<compile_context>
chip_gen: v7x
topology: tpu7x:2x2x1
jax: 0.10.0
libtpu: 0.0.40
codegen_flags: <defaults>
</compile_context>

<pallas_src>
import functools

import numpy as np
import jax
import jax.numpy as jnp
from jax.experimental import pallas as pl
from jax.experimental.pallas import tpu as pltpu

# ----------------------- small synthetic model config -----------------------
FEAT_DIM = 16          # mel bins (must be divisible by 8 for the FCM head)
FCM_HIDDEN = 8         # FCM hidden channels
TDNN_CH = 32           # in_ch of the first TDNN
GROWTH = 8             # dense-block growth rate
BN_SIZE = 2            # hidden = BN_SIZE * GROWTH
EMB = 16               # embedding size
BLOCK_CFG = ((2, 3, 1), (2, 3, 2), (2, 3, 2))   # (num_layers, kernel, dilation) per block
SEG_LEN = 100
BN_EPS = 1e-5


def _round_up(v, m):
    return -(-v // m) * m


def _pick_bn(n):
    """Lane-tile width: as big as useful (<=2048) but keeping >=2 tiles so v7x can use both TCs."""
    np128 = _round_up(max(n, 1), 128)
    if np128 <= 128:
        return 128
    half = _round_up(np128 // 2, 128)
    return int(min(2048, half))


# ------------------------------ Pallas kernels ------------------------------
def _fused_mm_kernel(*refs, has_pre, has_shift, act, extra_op):
    """y = act((W @ preReLU(X)) + shift) fused with gate-mul / residual add+relu.

    BN scales are folded into W at trace time; `pre` (packed (K,2)) only remains when the
    preceding block is BatchNorm -> ReLU (can't be folded through the ReLU)."""
    it = iter(refs)
    w_ref = next(it)
    x_ref = next(it)
    pre_ref = next(it) if has_pre else None
    sh_ref = next(it) if has_shift else None
    e_ref = next(it) if extra_op != "none" else None
    o_ref = next(it)

    if has_pre:
        x = x_ref[...].astype(jnp.float32)
        x = x * pre_ref[:, 0:1] + pre_ref[:, 1:2]
        x = jnp.maximum(x, 0.0)
        x = x.astype(jnp.bfloat16)
    else:
        x = x_ref[...]

    y = jnp.dot(w_ref[...], x, preferred_element_type=jnp.float32)

    if has_shift:
        y = y + sh_ref[...]
    if act == "relu":
        y = jnp.maximum(y, 0.0)
    elif act == "sigmoid":
        y = jax.nn.sigmoid(y)
    if extra_op == "mul":            # CAM gating
        y = y * e_ref[...].astype(jnp.float32)
    elif extra_op == "add_relu":     # residual shortcut
        y = jnp.maximum(y + e_ref[...].astype(jnp.float32), 0.0)
    o_ref[...] = y.astype(o_ref.dtype)


def fused_matmul(w, x, *, pre=None, pre_act=False, out_affine=None, act="none",
                 extra=None, extra_op="none", out_dtype=jnp.bfloat16):
    """W:(Cout,Kr), X:(Kr,N) -> (Cout,N), tiled over lane-dense N (padded to a bn multiple)."""
    w = w.astype(jnp.float32)
    cout, kr = w.shape
    n = x.shape[1]

    shift = None
    if out_affine is not None:                       # fold BN scale into W rows
        osc, osh = out_affine
        w = w * osc.reshape(cout, 1)
        shift = osh.reshape(cout, 1).astype(jnp.float32)
    if pre is not None and not pre_act:              # no ReLU in between: fold pre fully into W
        psc, psh = pre
        bias = w @ psh.reshape(kr, 1)
        w = w * psc.reshape(1, kr)
        shift = bias if shift is None else shift + bias
        pre = None

    bn = _pick_bn(n)
    n_pad = _round_up(n, bn)
    xp = jnp.pad(x.astype(jnp.bfloat16), ((0, 0), (0, n_pad - n)))

    operands = [w.astype(jnp.bfloat16), xp]
    in_specs = [pl.BlockSpec((cout, kr), lambda i: (0, 0)),
                pl.BlockSpec((kr, bn), lambda i: (0, i))]
    if pre is not None:
        psc, psh = pre
        pre_pack = jnp.stack([psc.astype(jnp.float32), psh.astype(jnp.float32)], axis=1)
        operands.append(pre_pack)
        in_specs.append(pl.BlockSpec((kr, 2), lambda i: (0, 0)))
    if shift is not None:
        operands.append(shift)
        in_specs.append(pl.BlockSpec((cout, 1), lambda i: (0, 0)))
    if extra is not None:
        ep = jnp.pad(extra.astype(jnp.bfloat16), ((0, 0), (0, n_pad - n)))
        operands.append(ep)
        in_specs.append(pl.BlockSpec((cout, bn), lambda i: (0, i)))
    else:
        extra_op = "none"

    kern = functools.partial(_fused_mm_kernel, has_pre=pre is not None,
                             has_shift=shift is not None, act=act, extra_op=extra_op)
    y = pl.pallas_call(
        kern,
        out_shape=jax.ShapeDtypeStruct((cout, n_pad), out_dtype),
        grid=(n_pad // bn,),
        in_specs=in_specs,
        out_specs=pl.BlockSpec((cout, bn), lambda i: (0, i)),
        compiler_params=pltpu.CompilerParams(dimension_semantics=("parallel",)),
    )(*operands)
    return y[:, :n]


def _conv1d_kshift_kernel(*refs, k, dilation, b, t_in, t_out, has_shift, act):
    """1-D conv (stride 1) by K-shifted accumulation on a halo-padded slab (no im2col)."""
    it = iter(refs)
    w_ref = next(it)                      # (K, Cout, Cin) bf16, out-BN scale pre-folded
    x_ref = next(it)                      # (Cin, B*T_in)  bf16, per-batch halo padded
    sh_ref = next(it) if has_shift else None
    o_ref = next(it)                      # (Cout, B*T_out)
    x = x_ref[...]
    for bi in range(b):
        base = bi * t_in
        acc = None
        for j in range(k):
            xs = x[:, base + j * dilation: base + j * dilation + t_out]
            yj = jnp.dot(w_ref[j], xs, preferred_element_type=jnp.float32)
            acc = yj if acc is None else acc + yj
        y = acc
        if has_shift:
            y = y + sh_ref[...]
        if act == "relu":
            y = jnp.maximum(y, 0.0)
        o_ref[:, bi * t_out:(bi + 1) * t_out] = y.astype(o_ref.dtype)


def conv1d_cm(x, w, *, padding=0, dilation=1, pre=None, pre_act=False,
              out_affine=None, act="none", out_dtype=jnp.bfloat16):
    """x: (Cin, B, T) channel-major -> (Cout, B, T_out).  K=1 uses the tiled fused matmul,
    K>1 uses one halo pad + in-kernel K-shifted accumulation."""
    cout, cin, k = w.shape
    c, b, t = x.shape
    if k == 1 and padding == 0:
        y = fused_matmul(w.reshape(cout, cin), x.reshape(c, b * t), pre=pre, pre_act=pre_act,
                         out_affine=out_affine, act=act, out_dtype=out_dtype)
        return y.reshape(cout, b, t)

    assert pre is None  # pre-activation is never needed on the K>1 convs of this model
    t_in = t + 2 * padding
    t_out = t_in - dilation * (k - 1)
    xp = jnp.pad(x.astype(jnp.bfloat16), ((0, 0), (0, 0), (padding, padding)))
    xp = xp.reshape(c, b * t_in)

    wf = w.astype(jnp.float32)
    shift = None
    if out_affine is not None:
        osc, osh = out_affine
        wf = wf * osc.reshape(cout, 1, 1)
        shift = osh.reshape(cout, 1).astype(jnp.float32)
    wt = jnp.transpose(wf, (2, 0, 1)).astype(jnp.bfloat16)     # (K, Cout, Cin)

    operands = [wt, xp]
    in_specs = [pl.BlockSpec((k, cout, cin), lambda i: (0, 0, 0)),
                pl.BlockSpec((c, b * t_in), lambda i: (0, 0))]
    if shift is not None:
        operands.append(shift)
        in_specs.append(pl.BlockSpec((cout, 1), lambda i: (0, 0)))

    kern = functools.partial(_conv1d_kshift_kernel, k=k, dilation=dilation, b=b,
                             t_in=t_in, t_out=t_out, has_shift=shift is not None, act=act)
    y = pl.pallas_call(
        kern,
        out_shape=jax.ShapeDtypeStruct((cout, b * t_out), out_dtype),
        grid=(1,),
        in_specs=in_specs,
        out_specs=pl.BlockSpec((cout, b * t_out), lambda i: (0, 0)),
    )(*operands)
    return y.reshape(cout, b, t_out)


def _cam_local_kernel(w_ref, x_ref, ctx_ref, w1_ref, b1_ref, w2_ref, b2_ref, o_ref,
                      *, k, dilation, b, s, t_in, t_out, seg_len):
    """CAM local conv: K-shifted conv fused with the CAM gate (both 1x1 projections + sigmoid
    computed in-kernel on the compact per-segment context, expanded per segment in-kernel)."""
    # gate prologue on the compact context (hidden, B*S)
    h = jnp.dot(w1_ref[...], ctx_ref[...], preferred_element_type=jnp.float32) + b1_ref[...]
    h = jnp.maximum(h, 0.0)
    m = jax.nn.sigmoid(jnp.dot(w2_ref[...], h, preferred_element_type=jnp.float32) + b2_ref[...])

    x = x_ref[...]
    cout = o_ref.shape[0]
    for bi in range(b):
        base = bi * t_in
        acc = None
        for j in range(k):
            xs = x[:, base + j * dilation: base + j * dilation + t_out]
            yj = jnp.dot(w_ref[j], xs, preferred_element_type=jnp.float32)
            acc = yj if acc is None else acc + yj
        # expand the per-segment gate to t_out columns (piecewise constant over seg_len)
        parts = []
        for si in range(s):
            width = min(seg_len, t_out - si * seg_len)
            col = m[:, bi * s + si: bi * s + si + 1]
            parts.append(jnp.broadcast_to(col, (cout, width)))
        gate = parts[0] if s == 1 else jnp.concatenate(parts, axis=1)
        o_ref[:, bi * t_out:(bi + 1) * t_out] = (acc * gate).astype(o_ref.dtype)


def cam_local_conv(h2, ctx, cam_p, k, dilation, seg_len=SEG_LEN):
    """h2: (hidden, B, T), ctx: (hidden, B, S) compact CAM context -> (growth, B, T)."""
    cout, cin, _ = cam_p["local_w"].shape
    c, b, t = h2.shape
    s = ctx.shape[-1]
    pad = (k - 1) // 2 * dilation
    t_in = t + 2 * pad
    t_out = t_in - dilation * (k - 1)

    xp = jnp.pad(h2.astype(jnp.bfloat16), ((0, 0), (0, 0), (pad, pad))).reshape(c, b * t_in)
    wt = jnp.transpose(cam_p["local_w"].astype(jnp.float32), (2, 0, 1)).astype(jnp.bfloat16)
    r = cam_p["l1_w"].shape[0]

    kern = functools.partial(_cam_local_kernel, k=k, dilation=dilation, b=b, s=s,
                             t_in=t_in, t_out=t_out, seg_len=seg_len)
    y = pl.pallas_call(
        kern,
        out_shape=jax.ShapeDtypeStruct((cout, b * t_out), jnp.bfloat16),
        grid=(1,),
        in_specs=[pl.BlockSpec((k, cout, cin), lambda i: (0, 0, 0)),
                  pl.BlockSpec((c, b * t_in), lambda i: (0, 0)),
                  pl.BlockSpec((cin, b * s), lambda i: (0, 0)),
                  pl.BlockSpec((r, cin), lambda i: (0, 0)),
                  pl.BlockSpec((r, 1), lambda i: (0, 0)),
                  pl.BlockSpec((cout, r), lambda i: (0, 0)),
                  pl.BlockSpec((cout, 1), lambda i: (0, 0))],
        out_specs=pl.BlockSpec((cout, b * t_out), lambda i: (0, 0)),
    )(wt, xp, ctx.reshape(cin, b * s).astype(jnp.float32),
      cam_p["l1_w"][:, :, 0], cam_p["l1_b"].reshape(r, 1),
      cam_p["l2_w"][:, :, 0], cam_p["l2_b"].reshape(cout, 1))
    return y.reshape(cout, b, t_out)


def _stats_kernel(x_ref, sc_ref, sh_ref, mean_ref, std_ref, s1, s2,
                  *, t_valid, bt, inv_n, inv_nm1):
    """out_nonlinear (BN -> ReLU) fused with StatsPool, tiled over T with running sums."""
    i = pl.program_id(0)

    @pl.when(i == 0)
    def _():
        s1[...] = jnp.zeros_like(s1)
        s2[...] = jnp.zeros_like(s2)

    x = x_ref[...].astype(jnp.float32) * sc_ref[...] + sh_ref[...]
    x = jnp.maximum(x, 0.0)
    col = i * bt + jax.lax.broadcasted_iota(jnp.int32, x.shape, 1)
    x = jnp.where(col < t_valid, x, 0.0)
    s1[...] += jnp.sum(x, axis=-1, keepdims=True)
    s2[...] += jnp.sum(x * x, axis=-1, keepdims=True)

    @pl.when(i == pl.num_programs(0) - 1)
    def _():
        mean = s1[...] * inv_n
        var = jnp.maximum(s2[...] - mean * s1[...], 0.0) * inv_nm1   # unbiased
        mean_ref[...] = mean
        std_ref[...] = jnp.sqrt(var)


def stats_pool_bnrelu(x, scale, shift):
    # x: (C, B, T) -> (B, 2C)
    c, b, t = x.shape
    rows = c * b
    xm = x.reshape(rows, t)
    bt = int(min(512, _round_up(t, 128)))
    t_pad = _round_up(t, bt)
    xm = jnp.pad(xm, ((0, 0), (0, t_pad - t)))
    sc = jnp.repeat(scale, b).reshape(rows, 1)
    sh = jnp.repeat(shift, b).reshape(rows, 1)
    denom = max(t - 1, 1)
    kern = functools.partial(_stats_kernel, t_valid=t, bt=bt,
                             inv_n=1.0 / float(t), inv_nm1=1.0 / float(denom))
    mean, std = pl.pallas_call(
        kern,
        out_shape=(jax.ShapeDtypeStruct((rows, 1), jnp.float32),
                   jax.ShapeDtypeStruct((rows, 1), jnp.float32)),
        grid=(t_pad // bt,),
        in_specs=[pl.BlockSpec((rows, bt), lambda i: (0, i)),
                  pl.BlockSpec((rows, 1), lambda i: (0, 0)),
                  pl.BlockSpec((rows, 1), lambda i: (0, 0))],
        out_specs=(pl.BlockSpec((rows, 1), lambda i: (0, 0)),
                   pl.BlockSpec((rows, 1), lambda i: (0, 0))),
        scratch_shapes=[pltpu.VMEM((rows, 1), jnp.float32),
                        pltpu.VMEM((rows, 1), jnp.float32)],
        compiler_params=pltpu.CompilerParams(dimension_semantics=("arbitrary",)),
    )(xm, sc, sh)
    return jnp.concatenate([mean.reshape(c, b).T, std.reshape(c, b).T], axis=-1)


# --------------------- 2-D conv wrapper (channel-major glue) ------------------
def _im2col2d(x, kh, kw, sh, sw, ph, pw):
    # x: (C, B, H, W) -> (C*KH*KW, B*Ho*Wo)   [row = ci*(KH*KW) + i*KW + j]   (bf16 glue)
    c, b, h, w = x.shape
    xp = jnp.pad(x.astype(jnp.bfloat16), ((0, 0), (0, 0), (ph, ph), (pw, pw)))
    ho = (h + 2 * ph - kh) // sh + 1
    wo = (w + 2 * pw - kw) // sw + 1
    cols = []
    for i in range(kh):
        for j in range(kw):
            cols.append(xp[:, :, i:i + (ho - 1) * sh + 1:sh, j:j + (wo - 1) * sw + 1:sw])
    xcol = jnp.stack(cols, axis=1)                       # (C, KH*KW, B, Ho, Wo)
    return xcol.reshape(c * kh * kw, b * ho * wo), ho, wo


def conv2d_cm(x, w, *, stride, padding, out_affine=None, act="none",
              extra=None, extra_op="none"):
    cout, cin, kh, kw = w.shape
    sh_, sw_ = stride
    ph, pw = padding
    xcol, ho, wo = _im2col2d(x, kh, kw, sh_, sw_, ph, pw)
    b = x.shape[1]
    e2 = None if extra is None else extra.reshape(cout, -1)
    y = fused_matmul(w.reshape(cout, cin * kh * kw), xcol, out_affine=out_affine, act=act,
                     extra=e2, extra_op=extra_op)
    return y.reshape(cout, b, ho, wo)


# ------------------------------- model pieces -------------------------------
def seg_context(x, seg_len=SEG_LEN):
    # CAM context on COMPACT segments: mean(x, T) + avg_pool1d(ceil_mode=True) per segment.
    c, b, t = x.shape
    xf = x.astype(jnp.float32)
    s = -(-t // seg_len)
    pad = s * seg_len - t
    xp = jnp.pad(xf, ((0, 0), (0, 0), (0, pad)))
    counts = jnp.minimum(seg_len, t - jnp.arange(s) * seg_len).astype(jnp.float32)
    seg = xp.reshape(c, b, s, seg_len).sum(-1) / counts   # (C, B, S)
    mean = jnp.mean(xf, axis=-1, keepdims=True)            # (C, B, 1)
    return mean + seg


def dense_layer(x, p, k, dilation):
    # kernel 1: h2 = ReLU(BN2(Conv1x1(ReLU(BN1(x)))))   (pre-act + epilogue fused)
    h2 = conv1d_cm(x, p["conv1_w"], pre=p["bn1"], pre_act=True,
                   out_affine=p["bn2"], act="relu")
    ctx = seg_context(h2)                                   # tiny XLA reduction (C, B, S)
    # kernel 2: local conv with the CAM gate (projections + sigmoid + expansion) fused in
    return cam_local_conv(h2, ctx, p["cam"], k, dilation)


def basic_res_block(x, p, stride):
    out = conv2d_cm(x, p["w1"], stride=(stride, 1), padding=(1, 1),
                    out_affine=p["bn1"], act="relu")
    if "ws" in p:
        sc = conv2d_cm(x, p["ws"], stride=(stride, 1), padding=(0, 0), out_affine=p["bns"])
    else:
        sc = x
    # conv2 + BN2 + residual add + ReLU in a single kernel
    return conv2d_cm(out, p["w2"], stride=(1, 1), padding=(1, 1),
                     out_affine=p["bn2"], extra=sc, extra_op="add_relu")


def fcm_forward(x, p):
    # x: (B, F, T) -> channel-major (1, B, F, T); 2-D convs stride only the frequency axis
    x = x[None]
    x = conv2d_cm(x, p["in_w"], stride=(1, 1), padding=(1, 1),
                  out_affine=p["in_bn"], act="relu")
    for layer in ("layer1", "layer2"):
        for bp, stride in zip(p[layer], (2, 1)):
            x = basic_res_block(x, bp, stride)
    x = conv2d_cm(x, p["out_w"], stride=(2, 1), padding=(1, 1),
                  out_affine=p["out_bn"], act="relu")
    c, b, f, t = x.shape
    # torch: (B, C, F, T) -> (B, C*F, T); channel-major equivalent: (C*F, B, T)
    return jnp.transpose(x, (0, 2, 1, 3)).reshape(c * f, b, t)


@jax.jit
def model_forward(feats, params):
    # feats: (B, T, FEAT_DIM) fbank features (Kaldi.fbank skipped, see TODO at top)
    x = feats - jnp.mean(feats, axis=1, keepdims=True)              # per-utt CMN
    x = jnp.transpose(x, (0, 2, 1))                                 # (B, F, T)
    x = fcm_forward(x, params["fcm"])                               # head -> (C_head, B, T)

    x = conv1d_cm(x, params["tdnn_w"], padding=2,
                  out_affine=params["tdnn_bn"], act="relu")         # tdnn (cna), K=5 in-kernel

    for bi, (num_layers, k, d) in enumerate(BLOCK_CFG):
        for lp in params["block%d" % (bi + 1)]:                     # CAMDenseTDNNBlock
            x = jnp.concatenate([x, dense_layer(x, lp, k, d)], axis=0)
        tp = params["transit%d" % (bi + 1)]                         # transit (nac): BN+ReLU
        x = conv1d_cm(x, tp["w"], pre=tp["bn"], pre_act=True)       # fused into the conv pre-act

    stats = stats_pool_bnrelu(x, *params["out_bn"])                 # out_nonlinear + StatsPool
    emb = fused_matmul(params["dense_w"], stats.T,
                       out_affine=params["dense_bn"],
                       out_dtype=jnp.float32).T                     # dense (cn) -> (B, EMB)

    preds = jnp.zeros((emb.shape[0],), jnp.int32)                   # ClusterBackend, N < 20 path
    return {"hidden": emb, "preds": preds}


# --------------------------- deterministic params ----------------------------
class _KeyGen:
    def __init__(self, key):
        self.key = key

    def __call__(self):
        self.key, sub = jax.random.split(self.key)
        return sub


def _he(key, shape):
    fan_in = int(np.prod(shape[1:]))
    return jax.random.normal(key, shape, jnp.float32) * np.sqrt(2.0 / fan_in)


def _bn(key, c):
    kg, kb = jax.random.split(key)
    gamma = 1.0 + 0.1 * jax.random.normal(kg, (c,), jnp.float32)
    beta = 0.1 * jax.random.normal(kb, (c,), jnp.float32)
    # eval-mode BN with running_mean=0, running_var=1 (fold real running stats for checkpoints)
    scale = gamma / jnp.sqrt(1.0 + BN_EPS)
    shift = beta
    return scale, shift


def init_params(key):
    kg = _KeyGen(key)
    p = {}

    # FCM head
    H = FCM_HIDDEN
    fcm = {"in_w": _he(kg(), (H, 1, 3, 3)), "in_bn": _bn(kg(), H)}

    def resblock(stride):
        bp = {"w1": _he(kg(), (H, H, 3, 3)), "bn1": _bn(kg(), H),
              "w2": _he(kg(), (H, H, 3, 3)), "bn2": _bn(kg(), H)}
        if stride != 1:
            bp["ws"] = _he(kg(), (H, H, 1, 1))
            bp["bns"] = _bn(kg(), H)
        return bp

    fcm["layer1"] = [resblock(2), resblock(1)]
    fcm["layer2"] = [resblock(2), resblock(1)]
    fcm["out_w"] = _he(kg(), (H, H, 3, 3))
    fcm["out_bn"] = _bn(kg(), H)
    p["fcm"] = fcm

    fcm_out = H * (FEAT_DIM // 8)
    p["tdnn_w"] = _he(kg(), (TDNN_CH, fcm_out, 5))
    p["tdnn_bn"] = _bn(kg(), TDNN_CH)

    ch = TDNN_CH
    hidden = BN_SIZE * GROWTH
    for bi, (num_layers, k, d) in enumerate(BLOCK_CFG):
        layers = []
        for li in range(num_layers):
            in_ch = ch + li * GROWTH
            layers.append({
                "bn1": _bn(kg(), in_ch),
                "conv1_w": _he(kg(), (hidden, in_ch, 1)),
                "bn2": _bn(kg(), hidden),
                "cam": {
                    "local_w": _he(kg(), (GROWTH, hidden, k)),
                    "l1_w": _he(kg(), (hidden // 2, hidden, 1)),
                    "l1_b": 0.1 * jax.random.normal(kg(), (hidden // 2,), jnp.float32),
                    "l2_w": _he(kg(), (GROWTH, hidden // 2, 1)),
                    "l2_b": 0.1 * jax.random.normal(kg(), (GROWTH,), jnp.float32),
                },
            })
        p["block%d" % (bi + 1)] = layers
        ch = ch + num_layers * GROWTH
        p["transit%d" % (bi + 1)] = {"bn": _bn(kg(), ch), "w": _he(kg(), (ch // 2, ch, 1))}
        ch //= 2

    p["out_bn"] = _bn(kg(), ch)
    p["dense_w"] = _he(kg(), (EMB, 2 * ch))
    # BatchNorm1d(EMB, affine=False), eval mode
    p["dense_bn"] = (jnp.full((EMB,), 1.0 / np.sqrt(1.0 + BN_EPS), jnp.float32),
                     jnp.zeros((EMB,), jnp.float32))
    return p


# ------------------------------------ main -----------------------------------
if __name__ == "__main__":
    key = jax.random.PRNGKey(0)
    pkey, xkey = jax.random.split(key)
    params = init_params(pkey)

    B, T = 2, 16
    feats = jax.random.normal(xkey, (B, T, FEAT_DIM), jnp.float32)

    out = model_forward(feats, params)
    emb = jax.block_until_ready(out["hidden"])
    preds = jax.block_until_ready(out["preds"])

    assert emb.shape == (B, EMB), emb.shape
    assert preds.shape == (B,), preds.shape
    assert bool(jnp.all(jnp.isfinite(emb)))
    print("KERNEL_OK")
</pallas_src>

<mosaic_0001>
module attributes {stable_mosaic.version = 11 : i64} {
  func.func @_fused_mm_kernel(%arg0: i32, %arg1: memref<8x9xbf16, #tpu.memory_space<vmem>>, %arg2: memref<9x256xbf16, #tpu.memory_space<vmem>>, %arg3: memref<8x1xf32, #tpu.memory_space<vmem>>, %arg4: memref<8x256xbf16, #tpu.memory_space<vmem>>) attributes {dimension_semantics = [#tpu.dimension_semantics<parallel>], iteration_bounds = array<i64: 2>, scalar_prefetch = 0 : i64, scratch_operands = 0 : i64, tpu.core_type = #tpu.core_type<tc>, window_params = [{pipeline_mode = #tpu.pipeline_mode<synchronous>, transform_indices = @transform_0, window_bounds = array<i64: 8, 9>}, {transform_indices = @transform_1, window_bounds = array<i64: 9, 256>}, {pipeline_mode = #tpu.pipeline_mode<synchronous>, transform_indices = @transform_2, window_bounds = array<i64: 8, 1>}, {transform_indices = @transform_3, window_bounds = array<i64: 8, 256>}]} {
    %c0 = arith.constant 0 : index
    %c0_0 = arith.constant 0 : index
    %0 = vector.load %arg2[%c0, %c0_0] : memref<9x256xbf16, #tpu.memory_space<vmem>>, vector<9x256xbf16>
    %c0_1 = arith.constant 0 : index
    %c0_2 = arith.constant 0 : index
    %1 = vector.load %arg1[%c0_1, %c0_2] : memref<8x9xbf16, #tpu.memory_space<vmem>>, vector<8x9xbf16>
    %cst = arith.constant dense<0.000000e+00> : vector<8x256xf32>
    %2 = tpu.matmul %1, %0, %cst {dimension_numbers = #tpu.dot_dimension_numbers<[1], [0], [0], [1], [0, 0, 1, 1], [], []>} : vector<8x9xbf16>, vector<9x256xbf16>, vector<8x256xf32> -> vector<8x256xf32>
    %c0_3 = arith.constant 0 : index
    %c0_4 = arith.constant 0 : index
    %3 = vector.load %arg3[%c0_3, %c0_4] : memref<8x1xf32, #tpu.memory_space<vmem>>, vector<8x1xf32>
    %4 = vector.broadcast %3 : vector<8x1xf32> to vector<8x256xf32>
    %5 = arith.addf %2, %4 : vector<8x256xf32>
    %cst_5 = arith.constant 0.000000e+00 : f32
    %6 = vector.broadcast %cst_5 : f32 to vector<8x256xf32>
    %7 = arith.maximumf %5, %6 : vector<8x256xf32>
    %8 = arith.truncf %7 : vector<8x256xf32> to vector<8x256xbf16>
    %c0_6 = arith.constant 0 : index
    %c0_7 = arith.constant 0 : index
    %9 = vector.load %arg4[%c0_6, %c0_7] : memref<8x256xbf16, #tpu.memory_space<vmem>>, vector<8x256xbf16>
    tpu.vector_store %arg4[%c0_6, %c0_7], %8 {strides = array<i32>} : memref<8x256xbf16, #tpu.memory_space<vmem>>, vector<8x256xbf16>,
    return
  }
  func.func @transform_0(%arg0: i32) -> (i32, i32) {
    %c0_i32 = arith.constant 0 : i32
    %c0_i32_0 = arith.constant 0 : i32
    %c0_i32_1 = arith.constant 0 : i32
    return %c0_i32, %c0_i32_0 : i32, i32
  }
  func.func @transform_1(%arg0: i32) -> (i32, i32) {
    %c0_i32 = arith.constant 0 : i32
    %c0_i32_0 = arith.constant 0 : i32
    return %c0_i32, %arg0 : i32, i32
  }
  func.func @transform_2(%arg0: i32) -> (i32, i32) {
    %c0_i32 = arith.constant 0 : i32
    %c0_i32_0 = arith.constant 0 : i32
    %c0_i32_1 = arith.constant 0 : i32
    return %c0_i32, %c0_i32_0 : i32, i32
  }
  func.func @transform_3(%arg0: i32) -> (i32, i32) {
    %c0_i32 = arith.constant 0 : i32
    %c0_i32_0 = arith.constant 0 : i32
    return %c0_i32, %arg0 : i32, i32
  }
}

module attributes {stable_mosaic.version = 11 : i64} {
  func.func @_fused_mm_kernel(%arg0: i32, %arg1: memref<8x72xbf16, #tpu.memory_space<vmem>>, %arg2: memref<72x128xbf16, #tpu.memory_space<vmem>>, %arg3: memref<8x1xf32, #tpu.memory_space<vmem>>, %arg4: memref<8x128xbf16, #tpu.memory_space<vmem>>) attributes {dimension_semantics = [#tpu.dimension_semantics<parallel>], iteration_bounds = array<i64: 2>, scalar_prefetch = 0 : i64, scratch_operands = 0 : i64, tpu.core_type = #tpu.core_type<tc>, window_params = [{pipeline_mode = #tpu.pipeline_mode<synchronous>, transform_indices = @transform_0, window_bounds = array<i64: 8, 72>}, {transform_indices = @transform_1, window_bounds = array<i64: 72, 128>}, {pipeline_mode = #tpu.pipeline_mode<synchronous>, transform_indices = @transform_2, window_bounds = array<i64: 8, 1>}, {transform_indices = @transform_3, window_bounds = array<i64: 8, 128>}]} {
    %c0 = arith.constant 0 : index
    %c0_0 = arith.constant 0 : index
    %0 = vector.load %arg2[%c0, %c0_0] : memref<72x128xbf16, #tpu.memory_space<vmem>>, vector<72x128xbf16>
    %c0_1 = arith.constant 0 : index
    %c0_2 = arith.constant 0 : index
    %1 = vector.load %arg1[%c0_1, %c0_2] : memref<8x72xbf16, #tpu.memory_space<vmem>>, vector<8x72xbf16>
    %cst = arith.constant dense<0.000000e+00> : vector<8x128xf32>
    %2 = tpu.matmul %1, %0, %cst {dimension_numbers = #tpu.dot_dimension_numbers<[1], [0], [0], [1], [0, 0, 1, 1], [], []>} : vector<8x72xbf16>, vector<72x128xbf16>, vector<8x128xf32> -> vector<8x128xf32>
    %c0_3 = arith.constant 0 : index
    %c0_4 = arith.constant 0 : index
    %3 = vector.load %arg3[%c0_3, %c0_4] : memref<8x1xf32, #tpu.memory_space<vmem>>, vector<8x1xf32>
    %4 = vector.broadcast %3 : vector<8x1xf32> to vector<8x128xf32>
    %5 = arith.addf %2, %4 : vector<8x128xf32>
    %cst_5 = arith.constant 0.000000e+00 : f32
    %6 = vector.broadcast %cst_5 : f32 to vector<8x128xf32>
    %7 = arith.maximumf %5, %6 : vector<8x128xf32>
    %8 = arith.truncf %7 : vector<8x128xf32> to vector<8x128xbf16>
    %c0_6 = arith.constant 0 : index
    %c0_7 = arith.constant 0 : index
    %9 = vector.load %arg4[%c0_6, %c0_7] : memref<8x128xbf16, #tpu.memory_space<vmem>>, vector<8x128xbf16>
    tpu.vector_store %arg4[%c0_6, %c0_7], %8 {strides = array<i32>} : memref<8x128xbf16, #tpu.memory_space<vmem>>, vector<8x128xbf16>,
    return
  }
  func.func @transform_0(%arg0: i32) -> (i32, i32) {
    %c0_i32 = arith.constant 0 : i32
    %c0_i32_0 = arith.constant 0 : i32
    %c0_i32_1 = arith.constant 0 : i32
    return %c0_i32, %c0_i32_0 : i32, i32
  }
  func.func @transform_1(%arg0: i32) -> (i32, i32) {
    %c0_i32 = arith.constant 0 : i32
    %c0_i32_0 = arith.constant 0 : i32
    return %c0_i32, %arg0 : i32, i32
  }
  func.func @transform_2(%arg0: i32) -> (i32, i32) {
    %c0_i32 = arith.constant 0 : i32
    %c0_i32_0 = arith.constant 0 : i32
    %c0_i32_1 = arith.constant 0 : i32
    return %c0_i32, %c0_i32_0 : i32, i32
  }
  func.func @transform_3(%arg0: i32) -> (i32, i32) {
    %c0_i32 = arith.constant 0 : i32
    %c0_i32_0 = arith.constant 0 : i32
    return %c0_i32, %arg0 : i32, i32
  }
}

module attributes {stable_mosaic.version = 11 : i64} {
  func.func @_fused_mm_kernel(%arg0: i32, %arg1: memref<8x72xbf16, #tpu.memory_space<vmem>>, %arg2: memref<72x128xbf16, #tpu.memory_space<vmem>>, %arg3: memref<8x1xf32, #tpu.memory_space<vmem>>, %arg4: memref<8x128xbf16, #tpu.memory_space<vmem>>, %arg5: memref<8x128xbf16, #tpu.memory_space<vmem>>) attributes {dimension_semantics = [#tpu.dimension_semantics<parallel>], iteration_bounds = array<i64: 2>, scalar_prefetch = 0 : i64, scratch_operands = 0 : i64, tpu.core_type = #tpu.core_type<tc>, window_params = [{pipeline_mode = #tpu.pipeline_mode<synchronous>, transform_indices = @transform_0, window_bounds = array<i64: 8, 72>}, {transform_indices = @transform_1, window_bounds = array<i64: 72, 128>}, {pipeline_mode = #tpu.pipeline_mode<synchronous>, transform_indices = @transform_2, window_bounds = array<i64: 8, 1>}, {transform_indices = @transform_3, window_bounds = array<i64: 8, 128>}, {transform_indices = @transform_4, window_bounds = array<i64: 8, 128>}]} {
    %c0 = arith.constant 0 : index
    %c0_0 = arith.constant 0 : index
    %0 = vector.load %arg2[%c0, %c0_0] : memref<72x128xbf16, #tpu.memory_space<vmem>>, vector<72x128xbf16>
    %c0_1 = arith.constant 0 : index
    %c0_2 = arith.constant 0 : index
    %1 = vector.load %arg1[%c0_1, %c0_2] : memref<8x72xbf16, #tpu.memory_space<vmem>>, vector<8x72xbf16>
    %cst = arith.constant dense<0.000000e+00> : vector<8x128xf32>
    %2 = tpu.matmul %1, %0, %cst {dimension_numbers = #tpu.dot_dimension_numbers<[1], [0], [0], [1], [0, 0, 1, 1], [], []>} : vector<8x72xbf16>, vector<72x128xbf16>, vector<8x128xf32> -> vector<8x128xf32>
    %c0_3 = arith.constant 0 : index
    %c0_4 = arith.constant 0 : index
    %3 = vector.load %arg3[%c0_3, %c0_4] : memref<8x1xf32, #tpu.memory_space<vmem>>, vector<8x1xf32>
    %4 = vector.broadcast %3 : vector<8x1xf32> to vector<8x128xf32>
    %5 = arith.addf %2, %4 : vector<8x128xf32>
    %c0_5 = arith.constant 0 : index
    %c0_6 = arith.constant 0 : index
    %6 = vector.load %arg4[%c0_5, %c0_6] : memref<8x128xbf16, #tpu.memory_space<vmem>>, vector<8x128xbf16>
    %7 = arith.extf %6 : vector<8x128xbf16> to vector<8x128xf32>
    %8 = arith.addf %5, %7 : vector<8x128xf32>
    %cst_7 = arith.constant 0.000000e+00 : f32
    %9 = vector.broadcast %cst_7 : f32 to vector<8x128xf32>
    %10 = arith.maximumf %8, %9 : vector<8x128xf32>
    %11 = arith.truncf %10 : vector<8x128xf32> to vector<8x128xbf16>
    %c0_8 = arith.constant 0 : index
    %c0_9 = arith.constant 0 : index
    %12 = vector.load %arg5[%c0_8, %c0_9] : memref<8x128xbf16, #tpu.memory_space<vmem>>, vector<8x128xbf16>
    tpu.vector_store %arg5[%c0_8, %c0_9], %11 {strides = array<i32>} : memref<8x128xbf16, #tpu.memory_space<vmem>>, vector<8x128xbf16>,
    return
  }
  func.func @transform_0(%arg0: i32) -> (i32, i32) {
    %c0_i32 = arith.constant 0 : i32
    %c0_i32_0 = arith.constant 0 : i32
    %c0_i32_1 = arith.constant 0 : i32
    return %c0_i32, %c0_i32_0 : i32, i32
  }
  func.func @transform_1(%arg0: i32) -> (i32, i32) {
    %c0_i32 = arith.constant 0 : i32
    %c0_i32_0 = arith.constant 0 : i32
    return %c0_i32, %arg0 : i32, i32
  }
  func.func @transform_2(%arg0: i32) -> (i32, i32) {
    %c0_i32 = arith.constant 0 : i32
    %c0_i32_0 = arith.constant 0 : i32
    %c0_i32_1 = arith.constant 0 : i32
    return %c0_i32, %c0_i32_0 : i32, i32
  }
  func.func @transform_3(%arg0: i32) -> (i32, i32) {
    %c0_i32 = arith.constant 0 : i32
    %c0_i32_0 = arith.constant 0 : i32
    return %c0_i32, %arg0 : i32, i32
  }
  func.func @transform_4(%arg0: i32) -> (i32, i32) {
    %c0_i32 = arith.constant 0 : i32
    %c0_i32_0 = arith.constant 0 : i32
    return %c0_i32, %arg0 : i32, i32
  }
}

module attributes {stable_mosaic.version = 11 : i64} {
  func.func @_fused_mm_kernel(%arg0: i32, %arg1: memref<8x8xbf16, #tpu.memory_space<vmem>>, %arg2: memref<8x128xbf16, #tpu.memory_space<vmem>>, %arg3: memref<8x1xf32, #tpu.memory_space<vmem>>, %arg4: memref<8x128xbf16, #tpu.memory_space<vmem>>) attributes {dimension_semantics = [#tpu.dimension_semantics<parallel>], iteration_bounds = array<i64: 2>, scalar_prefetch = 0 : i64, scratch_operands = 0 : i64, tpu.core_type = #tpu.core_type<tc>, window_params = [{pipeline_mode = #tpu.pipeline_mode<synchronous>, transform_indices = @transform_0, window_bounds = array<i64: 8, 8>}, {transform_indices = @transform_1, window_bounds = array<i64: 8, 128>}, {pipeline_mode = #tpu.pipeline_mode<synchronous>, transform_indices = @transform_2, window_bounds = array<i64: 8, 1>}, {transform_indices = @transform_3, window_bounds = array<i64: 8, 128>}]} {
    %c0 = arith.constant 0 : index
    %c0_0 = arith.constant 0 : index
    %0 = vector.load %arg2[%c0, %c0_0] : memref<8x128xbf16, #tpu.memory_space<vmem>>, vector<8x128xbf16>
    %c0_1 = arith.constant 0 : index
    %c0_2 = arith.constant 0 : index
    %1 = vector.load %arg1[%c0_1, %c0_2] : memref<8x8xbf16, #tpu.memory_space<vmem>>, vector<8x8xbf16>
    %cst = arith.constant dense<0.000000e+00> : vector<8x128xf32>
    %2 = tpu.matmul %1, %0, %cst {dimension_numbers = #tpu.dot_dimension_numbers<[1], [0], [0], [1], [0, 0, 1, 1], [], []>} : vector<8x8xbf16>, vector<8x128xbf16>, vector<8x128xf32> -> vector<8x128xf32>
    %c0_3 = arith.constant 0 : index
    %c0_4 = arith.constant 0 : index
    %3 = vector.load %arg3[%c0_3, %c0_4] : memref<8x1xf32, #tpu.memory_space<vmem>>, vector<8x1xf32>
    %4 = vector.broadcast %3 : vector<8x1xf32> to vector<8x128xf32>
    %5 = arith.addf %2, %4 : vector<8x128xf32>
    %6 = arith.truncf %5 : vector<8x128xf32> to vector<8x128xbf16>
    %c0_5 = arith.constant 0 : index
    %c0_6 = arith.constant 0 : index
    %7 = vector.load %arg4[%c0_5, %c0_6] : memref<8x128xbf16, #tpu.memory_space<vmem>>, vector<8x128xbf16>
    tpu.vector_store %arg4[%c0_5, %c0_6], %6 {strides = array<i32>} : memref<8x128xbf16, #tpu.memory_space<vmem>>, vector<8x128xbf16>,
    return
  }
  func.func @transform_0(%arg0: i32) -> (i32, i32) {
    %c0_i32 = arith.constant 0 : i32
    %c0_i32_0 = arith.constant 0 : i32
    %c0_i32_1 = arith.constant 0 : i32
    return %c0_i32, %c0_i32_0 : i32, i32
  }
  func.func @transform_1(%arg0: i32) -> (i32, i32) {
    %c0_i32 = arith.constant 0 : i32
    %c0_i32_0 = arith.constant 0 : i32
    return %c0_i32, %arg0 : i32, i32
  }
  func.func @transform_2(%arg0: i32) -> (i32, i32) {
    %c0_i32 = arith.constant 0 : i32
    %c0_i32_0 = arith.constant 0 : i32
    %c0_i32_1 = arith.constant 0 : i32
    return %c0_i32, %c0_i32_0 : i32, i32
  }
  func.func @transform_3(%arg0: i32) -> (i32, i32) {
    %c0_i32 = arith.constant 0 : i32
    %c0_i32_0 = arith.constant 0 : i32
    return %c0_i32, %arg0 : i32, i32
  }
}

module attributes {stable_mosaic.version = 11 : i64} {
  func.func @_fused_mm_kernel(%arg0: i32, %arg1: memref<8x72xbf16, #tpu.memory_space<vmem>>, %arg2: memref<72x128xbf16, #tpu.memory_space<vmem>>, %arg3: memref<8x1xf32, #tpu.memory_space<vmem>>, %arg4: memref<8x128xbf16, #tpu.memory_space<vmem>>) attributes {dimension_semantics = [#tpu.dimension_semantics<parallel>], iteration_bounds = array<i64: 1>, scalar_prefetch = 0 : i64, scratch_operands = 0 : i64, tpu.core_type = #tpu.core_type<tc>, window_params = [{pipeline_mode = #tpu.pipeline_mode<synchronous>, transform_indices = @transform_0, window_bounds = array<i64: 8, 72>}, {transform_indices = @transform_1, window_bounds = array<i64: 72, 128>}, {pipeline_mode = #tpu.pipeline_mode<synchronous>, transform_indices = @transform_2, window_bounds = array<i64: 8, 1>}, {transform_indices = @transform_3, window_bounds = array<i64: 8, 128>}]} {
    %c0 = arith.constant 0 : index
    %c0_0 = arith.constant 0 : index
    %0 = vector.load %arg2[%c0, %c0_0] : memref<72x128xbf16, #tpu.memory_space<vmem>>, vector<72x128xbf16>
    %c0_1 = arith.constant 0 : index
    %c0_2 = arith.constant 0 : index
    %1 = vector.load %arg1[%c0_1, %c0_2] : memref<8x72xbf16, #tpu.memory_space<vmem>>, vector<8x72xbf16>
    %cst = arith.constant dense<0.000000e+00> : vector<8x128xf32>
    %2 = tpu.matmul %1, %0, %cst {dimension_numbers = #tpu.dot_dimension_numbers<[1], [0], [0], [1], [0, 0, 1, 1], [], []>} : vector<8x72xbf16>, vector<72x128xbf16>, vector<8x128xf32> -> vector<8x128xf32>
    %c0_3 = arith.constant 0 : index
    %c0_4 = arith.constant 0 : index
    %3 = vector.load %arg3[%c0_3, %c0_4] : memref<8x1xf32, #tpu.memory_space<vmem>>, vector<8x1xf32>
    %4 = vector.broadcast %3 : vector<8x1xf32> to vector<8x128xf32>
    %5 = arith.addf %2, %4 : vector<8x128xf32>
    %cst_5 = arith.constant 0.000000e+00 : f32
    %6 = vector.broadcast %cst_5 : f32 to vector<8x128xf32>
    %7 = arith.maximumf %5, %6 : vector<8x128xf32>
    %8 = arith.truncf %7 : vector<8x128xf32> to vector<8x128xbf16>
    %c0_6 = arith.constant 0 : index
    %c0_7 = arith.constant 0 : index
    %9 = vector.load %arg4[%c0_6, %c0_7] : memref<8x128xbf16, #tpu.memory_space<vmem>>, vector<8x128xbf16>
    tpu.vector_store %arg4[%c0_6, %c0_7], %8 {strides = array<i32>} : memref<8x128xbf16, #tpu.memory_space<vmem>>, vector<8x128xbf16>,
    return
  }
  func.func @transform_0(%arg0: i32) -> (i32, i32) {
    %c0_i32 = arith.constant 0 : i32
    %c0_i32_0 = arith.constant 0 : i32
    %c0_i32_1 = arith.constant 0 : i32
    return %c0_i32, %c0_i32_0 : i32, i32
  }
  func.func @transform_1(%arg0: i32) -> (i32, i32) {
    %c0_i32 = arith.constant 0 : i32
    %c0_i32_0 = arith.constant 0 : i32
    return %c0_i32, %arg0 : i32, i32
  }
  func.func @transform_2(%arg0: i32) -> (i32, i32) {
    %c0_i32 = arith.constant 0 : i32
    %c0_i32_0 = arith.constant 0 : i32
    %c0_i32_1 = arith.constant 0 : i32
    return %c0_i32, %c0_i32_0 : i32, i32
  }
  func.func @transform_3(%arg0: i32) -> (i32, i32) {
    %c0_i32 = arith.constant 0 : i32
    %c0_i32_0 = arith.constant 0 : i32
    return %c0_i32, %arg0 : i32, i32
  }
}

module attributes {stable_mosaic.version = 11 : i64} {
  func.func @_fused_mm_kernel(%arg0: i32, %arg1: memref<8x72xbf16, #tpu.memory_space<vmem>>, %arg2: memref<72x128xbf16, #tpu.memory_space<vmem>>, %arg3: memref<8x1xf32, #tpu.memory_space<vmem>>, %arg4: memref<8x128xbf16, #tpu.memory_space<vmem>>, %arg5: memref<8x128xbf16, #tpu.memory_space<vmem>>) attributes {dimension_semantics = [#tpu.dimension_semantics<parallel>], iteration_bounds = array<i64: 1>, scalar_prefetch = 0 : i64, scratch_operands = 0 : i64, tpu.core_type = #tpu.core_type<tc>, window_params = [{pipeline_mode = #tpu.pipeline_mode<synchronous>, transform_indices = @transform_0, window_bounds = array<i64: 8, 72>}, {transform_indices = @transform_1, window_bounds = array<i64: 72, 128>}, {pipeline_mode = #tpu.pipeline_mode<synchronous>, transform_indices = @transform_2, window_bounds = array<i64: 8, 1>}, {transform_indices = @transform_3, window_bounds = array<i64: 8, 128>}, {transform_indices = @transform_4, window_bounds = array<i64: 8, 128>}]} {
    %c0 = arith.constant 0 : index
    %c0_0 = arith.constant 0 : index
    %0 = vector.load %arg2[%c0, %c0_0] : memref<72x128xbf16, #tpu.memory_space<vmem>>, vector<72x128xbf16>
    %c0_1 = arith.constant 0 : index
    %c0_2 = arith.constant 0 : index
    %1 = vector.load %arg1[%c0_1, %c0_2] : memref<8x72xbf16, #tpu.memory_space<vmem>>, vector<8x72xbf16>
    %cst = arith.constant dense<0.000000e+00> : vector<8x128xf32>
    %2 = tpu.matmul %1, %0, %cst {dimension_numbers = #tpu.dot_dimension_numbers<[1], [0], [0], [1], [0, 0, 1, 1], [], []>} : vector<8x72xbf16>, vector<72x128xbf16>, vector<8x128xf32> -> vector<8x128xf32>
    %c0_3 = arith.constant 0 : index
    %c0_4 = arith.constant 0 : index
    %3 = vector.load %arg3[%c0_3, %c0_4] : memref<8x1xf32, #tpu.memory_space<vmem>>, vector<8x1xf32>
    %4 = vector.broadcast %3 : vector<8x1xf32> to vector<8x128xf32>
    %5 = arith.addf %2, %4 : vector<8x128xf32>
    %c0_5 = arith.constant 0 : index
    %c0_6 = arith.constant 0 : index
    %6 = vector.load %arg4[%c0_5, %c0_6] : memref<8x128xbf16, #tpu.memory_space<vmem>>, vector<8x128xbf16>
    %7 = arith.extf %6 : vector<8x128xbf16> to vector<8x128xf32>
    %8 = arith.addf %5, %7 : vector<8x128xf32>
    %cst_7 = arith.constant 0.000000e+00 : f32
    %9 = vector.broadcast %cst_7 : f32 to vector<8x128xf32>
    %10 = arith.maximumf %8, %9 : vector<8x128xf32>
    %11 = arith.truncf %10 : vector<8x128xf32> to vector<8x128xbf16>
    %c0_8 = arith.constant 0 : index
    %c0_9 = arith.constant 0 : index
    %12 = vector.load %arg5[%c0_8, %c0_9] : memref<8x128xbf16, #tpu.memory_space<vmem>>, vector<8x128xbf16>
    tpu.vector_store %arg5[%c0_8, %c0_9], %11 {strides = array<i32>} : memref<8x128xbf16, #tpu.memory_space<vmem>>, vector<8x128xbf16>,
    return
  }
  func.func @transform_0(%arg0: i32) -> (i32, i32) {
    %c0_i32 = arith.constant 0 : i32
    %c0_i32_0 = arith.constant 0 : i32
    %c0_i32_1 = arith.constant 0 : i32
    return %c0_i32, %c0_i32_0 : i32, i32
  }
  func.func @transform_1(%arg0: i32) -> (i32, i32) {
    %c0_i32 = arith.constant 0 : i32
    %c0_i32_0 = arith.constant 0 : i32
    return %c0_i32, %arg0 : i32, i32
  }
  func.func @transform_2(%arg0: i32) -> (i32, i32) {
    %c0_i32 = arith.constant 0 : i32
    %c0_i32_0 = arith.constant 0 : i32
    %c0_i32_1 = arith.constant 0 : i32
    return %c0_i32, %c0_i32_0 : i32, i32
  }
  func.func @transform_3(%arg0: i32) -> (i32, i32) {
    %c0_i32 = arith.constant 0 : i32
    %c0_i32_0 = arith.constant 0 : i32
    return %c0_i32, %arg0 : i32, i32
  }
  func.func @transform_4(%arg0: i32) -> (i32, i32) {
    %c0_i32 = arith.constant 0 : i32
    %c0_i32_0 = arith.constant 0 : i32
    return %c0_i32, %arg0 : i32, i32
  }
}

module attributes {stable_mosaic.version = 11 : i64} {
  func.func @_fused_mm_kernel(%arg0: i32, %arg1: memref<8x8xbf16, #tpu.memory_space<vmem>>, %arg2: memref<8x128xbf16, #tpu.memory_space<vmem>>, %arg3: memref<8x1xf32, #tpu.memory_space<vmem>>, %arg4: memref<8x128xbf16, #tpu.memory_space<vmem>>) attributes {dimension_semantics = [#tpu.dimension_semantics<parallel>], iteration_bounds = array<i64: 1>, scalar_prefetch = 0 : i64, scratch_operands = 0 : i64, tpu.core_type = #tpu.core_type<tc>, window_params = [{pipeline_mode = #tpu.pipeline_mode<synchronous>, transform_indices = @transform_0, window_bounds = array<i64: 8, 8>}, {transform_indices = @transform_1, window_bounds = array<i64: 8, 128>}, {pipeline_mode = #tpu.pipeline_mode<synchronous>, transform_indices = @transform_2, window_bounds = array<i64: 8, 1>}, {transform_indices = @transform_3, window_bounds = array<i64: 8, 128>}]} {
    %c0 = arith.constant 0 : index
    %c0_0 = arith.constant 0 : index
    %0 = vector.load %arg2[%c0, %c0_0] : memref<8x128xbf16, #tpu.memory_space<vmem>>, vector<8x128xbf16>
    %c0_1 = arith.constant 0 : index
    %c0_2 = arith.constant 0 : index
    %1 = vector.load %arg1[%c0_1, %c0_2] : memref<8x8xbf16, #tpu.memory_space<vmem>>, vector<8x8xbf16>
    %cst = arith.constant dense<0.000000e+00> : vector<8x128xf32>
    %2 = tpu.matmul %1, %0, %cst {dimension_numbers = #tpu.dot_dimension_numbers<[1], [0], [0], [1], [0, 0, 1, 1], [], []>} : vector<8x8xbf16>, vector<8x128xbf16>, vector<8x128xf32> -> vector<8x128xf32>
    %c0_3 = arith.constant 0 : index
    %c0_4 = arith.constant 0 : index
    %3 = vector.load %arg3[%c0_3, %c0_4] : memref<8x1xf32, #tpu.memory_space<vmem>>, vector<8x1xf32>
    %4 = vector.broadcast %3 : vector<8x1xf32> to vector<8x128xf32>
    %5 = arith.addf %2, %4 : vector<8x128xf32>
    %6 = arith.truncf %5 : vector<8x128xf32> to vector<8x128xbf16>
    %c0_5 = arith.constant 0 : index
    %c0_6 = arith.constant 0 : index
    %7 = vector.load %arg4[%c0_5, %c0_6] : memref<8x128xbf16, #tpu.memory_space<vmem>>, vector<8x128xbf16>
    tpu.vector_store %arg4[%c0_5, %c0_6], %6 {strides = array<i32>} : memref<8x128xbf16, #tpu.memory_space<vmem>>, vector<8x128xbf16>,
    return
  }
  func.func @transform_0(%arg0: i32) -> (i32, i32) {
    %c0_i32 = arith.constant 0 : i32
    %c0_i32_0 = arith.constant 0 : i32
    %c0_i32_1 = arith.constant 0 : i32
    return %c0_i32, %c0_i32_0 : i32, i32
  }
  func.func @transform_1(%arg0: i32) -> (i32, i32) {
    %c0_i32 = arith.constant 0 : i32
    %c0_i32_0 = arith.constant 0 : i32
    return %c0_i32, %arg0 : i32, i32
  }
  func.func @transform_2(%arg0: i32) -> (i32, i32) {
    %c0_i32 = arith.constant 0 : i32
    %c0_i32_0 = arith.constant 0 : i32
    %c0_i32_1 = arith.constant 0 : i32
    return %c0_i32, %c0_i32_0 : i32, i32
  }
  func.func @transform_3(%arg0: i32) -> (i32, i32) {
    %c0_i32 = arith.constant 0 : i32
    %c0_i32_0 = arith.constant 0 : i32
    return %c0_i32, %arg0 : i32, i32
  }
}

module attributes {stable_mosaic.version = 11 : i64} {
  func.func @_conv1d_kshift_kernel(%arg0: i32, %arg1: memref<5x32x16xbf16, #tpu.memory_space<vmem>>, %arg2: memref<16x40xbf16, #tpu.memory_space<vmem>>, %arg3: memref<32x1xf32, #tpu.memory_space<vmem>>, %arg4: memref<32x32xbf16, #tpu.memory_space<vmem>>) attributes {dimension_semantics = [#tpu.dimension_semantics<arbitrary>], iteration_bounds = array<i64: 1>, scalar_prefetch = 0 : i64, scratch_operands = 0 : i64, tpu.core_type = #tpu.core_type<tc>, window_params = [{pipeline_mode = #tpu.pipeline_mode<synchronous>, transform_indices = @transform_0, window_bounds = array<i64: 5, 32, 16>}, {pipeline_mode = #tpu.pipeline_mode<synchronous>, transform_indices = @transform_1, window_bounds = array<i64: 16, 40>}, {pipeline_mode = #tpu.pipeline_mode<synchronous>, transform_indices = @transform_2, window_bounds = array<i64: 32, 1>}, {pipeline_mode = #tpu.pipeline_mode<synchronous>, transform_indices = @transform_3, window_bounds = array<i64: 32, 32>}]} {
    %c0 = arith.constant 0 : index
    %c0_0 = arith.constant 0 : index
    %0 = vector.load %arg2[%c0, %c0_0] : memref<16x40xbf16, #tpu.memory_space<vmem>>, vector<16x40xbf16>
    %1 = vector.extract_strided_slice %0 {offsets = [0, 0], sizes = [16, 16], strides = [1, 1]} : vector<16x40xbf16> to vector<16x16xbf16>
    %c0_1 = arith.constant 0 : index
    %c0_2 = arith.constant 0 : index
    %c0_3 = arith.constant 0 : index
    %2 = vector.load %arg1[%c0_1, %c0_2, %c0_3] : memref<5x32x16xbf16, #tpu.memory_space<vmem>>, vector<1x32x16xbf16>
    %3 = vector.shape_cast %2 : vector<1x32x16xbf16> to vector<32x16xbf16>
    %cst = arith.constant dense<0.000000e+00> : vector<32x16xf32>
    %4 = tpu.matmul %3, %1, %cst {dimension_numbers = #tpu.dot_dimension_numbers<[1], [0], [0], [1], [0, 0, 1, 1], [], []>} : vector<32x16xbf16>, vector<16x16xbf16>, vector<32x16xf32> -> vector<32x16xf32>
    %5 = vector.extract_strided_slice %0 {offsets = [0, 1], sizes = [16, 16], strides = [1, 1]} : vector<16x40xbf16> to vector<16x16xbf16>
    %c1 = arith.constant 1 : index
    %c0_4 = arith.constant 0 : index
    %c0_5 = arith.constant 0 : index
    %6 = vector.load %arg1[%c1, %c0_4, %c0_5] : memref<5x32x16xbf16, #tpu.memory_space<vmem>>, vector<1x32x16xbf16>
    %7 = vector.shape_cast %6 : vector<1x32x16xbf16> to vector<32x16xbf16>
    %cst_6 = arith.constant dense<0.000000e+00> : vector<32x16xf32>
    %8 = tpu.matmul %7, %5, %cst_6 {dimension_numbers = #tpu.dot_dimension_numbers<[1], [0], [0], [1], [0, 0, 1, 1], [], []>} : vector<32x16xbf16>, vector<16x16xbf16>, vector<32x16xf32> -> vector<32x16xf32>
    %9 = arith.addf %4, %8 : vector<32x16xf32>
    %10 = vector.extract_strided_slice %0 {offsets = [0, 2], sizes = [16, 16], strides = [1, 1]} : vector<16x40xbf16> to vector<16x16xbf16>
    %c2 = arith.constant 2 : index
    %c0_7 = arith.constant 0 : index
    %c0_8 = arith.constant 0 : index
    %11 = vector.load %arg1[%c2, %c0_7, %c0_8] : memref<5x32x16xbf16, #tpu.memory_space<vmem>>, vector<1x32x16xbf16>
    %12 = vector.shape_cast %11 : vector<1x32x16xbf16> to vector<32x16xbf16>
    %cst_9 = arith.constant dense<0.000000e+00> : vector<32x16xf32>
    %13 = tpu.matmul %12, %10, %cst_9 {dimension_numbers = #tpu.dot_dimension_numbers<[1], [0], [0], [1], [0, 0, 1, 1], [], []>} : vector<32x16xbf16>, vector<16x16xbf16>, vector<32x16xf32> -> vector<32x16xf32>
    %14 = arith.addf %9, %13 : vector<32x16xf32>
    %15 = vector.extract_strided_slice %0 {offsets = [0, 3], sizes = [16, 16], strides = [1, 1]} : vector<16x40xbf16> to vector<16x16xbf16>
    %c3 = arith.constant 3 : index
    %c0_10 = arith.constant 0 : index
    %c0_11 = arith.constant 0 : index
    %16 = vector.load %arg1[%c3, %c0_10, %c0_11] : memref<5x32x16xbf16, #tpu.memory_space<vmem>>, vector<1x32x16xbf16>
    %17 = vector.shape_cast %16 : vector<1x32x16xbf16> to vector<32x16xbf16>
    %cst_12 = arith.constant dense<0.000000e+00> : vector<32x16xf32>
    %18 = tpu.matmul %17, %15, %cst_12 {dimension_numbers = #tpu.dot_dimension_numbers<[1], [0], [0], [1], [0, 0, 1, 1], [], []>} : vector<32x16xbf16>, vector<16x16xbf16>, vector<32x16xf32> -> vector<32x16xf32>
    %19 = arith.addf %14, %18 : vector<32x16xf32>
    %20 = vector.extract_strided_slice %0 {offsets = [0, 4], sizes = [16, 16], strides = [1, 1]} : vector<16x40xbf16> to vector<16x16xbf16>
    %c4 = arith.constant 4 : index
    %c0_13 = arith.constant 0 : index
    %c0_14 = arith.constant 0 : index
    %21 = vector.load %arg1[%c4, %c0_13, %c0_14] : memref<5x32x16xbf16, #tpu.memory_space<vmem>>, vector<1x32x16xbf16>
    %22 = vector.shape_cast %21 : vector<1x32x16xbf16> to vector<32x16xbf16>
    %cst_15 = arith.constant dense<0.000000e+00> : vector<32x16xf32>
    %23 = tpu.matmul %22, %20, %cst_15 {dimension_numbers = #tpu.dot_dimension_numbers<[1], [0], [0], [1], [0, 0, 1, 1], [], []>} : vector<32x16xbf16>, vector<16x16xbf16>, vector<32x16xf32> -> vector<32x16xf32>
    %24 = arith.addf %19, %23 : vector<32x16xf32>
    %c0_16 = arith.constant 0 : index
    %c0_17 = arith.constant 0 : index
    %25 = vector.load %arg3[%c0_16, %c0_17] : memref<32x1xf32, #tpu.memory_space<vmem>>, vector<32x1xf32>
    %26 = vector.broadcast %25 : vector<32x1xf32> to vector<32x16xf32>
    %27 = arith.addf %24, %26 : vector<32x16xf32>
    %cst_18 = arith.constant 0.000000e+00 : f32
    %28 = vector.broadcast %cst_18 : f32 to vector<32x16xf32>
    %29 = arith.maximumf %27, %28 : vector<32x16xf32>
    %30 = arith.truncf %29 : vector<32x16xf32> to vector<32x16xbf16>
    %c0_19 = arith.constant 0 : index
    %c0_20 = arith.constant 0 : index
    %31 = vector.load %arg4[%c0_19, %c0_20] : memref<32x32xbf16, #tpu.memory_space<vmem>>, vector<32x16xbf16>
    tpu.vector_store %arg4[%c0_19, %c0_20], %30 {strides = array<i32>} : memref<32x32xbf16, #tpu.memory_space<vmem>>, vector<32x16xbf16>,
    %32 = vector.extract_strided_slice %0 {offsets = [0, 20], sizes = [16, 16], strides = [1, 1]} : vector<16x40xbf16> to vector<16x16xbf16>
    %c0_21 = arith.constant 0 : index
    %c0_22 = arith.constant 0 : index
    %c0_23 = arith.constant 0 : index
    %33 = vector.load %arg1[%c0_21, %c0_22, %c0_23] : memref<5x32x16xbf16, #tpu.memory_space<vmem>>, vector<1x32x16xbf16>
    %34 = vector.shape_cast %33 : vector<1x32x16xbf16> to vector<32x16xbf16>
    %cst_24 = arith.constant dense<0.000000e+00> : vector<32x16xf32>
    %35 = tpu.matmul %34, %32, %cst_24 {dimension_numbers = #tpu.dot_dimension_numbers<[1], [0], [0], [1], [0, 0, 1, 1], [], []>} : vector<32x16xbf16>, vector<16x16xbf16>, vector<32x16xf32> -> vector<32x16xf32>
    %36 = vector.extract_strided_slice %0 {offsets = [0, 21], sizes = [16, 16], strides = [1, 1]} : vector<16x40xbf16> to vector<16x16xbf16>
    %c1_25 = arith.constant 1 : index
    %c0_26 = arith.constant 0 : index
    %c0_27 = arith.constant 0 : index
    %37 = vector.load %arg1[%c1_25, %c0_26, %c0_27] : memref<5x32x16xbf16, #tpu.memory_space<vmem>>, vector<1x32x16xbf16>
    %38 = vector.shape_cast %37 : vector<1x32x16xbf16> to vector<32x16xbf16>
    %cst_28 = arith.constant dense<0.000000e+00> : vector<32x16xf32>
    %39 = tpu.matmul %38, %36, %cst_28 {dimension_numbers = #tpu.dot_dimension_numbers<[1], [0], [0], [1], [0, 0, 1, 1], [], []>} : vector<32x16xbf16>, vector<16x16xbf16>, vector<32x16xf32> -> vector<32x16xf32>
    %40 = arith.addf %35, %39 : vector<32x16xf32>
    %41 = vector.extract_strided_slice %0 {offsets = [0, 22], sizes = [16, 16], strides = [1, 1]} : vector<16x40xbf16> to vector<16x16xbf16>
    %c2_29 = arith.constant 2 : index
    %c0_30 = arith.constant 0 : index
    %c0_31 = arith.constant 0 : index
    %42 = vector.load %arg1[%c2_29, %c0_30, %c0_31] : memref<5x32x16xbf16, #tpu.memory_space<vmem>>, vector<1x32x16xbf16>
    %43 = vector.shape_cast %42 : vector<1x32x16xbf16> to vector<32x16xbf16>
    %cst_32 = arith.constant dense<0.000000e+00> : vector<32x16xf32>
    %44 = tpu.matmul %43, %41, %cst_32 {dimension_numbers = #tpu.dot_dimension_numbers<[1], [0], [0], [1], [0, 0, 1, 1], [], []>} : vector<32x16xbf16>, vector<16x16xbf16>, vector<32x16xf32> -> vector<32x16xf32>
    %45 = arith.addf %40, %44 : vector<32x16xf32>
    %46 = vector.extract_strided_slice %0 {offsets = [0, 23], sizes = [16, 16], strides = [1, 1]} : vector<16x40xbf16> to vector<16x16xbf16>
    %c3_33 = arith.constant 3 : index
    %c0_34 = arith.constant 0 : index
    %c0_35 = arith.constant 0 : index
    %47 = vector.load %arg1[%c3_33, %c0_34, %c0_35] : memref<5x32x16xbf16, #tpu.memory_space<vmem>>, vector<1x32x16xbf16>
    %48 = vector.shape_cast %47 : vector<1x32x16xbf16> to vector<32x16xbf16>
    %cst_36 = arith.constant dense<0.000000e+00> : vector<32x16xf32>
    %49 = tpu.matmul %48, %46, %cst_36 {dimension_numbers = #tpu.dot_dimension_numbers<[1], [0], [0], [1], [0, 0, 1, 1], [], []>} : vector<32x16xbf16>, vector<16x16xbf16>, vector<32x16xf32> -> vector<32x16xf32>
    %50 = arith.addf %45, %49 : vector<32x16xf32>
    %51 = vector.extract_strided_slice %0 {offsets = [0, 24], sizes = [16, 16], strides = [1, 1]} : vector<16x40xbf16> to vector<16x16xbf16>
    %c4_37 = arith.constant 4 : index
    %c0_38 = arith.constant 0 : index
    %c0_39 = arith.constant 0 : index
    %52 = vector.load %arg1[%c4_37, %c0_38, %c0_39] : memref<5x32x16xbf16, #tpu.memory_space<vmem>>, vector<1x32x16xbf16>
    %53 = vector.shape_cast %52 : vector<1x32x16xbf16> to vector<32x16xbf16>
    %cst_40 = arith.constant dense<0.000000e+00> : vector<32x16xf32>
    %54 = tpu.matmul %53, %51, %cst_40 {dimension_numbers = #tpu.dot_dimension_numbers<[1], [0], [0], [1], [0, 0, 1, 1], [], []>} : vector<32x16xbf16>, vector<16x16xbf16>, vector<32x16xf32> -> vector<32x16xf32>
    %55 = arith.addf %50, %54 : vector<32x16xf32>
    %c0_41 = arith.constant 0 : index
    %c0_42 = arith.constant 0 : index
    %56 = vector.load %arg3[%c0_41, %c0_42] : memref<32x1xf32, #tpu.memory_space<vmem>>, vector<32x1xf32>
    %57 = vector.broadcast %56 : vector<32x1xf32> to vector<32x16xf32>
    %58 = arith.addf %55, %57 : vector<32x16xf32>
    %cst_43 = arith.constant 0.000000e+00 : f32
    %59 = vector.broadcast %cst_43 : f32 to vector<32x16xf32>
    %60 = arith.maximumf %58, %59 : vector<32x16xf32>
    %61 = arith.truncf %60 : vector<32x16xf32> to vector<32x16xbf16>
    %c0_44 = arith.constant 0 : index
    %c16 = arith.constant 16 : index
    %62 = vector.load %arg4[%c0_44, %c16] : memref<32x32xbf16, #tpu.memory_space<vmem>>, vector<32x16xbf16>
    tpu.vector_store %arg4[%c0_44, %c16], %61 {strides = array<i32>} : memref<32x32xbf16, #tpu.memory_space<vmem>>, vector<32x16xbf16>,
    return
  }
  func.func @transform_0(%arg0: i32) -> (i32, i32, i32) {
    %c0_i32 = arith.constant 0 : i32
    %c0_i32_0 = arith.constant 0 : i32
    %c0_i32_1 = arith.constant 0 : i32
    %c0_i32_2 = arith.constant 0 : i32
    return %c0_i32, %c0_i32_0, %c0_i32_1 : i32, i32, i32
  }
  func.func @transform_1(%arg0: i32) -> (i32, i32) {
    %c0_i32 = arith.constant 0 : i32
    %c0_i32_0 = arith.constant 0 : i32
    %c0_i32_1 = arith.constant 0 : i32
    return %c0_i32, %c0_i32_0 : i32, i32
  }
  func.func @transform_2(%arg0: i32) -> (i32, i32) {
    %c0_i32 = arith.constant 0 : i32
    %c0_i32_0 = arith.constant 0 : i32
    %c0_i32_1 = arith.constant 0 : i32
    return %c0_i32, %c0_i32_0 : i32, i32
  }
  func.func @transform_3(%arg0: i32) -> (i32, i32) {
    %c0_i32 = arith.constant 0 : i32
    %c0_i32_0 = arith.constant 0 : i32
    %c0_i32_1 = arith.constant 0 : i32
    return %c0_i32, %c0_i32_0 : i32, i32
  }
}

module attributes {stable_mosaic.version = 11 : i64} {
  func.func @_fused_mm_kernel(%arg0: i32, %arg1: memref<16x32xbf16, #tpu.memory_space<vmem>>, %arg2: memref<32x128xbf16, #tpu.memory_space<vmem>>, %arg3: memref<32x2xf32, #tpu.memory_space<vmem>>, %arg4: memref<16x1xf32, #tpu.memory_space<vmem>>, %arg5: memref<16x128xbf16, #tpu.memory_space<vmem>>) attributes {dimension_semantics = [#tpu.dimension_semantics<parallel>], iteration_bounds = array<i64: 1>, scalar_prefetch = 0 : i64, scratch_operands = 0 : i64, tpu.core_type = #tpu.core_type<tc>, window_params = [{pipeline_mode = #tpu.pipeline_mode<synchronous>, transform_indices = @transform_0, window_bounds = array<i64: 16, 32>}, {transform_indices = @transform_1, window_bounds = array<i64: 32, 128>}, {pipeline_mode = #tpu.pipeline_mode<synchronous>, transform_indices = @transform_2, window_bounds = array<i64: 32, 2>}, {pipeline_mode = #tpu.pipeline_mode<synchronous>, transform_indices = @transform_3, window_bounds = array<i64: 16, 1>}, {transform_indices = @transform_4, window_bounds = array<i64: 16, 128>}]} {
    %c0 = arith.constant 0 : index
    %c0_0 = arith.constant 0 : index
    %0 = vector.load %arg2[%c0, %c0_0] : memref<32x128xbf16, #tpu.memory_space<vmem>>, vector<32x128xbf16>
    %1 = arith.extf %0 : vector<32x128xbf16> to vector<32x128xf32>
    %c0_1 = arith.constant 0 : index
    %c0_2 = arith.constant 0 : index
    %2 = vector.load %arg3[%c0_1, %c0_2] : memref<32x2xf32, #tpu.memory_space<vmem>>, vector<32x1xf32>
    %3 = vector.broadcast %2 : vector<32x1xf32> to vector<32x128xf32>
    %4 = arith.mulf %1, %3 : vector<32x128xf32>
    %c0_3 = arith.constant 0 : index
    %c1 = arith.constant 1 : index
    %5 = vector.load %arg3[%c0_3, %c1] : memref<32x2xf32, #tpu.memory_space<vmem>>, vector<32x1xf32>
    %6 = vector.broadcast %5 : vector<32x1xf32> to vector<32x128xf32>
    %7 = arith.addf %4, %6 : vector<32x128xf32>
    %cst = arith.constant 0.000000e+00 : f32
    %8 = vector.broadcast %cst : f32 to vector<32x128xf32>
    %9 = arith.maximumf %7, %8 : vector<32x128xf32>
    %10 = arith.truncf %9 : vector<32x128xf32> to vector<32x128xbf16>
    %c0_4 = arith.constant 0 : index
    %c0_5 = arith.constant 0 : index
    %11 = vector.load %arg1[%c0_4, %c0_5] : memref<16x32xbf16, #tpu.memory_space<vmem>>, vector<16x32xbf16>
    %cst_6 = arith.constant dense<0.000000e+00> : vector<16x128xf32>
    %12 = tpu.matmul %11, %10, %cst_6 {dimension_numbers = #tpu.dot_dimension_numbers<[1], [0], [0], [1], [0, 0, 1, 1], [], []>} : vector<16x32xbf16>, vector<32x128xbf16>, vector<16x128xf32> -> vector<16x128xf32>
    %c0_7 = arith.constant 0 : index
    %c0_8 = arith.constant 0 : index
    %13 = vector.load %arg4[%c0_7, %c0_8] : memref<16x1xf32, #tpu.memory_space<vmem>>, vector<16x1xf32>
    %14 = vector.broadcast %13 : vector<16x1xf32> to vector<16x128xf32>
    %15 = arith.addf %12, %14 : vector<16x128xf32>
    %cst_9 = arith.constant 0.000000e+00 : f32
    %16 = vector.broadcast %cst_9 : f32 to vector<16x128xf32>
    %17 = arith.maximumf %15, %16 : vector<16x128xf32>
    %18 = arith.truncf %17 : vector<16x128xf32> to vector<16x128xbf16>
    %c0_10 = arith.constant 0 : index
    %c0_11 = arith.constant 0 : index
    %19 = vector.load %arg5[%c0_10, %c0_11] : memref<16x128xbf16, #tpu.memory_space<vmem>>, vector<16x128xbf16>
    tpu.vector_store %arg5[%c0_10, %c0_11], %18 {strides = array<i32>} : memref<16x128xbf16, #tpu.memory_space<vmem>>, vector<16x128xbf16>,
    return
  }
  func.func @transform_0(%arg0: i32) -> (i32, i32) {
    %c0_i32 = arith.constant 0 : i32
    %c0_i32_0 = arith.constant 0 : i32
    %c0_i32_1 = arith.constant 0 : i32
    return %c0_i32, %c0_i32_0 : i32, i32
  }
  func.func @transform_1(%arg0: i32) -> (i32, i32) {
    %c0_i32 = arith.constant 0 : i32
    %c0_i32_0 = arith.constant 0 : i32
    return %c0_i32, %arg0 : i32, i32
  }
  func.func @transform_2(%arg0: i32) -> (i32, i32) {
    %c0_i32 = arith.constant 0 : i32
    %c0_i32_0 = arith.constant 0 : i32
    %c0_i32_1 = arith.constant 0 : i32
    return %c0_i32, %c0_i32_0 : i32, i32
  }
  func.func @transform_3(%arg0: i32) -> (i32, i32) {
    %c0_i32 = arith.constant 0 : i32
    %c0_i32_0 = arith.constant 0 : i32
    %c0_i32_1 = arith.constant 0 : i32
    return %c0_i32, %c0_i32_0 : i32, i32
  }
  func.func @transform_4(%arg0: i32) -> (i32, i32) {
    %c0_i32 = arith.constant 0 : i32
    %c0_i32_0 = arith.constant 0 : i32
    return %c0_i32, %arg0 : i32, i32
  }
}

module attributes {stable_mosaic.version = 11 : i64} {
  func.func @_cam_local_kernel(%arg0: i32, %arg1: memref<3x8x16xbf16, #tpu.memory_space<vmem>>, %arg2: memref<16x36xbf16, #tpu.memory_space<vmem>>, %arg3: memref<16x2xf32, #tpu.memory_space<vmem>>, %arg4: memref<8x16xf32, #tpu.memory_space<vmem>>, %arg5: memref<8x1xf32, #tpu.memory_space<vmem>>, %arg6: memref<8x8xf32, #tpu.memory_space<vmem>>, %arg7: memref<8x1xf32, #tpu.memory_space<vmem>>, %arg8: memref<8x32xbf16, #tpu.memory_space<vmem>>) attributes {dimension_semantics = [#tpu.dimension_semantics<arbitrary>], iteration_bounds = array<i64: 1>, scalar_prefetch = 0 : i64, scratch_operands = 0 : i64, tpu.core_type = #tpu.core_type<tc>, window_params = [{pipeline_mode = #tpu.pipeline_mode<synchronous>, transform_indices = @transform_0, window_bounds = array<i64: 3, 8, 16>}, {pipeline_mode = #tpu.pipeline_mode<synchronous>, transform_indices = @transform_1, window_bounds = array<i64: 16, 36>}, {pipeline_mode = #tpu.pipeline_mode<synchronous>, transform_indices = @transform_2, window_bounds = array<i64: 16, 2>}, {pipeline_mode = #tpu.pipeline_mode<synchronous>, transform_indices = @transform_3, window_bounds = array<i64: 8, 16>}, {pipeline_mode = #tpu.pipeline_mode<synchronous>, transform_indices = @transform_4, window_bounds = array<i64: 8, 1>}, {pipeline_mode = #tpu.pipeline_mode<synchronous>, transform_indices = @transform_5, window_bounds = array<i64: 8, 8>}, {pipeline_mode = #tpu.pipeline_mode<synchronous>, transform_indices = @transform_6, window_bounds = array<i64: 8, 1>}, {pipeline_mode = #tpu.pipeline_mode<synchronous>, transform_indices = @transform_7, window_bounds = array<i64: 8, 32>}]} {
    %c0 = arith.constant 0 : index
    %c0_0 = arith.constant 0 : index
    %0 = vector.load %arg4[%c0, %c0_0] : memref<8x16xf32, #tpu.memory_space<vmem>>, vector<8x16xf32>
    %c0_1 = arith.constant 0 : index
    %c0_2 = arith.constant 0 : index
    %1 = vector.load %arg3[%c0_1, %c0_2] : memref<16x2xf32, #tpu.memory_space<vmem>>, vector<16x2xf32>
    %cst = arith.constant dense<0.000000e+00> : vector<8x2xf32>
    %2 = tpu.matmul %0, %1, %cst {dimension_numbers = #tpu.dot_dimension_numbers<[1], [0], [0], [1], [0, 0, 1, 1], [], []>} : vector<8x16xf32>, vector<16x2xf32>, vector<8x2xf32> -> vector<8x2xf32>
    %c0_3 = arith.constant 0 : index
    %c0_4 = arith.constant 0 : index
    %3 = vector.load %arg5[%c0_3, %c0_4] : memref<8x1xf32, #tpu.memory_space<vmem>>, vector<8x1xf32>
    %4 = vector.broadcast %3 : vector<8x1xf32> to vector<8x2xf32>
    %5 = arith.addf %2, %4 : vector<8x2xf32>
    %cst_5 = arith.constant 0.000000e+00 : f32
    %6 = vector.broadcast %cst_5 : f32 to vector<8x2xf32>
    %7 = arith.maximumf %5, %6 : vector<8x2xf32>
    %c0_6 = arith.constant 0 : index
    %c0_7 = arith.constant 0 : index
    %8 = vector.load %arg6[%c0_6, %c0_7] : memref<8x8xf32, #tpu.memory_space<vmem>>, vector<8x8xf32>
    %cst_8 = arith.constant dense<0.000000e+00> : vector<8x2xf32>
    %9 = tpu.matmul %8, %7, %cst_8 {dimension_numbers = #tpu.dot_dimension_numbers<[1], [0], [0], [1], [0, 0, 1, 1], [], []>} : vector<8x8xf32>, vector<8x2xf32>, vector<8x2xf32> -> vector<8x2xf32>
    %c0_9 = arith.constant 0 : index
    %c0_10 = arith.constant 0 : index
    %10 = vector.load %arg7[%c0_9, %c0_10] : memref<8x1xf32, #tpu.memory_space<vmem>>, vector<8x1xf32>
    %11 = vector.broadcast %10 : vector<8x1xf32> to vector<8x2xf32>
    %12 = arith.addf %9, %11 : vector<8x2xf32>
    %13 = arith.negf %12 : vector<8x2xf32>
    %14 = math.exp %13 : vector<8x2xf32>
    %cst_11 = arith.constant 1.000000e+00 : f32
    %15 = vector.broadcast %cst_11 : f32 to vector<8x2xf32>
    %16 = arith.addf %15, %14 : vector<8x2xf32>
    %17 = arith.divf %15, %16 : vector<8x2xf32>
    %c0_12 = arith.constant 0 : index
    %c0_13 = arith.constant 0 : index
    %18 = vector.load %arg2[%c0_12, %c0_13] : memref<16x36xbf16, #tpu.memory_space<vmem>>, vector<16x36xbf16>
    %19 = vector.extract_strided_slice %18 {offsets = [0, 0], sizes = [16, 16], strides = [1, 1]} : vector<16x36xbf16> to vector<16x16xbf16>
    %c0_14 = arith.constant 0 : index
    %c0_15 = arith.constant 0 : index
    %c0_16 = arith.constant 0 : index
    %20 = vector.load %arg1[%c0_14, %c0_15, %c0_16] : memref<3x8x16xbf16, #tpu.memory_space<vmem>>, vector<1x8x16xbf16>
    %21 = vector.shape_cast %20 : vector<1x8x16xbf16> to vector<8x16xbf16>
    %cst_17 = arith.constant dense<0.000000e+00> : vector<8x16xf32>
    %22 = tpu.matmul %21, %19, %cst_17 {dimension_numbers = #tpu.dot_dimension_numbers<[1], [0], [0], [1], [0, 0, 1, 1], [], []>} : vector<8x16xbf16>, vector<16x16xbf16>, vector<8x16xf32> -> vector<8x16xf32>
    %23 = vector.extract_strided_slice %18 {offsets = [0, 1], sizes = [16, 16], strides = [1, 1]} : vector<16x36xbf16> to vector<16x16xbf16>
    %c1 = arith.constant 1 : index
    %c0_18 = arith.constant 0 : index
    %c0_19 = arith.constant 0 : index
    %24 = vector.load %arg1[%c1, %c0_18, %c0_19] : memref<3x8x16xbf16, #tpu.memory_space<vmem>>, vector<1x8x16xbf16>
    %25 = vector.shape_cast %24 : vector<1x8x16xbf16> to vector<8x16xbf16>
    %cst_20 = arith.constant dense<0.000000e+00> : vector<8x16xf32>
    %26 = tpu.matmul %25, %23, %cst_20 {dimension_numbers = #tpu.dot_dimension_numbers<[1], [0], [0], [1], [0, 0, 1, 1], [], []>} : vector<8x16xbf16>, vector<16x16xbf16>, vector<8x16xf32> -> vector<8x16xf32>
    %27 = arith.addf %22, %26 : vector<8x16xf32>
    %28 = vector.extract_strided_slice %18 {offsets = [0, 2], sizes = [16, 16], strides = [1, 1]} : vector<16x36xbf16> to vector<16x16xbf16>
    %c2 = arith.constant 2 : index
    %c0_21 = arith.constant 0 : index
    %c0_22 = arith.constant 0 : index
    %29 = vector.load %arg1[%c2, %c0_21, %c0_22] : memref<3x8x16xbf16, #tpu.memory_space<vmem>>, vector<1x8x16xbf16>
    %30 = vector.shape_cast %29 : vector<1x8x16xbf16> to vector<8x16xbf16>
    %cst_23 = arith.constant dense<0.000000e+00> : vector<8x16xf32>
    %31 = tpu.matmul %30, %28, %cst_23 {dimension_numbers = #tpu.dot_dimension_numbers<[1], [0], [0], [1], [0, 0, 1, 1], [], []>} : vector<8x16xbf16>, vector<16x16xbf16>, vector<8x16xf32> -> vector<8x16xf32>
    %32 = arith.addf %27, %31 : vector<8x16xf32>
    %33 = vector.extract_strided_slice %17 {offsets = [0, 0], sizes = [8, 1], strides = [1, 1]} : vector<8x2xf32> to vector<8x1xf32>
    %34 = vector.shape_cast %33 : vector<8x1xf32> to vector<8x1xf32>
    %35 = vector.broadcast %34 : vector<8x1xf32> to vector<8x16xf32>
    %36 = arith.mulf %32, %35 : vector<8x16xf32>
    %37 = arith.truncf %36 : vector<8x16xf32> to vector<8x16xbf16>
    %c0_24 = arith.constant 0 : index
    %c0_25 = arith.constant 0 : index
    %38 = vector.load %arg8[%c0_24, %c0_25] : memref<8x32xbf16, #tpu.memory_space<vmem>>, vector<8x16xbf16>
    tpu.vector_store %arg8[%c0_24, %c0_25], %37 {strides = array<i32>} : memref<8x32xbf16, #tpu.memory_space<vmem>>, vector<8x16xbf16>,
    %39 = vector.extract_strided_slice %18 {offsets = [0, 18], sizes = [16, 16], strides = [1, 1]} : vector<16x36xbf16> to vector<16x16xbf16>
    %c0_26 = arith.constant 0 : index
    %c0_27 = arith.constant 0 : index
    %c0_28 = arith.constant 0 : index
    %40 = vector.load %arg1[%c0_26, %c0_27, %c0_28] : memref<3x8x16xbf16, #tpu.memory_space<vmem>>, vector<1x8x16xbf16>
    %41 = vector.shape_cast %40 : vector<1x8x16xbf16> to vector<8x16xbf16>
    %cst_29 = arith.constant dense<0.000000e+00> : vector<8x16xf32>
    %42 = tpu.matmul %41, %39, %cst_29 {dimension_numbers = #tpu.dot_dimension_numbers<[1], [0], [0], [1], [0, 0, 1, 1], [], []>} : vector<8x16xbf16>, vector<16x16xbf16>, vector<8x16xf32> -> vector<8x16xf32>
    %43 = vector.extract_strided_slice %18 {offsets = [0, 19], sizes = [16, 16], strides = [1, 1]} : vector<16x36xbf16> to vector<16x16xbf16>
    %c1_30 = arith.constant 1 : index
    %c0_31 = arith.constant 0 : index
    %c0_32 = arith.constant 0 : index
    %44 = vector.load %arg1[%c1_30, %c0_31, %c0_32] : memref<3x8x16xbf16, #tpu.memory_space<vmem>>, vector<1x8x16xbf16>
    %45 = vector.shape_cast %44 : vector<1x8x16xbf16> to vector<8x16xbf16>
    %cst_33 = arith.constant dense<0.000000e+00> : vector<8x16xf32>
    %46 = tpu.matmul %45, %43, %cst_33 {dimension_numbers = #tpu.dot_dimension_numbers<[1], [0], [0], [1], [0, 0, 1, 1], [], []>} : vector<8x16xbf16>, vector<16x16xbf16>, vector<8x16xf32> -> vector<8x16xf32>
    %47 = arith.addf %42, %46 : vector<8x16xf32>
    %48 = vector.extract_strided_slice %18 {offsets = [0, 20], sizes = [16, 16], strides = [1, 1]} : vector<16x36xbf16> to vector<16x16xbf16>
    %c2_34 = arith.constant 2 : index
    %c0_35 = arith.constant 0 : index
    %c0_36 = arith.constant 0 : index
    %49 = vector.load %arg1[%c2_34, %c0_35, %c0_36] : memref<3x8x16xbf16, #tpu.memory_space<vmem>>, vector<1x8x16xbf16>
    %50 = vector.shape_cast %49 : vector<1x8x16xbf16> to vector<8x16xbf16>
    %cst_37 = arith.constant dense<0.000000e+00> : vector<8x16xf32>
    %51 = tpu.matmul %50, %48, %cst_37 {dimension_numbers = #tpu.dot_dimension_numbers<[1], [0], [0], [1], [0, 0, 1, 1], [], []>} : vector<8x16xbf16>, vector<16x16xbf16>, vector<8x16xf32> -> vector<8x16xf32>
    %52 = arith.addf %47, %51 : vector<8x16xf32>
    %53 = vector.extract_strided_slice %17 {offsets = [0, 1], sizes = [8, 1], strides = [1, 1]} : vector<8x2xf32> to vector<8x1xf32>
    %54 = vector.shape_cast %53 : vector<8x1xf32> to vector<8x1xf32>
    %55 = vector.broadcast %54 : vector<8x1xf32> to vector<8x16xf32>
    %56 = arith.mulf %52, %55 : vector<8x16xf32>
    %57 = arith.truncf %56 : vector<8x16xf32> to vector<8x16xbf16>
    %c0_38 = arith.constant 0 : index
    %c16 = arith.constant 16 : index
    %58 = vector.load %arg8[%c0_38, %c16] : memref<8x32xbf16, #tpu.memory_space<vmem>>, vector<8x16xbf16>
    tpu.vector_store %arg8[%c0_38, %c16], %57 {strides = array<i32>} : memref<8x32xbf16, #tpu.memory_space<vmem>>, vector<8x16xbf16>,
    return
  }
  func.func @transform_0(%arg0: i32) -> (i32, i32, i32) {
    %c0_i32 = arith.constant 0 : i32
    %c0_i32_0 = arith.constant 0 : i32
    %c0_i32_1 = arith.constant 0 : i32
    %c0_i32_2 = arith.constant 0 : i32
    return %c0_i32, %c0_i32_0, %c0_i32_1 : i32, i32, i32
  }
  func.func @transform_1(%arg0: i32) -> (i32, i32) {
    %c0_i32 = arith.constant 0 : i32
    %c0_i32_0 = arith.constant 0 : i32
    %c0_i32_1 = arith.constant 0 : i32
    return %c0_i32, %c0_i32_0 : i32, i32
  }
  func.func @transform_2(%arg0: i32) -> (i32, i32) {
    %c0_i32 = arith.constant 0 : i32
    %c0_i32_0 = arith.constant 0 : i32
    %c0_i32_1 = arith.constant 0 : i32
    return %c0_i32, %c0_i32_0 : i32, i32
  }
  func.func @transform_3(%arg0: i32) -> (i32, i32) {
    %c0_i32 = arith.constant 0 : i32
    %c0_i32_0 = arith.constant 0 : i32
    %c0_i32_1 = arith.constant 0 : i32
    return %c0_i32, %c0_i32_0 : i32, i32
  }
  func.func @transform_4(%arg0: i32) -> (i32, i32) {
    %c0_i32 = arith.constant 0 : i32
    %c0_i32_0 = arith.constant 0 : i32
    %c0_i32_1 = arith.constant 0 : i32
    return %c0_i32, %c0_i32_0 : i32, i32
  }
  func.func @transform_5(%arg0: i32) -> (i32, i32) {
    %c0_i32 = arith.constant 0 : i32
    %c0_i32_0 = arith.constant 0 : i32
    %c0_i32_1 = arith.constant 0 : i32
    return %c0_i32, %c0_i32_0 : i32, i32
  }
  func.func @transform_6(%arg0: i32) -> (i32, i32) {
    %c0_i32 = arith.constant 0 : i32
    %c0_i32_0 = arith.constant 0 : i32
    %c0_i32_1 = arith.constant 0 : i32
    return %c0_i32, %c0_i32_0 : i32, i32
  }
  func.func @transform_7(%arg0: i32) -> (i32, i32) {
    %c0_i32 = arith.constant 0 : i32
    %c0_i32_0 = arith.constant 0 : i32
    %c0_i32_1 = arith.constant 0 : i32
    return %c0_i32, %c0_i32_0 : i32, i32
  }
}

module attributes {stable_mosaic.version = 11 : i64} {
  func.func @_fused_mm_kernel(%arg0: i32, %arg1: memref<16x40xbf16, #tpu.memory_space<vmem>>, %arg2: memref<40x128xbf16, #tpu.memory_space<vmem>>, %arg3: memref<40x2xf32, #tpu.memory_space<vmem>>, %arg4: memref<16x1xf32, #tpu.memory_space<vmem>>, %arg5: memref<16x128xbf16, #tpu.memory_space<vmem>>) attributes {dimension_semantics = [#tpu.dimension_semantics<parallel>], iteration_bounds = array<i64: 1>, scalar_prefetch = 0 : i64, scratch_operands = 0 : i64, tpu.core_type = #tpu.core_type<tc>, window_params = [{pipeline_mode = #tpu.pipeline_mode<synchronous>, transform_indices = @transform_0, window_bounds = array<i64: 16, 40>}, {transform_indices = @transform_1, window_bounds = array<i64: 40, 128>}, {pipeline_mode = #tpu.pipeline_mode<synchronous>, transform_indices = @transform_2, window_bounds = array<i64: 40, 2>}, {pipeline_mode = #tpu.pipeline_mode<synchronous>, transform_indices = @transform_3, window_bounds = array<i64: 16, 1>}, {transform_indices = @transform_4, window_bounds = array<i64: 16, 128>}]} {
    %c0 = arith.constant 0 : index
    %c0_0 = arith.constant 0 : index
    %0 = vector.load %arg2[%c0, %c0_0] : memref<40x128xbf16, #tpu.memory_space<vmem>>, vector<40x128xbf16>
    %1 = arith.extf %0 : vector<40x128xbf16> to vector<40x128xf32>
    %c0_1 = arith.constant 0 : index
    %c0_2 = arith.constant 0 : index
    %2 = vector.load %arg3[%c0_1, %c0_2] : memref<40x2xf32, #tpu.memory_space<vmem>>, vector<40x1xf32>
    %3 = vector.broadcast %2 : vector<40x1xf32> to vector<40x128xf32>
    %4 = arith.mulf %1, %3 : vector<40x128xf32>
    %c0_3 = arith.constant 0 : index
    %c1 = arith.constant 1 : index
    %5 = vector.load %arg3[%c0_3, %c1] : memref<40x2xf32, #tpu.memory_space<vmem>>, vector<40x1xf32>
    %6 = vector.broadcast %5 : vector<40x1xf32> to vector<40x128xf32>
    %7 = arith.addf %4, %6 : vector<40x128xf32>
    %cst = arith.constant 0.000000e+00 : f32
    %8 = vector.broadcast %cst : f32 to vector<40x128xf32>
    %9 = arith.maximumf %7, %8 : vector<40x128xf32>
    %10 = arith.truncf %9 : vector<40x128xf32> to vector<40x128xbf16>
    %c0_4 = arith.constant 0 : index
    %c0_5 = arith.constant 0 : index
    %11 = vector.load %arg1[%c0_4, %c0_5] : memref<16x40xbf16, #tpu.memory_space<vmem>>, vector<16x40xbf16>
    %cst_6 = arith.constant dense<0.000000e+00> : vector<16x128xf32>
    %12 = tpu.matmul %11, %10, %cst_6 {dimension_numbers = #tpu.dot_dimension_numbers<[1], [0], [0], [1], [0, 0, 1, 1], [], []>} : vector<16x40xbf16>, vector<40x128xbf16>, vector<16x128xf32> -> vector<16x128xf32>
    %c0_7 = arith.constant 0 : index
    %c0_8 = arith.constant 0 : index
    %13 = vector.load %arg4[%c0_7, %c0_8] : memref<16x1xf32, #tpu.memory_space<vmem>>, vector<16x1xf32>
    %14 = vector.broadcast %13 : vector<16x1xf32> to vector<16x128xf32>
    %15 = arith.addf %12, %14 : vector<16x128xf32>
    %cst_9 = arith.constant 0.000000e+00 : f32
    %16 = vector.broadcast %cst_9 : f32 to vector<16x128xf32>
    %17 = arith.maximumf %15, %16 : vector<16x128xf32>
    %18 = arith.truncf %17 : vector<16x128xf32> to vector<16x128xbf16>
    %c0_10 = arith.constant 0 : index
    %c0_11 = arith.constant 0 : index
    %19 = vector.load %arg5[%c0_10, %c0_11] : memref<16x128xbf16, #tpu.memory_space<vmem>>, vector<16x128xbf16>
    tpu.vector_store %arg5[%c0_10, %c0_11], %18 {strides = array<i32>} : memref<16x128xbf16, #tpu.memory_space<vmem>>, vector<16x128xbf16>,
    return
  }
  func.func @transform_0(%arg0: i32) -> (i32, i32) {
    %c0_i32 = arith.constant 0 : i32
    %c0_i32_0 = arith.constant 0 : i32
    %c0_i32_1 = arith.constant 0 : i32
    return %c0_i32, %c0_i32_0 : i32, i32
  }
  func.func @transform_1(%arg0: i32) -> (i32, i32) {
    %c0_i32 = arith.constant 0 : i32
    %c0_i32_0 = arith.constant 0 : i32
    return %c0_i32, %arg0 : i32, i32
  }
  func.func @transform_2(%arg0: i32) -> (i32, i32) {
    %c0_i32 = arith.constant 0 : i32
    %c0_i32_0 = arith.constant 0 : i32
    %c0_i32_1 = arith.constant 0 : i32
    return %c0_i32, %c0_i32_0 : i32, i32
  }
  func.func @transform_3(%arg0: i32) -> (i32, i32) {
    %c0_i32 = arith.constant 0 : i32
    %c0_i32_0 = arith.constant 0 : i32
    %c0_i32_1 = arith.constant 0 : i32
    return %c0_i32, %c0_i32_0 : i32, i32
  }
  func.func @transform_4(%arg0: i32) -> (i32, i32) {
    %c0_i32 = arith.constant 0 : i32
    %c0_i32_0 = arith.constant 0 : i32
    return %c0_i32, %arg0 : i32, i32
  }
}

module attributes {stable_mosaic.version = 11 : i64} {
  func.func @_fused_mm_kernel(%arg0: i32, %arg1: memref<24x48xbf16, #tpu.memory_space<vmem>>, %arg2: memref<48x128xbf16, #tpu.memory_space<vmem>>, %arg3: memref<48x2xf32, #tpu.memory_space<vmem>>, %arg4: memref<24x128xbf16, #tpu.memory_space<vmem>>) attributes {dimension_semantics = [#tpu.dimension_semantics<parallel>], iteration_bounds = array<i64: 1>, scalar_prefetch = 0 : i64, scratch_operands = 0 : i64, tpu.core_type = #tpu.core_type<tc>, window_params = [{pipeline_mode = #tpu.pipeline_mode<synchronous>, transform_indices = @transform_0, window_bounds = array<i64: 24, 48>}, {transform_indices = @transform_1, window_bounds = array<i64: 48, 128>}, {pipeline_mode = #tpu.pipeline_mode<synchronous>, transform_indices = @transform_2, window_bounds = array<i64: 48, 2>}, {transform_indices = @transform_3, window_bounds = array<i64: 24, 128>}]} {
    %c0 = arith.constant 0 : index
    %c0_0 = arith.constant 0 : index
    %0 = vector.load %arg2[%c0, %c0_0] : memref<48x128xbf16, #tpu.memory_space<vmem>>, vector<48x128xbf16>
    %1 = arith.extf %0 : vector<48x128xbf16> to vector<48x128xf32>
    %c0_1 = arith.constant 0 : index
    %c0_2 = arith.constant 0 : index
    %2 = vector.load %arg3[%c0_1, %c0_2] : memref<48x2xf32, #tpu.memory_space<vmem>>, vector<48x1xf32>
    %3 = vector.broadcast %2 : vector<48x1xf32> to vector<48x128xf32>
    %4 = arith.mulf %1, %3 : vector<48x128xf32>
    %c0_3 = arith.constant 0 : index
    %c1 = arith.constant 1 : index
    %5 = vector.load %arg3[%c0_3, %c1] : memref<48x2xf32, #tpu.memory_space<vmem>>, vector<48x1xf32>
    %6 = vector.broadcast %5 : vector<48x1xf32> to vector<48x128xf32>
    %7 = arith.addf %4, %6 : vector<48x128xf32>
    %cst = arith.constant 0.000000e+00 : f32
    %8 = vector.broadcast %cst : f32 to vector<48x128xf32>
    %9 = arith.maximumf %7, %8 : vector<48x128xf32>
    %10 = arith.truncf %9 : vector<48x128xf32> to vector<48x128xbf16>
    %c0_4 = arith.constant 0 : index
    %c0_5 = arith.constant 0 : index
    %11 = vector.load %arg1[%c0_4, %c0_5] : memref<24x48xbf16, #tpu.memory_space<vmem>>, vector<24x48xbf16>
    %cst_6 = arith.constant dense<0.000000e+00> : vector<24x128xf32>
    %12 = tpu.matmul %11, %10, %cst_6 {dimension_numbers = #tpu.dot_dimension_numbers<[1], [0], [0], [1], [0, 0, 1, 1], [], []>} : vector<24x48xbf16>, vector<48x128xbf16>, vector<24x128xf32> -> vector<24x128xf32>
    %13 = arith.truncf %12 : vector<24x128xf32> to vector<24x128xbf16>
    %c0_7 = arith.constant 0 : index
    %c0_8 = arith.constant 0 : index
    %14 = vector.load %arg4[%c0_7, %c0_8] : memref<24x128xbf16, #tpu.memory_space<vmem>>, vector<24x128xbf16>
    tpu.vector_store %arg4[%c0_7, %c0_8], %13 {strides = array<i32>} : memref<24x128xbf16, #tpu.memory_space<vmem>>, vector<24x128xbf16>,
    return
  }
  func.func @transform_0(%arg0: i32) -> (i32, i32) {
    %c0_i32 = arith.constant 0 : i32
    %c0_i32_0 = arith.constant 0 : i32
    %c0_i32_1 = arith.constant 0 : i32
    return %c0_i32, %c0_i32_0 : i32, i32
  }
  func.func @transform_1(%arg0: i32) -> (i32, i32) {
    %c0_i32 = arith.constant 0 : i32
    %c0_i32_0 = arith.constant 0 : i32
    return %c0_i32, %arg0 : i32, i32
  }
  func.func @transform_2(%arg0: i32) -> (i32, i32) {
    %c0_i32 = arith.constant 0 : i32
    %c0_i32_0 = arith.constant 0 : i32
    %c0_i32_1 = arith.constant 0 : i32
    return %c0_i32, %c0_i32_0 : i32, i32
  }
  func.func @transform_3(%arg0: i32) -> (i32, i32) {
    %c0_i32 = arith.constant 0 : i32
    %c0_i32_0 = arith.constant 0 : i32
    return %c0_i32, %arg0 : i32, i32
  }
}

module attributes {stable_mosaic.version = 11 : i64} {
  func.func @_cam_local_kernel(%arg0: i32, %arg1: memref<3x8x16xbf16, #tpu.memory_space<vmem>>, %arg2: memref<16x40xbf16, #tpu.memory_space<vmem>>, %arg3: memref<16x2xf32, #tpu.memory_space<vmem>>, %arg4: memref<8x16xf32, #tpu.memory_space<vmem>>, %arg5: memref<8x1xf32, #tpu.memory_space<vmem>>, %arg6: memref<8x8xf32, #tpu.memory_space<vmem>>, %arg7: memref<8x1xf32, #tpu.memory_space<vmem>>, %arg8: memref<8x32xbf16, #tpu.memory_space<vmem>>) attributes {dimension_semantics = [#tpu.dimension_semantics<arbitrary>], iteration_bounds = array<i64: 1>, scalar_prefetch = 0 : i64, scratch_operands = 0 : i64, tpu.core_type = #tpu.core_type<tc>, window_params = [{pipeline_mode = #tpu.pipeline_mode<synchronous>, transform_indices = @transform_0, window_bounds = array<i64: 3, 8, 16>}, {pipeline_mode = #tpu.pipeline_mode<synchronous>, transform_indices = @transform_1, window_bounds = array<i64: 16, 40>}, {pipeline_mode = #tpu.pipeline_mode<synchronous>, transform_indices = @transform_2, window_bounds = array<i64: 16, 2>}, {pipeline_mode = #tpu.pipeline_mode<synchronous>, transform_indices = @transform_3, window_bounds = array<i64: 8, 16>}, {pipeline_mode = #tpu.pipeline_mode<synchronous>, transform_indices = @transform_4, window_bounds = array<i64: 8, 1>}, {pipeline_mode = #tpu.pipeline_mode<synchronous>, transform_indices = @transform_5, window_bounds = array<i64: 8, 8>}, {pipeline_mode = #tpu.pipeline_mode<synchronous>, transform_indices = @transform_6, window_bounds = array<i64: 8, 1>}, {pipeline_mode = #tpu.pipeline_mode<synchronous>, transform_indices = @transform_7, window_bounds = array<i64: 8, 32>}]} {
    %c0 = arith.constant 0 : index
    %c0_0 = arith.constant 0 : index
    %0 = vector.load %arg4[%c0, %c0_0] : memref<8x16xf32, #tpu.memory_space<vmem>>, vector<8x16xf32>
    %c0_1 = arith.constant 0 : index
    %c0_2 = arith.constant 0 : index
    %1 = vector.load %arg3[%c0_1, %c0_2] : memref<16x2xf32, #tpu.memory_space<vmem>>, vector<16x2xf32>
    %cst = arith.constant dense<0.000000e+00> : vector<8x2xf32>
    %2 = tpu.matmul %0, %1, %cst {dimension_numbers = #tpu.dot_dimension_numbers<[1], [0], [0], [1], [0, 0, 1, 1], [], []>} : vector<8x16xf32>, vector<16x2xf32>, vector<8x2xf32> -> vector<8x2xf32>
    %c0_3 = arith.constant 0 : index
    %c0_4 = arith.constant 0 : index
    %3 = vector.load %arg5[%c0_3, %c0_4] : memref<8x1xf32, #tpu.memory_space<vmem>>, vector<8x1xf32>
    %4 = vector.broadcast %3 : vector<8x1xf32> to vector<8x2xf32>
    %5 = arith.addf %2, %4 : vector<8x2xf32>
    %cst_5 = arith.constant 0.000000e+00 : f32
    %6 = vector.broadcast %cst_5 : f32 to vector<8x2xf32>
    %7 = arith.maximumf %5, %6 : vector<8x2xf32>
    %c0_6 = arith.constant 0 : index
    %c0_7 = arith.constant 0 : index
    %8 = vector.load %arg6[%c0_6, %c0_7] : memref<8x8xf32, #tpu.memory_space<vmem>>, vector<8x8xf32>
    %cst_8 = arith.constant dense<0.000000e+00> : vector<8x2xf32>
    %9 = tpu.matmul %8, %7, %cst_8 {dimension_numbers = #tpu.dot_dimension_numbers<[1], [0], [0], [1], [0, 0, 1, 1], [], []>} : vector<8x8xf32>, vector<8x2xf32>, vector<8x2xf32> -> vector<8x2xf32>
    %c0_9 = arith.constant 0 : index
    %c0_10 = arith.constant 0 : index
    %10 = vector.load %arg7[%c0_9, %c0_10] : memref<8x1xf32, #tpu.memory_space<vmem>>, vector<8x1xf32>
    %11 = vector.broadcast %10 : vector<8x1xf32> to vector<8x2xf32>
    %12 = arith.addf %9, %11 : vector<8x2xf32>
    %13 = arith.negf %12 : vector<8x2xf32>
    %14 = math.exp %13 : vector<8x2xf32>
    %cst_11 = arith.constant 1.000000e+00 : f32
    %15 = vector.broadcast %cst_11 : f32 to vector<8x2xf32>
    %16 = arith.addf %15, %14 : vector<8x2xf32>
    %17 = arith.divf %15, %16 : vector<8x2xf32>
    %c0_12 = arith.constant 0 : index
    %c0_13 = arith.constant 0 : index
    %18 = vector.load %arg2[%c0_12, %c0_13] : memref<16x40xbf16, #tpu.memory_space<vmem>>, vector<16x40xbf16>
    %19 = vector.extract_strided_slice %18 {offsets = [0, 0], sizes = [16, 16], strides = [1, 1]} : vector<16x40xbf16> to vector<16x16xbf16>
    %c0_14 = arith.constant 0 : index
    %c0_15 = arith.constant 0 : index
    %c0_16 = arith.constant 0 : index
    %20 = vector.load %arg1[%c0_14, %c0_15, %c0_16] : memref<3x8x16xbf16, #tpu.memory_space<vmem>>, vector<1x8x16xbf16>
    %21 = vector.shape_cast %20 : vector<1x8x16xbf16> to vector<8x16xbf16>
    %cst_17 = arith.constant dense<0.000000e+00> : vector<8x16xf32>
    %22 = tpu.matmul %21, %19, %cst_17 {dimension_numbers = #tpu.dot_dimension_numbers<[1], [0], [0], [1], [0, 0, 1, 1], [], []>} : vector<8x16xbf16>, vector<16x16xbf16>, vector<8x16xf32> -> vector<8x16xf32>
    %23 = vector.extract_strided_slice %18 {offsets = [0, 2], sizes = [16, 16], strides = [1, 1]} : vector<16x40xbf16> to vector<16x16xbf16>
    %c1 = arith.constant 1 : index
    %c0_18 = arith.constant 0 : index
    %c0_19 = arith.constant 0 : index
    %24 = vector.load %arg1[%c1, %c0_18, %c0_19] : memref<3x8x16xbf16, #tpu.memory_space<vmem>>, vector<1x8x16xbf16>
    %25 = vector.shape_cast %24 : vector<1x8x16xbf16> to vector<8x16xbf16>
    %cst_20 = arith.constant dense<0.000000e+00> : vector<8x16xf32>
    %26 = tpu.matmul %25, %23, %cst_20 {dimension_numbers = #tpu.dot_dimension_numbers<[1], [0], [0], [1], [0, 0, 1, 1], [], []>} : vector<8x16xbf16>, vector<16x16xbf16>, vector<8x16xf32> -> vector<8x16xf32>
    %27 = arith.addf %22, %26 : vector<8x16xf32>
    %28 = vector.extract_strided_slice %18 {offsets = [0, 4], sizes = [16, 16], strides = [1, 1]} : vector<16x40xbf16> to vector<16x16xbf16>
    %c2 = arith.constant 2 : index
    %c0_21 = arith.constant 0 : index
    %c0_22 = arith.constant 0 : index
    %29 = vector.load %arg1[%c2, %c0_21, %c0_22] : memref<3x8x16xbf16, #tpu.memory_space<vmem>>, vector<1x8x16xbf16>
    %30 = vector.shape_cast %29 : vector<1x8x16xbf16> to vector<8x16xbf16>
    %cst_23 = arith.constant dense<0.000000e+00> : vector<8x16xf32>
    %31 = tpu.matmul %30, %28, %cst_23 {dimension_numbers = #tpu.dot_dimension_numbers<[1], [0], [0], [1], [0, 0, 1, 1], [], []>} : vector<8x16xbf16>, vector<16x16xbf16>, vector<8x16xf32> -> vector<8x16xf32>
    %32 = arith.addf %27, %31 : vector<8x16xf32>
    %33 = vector.extract_strided_slice %17 {offsets = [0, 0], sizes = [8, 1], strides = [1, 1]} : vector<8x2xf32> to vector<8x1xf32>
    %34 = vector.shape_cast %33 : vector<8x1xf32> to vector<8x1xf32>
    %35 = vector.broadcast %34 : vector<8x1xf32> to vector<8x16xf32>
    %36 = arith.mulf %32, %35 : vector<8x16xf32>
    %37 = arith.truncf %36 : vector<8x16xf32> to vector<8x16xbf16>
    %c0_24 = arith.constant 0 : index
    %c0_25 = arith.constant 0 : index
    %38 = vector.load %arg8[%c0_24, %c0_25] : memref<8x32xbf16, #tpu.memory_space<vmem>>, vector<8x16xbf16>
    tpu.vector_store %arg8[%c0_24, %c0_25], %37 {strides = array<i32>} : memref<8x32xbf16, #tpu.memory_space<vmem>>, vector<8x16xbf16>,
    %39 = vector.extract_strided_slice %18 {offsets = [0, 20], sizes = [16, 16], strides = [1, 1]} : vector<16x40xbf16> to vector<16x16xbf16>
    %c0_26 = arith.constant 0 : index
    %c0_27 = arith.constant 0 : index
    %c0_28 = arith.constant 0 : index
    %40 = vector.load %arg1[%c0_26, %c0_27, %c0_28] : memref<3x8x16xbf16, #tpu.memory_space<vmem>>, vector<1x8x16xbf16>
    %41 = vector.shape_cast %40 : vector<1x8x16xbf16> to vector<8x16xbf16>
    %cst_29 = arith.constant dense<0.000000e+00> : vector<8x16xf32>
    %42 = tpu.matmul %41, %39, %cst_29 {dimension_numbers = #tpu.dot_dimension_numbers<[1], [0], [0], [1], [0, 0, 1, 1], [], []>} : vector<8x16xbf16>, vector<16x16xbf16>, vector<8x16xf32> -> vector<8x16xf32>
    %43 = vector.extract_strided_slice %18 {offsets = [0, 22], sizes = [16, 16], strides = [1, 1]} : vector<16x40xbf16> to vector<16x16xbf16>
    %c1_30 = arith.constant 1 : index
    %c0_31 = arith.constant 0 : index
    %c0_32 = arith.constant 0 : index
    %44 = vector.load %arg1[%c1_30, %c0_31, %c0_32] : memref<3x8x16xbf16, #tpu.memory_space<vmem>>, vector<1x8x16xbf16>
    %45 = vector.shape_cast %44 : vector<1x8x16xbf16> to vector<8x16xbf16>
    %cst_33 = arith.constant dense<0.000000e+00> : vector<8x16xf32>
    %46 = tpu.matmul %45, %43, %cst_33 {dimension_numbers = #tpu.dot_dimension_numbers<[1], [0], [0], [1], [0, 0, 1, 1], [], []>} : vector<8x16xbf16>, vector<16x16xbf16>, vector<8x16xf32> -> vector<8x16xf32>
    %47 = arith.addf %42, %46 : vector<8x16xf32>
    %48 = vector.extract_strided_slice %18 {offsets = [0, 24], sizes = [16, 16], strides = [1, 1]} : vector<16x40xbf16> to vector<16x16xbf16>
    %c2_34 = arith.constant 2 : index
    %c0_35 = arith.constant 0 : index
    %c0_36 = arith.constant 0 : index
    %49 = vector.load %arg1[%c2_34, %c0_35, %c0_36] : memref<3x8x16xbf16, #tpu.memory_space<vmem>>, vector<1x8x16xbf16>
    %50 = vector.shape_cast %49 : vector<1x8x16xbf16> to vector<8x16xbf16>
    %cst_37 = arith.constant dense<0.000000e+00> : vector<8x16xf32>
    %51 = tpu.matmul %50, %48, %cst_37 {dimension_numbers = #tpu.dot_dimension_numbers<[1], [0], [0], [1], [0, 0, 1, 1], [], []>} : vector<8x16xbf16>, vector<16x16xbf16>, vector<8x16xf32> -> vector<8x16xf32>
    %52 = arith.addf %47, %51 : vector<8x16xf32>
    %53 = vector.extract_strided_slice %17 {offsets = [0, 1], sizes = [8, 1], strides = [1, 1]} : vector<8x2xf32> to vector<8x1xf32>
    %54 = vector.shape_cast %53 : vector<8x1xf32> to vector<8x1xf32>
    %55 = vector.broadcast %54 : vector<8x1xf32> to vector<8x16xf32>
    %56 = arith.mulf %52, %55 : vector<8x16xf32>
    %57 = arith.truncf %56 : vector<8x16xf32> to vector<8x16xbf16>
    %c0_38 = arith.constant 0 : index
    %c16 = arith.constant 16 : index
    %58 = vector.load %arg8[%c0_38, %c16] : memref<8x32xbf16, #tpu.memory_space<vmem>>, vector<8x16xbf16>
    tpu.vector_store %arg8[%c0_38, %c16], %57 {strides = array<i32>} : memref<8x32xbf16, #tpu.memory_space<vmem>>, vector<8x16xbf16>,
    return
  }
  func.func @transform_0(%arg0: i32) -> (i32, i32, i32) {
    %c0_i32 = arith.constant 0 : i32
    %c0_i32_0 = arith.constant 0 : i32
    %c0_i32_1 = arith.constant 0 : i32
    %c0_i32_2 = arith.constant 0 : i32
    return %c0_i32, %c0_i32_0, %c0_i32_1 : i32, i32, i32
  }
  func.func @transform_1(%arg0: i32) -> (i32, i32) {
    %c0_i32 = arith.constant 0 : i32
    %c0_i32_0 = arith.constant 0 : i32
    %c0_i32_1 = arith.constant 0 : i32
    return %c0_i32, %c0_i32_0 : i32, i32
  }
  func.func @transform_2(%arg0: i32) -> (i32, i32) {
    %c0_i32 = arith.constant 0 : i32
    %c0_i32_0 = arith.constant 0 : i32
    %c0_i32_1 = arith.constant 0 : i32
    return %c0_i32, %c0_i32_0 : i32, i32
  }
  func.func @transform_3(%arg0: i32) -> (i32, i32) {
    %c0_i32 = arith.constant 0 : i32
    %c0_i32_0 = arith.constant 0 : i32
    %c0_i32_1 = arith.constant 0 : i32
    return %c0_i32, %c0_i32_0 : i32, i32
  }
  func.func @transform_4(%arg0: i32) -> (i32, i32) {
    %c0_i32 = arith.constant 0 : i32
    %c0_i32_0 = arith.constant 0 : i32
    %c0_i32_1 = arith.constant 0 : i32
    return %c0_i32, %c0_i32_0 : i32, i32
  }
  func.func @transform_5(%arg0: i32) -> (i32, i32) {
    %c0_i32 = arith.constant 0 : i32
    %c0_i32_0 = arith.constant 0 : i32
    %c0_i32_1 = arith.constant 0 : i32
    return %c0_i32, %c0_i32_0 : i32, i32
  }
  func.func @transform_6(%arg0: i32) -> (i32, i32) {
    %c0_i32 = arith.constant 0 : i32
    %c0_i32_0 = arith.constant 0 : i32
    %c0_i32_1 = arith.constant 0 : i32
    return %c0_i32, %c0_i32_0 : i32, i32
  }
  func.func @transform_7(%arg0: i32) -> (i32, i32) {
    %c0_i32 = arith.constant 0 : i32
    %c0_i32_0 = arith.constant 0 : i32
    %c0_i32_1 = arith.constant 0 : i32
    return %c0_i32, %c0_i32_0 : i32, i32
  }
}

module attributes {stable_mosaic.version = 11 : i64} {
  func.func @_fused_mm_kernel(%arg0: i32, %arg1: memref<16x24xbf16, #tpu.memory_space<vmem>>, %arg2: memref<24x128xbf16, #tpu.memory_space<vmem>>, %arg3: memref<24x2xf32, #tpu.memory_space<vmem>>, %arg4: memref<16x1xf32, #tpu.memory_space<vmem>>, %arg5: memref<16x128xbf16, #tpu.memory_space<vmem>>) attributes {dimension_semantics = [#tpu.dimension_semantics<parallel>], iteration_bounds = array<i64: 1>, scalar_prefetch = 0 : i64, scratch_operands = 0 : i64, tpu.core_type = #tpu.core_type<tc>, window_params = [{pipeline_mode = #tpu.pipeline_mode<synchronous>, transform_indices = @transform_0, window_bounds = array<i64: 16, 24>}, {transform_indices = @transform_1, window_bounds = array<i64: 24, 128>}, {pipeline_mode = #tpu.pipeline_mode<synchronous>, transform_indices = @transform_2, window_bounds = array<i64: 24, 2>}, {pipeline_mode = #tpu.pipeline_mode<synchronous>, transform_indices = @transform_3, window_bounds = array<i64: 16, 1>}, {transform_indices = @transform_4, window_bounds = array<i64: 16, 128>}]} {
    %c0 = arith.constant 0 : index
    %c0_0 = arith.constant 0 : index
    %0 = vector.load %arg2[%c0, %c0_0] : memref<24x128xbf16, #tpu.memory_space<vmem>>, vector<24x128xbf16>
    %1 = arith.extf %0 : vector<24x128xbf16> to vector<24x128xf32>
    %c0_1 = arith.constant 0 : index
    %c0_2 = arith.constant 0 : index
    %2 = vector.load %arg3[%c0_1, %c0_2] : memref<24x2xf32, #tpu.memory_space<vmem>>, vector<24x1xf32>
    %3 = vector.broadcast %2 : vector<24x1xf32> to vector<24x128xf32>
    %4 = arith.mulf %1, %3 : vector<24x128xf32>
    %c0_3 = arith.constant 0 : index
    %c1 = arith.constant 1 : index
    %5 = vector.load %arg3[%c0_3, %c1] : memref<24x2xf32, #tpu.memory_space<vmem>>, vector<24x1xf32>
    %6 = vector.broadcast %5 : vector<24x1xf32> to vector<24x128xf32>
    %7 = arith.addf %4, %6 : vector<24x128xf32>
    %cst = arith.constant 0.000000e+00 : f32
    %8 = vector.broadcast %cst : f32 to vector<24x128xf32>
    %9 = arith.maximumf %7, %8 : vector<24x128xf32>
    %10 = arith.truncf %9 : vector<24x128xf32> to vector<24x128xbf16>
    %c0_4 = arith.constant 0 : index
    %c0_5 = arith.constant 0 : index
    %11 = vector.load %arg1[%c0_4, %c0_5] : memref<16x24xbf16, #tpu.memory_space<vmem>>, vector<16x24xbf16>
    %cst_6 = arith.constant dense<0.000000e+00> : vector<16x128xf32>
    %12 = tpu.matmul %11, %10, %cst_6 {dimension_numbers = #tpu.dot_dimension_numbers<[1], [0], [0], [1], [0, 0, 1, 1], [], []>} : vector<16x24xbf16>, vector<24x128xbf16>, vector<16x128xf32> -> vector<16x128xf32>
    %c0_7 = arith.constant 0 : index
    %c0_8 = arith.constant 0 : index
    %13 = vector.load %arg4[%c0_7, %c0_8] : memref<16x1xf32, #tpu.memory_space<vmem>>, vector<16x1xf32>
    %14 = vector.broadcast %13 : vector<16x1xf32> to vector<16x128xf32>
    %15 = arith.addf %12, %14 : vector<16x128xf32>
    %cst_9 = arith.constant 0.000000e+00 : f32
    %16 = vector.broadcast %cst_9 : f32 to vector<16x128xf32>
    %17 = arith.maximumf %15, %16 : vector<16x128xf32>
    %18 = arith.truncf %17 : vector<16x128xf32> to vector<16x128xbf16>
    %c0_10 = arith.constant 0 : index
    %c0_11 = arith.constant 0 : index
    %19 = vector.load %arg5[%c0_10, %c0_11] : memref<16x128xbf16, #tpu.memory_space<vmem>>, vector<16x128xbf16>
    tpu.vector_store %arg5[%c0_10, %c0_11], %18 {strides = array<i32>} : memref<16x128xbf16, #tpu.memory_space<vmem>>, vector<16x128xbf16>,
    return
  }
  func.func @transform_0(%arg0: i32) -> (i32, i32) {
    %c0_i32 = arith.constant 0 : i32
    %c0_i32_0 = arith.constant 0 : i32
    %c0_i32_1 = arith.constant 0 : i32
    return %c0_i32, %c0_i32_0 : i32, i32
  }
  func.func @transform_1(%arg0: i32) -> (i32, i32) {
    %c0_i32 = arith.constant 0 : i32
    %c0_i32_0 = arith.constant 0 : i32
    return %c0_i32, %arg0 : i32, i32
  }
  func.func @transform_2(%arg0: i32) -> (i32, i32) {
    %c0_i32 = arith.constant 0 : i32
    %c0_i32_0 = arith.constant 0 : i32
    %c0_i32_1 = arith.constant 0 : i32
    return %c0_i32, %c0_i32_0 : i32, i32
  }
  func.func @transform_3(%arg0: i32) -> (i32, i32) {
    %c0_i32 = arith.constant 0 : i32
    %c0_i32_0 = arith.constant 0 : i32
    %c0_i32_1 = arith.constant 0 : i32
    return %c0_i32, %c0_i32_0 : i32, i32
  }
  func.func @transform_4(%arg0: i32) -> (i32, i32) {
    %c0_i32 = arith.constant 0 : i32
    %c0_i32_0 = arith.constant 0 : i32
    return %c0_i32, %arg0 : i32, i32
  }
}

module attributes {stable_mosaic.version = 11 : i64} {
  func.func @_fused_mm_kernel(%arg0: i32, %arg1: memref<20x40xbf16, #tpu.memory_space<vmem>>, %arg2: memref<40x128xbf16, #tpu.memory_space<vmem>>, %arg3: memref<40x2xf32, #tpu.memory_space<vmem>>, %arg4: memref<20x128xbf16, #tpu.memory_space<vmem>>) attributes {dimension_semantics = [#tpu.dimension_semantics<parallel>], iteration_bounds = array<i64: 1>, scalar_prefetch = 0 : i64, scratch_operands = 0 : i64, tpu.core_type = #tpu.core_type<tc>, window_params = [{pipeline_mode = #tpu.pipeline_mode<synchronous>, transform_indices = @transform_0, window_bounds = array<i64: 20, 40>}, {transform_indices = @transform_1, window_bounds = array<i64: 40, 128>}, {pipeline_mode = #tpu.pipeline_mode<synchronous>, transform_indices = @transform_2, window_bounds = array<i64: 40, 2>}, {transform_indices = @transform_3, window_bounds = array<i64: 20, 128>}]} {
    %c0 = arith.constant 0 : index
    %c0_0 = arith.constant 0 : index
    %0 = vector.load %arg2[%c0, %c0_0] : memref<40x128xbf16, #tpu.memory_space<vmem>>, vector<40x128xbf16>
    %1 = arith.extf %0 : vector<40x128xbf16> to vector<40x128xf32>
    %c0_1 = arith.constant 0 : index
    %c0_2 = arith.constant 0 : index
    %2 = vector.load %arg3[%c0_1, %c0_2] : memref<40x2xf32, #tpu.memory_space<vmem>>, vector<40x1xf32>
    %3 = vector.broadcast %2 : vector<40x1xf32> to vector<40x128xf32>
    %4 = arith.mulf %1, %3 : vector<40x128xf32>
    %c0_3 = arith.constant 0 : index
    %c1 = arith.constant 1 : index
    %5 = vector.load %arg3[%c0_3, %c1] : memref<40x2xf32, #tpu.memory_space<vmem>>, vector<40x1xf32>
    %6 = vector.broadcast %5 : vector<40x1xf32> to vector<40x128xf32>
    %7 = arith.addf %4, %6 : vector<40x128xf32>
    %cst = arith.constant 0.000000e+00 : f32
    %8 = vector.broadcast %cst : f32 to vector<40x128xf32>
    %9 = arith.maximumf %7, %8 : vector<40x128xf32>
    %10 = arith.truncf %9 : vector<40x128xf32> to vector<40x128xbf16>
    %c0_4 = arith.constant 0 : index
    %c0_5 = arith.constant 0 : index
    %11 = vector.load %arg1[%c0_4, %c0_5] : memref<20x40xbf16, #tpu.memory_space<vmem>>, vector<20x40xbf16>
    %cst_6 = arith.constant dense<0.000000e+00> : vector<20x128xf32>
    %12 = tpu.matmul %11, %10, %cst_6 {dimension_numbers = #tpu.dot_dimension_numbers<[1], [0], [0], [1], [0, 0, 1, 1], [], []>} : vector<20x40xbf16>, vector<40x128xbf16>, vector<20x128xf32> -> vector<20x128xf32>
    %13 = arith.truncf %12 : vector<20x128xf32> to vector<20x128xbf16>
    %c0_7 = arith.constant 0 : index
    %c0_8 = arith.constant 0 : index
    %14 = vector.load %arg4[%c0_7, %c0_8] : memref<20x128xbf16, #tpu.memory_space<vmem>>, vector<20x128xbf16>
    tpu.vector_store %arg4[%c0_7, %c0_8], %13 {strides = array<i32>} : memref<20x128xbf16, #tpu.memory_space<vmem>>, vector<20x128xbf16>,
    return
  }
  func.func @transform_0(%arg0: i32) -> (i32, i32) {
    %c0_i32 = arith.constant 0 : i32
    %c0_i32_0 = arith.constant 0 : i32
    %c0_i32_1 = arith.constant 0 : i32
    return %c0_i32, %c0_i32_0 : i32, i32
  }
  func.func @transform_1(%arg0: i32) -> (i32, i32) {
    %c0_i32 = arith.constant 0 : i32
    %c0_i32_0 = arith.constant 0 : i32
    return %c0_i32, %arg0 : i32, i32
  }
  func.func @transform_2(%arg0: i32) -> (i32, i32) {
    %c0_i32 = arith.constant 0 : i32
    %c0_i32_0 = arith.constant 0 : i32
    %c0_i32_1 = arith.constant 0 : i32
    return %c0_i32, %c0_i32_0 : i32, i32
  }
  func.func @transform_3(%arg0: i32) -> (i32, i32) {
    %c0_i32 = arith.constant 0 : i32
    %c0_i32_0 = arith.constant 0 : i32
    return %c0_i32, %arg0 : i32, i32
  }
}

module attributes {stable_mosaic.version = 11 : i64} {
  func.func @_fused_mm_kernel(%arg0: i32, %arg1: memref<16x20xbf16, #tpu.memory_space<vmem>>, %arg2: memref<20x128xbf16, #tpu.memory_space<vmem>>, %arg3: memref<20x2xf32, #tpu.memory_space<vmem>>, %arg4: memref<16x1xf32, #tpu.memory_space<vmem>>, %arg5: memref<16x128xbf16, #tpu.memory_space<vmem>>) attributes {dimension_semantics = [#tpu.dimension_semantics<parallel>], iteration_bounds = array<i64: 1>, scalar_prefetch = 0 : i64, scratch_operands = 0 : i64, tpu.core_type = #tpu.core_type<tc>, window_params = [{pipeline_mode = #tpu.pipeline_mode<synchronous>, transform_indices = @transform_0, window_bounds = array<i64: 16, 20>}, {transform_indices = @transform_1, window_bounds = array<i64: 20, 128>}, {pipeline_mode = #tpu.pipeline_mode<synchronous>, transform_indices = @transform_2, window_bounds = array<i64: 20, 2>}, {pipeline_mode = #tpu.pipeline_mode<synchronous>, transform_indices = @transform_3, window_bounds = array<i64: 16, 1>}, {transform_indices = @transform_4, window_bounds = array<i64: 16, 128>}]} {
    %c0 = arith.constant 0 : index
    %c0_0 = arith.constant 0 : index
    %0 = vector.load %arg2[%c0, %c0_0] : memref<20x128xbf16, #tpu.memory_space<vmem>>, vector<20x128xbf16>
    %1 = arith.extf %0 : vector<20x128xbf16> to vector<20x128xf32>
    %c0_1 = arith.constant 0 : index
    %c0_2 = arith.constant 0 : index
    %2 = vector.load %arg3[%c0_1, %c0_2] : memref<20x2xf32, #tpu.memory_space<vmem>>, vector<20x1xf32>
    %3 = vector.broadcast %2 : vector<20x1xf32> to vector<20x128xf32>
    %4 = arith.mulf %1, %3 : vector<20x128xf32>
    %c0_3 = arith.constant 0 : index
    %c1 = arith.constant 1 : index
    %5 = vector.load %arg3[%c0_3, %c1] : memref<20x2xf32, #tpu.memory_space<vmem>>, vector<20x1xf32>
    %6 = vector.broadcast %5 : vector<20x1xf32> to vector<20x128xf32>
    %7 = arith.addf %4, %6 : vector<20x128xf32>
    %cst = arith.constant 0.000000e+00 : f32
    %8 = vector.broadcast %cst : f32 to vector<20x128xf32>
    %9 = arith.maximumf %7, %8 : vector<20x128xf32>
    %10 = arith.truncf %9 : vector<20x128xf32> to vector<20x128xbf16>
    %c0_4 = arith.constant 0 : index
    %c0_5 = arith.constant 0 : index
    %11 = vector.load %arg1[%c0_4, %c0_5] : memref<16x20xbf16, #tpu.memory_space<vmem>>, vector<16x20xbf16>
    %cst_6 = arith.constant dense<0.000000e+00> : vector<16x128xf32>
    %12 = tpu.matmul %11, %10, %cst_6 {dimension_numbers = #tpu.dot_dimension_numbers<[1], [0], [0], [1], [0, 0, 1, 1], [], []>} : vector<16x20xbf16>, vector<20x128xbf16>, vector<16x128xf32> -> vector<16x128xf32>
    %c0_7 = arith.constant 0 : index
    %c0_8 = arith.constant 0 : index
    %13 = vector.load %arg4[%c0_7, %c0_8] : memref<16x1xf32, #tpu.memory_space<vmem>>, vector<16x1xf32>
    %14 = vector.broadcast %13 : vector<16x1xf32> to vector<16x128xf32>
    %15 = arith.addf %12, %14 : vector<16x128xf32>
    %cst_9 = arith.constant 0.000000e+00 : f32
    %16 = vector.broadcast %cst_9 : f32 to vector<16x128xf32>
    %17 = arith.maximumf %15, %16 : vector<16x128xf32>
    %18 = arith.truncf %17 : vector<16x128xf32> to vector<16x128xbf16>
    %c0_10 = arith.constant 0 : index
    %c0_11 = arith.constant 0 : index
    %19 = vector.load %arg5[%c0_10, %c0_11] : memref<16x128xbf16, #tpu.memory_space<vmem>>, vector<16x128xbf16>
    tpu.vector_store %arg5[%c0_10, %c0_11], %18 {strides = array<i32>} : memref<16x128xbf16, #tpu.memory_space<vmem>>, vector<16x128xbf16>,
    return
  }
  func.func @transform_0(%arg0: i32) -> (i32, i32) {
    %c0_i32 = arith.constant 0 : i32
    %c0_i32_0 = arith.constant 0 : i32
    %c0_i32_1 = arith.constant 0 : i32
    return %c0_i32, %c0_i32_0 : i32, i32
  }
  func.func @transform_1(%arg0: i32) -> (i32, i32) {
    %c0_i32 = arith.constant 0 : i32
    %c0_i32_0 = arith.constant 0 : i32
    return %c0_i32, %arg0 : i32, i32
  }
  func.func @transform_2(%arg0: i32) -> (i32, i32) {
    %c0_i32 = arith.constant 0 : i32
    %c0_i32_0 = arith.constant 0 : i32
    %c0_i32_1 = arith.constant 0 : i32
    return %c0_i32, %c0_i32_0 : i32, i32
  }
  func.func @transform_3(%arg0: i32) -> (i32, i32) {
    %c0_i32 = arith.constant 0 : i32
    %c0_i32_0 = arith.constant 0 : i32
    %c0_i32_1 = arith.constant 0 : i32
    return %c0_i32, %c0_i32_0 : i32, i32
  }
  func.func @transform_4(%arg0: i32) -> (i32, i32) {
    %c0_i32 = arith.constant 0 : i32
    %c0_i32_0 = arith.constant 0 : i32
    return %c0_i32, %arg0 : i32, i32
  }
}

module attributes {stable_mosaic.version = 11 : i64} {
  func.func @_fused_mm_kernel(%arg0: i32, %arg1: memref<16x28xbf16, #tpu.memory_space<vmem>>, %arg2: memref<28x128xbf16, #tpu.memory_space<vmem>>, %arg3: memref<28x2xf32, #tpu.memory_space<vmem>>, %arg4: memref<16x1xf32, #tpu.memory_space<vmem>>, %arg5: memref<16x128xbf16, #tpu.memory_space<vmem>>) attributes {dimension_semantics = [#tpu.dimension_semantics<parallel>], iteration_bounds = array<i64: 1>, scalar_prefetch = 0 : i64, scratch_operands = 0 : i64, tpu.core_type = #tpu.core_type<tc>, window_params = [{pipeline_mode = #tpu.pipeline_mode<synchronous>, transform_indices = @transform_0, window_bounds = array<i64: 16, 28>}, {transform_indices = @transform_1, window_bounds = array<i64: 28, 128>}, {pipeline_mode = #tpu.pipeline_mode<synchronous>, transform_indices = @transform_2, window_bounds = array<i64: 28, 2>}, {pipeline_mode = #tpu.pipeline_mode<synchronous>, transform_indices = @transform_3, window_bounds = array<i64: 16, 1>}, {transform_indices = @transform_4, window_bounds = array<i64: 16, 128>}]} {
    %c0 = arith.constant 0 : index
    %c0_0 = arith.constant 0 : index
    %0 = vector.load %arg2[%c0, %c0_0] : memref<28x128xbf16, #tpu.memory_space<vmem>>, vector<28x128xbf16>
    %1 = arith.extf %0 : vector<28x128xbf16> to vector<28x128xf32>
    %c0_1 = arith.constant 0 : index
    %c0_2 = arith.constant 0 : index
    %2 = vector.load %arg3[%c0_1, %c0_2] : memref<28x2xf32, #tpu.memory_space<vmem>>, vector<28x1xf32>
    %3 = vector.broadcast %2 : vector<28x1xf32> to vector<28x128xf32>
    %4 = arith.mulf %1, %3 : vector<28x128xf32>
    %c0_3 = arith.constant 0 : index
    %c1 = arith.constant 1 : index
    %5 = vector.load %arg3[%c0_3, %c1] : memref<28x2xf32, #tpu.memory_space<vmem>>, vector<28x1xf32>
    %6 = vector.broadcast %5 : vector<28x1xf32> to vector<28x128xf32>
    %7 = arith.addf %4, %6 : vector<28x128xf32>
    %cst = arith.constant 0.000000e+00 : f32
    %8 = vector.broadcast %cst : f32 to vector<28x128xf32>
    %9 = arith.maximumf %7, %8 : vector<28x128xf32>
    %10 = arith.truncf %9 : vector<28x128xf32> to vector<28x128xbf16>
    %c0_4 = arith.constant 0 : index
    %c0_5 = arith.constant 0 : index
    %11 = vector.load %arg1[%c0_4, %c0_5] : memref<16x28xbf16, #tpu.memory_space<vmem>>, vector<16x28xbf16>
    %cst_6 = arith.constant dense<0.000000e+00> : vector<16x128xf32>
    %12 = tpu.matmul %11, %10, %cst_6 {dimension_numbers = #tpu.dot_dimension_numbers<[1], [0], [0], [1], [0, 0, 1, 1], [], []>} : vector<16x28xbf16>, vector<28x128xbf16>, vector<16x128xf32> -> vector<16x128xf32>
    %c0_7 = arith.constant 0 : index
    %c0_8 = arith.constant 0 : index
    %13 = vector.load %arg4[%c0_7, %c0_8] : memref<16x1xf32, #tpu.memory_space<vmem>>, vector<16x1xf32>
    %14 = vector.broadcast %13 : vector<16x1xf32> to vector<16x128xf32>
    %15 = arith.addf %12, %14 : vector<16x128xf32>
    %cst_9 = arith.constant 0.000000e+00 : f32
    %16 = vector.broadcast %cst_9 : f32 to vector<16x128xf32>
    %17 = arith.maximumf %15, %16 : vector<16x128xf32>
    %18 = arith.truncf %17 : vector<16x128xf32> to vector<16x128xbf16>
    %c0_10 = arith.constant 0 : index
    %c0_11 = arith.constant 0 : index
    %19 = vector.load %arg5[%c0_10, %c0_11] : memref<16x128xbf16, #tpu.memory_space<vmem>>, vector<16x128xbf16>
    tpu.vector_store %arg5[%c0_10, %c0_11], %18 {strides = array<i32>} : memref<16x128xbf16, #tpu.memory_space<vmem>>, vector<16x128xbf16>,
    return
  }
  func.func @transform_0(%arg0: i32) -> (i32, i32) {
    %c0_i32 = arith.constant 0 : i32
    %c0_i32_0 = arith.constant 0 : i32
    %c0_i32_1 = arith.constant 0 : i32
    return %c0_i32, %c0_i32_0 : i32, i32
  }
  func.func @transform_1(%arg0: i32) -> (i32, i32) {
    %c0_i32 = arith.constant 0 : i32
    %c0_i32_0 = arith.constant 0 : i32
    return %c0_i32, %arg0 : i32, i32
  }
  func.func @transform_2(%arg0: i32) -> (i32, i32) {
    %c0_i32 = arith.constant 0 : i32
    %c0_i32_0 = arith.constant 0 : i32
    %c0_i32_1 = arith.constant 0 : i32
    return %c0_i32, %c0_i32_0 : i32, i32
  }
  func.func @transform_3(%arg0: i32) -> (i32, i32) {
    %c0_i32 = arith.constant 0 : i32
    %c0_i32_0 = arith.constant 0 : i32
    %c0_i32_1 = arith.constant 0 : i32
    return %c0_i32, %c0_i32_0 : i32, i32
  }
  func.func @transform_4(%arg0: i32) -> (i32, i32) {
    %c0_i32 = arith.constant 0 : i32
    %c0_i32_0 = arith.constant 0 : i32
    return %c0_i32, %arg0 : i32, i32
  }
}

module attributes {stable_mosaic.version = 11 : i64} {
  func.func @_fused_mm_kernel(%arg0: i32, %arg1: memref<18x36xbf16, #tpu.memory_space<vmem>>, %arg2: memref<36x128xbf16, #tpu.memory_space<vmem>>, %arg3: memref<36x2xf32, #tpu.memory_space<vmem>>, %arg4: memref<18x128xbf16, #tpu.memory_space<vmem>>) attributes {dimension_semantics = [#tpu.dimension_semantics<parallel>], iteration_bounds = array<i64: 1>, scalar_prefetch = 0 : i64, scratch_operands = 0 : i64, tpu.core_type = #tpu.core_type<tc>, window_params = [{pipeline_mode = #tpu.pipeline_mode<synchronous>, transform_indices = @transform_0, window_bounds = array<i64: 18, 36>}, {transform_indices = @transform_1, window_bounds = array<i64: 36, 128>}, {pipeline_mode = #tpu.pipeline_mode<synchronous>, transform_indices = @transform_2, window_bounds = array<i64: 36, 2>}, {transform_indices = @transform_3, window_bounds = array<i64: 18, 128>}]} {
    %c0 = arith.constant 0 : index
    %c0_0 = arith.constant 0 : index
    %0 = vector.load %arg2[%c0, %c0_0] : memref<36x128xbf16, #tpu.memory_space<vmem>>, vector<36x128xbf16>
    %1 = arith.extf %0 : vector<36x128xbf16> to vector<36x128xf32>
    %c0_1 = arith.constant 0 : index
    %c0_2 = arith.constant 0 : index
    %2 = vector.load %arg3[%c0_1, %c0_2] : memref<36x2xf32, #tpu.memory_space<vmem>>, vector<36x1xf32>
    %3 = vector.broadcast %2 : vector<36x1xf32> to vector<36x128xf32>
    %4 = arith.mulf %1, %3 : vector<36x128xf32>
    %c0_3 = arith.constant 0 : index
    %c1 = arith.constant 1 : index
    %5 = vector.load %arg3[%c0_3, %c1] : memref<36x2xf32, #tpu.memory_space<vmem>>, vector<36x1xf32>
    %6 = vector.broadcast %5 : vector<36x1xf32> to vector<36x128xf32>
    %7 = arith.addf %4, %6 : vector<36x128xf32>
    %cst = arith.constant 0.000000e+00 : f32
    %8 = vector.broadcast %cst : f32 to vector<36x128xf32>
    %9 = arith.maximumf %7, %8 : vector<36x128xf32>
    %10 = arith.truncf %9 : vector<36x128xf32> to vector<36x128xbf16>
    %c0_4 = arith.constant 0 : index
    %c0_5 = arith.constant 0 : index
    %11 = vector.load %arg1[%c0_4, %c0_5] : memref<18x36xbf16, #tpu.memory_space<vmem>>, vector<18x36xbf16>
    %cst_6 = arith.constant dense<0.000000e+00> : vector<18x128xf32>
    %12 = tpu.matmul %11, %10, %cst_6 {dimension_numbers = #tpu.dot_dimension_numbers<[1], [0], [0], [1], [0, 0, 1, 1], [], []>} : vector<18x36xbf16>, vector<36x128xbf16>, vector<18x128xf32> -> vector<18x128xf32>
    %13 = arith.truncf %12 : vector<18x128xf32> to vector<18x128xbf16>
    %c0_7 = arith.constant 0 : index
    %c0_8 = arith.constant 0 : index
    %14 = vector.load %arg4[%c0_7, %c0_8] : memref<18x128xbf16, #tpu.memory_space<vmem>>, vector<18x128xbf16>
    tpu.vector_store %arg4[%c0_7, %c0_8], %13 {strides = array<i32>} : memref<18x128xbf16, #tpu.memory_space<vmem>>, vector<18x128xbf16>,
    return
  }
  func.func @transform_0(%arg0: i32) -> (i32, i32) {
    %c0_i32 = arith.constant 0 : i32
    %c0_i32_0 = arith.constant 0 : i32
    %c0_i32_1 = arith.constant 0 : i32
    return %c0_i32, %c0_i32_0 : i32, i32
  }
  func.func @transform_1(%arg0: i32) -> (i32, i32) {
    %c0_i32 = arith.constant 0 : i32
    %c0_i32_0 = arith.constant 0 : i32
    return %c0_i32, %arg0 : i32, i32
  }
  func.func @transform_2(%arg0: i32) -> (i32, i32) {
    %c0_i32 = arith.constant 0 : i32
    %c0_i32_0 = arith.constant 0 : i32
    %c0_i32_1 = arith.constant 0 : i32
    return %c0_i32, %c0_i32_0 : i32, i32
  }
  func.func @transform_3(%arg0: i32) -> (i32, i32) {
    %c0_i32 = arith.constant 0 : i32
    %c0_i32_0 = arith.constant 0 : i32
    return %c0_i32, %arg0 : i32, i32
  }
}

module attributes {stable_mosaic.version = 11 : i64} {
  func.func @_stats_kernel(%arg0: i32, %arg1: memref<36x128xbf16, #tpu.memory_space<vmem>>, %arg2: memref<36x1xf32, #tpu.memory_space<vmem>>, %arg3: memref<36x1xf32, #tpu.memory_space<vmem>>, %arg4: memref<36x1xf32, #tpu.memory_space<vmem>>, %arg5: memref<36x1xf32, #tpu.memory_space<vmem>>, %arg6: memref<36x1xf32, #tpu.memory_space<vmem>>, %arg7: memref<36x1xf32, #tpu.memory_space<vmem>>) attributes {dimension_semantics = [#tpu.dimension_semantics<arbitrary>], iteration_bounds = array<i64: 1>, scalar_prefetch = 0 : i64, scratch_operands = 2 : i64, tpu.core_type = #tpu.core_type<tc>, window_params = [{transform_indices = @transform_0, window_bounds = array<i64: 36, 128>}, {pipeline_mode = #tpu.pipeline_mode<synchronous>, transform_indices = @transform_1, window_bounds = array<i64: 36, 1>}, {pipeline_mode = #tpu.pipeline_mode<synchronous>, transform_indices = @transform_2, window_bounds = array<i64: 36, 1>}, {pipeline_mode = #tpu.pipeline_mode<synchronous>, transform_indices = @transform_3, window_bounds = array<i64: 36, 1>}, {pipeline_mode = #tpu.pipeline_mode<synchronous>, transform_indices = @transform_4, window_bounds = array<i64: 36, 1>}]} {
    %c0_i32 = arith.constant 0 : i32
    %0 = arith.cmpi eq, %arg0, %c0_i32 : i32
    %1 = arith.extui %0 : i1 to i32
    %c0_i32_0 = arith.constant 0 : i32
    %2 = arith.cmpi ne, %1, %c0_i32_0 : i32
    scf.if %2 {
      %cst_19 = arith.constant 0.000000e+00 : f32
      %35 = vector.broadcast %cst_19 : f32 to vector<36x1xf32>
      %c0_20 = arith.constant 0 : index
      %c0_21 = arith.constant 0 : index
      %36 = vector.load %arg6[%c0_20, %c0_21] : memref<36x1xf32, #tpu.memory_space<vmem>>, vector<36x1xf32>
      tpu.vector_store %arg6[%c0_20, %c0_21], %35 {strides = array<i32>} : memref<36x1xf32, #tpu.memory_space<vmem>>, vector<36x1xf32>,
      %cst_22 = arith.constant 0.000000e+00 : f32
      %37 = vector.broadcast %cst_22 : f32 to vector<36x1xf32>
      %c0_23 = arith.constant 0 : index
      %c0_24 = arith.constant 0 : index
      %38 = vector.load %arg7[%c0_23, %c0_24] : memref<36x1xf32, #tpu.memory_space<vmem>>, vector<36x1xf32>
      tpu.vector_store %arg7[%c0_23, %c0_24], %37 {strides = array<i32>} : memref<36x1xf32, #tpu.memory_space<vmem>>, vector<36x1xf32>,
    } else {
    }
    %c0 = arith.constant 0 : index
    %c0_1 = arith.constant 0 : index
    %3 = vector.load %arg1[%c0, %c0_1] : memref<36x128xbf16, #tpu.memory_space<vmem>>, vector<36x128xbf16>
    %4 = arith.extf %3 : vector<36x128xbf16> to vector<36x128xf32>
    %c0_2 = arith.constant 0 : index
    %c0_3 = arith.constant 0 : index
    %5 = vector.load %arg2[%c0_2, %c0_3] : memref<36x1xf32, #tpu.memory_space<vmem>>, vector<36x1xf32>
    %6 = vector.broadcast %5 : vector<36x1xf32> to vector<36x128xf32>
    %7 = arith.mulf %4, %6 : vector<36x128xf32>
    %c0_4 = arith.constant 0 : index
    %c0_5 = arith.constant 0 : index
    %8 = vector.load %arg3[%c0_4, %c0_5] : memref<36x1xf32, #tpu.memory_space<vmem>>, vector<36x1xf32>
    %9 = vector.broadcast %8 : vector<36x1xf32> to vector<36x128xf32>
    %10 = arith.addf %7, %9 : vector<36x128xf32>
    %cst = arith.constant 0.000000e+00 : f32
    %11 = vector.broadcast %cst : f32 to vector<36x128xf32>
    %12 = arith.maximumf %10, %11 : vector<36x128xf32>
    %c128_i32 = arith.constant 128 : i32
    %13 = arith.muli %arg0, %c128_i32 : i32
    %14 = tpu.iota {dimensions = array<i32: 1>} : vector<36x128xi32>
    %15 = vector.broadcast %13 : i32 to vector<36x128xi32>
    %16 = arith.addi %15, %14 : vector<36x128xi32>
    %c16_i32 = arith.constant 16 : i32
    %17 = vector.broadcast %c16_i32 : i32 to vector<36x128xi32>
    %18 = arith.cmpi slt, %16, %17 : vector<36x128xi32>
    %cst_6 = arith.constant 0.000000e+00 : f32
    %19 = vector.broadcast %cst_6 : f32 to vector<36x128xf32>
    %20 = arith.select %18, %12, %19 : vector<36x128xi1>, vector<36x128xf32>
    %c0_7 = arith.constant 0 : index
    %c0_8 = arith.constant 0 : index
    %21 = vector.load %arg6[%c0_7, %c0_8] : memref<36x1xf32, #tpu.memory_space<vmem>>, vector<36x1xf32>
    %cst_9 = arith.constant dense<0.000000e+00> : vector<36xf32>
    %22 = vector.multi_reduction <add>, %20, %cst_9 [1] : vector<36x128xf32> to vector<36xf32>
    %23 = vector.shape_cast %22 : vector<36xf32> to vector<36x1xf32>
    %24 = arith.addf %21, %23 : vector<36x1xf32>
    %c0_10 = arith.constant 0 : index
    %c0_11 = arith.constant 0 : index
    %25 = vector.load %arg6[%c0_10, %c0_11] : memref<36x1xf32, #tpu.memory_space<vmem>>, vector<36x1xf32>
    tpu.vector_store %arg6[%c0_10, %c0_11], %24 {strides = array<i32>} : memref<36x1xf32, #tpu.memory_space<vmem>>, vector<36x1xf32>,
    %c0_12 = arith.constant 0 : index
    %c0_13 = arith.constant 0 : index
    %26 = vector.load %arg7[%c0_12, %c0_13] : memref<36x1xf32, #tpu.memory_space<vmem>>, vector<36x1xf32>
    %27 = arith.mulf %20, %20 : vector<36x128xf32>
    %cst_14 = arith.constant dense<0.000000e+00> : vector<36xf32>
    %28 = vector.multi_reduction <add>, %27, %cst_14 [1] : vector<36x128xf32> to vector<36xf32>
    %29 = vector.shape_cast %28 : vector<36xf32> to vector<36x1xf32>
    %30 = arith.addf %26, %29 : vector<36x1xf32>
    %c0_15 = arith.constant 0 : index
    %c0_16 = arith.constant 0 : index
    %31 = vector.load %arg7[%c0_15, %c0_16] : memref<36x1xf32, #tpu.memory_space<vmem>>, vector<36x1xf32>
    tpu.vector_store %arg7[%c0_15, %c0_16], %30 {strides = array<i32>} : memref<36x1xf32, #tpu.memory_space<vmem>>, vector<36x1xf32>,
    %c0_i32_17 = arith.constant 0 : i32
    %32 = arith.cmpi eq, %arg0, %c0_i32_17 : i32
    %33 = arith.extui %32 : i1 to i32
    %c0_i32_18 = arith.constant 0 : i32
    %34 = arith.cmpi ne, %33, %c0_i32_18 : i32
    scf.if %34 {
      %c0_19 = arith.constant 0 : index
      %c0_20 = arith.constant 0 : index
      %35 = vector.load %arg6[%c0_19, %c0_20] : memref<36x1xf32, #tpu.memory_space<vmem>>, vector<36x1xf32>
      %cst_21 = arith.constant 6.250000e-02 : f32
      %36 = vector.broadcast %cst_21 : f32 to vector<36x1xf32>
      %37 = arith.mulf %35, %36 : vector<36x1xf32>
      %c0_22 = arith.constant 0 : index
      %c0_23 = arith.constant 0 : index
      %38 = vector.load %arg7[%c0_22, %c0_23] : memref<36x1xf32, #tpu.memory_space<vmem>>, vector<36x1xf32>
      %c0_24 = arith.constant 0 : index
      %c0_25 = arith.constant 0 : index
      %39 = vector.load %arg6[%c0_24, %c0_25] : memref<36x1xf32, #tpu.memory_space<vmem>>, vector<36x1xf32>
      %40 = arith.mulf %37, %39 : vector<36x1xf32>
      %41 = arith.subf %38, %40 : vector<36x1xf32>
      %cst_26 = arith.constant 0.000000e+00 : f32
      %42 = vector.broadcast %cst_26 : f32 to vector<36x1xf32>
      %43 = arith.maximumf %41, %42 : vector<36x1xf32>
      %cst_27 = arith.constant 0.0666666701 : f32
      %44 = vector.broadcast %cst_27 : f32 to vector<36x1xf32>
      %45 = arith.mulf %43, %44 : vector<36x1xf32>
      %c0_28 = arith.constant 0 : index
      %c0_29 = arith.constant 0 : index
      %46 = vector.load %arg4[%c0_28, %c0_29] : memref<36x1xf32, #tpu.memory_space<vmem>>, vector<36x1xf32>
      tpu.vector_store %arg4[%c0_28, %c0_29], %37 {strides = array<i32>} : memref<36x1xf32, #tpu.memory_space<vmem>>, vector<36x1xf32>,
      %47 = math.sqrt %45 : vector<36x1xf32>
      %c0_30 = arith.constant 0 : index
      %c0_31 = arith.constant 0 : index
      %48 = vector.load %arg5[%c0_30, %c0_31] : memref<36x1xf32, #tpu.memory_space<vmem>>, vector<36x1xf32>
      tpu.vector_store %arg5[%c0_30, %c0_31], %47 {strides = array<i32>} : memref<36x1xf32, #tpu.memory_space<vmem>>, vector<36x1xf32>,
    } else {
    }
    return
  }
  func.func @transform_0(%arg0: i32) -> (i32, i32) {
    %c0_i32 = arith.constant 0 : i32
    %c0_i32_0 = arith.constant 0 : i32
    return %c0_i32, %arg0 : i32, i32
  }
  func.func @transform_1(%arg0: i32) -> (i32, i32) {
    %c0_i32 = arith.constant 0 : i32
    %c0_i32_0 = arith.constant 0 : i32
    %c0_i32_1 = arith.constant 0 : i32
    return %c0_i32, %c0_i32_0 : i32, i32
  }
  func.func @transform_2(%arg0: i32) -> (i32, i32) {
    %c0_i32 = arith.constant 0 : i32
    %c0_i32_0 = arith.constant 0 : i32
    %c0_i32_1 = arith.constant 0 : i32
    return %c0_i32, %c0_i32_0 : i32, i32
  }
  func.func @transform_3(%arg0: i32) -> (i32, i32) {
    %c0_i32 = arith.constant 0 : i32
    %c0_i32_0 = arith.constant 0 : i32
    %c0_i32_1 = arith.constant 0 : i32
    return %c0_i32, %c0_i32_0 : i32, i32
  }
  func.func @transform_4(%arg0: i32) -> (i32, i32) {
    %c0_i32 = arith.constant 0 : i32
    %c0_i32_0 = arith.constant 0 : i32
    %c0_i32_1 = arith.constant 0 : i32
    return %c0_i32, %c0_i32_0 : i32, i32
  }
}

module attributes {stable_mosaic.version = 11 : i64} {
  func.func @_fused_mm_kernel(%arg0: i32, %arg1: memref<16x36xbf16, #tpu.memory_space<vmem>>, %arg2: memref<36x128xbf16, #tpu.memory_space<vmem>>, %arg3: memref<16x1xf32, #tpu.memory_space<vmem>>, %arg4: memref<16x128xf32, #tpu.memory_space<vmem>>) attributes {dimension_semantics = [#tpu.dimension_semantics<parallel>], iteration_bounds = array<i64: 1>, scalar_prefetch = 0 : i64, scratch_operands = 0 : i64, tpu.core_type = #tpu.core_type<tc>, window_params = [{pipeline_mode = #tpu.pipeline_mode<synchronous>, transform_indices = @transform_0, window_bounds = array<i64: 16, 36>}, {transform_indices = @transform_1, window_bounds = array<i64: 36, 128>}, {pipeline_mode = #tpu.pipeline_mode<synchronous>, transform_indices = @transform_2, window_bounds = array<i64: 16, 1>}, {transform_indices = @transform_3, window_bounds = array<i64: 16, 128>}]} {
    %c0 = arith.constant 0 : index
    %c0_0 = arith.constant 0 : index
    %0 = vector.load %arg2[%c0, %c0_0] : memref<36x128xbf16, #tpu.memory_space<vmem>>, vector<36x128xbf16>
    %c0_1 = arith.constant 0 : index
    %c0_2 = arith.constant 0 : index
    %1 = vector.load %arg1[%c0_1, %c0_2] : memref<16x36xbf16, #tpu.memory_space<vmem>>, vector<16x36xbf16>
    %cst = arith.constant dense<0.000000e+00> : vector<16x128xf32>
    %2 = tpu.matmul %1, %0, %cst {dimension_numbers = #tpu.dot_dimension_numbers<[1], [0], [0], [1], [0, 0, 1, 1], [], []>} : vector<16x36xbf16>, vector<36x128xbf16>, vector<16x128xf32> -> vector<16x128xf32>
    %c0_3 = arith.constant 0 : index
    %c0_4 = arith.constant 0 : index
    %3 = vector.load %arg3[%c0_3, %c0_4] : memref<16x1xf32, #tpu.memory_space<vmem>>, vector<16x1xf32>
    %4 = vector.broadcast %3 : vector<16x1xf32> to vector<16x128xf32>
    %5 = arith.addf %2, %4 : vector<16x128xf32>
    %c0_5 = arith.constant 0 : index
    %c0_6 = arith.constant 0 : index
    %6 = vector.load %arg4[%c0_5, %c0_6] : memref<16x128xf32, #tpu.memory_space<vmem>>, vector<16x128xf32>
    tpu.vector_store %arg4[%c0_5, %c0_6], %5 {strides = array<i32>} : memref<16x128xf32, #tpu.memory_space<vmem>>, vector<16x128xf32>,
    return
  }
  func.func @transform_0(%arg0: i32) -> (i32, i32) {
    %c0_i32 = arith.constant 0 : i32
    %c0_i32_0 = arith.constant 0 : i32
    %c0_i32_1 = arith.constant 0 : i32
    return %c0_i32, %c0_i32_0 : i32, i32
  }
  func.func @transform_1(%arg0: i32) -> (i32, i32) {
    %c0_i32 = arith.constant 0 : i32
    %c0_i32_0 = arith.constant 0 : i32
    return %c0_i32, %arg0 : i32, i32
  }
  func.func @transform_2(%arg0: i32) -> (i32, i32) {
    %c0_i32 = arith.constant 0 : i32
    %c0_i32_0 = arith.constant 0 : i32
    %c0_i32_1 = arith.constant 0 : i32
    return %c0_i32, %c0_i32_0 : i32, i32
  }
  func.func @transform_3(%arg0: i32) -> (i32, i32) {
    %c0_i32 = arith.constant 0 : i32
    %c0_i32_0 = arith.constant 0 : i32
    return %c0_i32, %arg0 : i32, i32
  }
}

</mosaic_0001>

<llo_original>
// kernel: model_forward.30
$region0: #{model_forward.30}
  #allocation0 [shape = 'u32[]', space=smem, size = 0x4, offset = 0x4, fixed_abs, tag = 'smem constant byte address 0x4 - core index']
  #allocation1 [shape = 'u32[144,128]{1,0:T(1,128)}', space=vmem, size = 0x12000, scoped, tag = 'internal scratch']
  %s0 = inlined_call_operand.vmem [shape: bf16[8,9], index: 0, kind: input, shape index: {}]
  %s1 = inlined_call_operand.vmem [shape: bf16[9,512], index: 1, kind: input, shape index: {}]
  %s2 = inlined_call_operand.vmem [shape: f32[8,1], index: 2, kind: input, shape index: {}]
  %s3 = inlined_call_operand.vmem [shape: bf16[8,512], index: 3, kind: output, shape index: {}]
  %s4 = sld [smem:[#allocation0]]
  $region83: #{model_forward.30} parent=0
    _
  %s6 = ssub.s32 1, %s4
  %s7 = scalar_select 0, %s6, %s4
  $region1: #{model_forward.30} parent=0
    #allocation2 [shape = 'u8[16384]{0}', space=vmem, size = 0x4000, scoped, tag = 'input window, operand 1']
    loop: start=0, step=1, limit=4
    $region2: #{model_forward.30} parent=1 // loop_pre_header
      _
    $region3: #{model_forward.30} parent=1 // loop_header
      %s9 = sphi 0, %s13
      %p10 = scmp.ge.s32.totalorder %s9, 4
      %s17 = sphi 0, %s17
      %s19 = sphi 0, %s17
      %s20 = sphi 0, %s19
      %s34 = sphi 0, %s20
      %s40 = sphi 0, %s42
      %s43 = sphi 0, %s40
      %s44 = sphi 0, %s43
      %s60 = sphi 0, %s44
      %s64 = sphi 0, %s64
      %s66 = sphi 0, %s64
      %s67 = sphi 0, %s66
      %s81 = sphi 0, %s67
      %s87 = sphi 0, %s89
      %s90 = sphi 0, %s87
      %s91 = sphi 0, %s90
      %s107 = sphi 0, %s91
    $region4: #{model_forward.30} parent=1 // loop_header_branch
      %12 = sbr.rel (%p10) target = $region8
    $region5: #{model_forward.30} parent=1 // loop_body
      %s14 = ssub.s32 %s9, 1
      %s15 = ssub.s32 %s9, 2
      %s16 = sadd.s32 %s9, 1
      %s18 = sadd.s32 %s17, 1
      %p21 = scmp.eq.s32.totalorder %s9, 1
      %p22 = scmp.ne.s32.totalorder %s17, %s19
      %p23 = scmp.eq.s32.totalorder %s9, 0
      %p24 = por %p22, %p23
      %p25 = scmp.ne.s32.totalorder %s17, %s19
      %p26 = scmp.eq.s32.totalorder %s14, 1
      %p27 = por %p25, %p26
      %p28 = scmp.ne.s32.totalorder %s19, %s20
      %p29 = scmp.eq.s32.totalorder %s14, 0
      %p30 = por %p28, %p29
      %p31 = scmp.ne.s32.totalorder %s19, %s20
      %p32 = scmp.eq.s32.totalorder %s15, 1
      %p33 = por %p31, %p32
      %p35 = scmp.ne.s32.totalorder %s20, %s34
      %p36 = scmp.eq.s32.totalorder %s15, 0
      %p37 = por %p35, %p36
      %s38 = ssub.s32 %s9, %s16
      %p39 = scmp.eq.s32.totalorder %s38, 0
      %s41 = sadd.s32 %s40, 1
      %s42 = scalar_select %p39, %s40, %s41
      %p45 = pneg %p39
      %p46 = scmp.eq.s32.totalorder %s9, 1
      %p47 = por %p45, %p46
      %p48 = scmp.ne.s32.totalorder %s40, %s43
      %p49 = scmp.eq.s32.totalorder %s9, 0
      %p50 = por %p48, %p49
      %p51 = scmp.ne.s32.totalorder %s40, %s43
      %p52 = scmp.eq.s32.totalorder %s14, 1
      %p53 = por %p51, %p52
      %p54 = scmp.ne.s32.totalorder %s43, %s44
      %p55 = scmp.eq.s32.totalorder %s14, 0
      %p56 = por %p54, %p55
      %p57 = scmp.ne.s32.totalorder %s43, %s44
      %p58 = scmp.eq.s32.totalorder %s15, 1
      %p59 = por %p57, %p58
      %p61 = scmp.ne.s32.totalorder %s44, %s60
      %p62 = scmp.eq.s32.totalorder %s15, 0
      %p63 = por %p61, %p62
      %s65 = sadd.s32 %s64, 1
      %p68 = scmp.eq.s32.totalorder %s9, 1
      %p69 = scmp.ne.s32.totalorder %s64, %s66
      %p70 = scmp.eq.s32.totalorder %s9, 0
      %p71 = por %p69, %p70
      %p72 = scmp.ne.s32.totalorder %s64, %s66
      %p73 = scmp.eq.s32.totalorder %s14, 1
      %p74 = por %p72, %p73
      %p75 = scmp.ne.s32.totalorder %s66, %s67
      %p76 = scmp.eq.s32.totalorder %s14, 0
      %p77 = por %p75, %p76
      %p78 = scmp.ne.s32.totalorder %s66, %s67
      %p79 = scmp.eq.s32.totalorder %s15, 1
      %p80 = por %p78, %p79
      %p82 = scmp.ne.s32.totalorder %s67, %s81
      %p83 = scmp.eq.s32.totalorder %s15, 0
      %p84 = por %p82, %p83
      %s85 = ssub.s32 %s9, %s16
      %p86 = scmp.eq.s32.totalorder %s85, 0
      %s88 = sadd.s32 %s87, 1
      %s89 = scalar_select %p86, %s87, %s88
      %p92 = pneg %p86
      %p93 = scmp.eq.s32.totalorder %s9, 1
      %p94 = por %p92, %p93
      %p95 = scmp.ne.s32.totalorder %s87, %s90
      %p96 = scmp.eq.s32.totalorder %s9, 0
      %p97 = por %p95, %p96
      %p98 = scmp.ne.s32.totalorder %s87, %s90
      %p99 = scmp.eq.s32.totalorder %s14, 1
      %p100 = por %p98, %p99
      %p101 = scmp.ne.s32.totalorder %s90, %s91
      %p102 = scmp.eq.s32.totalorder %s14, 0
      %p103 = por %p101, %p102
      %p104 = scmp.ne.s32.totalorder %s90, %s91
      %p105 = scmp.eq.s32.totalorder %s15, 1
      %p106 = por %p104, %p105
      %p108 = scmp.ne.s32.totalorder %s91, %s107
      %p109 = scmp.eq.s32.totalorder %s15, 0
      %p110 = por %p108, %p109
      %p111 = scmp.le.s32.totalorder 1, %s9
      %p112 = scmp.lt.s32.totalorder %s9, 3
      %p113 = pnand %p111, %p112
      %p114 = pneg %p113
      // Predicated region
      $region9: #{model_forward.30} parent=5 // pred_check
        _
      $region10: #{model_forward.30} parent=5 // pred_check_branch
        %116 = sbr.rel (%p113) target = $region12
      $region11: #{model_forward.30} parent=5 // pred_region
        %s117 = ssub.s32 %s9, 1
        // Predicated region
        $region13: #{model_forward.30} parent=11 // pred_check
          %p118 = pneg %p30
        $region14: #{model_forward.30} parent=11 // pred_check_branch
          %120 = sbr.rel (%p118) target = $region16
        $region15: #{model_forward.30} parent=11 // pred_region
          _
        $region16: #{model_forward.30} parent=11 // pred_fallthru
          _
        // Predicated region
        $region17: #{model_forward.30} parent=11 // pred_check
          %p121 = pneg %p77
        $region18: #{model_forward.30} parent=11 // pred_check_branch
          %123 = sbr.rel (%p121) target = $region20
        $region19: #{model_forward.30} parent=11 // pred_region
          _
        $region20: #{model_forward.30} parent=11 // pred_fallthru
          _
      $region12: #{model_forward.30} parent=5 // pred_fallthru
        _
      %p124 = scmp.lt.s32.totalorder %s9, 2
      // Predicated region
      $region21: #{model_forward.30} parent=5 // pred_check
        %p125 = pneg %p124
      $region22: #{model_forward.30} parent=5 // pred_check_branch
        %127 = sbr.rel (%p125) target = $region24
      $region23: #{model_forward.30} parent=5 // pred_region
        // Predicated region
        $region25: #{model_forward.30} parent=23 // pred_check
          %p128 = pneg %p50
        $region26: #{model_forward.30} parent=23 // pred_check_branch
          %130 = sbr.rel (%p128) target = $region28
        $region27: #{model_forward.30} parent=23 // pred_region
          %s131 = sand.u32 %s40, 1
          %s132 = sand.u32 %s40, 1
          %s133 = smul.addr %s132, 16
          %s134 = scalar_lea.vmem [#allocation2], %s133
          %s135 = smul.u32 2, %s9
          %s136 = smul.addr %s135, 4
          %s137 = scalar_lea.vmem %s1, %s136
          // Predicated region
          $region29: #{model_forward.30} parent=27 // pred_check
            _
          $region30: #{model_forward.30} parent=27 // pred_check_branch
            %139 = sbr.rel (0) target = $region32
          $region31: #{model_forward.30} parent=27 // pred_region
            // Predicated region
            $region33: #{model_forward.30} parent=31 // pred_check
              _
            $region34: #{model_forward.30} parent=31 // pred_check_branch
              %141 = sbr.rel (0) target = $region36
            $region35: #{model_forward.30} parent=31 // pred_region
              // Predicated region
              $region48: #{model_forward.30} parent=35 // pred_check
                _
              $region49: #{model_forward.30} parent=35 // pred_check_branch
                %158 = sbr.rel (0) target = $region51
              $region50: #{model_forward.30} parent=35 // pred_region
                loop: start=0, step=1, limit=1
                $region52: #{model_forward.30} parent=50 // loop_pre_header
                  _
                $region53: #{model_forward.30} parent=50 // loop_header
                  %s160 = sphi 0, %s164
                  %p161 = scmp.ge.s32.totalorder %s160, 1
                  %s165 = sphi %s137, %s137
                  %s166 = sphi %s134, %s134
                $region54: #{model_forward.30} parent=50 // loop_header_branch
                  %163 = sbr.rel (%p161) target = $region58
                $region55: #{model_forward.30} parent=50 // loop_body
                  %v167 = vld [vmem:[%s165] sm:$0xff]
                  %168 = vst [vmem:[%s166] sm:$0xff] %v167
                  %v169 = vld [vmem:[%s165 + $0x10] sm:$0xff]
                  %170 = vst [vmem:[%s166 + $0x8] sm:$0xff] %v169
                $region56: #{model_forward.30} parent=50 // loop_footer
                  %s164 = sadd.s32 1, %s160
                $region57: #{model_forward.30} parent=50 // loop_footer_branch
                  %159 = sbr.rel target = $region53
                $region58: #{model_forward.30} parent=50 // loop_exit
                  _
              $region51: #{model_forward.30} parent=35 // pred_fallthru
                _
              // Predicated region
              $region59: #{model_forward.30} parent=35 // pred_check
                _
              $region60: #{model_forward.30} parent=35 // pred_check_branch
                %172 = sbr.rel target = $region62
              $region61: #{model_forward.30} parent=35 // pred_region
                _
              $region62: #{model_forward.30} parent=35 // pred_fallthru
                _
            $region36: #{model_forward.30} parent=31 // pred_fallthru
              _
            // Predicated region
            $region37: #{model_forward.30} parent=31 // pred_check
              _
            $region38: #{model_forward.30} parent=31 // pred_check_branch
              %143 = sbr.rel target = $region40
            $region39: #{model_forward.30} parent=31 // pred_region
              loop: start=0, step=1, limit=1
              $region41: #{model_forward.30} parent=39 // loop_pre_header
                _
              $region42: #{model_forward.30} parent=39 // loop_header
                %s146 = sphi 0, %s150
                %p147 = scmp.ge.s32.totalorder %s146, 1
                %s151 = sphi %s137, %s137
                %s152 = sphi %s134, %s134
              $region43: #{model_forward.30} parent=39 // loop_header_branch
                %149 = sbr.rel (%p147) target = $region47
              $region44: #{model_forward.30} parent=39 // loop_body
                %v153 = vld [vmem:[%s151] sm:$0xff]
                %154 = vst [vmem:[%s152] sm:$0xff] %v153
                %v155 = vld [vmem:[%s151 + $0x10] sm:$0xff]
                %156 = vst [vmem:[%s152 + $0x8] sm:$0xff] %v155
              $region45: #{model_forward.30} parent=39 // loop_footer
                %s150 = sadd.s32 1, %s146
              $region46: #{model_forward.30} parent=39 // loop_footer_branch
                %145 = sbr.rel target = $region42
              $region47: #{model_forward.30} parent=39 // loop_exit
                _
            $region40: #{model_forward.30} parent=31 // pred_fallthru
              _
          $region32: #{model_forward.30} parent=27 // pred_fallthru
            _
          %173 = vnop
        $region28: #{model_forward.30} parent=23 // pred_fallthru
          _
      $region24: #{model_forward.30} parent=5 // pred_fallthru
        _
      %p174 = scmp.le.s32.totalorder 1, %s9
      %p175 = scmp.lt.s32.totalorder %s9, 3
      %p176 = pnand %p174, %p175
      %p177 = pneg %p176
      // Predicated region
      $region63: #{model_forward.30} parent=5 // pred_check
        _
      $region64: #{model_forward.30} parent=5 // pred_check_branch
        %179 = sbr.rel (%p176) target = $region66
      $region65: #{model_forward.30} parent=5 // pred_region
        %s180 = ssub.s32 %s9, 1
        %s181 = sand.u32 %s43, 1
        %s182 = sand.u32 %s43, 1
        %s183 = smul.addr %s182, 16
        %s184 = scalar_lea.vmem [#allocation2], %s183
        // Predicated region
        $region67: #{model_forward.30} parent=65 // pred_check
          %p185 = pneg %p56
        $region68: #{model_forward.30} parent=65 // pred_check_branch
          %187 = sbr.rel (%p185) target = $region70
        $region69: #{model_forward.30} parent=65 // pred_region
          _
        $region70: #{model_forward.30} parent=65 // pred_fallthru
          _
        %p188 = pneg %p30
        %p189 = pneg %p27
        %s190 = sand.u32 %s43, 1
        %s191 = sand.u32 %s43, 1
        %s192 = smul.addr %s191, 16
        %s193 = scalar_lea.vmem [#allocation2], %s192
        %p194 = pneg %p56
        %p195 = pneg %p53
        %p196 = pneg %p77
        %p197 = pneg %p74
        %p198 = pneg %p103
        %p199 = pneg %p100
        %s200 = smul.u32 2, %s14
        %p201 = scmp.lt.s32.totalorder %s200, 3
        %s202 = scalar_select %p201, %s200, 3
        %s203 = smul.addr %s202, 4
        %s204 = scalar_lea.vmem %s3, %s203
        %s205 = smul.u32 2, %s14
        %s206 = smul.u32 2, %s14
        %p207 = scmp.lt.s32.totalorder %s206, 3
        %s208 = scalar_select %p207, %s206, 3
        %s209 = smul.addr %s208, 4
        %s210 = scalar_lea.vmem %s3, %s209
        %s211 = smul.u32 2, %s14
        %v213 = vld [vmem:[%s184] sm:$0xff]
        %v214 = vld [vmem:[%s184 + $0x8] sm:$0x11]
        %v215 = vld [vmem:[%s0] sm:$0xf]
        %v216 = vld [vmem:[%s2] sm:$0xff]
        %218 = vset.pattern.permute.xlu0 0
        %219 = vperm.xlu0 %218, %v216
        %v220 = vpop.permute.xlu0 %219
        %v224 = vunpack.c.l.b16 %v213
        %v225 = vunpack.c.h.b16 %v213
        %v226 = vunpack.c.l.b16 %v214
        %v227 = vunpack.c.h.b16 %v214
        %v228 = vpack.c.b16 %v226, %v224
        %v229 = vpack.c.b16 %v227, %v225
        %vm230 = vcmask 72704
        %v232 = vsel %vm230, %v215, 0
        %vm234 = vcmask 1043456
        %vm235 = vcmask 1044480
        %v236 = vsel %vm234, 4294967295, 65535
        %v237 = vsel %vm235, %v236, 0
        %v239 = vand.u32 %v228, %v237
        %v242 = vand.u32 %v229, %v237
        %244 = vmatprep.subr.bf16.mxu0 %v242
        %245 = vmatpush1.bf16.msra.mxu0 %v239
        %246 = vmatprep.subr.bf16.mxu0 0
        %247 = vmatpush1.bf16.msra.mxu0 0
        %248 = vmatprep.subr.bf16.mxu0 0
        %249 = vmatpush1.bf16.msra.mxu0 0
        %250 = vmatprep.subr.bf16.mxu0 0
        %251 = vmatpush1.bf16.msra.mxu0 0
        %252 = vmatprep.subr.bf16.mxu0 0
        %253 = vmatpush1.bf16.msra.mxu0 0
        %254 = vmatprep.subr.bf16.mxu0 0
        %255 = vmatpush1.bf16.msra.mxu0 0
        %256 = vmatprep.subr.bf16.mxu0 0
        %257 = vmatpush1.bf16.msra.mxu0 0
        %258 = vmatprep.subr.bf16.mxu0 0
        %259 = vmatpush1.bf16.msra.mxu0 0
        %260 = vmatprep.subr.bf16.mxu0 0
        %261 = vmatpush1.bf16.msra.mxu0 0
        %262 = vmatprep.subr.bf16.mxu0 0
        %263 = vmatpush1.bf16.msra.mxu0 0
        %264 = vmatprep.subr.bf16.mxu0 0
        %265 = vmatpush1.bf16.msra.mxu0 0
        %266 = vmatprep.subr.bf16.mxu0 0
        %267 = vmatpush1.bf16.msra.mxu0 0
        %268 = vmatprep.subr.bf16.mxu0 0
        %269 = vmatpush1.bf16.msra.mxu0 0
        %270 = vmatprep.subr.bf16.mxu0 0
        %271 = vmatpush1.bf16.msra.mxu0 0
        %272 = vmatprep.subr.bf16.mxu0 0
        %273 = vmatpush1.bf16.msra.mxu0 0
        %274 = vmatprep.subr.bf16.mxu0 0
        %275 = vmatpush1.bf16.msra.mxu0 0
        %276 = vmatprep.mubr.bf16.mxu0 0
        %277 = vmatmul.mubr.bf16.gmra.mrb[0].mxu0 %v232
        %v278 = vpop.f32.mrb[0].mxu0
        %v279 = vadd.f32 %v220, %v278
        %v280 = vpop.f32.mrb[0].mxu0
        %v281 = vadd.f32 %v220, %v280
        %v282 = vpop.f32.mrb[0].mxu0
        %v283 = vpop.f32.mrb[0].mxu0
        %284 = vdwg.mxu0
        %v285 = vmax.f32 %v279, 0.0
        %v286 = vmax.f32 %v281, 0.0
        %v287 = vpack.c.bf16 %v285, %v285
        %v288 = vpack.c.bf16 %v286, %v286
        %v291 = vunpack.c.l.b16 %v287
        %v292 = vunpack.c.l.b16 %v288
        %v293 = vpack.c.b16 %v292, %v291
        %295 = vst [vmem:[%s210] sm:$0xff] %v293
        %s296 = smul.u32 2, %s14
        %p297 = scmp.lt.s32.totalorder %s296, 3
        %s298 = scalar_select %p297, %s296, 3
        %s299 = smul.addr %s298, 4
        %s300 = scalar_lea.vmem %s3, %s299
        // Predicated region
        $region71: #{model_forward.30} parent=65 // pred_check
          %p301 = pneg %p100
        $region72: #{model_forward.30} parent=65 // pred_check_branch
          %303 = sbr.rel (%p301) target = $region74
        $region73: #{model_forward.30} parent=65 // pred_region
          %s304 = smul.u32 2, %s14
        $region74: #{model_forward.30} parent=65 // pred_fallthru
          _
      $region66: #{model_forward.30} parent=5 // pred_fallthru
        _
      %p305 = scmp.le.s32.totalorder 2, %s9
      // Predicated region
      $region75: #{model_forward.30} parent=5 // pred_check
        %p306 = pneg %p305
      $region76: #{model_forward.30} parent=5 // pred_check_branch
        %308 = sbr.rel (%p306) target = $region78
      $region77: #{model_forward.30} parent=5 // pred_region
        %s309 = ssub.s32 %s9, 2
        // Predicated region
        $region79: #{model_forward.30} parent=77 // pred_check
          %p310 = pneg %p106
        $region80: #{model_forward.30} parent=77 // pred_check_branch
          %312 = sbr.rel (%p310) target = $region82
        $region81: #{model_forward.30} parent=77 // pred_region
          %s313 = smul.u32 2, %s15
          %p314 = scmp.lt.s32.totalorder %s313, 3
          %s315 = scalar_select %p314, %s313, 3
          %s316 = smul.addr %s315, 4
          %s317 = scalar_lea.vmem %s3, %s316
        $region82: #{model_forward.30} parent=77 // pred_fallthru
          _
      $region78: #{model_forward.30} parent=5 // pred_fallthru
        _
    $region6: #{model_forward.30} parent=1 // loop_footer
      %s13 = sadd.s32 1, %s9
    $region7: #{model_forward.30} parent=1 // loop_footer_branch
      %8 = sbr.rel target = $region3
    $region8: #{model_forward.30} parent=1 // loop_exit
      _

// kernel: model_forward.31
$region0: #{model_forward.31}
  #allocation0 [shape = 'u32[]', space=smem, size = 0x4, offset = 0x4, fixed_abs, tag = 'smem constant byte address 0x4 - core index']
  #allocation1 [shape = 'u32[144,128]{1,0:T(1,128)}', space=vmem, size = 0x12000, scoped, tag = 'internal scratch']
  %s0 = inlined_call_operand.vmem [shape: bf16[8,72], index: 0, kind: input, shape index: {}]
  %s1 = inlined_call_operand.vmem [shape: bf16[72,256], index: 1, kind: input, shape index: {}]
  %s2 = inlined_call_operand.vmem [shape: f32[8,1], index: 2, kind: input, shape index: {}]
  %s3 = inlined_call_operand.vmem [shape: bf16[8,256], index: 3, kind: output, shape index: {}]
  %s4 = sld [smem:[#allocation0]]
  $region86: #{model_forward.31} parent=0
    _
  %s6 = ssub.s32 1, %s4
  %s7 = scalar_select 0, %s6, %s4
  $region1: #{model_forward.31} parent=0
    #allocation2 [shape = 'u8[36864]{0}', space=vmem, size = 0x9000, scoped, tag = 'input window, operand 1']
    loop: start=0, step=1, limit=4
    $region2: #{model_forward.31} parent=1 // loop_pre_header
      _
    $region3: #{model_forward.31} parent=1 // loop_header
      %s9 = sphi 0, %s13
      %p10 = scmp.ge.s32.totalorder %s9, 4
      %s17 = sphi 0, %s17
      %s19 = sphi 0, %s17
      %s20 = sphi 0, %s19
      %s34 = sphi 0, %s20
      %s40 = sphi 0, %s42
      %s43 = sphi 0, %s40
      %s44 = sphi 0, %s43
      %s60 = sphi 0, %s44
      %s64 = sphi 0, %s64
      %s66 = sphi 0, %s64
      %s67 = sphi 0, %s66
      %s81 = sphi 0, %s67
      %s87 = sphi 0, %s89
      %s90 = sphi 0, %s87
      %s91 = sphi 0, %s90
      %s107 = sphi 0, %s91
    $region4: #{model_forward.31} parent=1 // loop_header_branch
      %12 = sbr.rel (%p10) target = $region8
    $region5: #{model_forward.31} parent=1 // loop_body
      %s14 = ssub.s32 %s9, 1
      %s15 = ssub.s32 %s9, 2
      %s16 = sadd.s32 %s9, 1
      %s18 = sadd.s32 %s17, 1
      %p21 = scmp.eq.s32.totalorder %s9, 1
      %p22 = scmp.ne.s32.totalorder %s17, %s19
      %p23 = scmp.eq.s32.totalorder %s9, 0
      %p24 = por %p22, %p23
      %p25 = scmp.ne.s32.totalorder %s17, %s19
      %p26 = scmp.eq.s32.totalorder %s14, 1
      %p27 = por %p25, %p26
      %p28 = scmp.ne.s32.totalorder %s19, %s20
      %p29 = scmp.eq.s32.totalorder %s14, 0
      %p30 = por %p28, %p29
      %p31 = scmp.ne.s32.totalorder %s19, %s20
      %p32 = scmp.eq.s32.totalorder %s15, 1
      %p33 = por %p31, %p32
      %p35 = scmp.ne.s32.totalorder %s20, %s34
      %p36 = scmp.eq.s32.totalorder %s15, 0
      %p37 = por %p35, %p36
      %s38 = ssub.s32 %s9, %s16
      %p39 = scmp.eq.s32.totalorder %s38, 0
      %s41 = sadd.s32 %s40, 1
      %s42 = scalar_select %p39, %s40, %s41
      %p45 = pneg %p39
      %p46 = scmp.eq.s32.totalorder %s9, 1
      %p47 = por %p45, %p46
      %p48 = scmp.ne.s32.totalorder %s40, %s43
      %p49 = scmp.eq.s32.totalorder %s9, 0
      %p50 = por %p48, %p49
      %p51 = scmp.ne.s32.totalorder %s40, %s43
      %p52 = scmp.eq.s32.totalorder %s14, 1
      %p53 = por %p51, %p52
      %p54 = scmp.ne.s32.totalorder %s43, %s44
      %p55 = scmp.eq.s32.totalorder %s14, 0
      %p56 = por %p54, %p55
      %p57 = scmp.ne.s32.totalorder %s43, %s44
      %p58 = scmp.eq.s32.totalorder %s15, 1
      %p59 = por %p57, %p58
      %p61 = scmp.ne.s32.totalorder %s44, %s60
      %p62 = scmp.eq.s32.totalorder %s15, 0
      %p63 = por %p61, %p62
      %s65 = sadd.s32 %s64, 1
      %p68 = scmp.eq.s32.totalorder %s9, 1
      %p69 = scmp.ne.s32.totalorder %s64, %s66
      %p70 = scmp.eq.s32.totalorder %s9, 0
      %p71 = por %p69, %p70
      %p72 = scmp.ne.s32.totalorder %s64, %s66
      %p73 = scmp.eq.s32.totalorder %s14, 1
      %p74 = por %p72, %p73
      %p75 = scmp.ne.s32.totalorder %s66, %s67
      %p76 = scmp.eq.s32.totalorder %s14, 0
      %p77 = por %p75, %p76
      %p78 = scmp.ne.s32.totalorder %s66, %s67
      %p79 = scmp.eq.s32.totalorder %s15, 1
      %p80 = por %p78, %p79
      %p82 = scmp.ne.s32.totalorder %s67, %s81
      %p83 = scmp.eq.s32.totalorder %s15, 0
      %p84 = por %p82, %p83
      %s85 = ssub.s32 %s9, %s16
      %p86 = scmp.eq.s32.totalorder %s85, 0
      %s88 = sadd.s32 %s87, 1
      %s89 = scalar_select %p86, %s87, %s88
      %p92 = pneg %p86
      %p93 = scmp.eq.s32.totalorder %s9, 1
      %p94 = por %p92, %p93
      %p95 = scmp.ne.s32.totalorder %s87, %s90
      %p96 = scmp.eq.s32.totalorder %s9, 0
      %p97 = por %p95, %p96
      %p98 = scmp.ne.s32.totalorder %s87, %s90
      %p99 = scmp.eq.s32.totalorder %s14, 1
      %p100 = por %p98, %p99
      %p101 = scmp.ne.s32.totalorder %s90, %s91
      %p102 = scmp.eq.s32.totalorder %s14, 0
      %p103 = por %p101, %p102
      %p104 = scmp.ne.s32.totalorder %s90, %s91
      %p105 = scmp.eq.s32.totalorder %s15, 1
      %p106 = por %p104, %p105
      %p108 = scmp.ne.s32.totalorder %s91, %s107
      %p109 = scmp.eq.s32.totalorder %s15, 0
      %p110 = por %p108, %p109
      %p111 = scmp.le.s32.totalorder 1, %s9
      %p112 = scmp.lt.s32.totalorder %s9, 3
      %p113 = pnand %p111, %p112
      %p114 = pneg %p113
      // Predicated region
      $region9: #{model_forward.31} parent=5 // pred_check
        _
      $region10: #{model_forward.31} parent=5 // pred_check_branch
        %116 = sbr.rel (%p113) target = $region12
      $region11: #{model_forward.31} parent=5 // pred_region
        %s117 = ssub.s32 %s9, 1
        // Predicated region
        $region13: #{model_forward.31} parent=11 // pred_check
          %p118 = pneg %p30
        $region14: #{model_forward.31} parent=11 // pred_check_branch
          %120 = sbr.rel (%p118) target = $region16
        $region15: #{model_forward.31} parent=11 // pred_region
          _
        $region16: #{model_forward.31} parent=11 // pred_fallthru
          _
        // Predicated region
        $region17: #{model_forward.31} parent=11 // pred_check
          %p121 = pneg %p77
        $region18: #{model_forward.31} parent=11 // pred_check_branch
          %123 = sbr.rel (%p121) target = $region20
        $region19: #{model_forward.31} parent=11 // pred_region
          _
        $region20: #{model_forward.31} parent=11 // pred_fallthru
          _
      $region12: #{model_forward.31} parent=5 // pred_fallthru
        _
      %p124 = scmp.lt.s32.totalorder %s9, 2
      // Predicated region
      $region21: #{model_forward.31} parent=5 // pred_check
        %p125 = pneg %p124
      $region22: #{model_forward.31} parent=5 // pred_check_branch
        %127 = sbr.rel (%p125) target = $region24
      $region23: #{model_forward.31} parent=5 // pred_region
        // Predicated region
        $region25: #{model_forward.31} parent=23 // pred_check
          %p128 = pneg %p50
        $region26: #{model_forward.31} parent=23 // pred_check_branch
          %130 = sbr.rel (%p128) target = $region28
        $region27: #{model_forward.31} parent=23 // pred_region
          %s131 = sand.u32 %s40, 1
          %s132 = sand.u32 %s40, 1
          %s133 = smul.addr %s132, 36
          %s134 = scalar_lea.vmem [#allocation2], %s133
          %s135 = smul.addr %s9, 4
          %s136 = scalar_lea.vmem %s1, %s135
          // Predicated region
          $region29: #{model_forward.31} parent=27 // pred_check
            _
          $region30: #{model_forward.31} parent=27 // pred_check_branch
            %138 = sbr.rel (0) target = $region32
          $region31: #{model_forward.31} parent=27 // pred_region
            // Predicated region
            $region33: #{model_forward.31} parent=31 // pred_check
              _
            $region34: #{model_forward.31} parent=31 // pred_check_branch
              %140 = sbr.rel target = $region36
            $region35: #{model_forward.31} parent=31 // pred_region
              // Predicated region
              $region48: #{model_forward.31} parent=35 // pred_check
                _
              $region49: #{model_forward.31} parent=35 // pred_check_branch
                %171 = sbr.rel (0) target = $region51
              $region50: #{model_forward.31} parent=35 // pred_region
                loop: start=0, step=1, limit=1
                $region52: #{model_forward.31} parent=50 // loop_pre_header
                  _
                $region53: #{model_forward.31} parent=50 // loop_header
                  %s173 = sphi 0, %s177
                  %p174 = scmp.ge.s32.totalorder %s173, 1
                  %s178 = sphi %s136, %s136
                  %s179 = sphi %s134, %s134
                $region54: #{model_forward.31} parent=50 // loop_header_branch
                  %176 = sbr.rel (%p174) target = $region58
                $region55: #{model_forward.31} parent=50 // loop_body
                  _
                $region56: #{model_forward.31} parent=50 // loop_footer
                  %s177 = sadd.s32 1, %s173
                $region57: #{model_forward.31} parent=50 // loop_footer_branch
                  %172 = sbr.rel target = $region53
                $region58: #{model_forward.31} parent=50 // loop_exit
                  _
                loop: start=0, step=1, limit=1
                $region59: #{model_forward.31} parent=50 // loop_pre_header
                  _
                $region60: #{model_forward.31} parent=50 // loop_header
                  %s182 = sphi 0, %s186
                  %p183 = scmp.ge.s32.totalorder %s182, 1
                  %s187 = sphi %s136, %s136
                  %s188 = sphi %s134, %s134
                $region61: #{model_forward.31} parent=50 // loop_header_branch
                  %185 = sbr.rel (%p183) target = $region65
                $region62: #{model_forward.31} parent=50 // loop_body
                  %v189 = vld [vmem:[%s187] sm:$0xf]
                  %190 = vst [vmem:[%s188] sm:$0xf] %v189
                  %v191 = vld [vmem:[%s187 + $0x8] sm:$0xf]
                  %192 = vst [vmem:[%s188 + $0x4] sm:$0xf] %v191
                  %v193 = vld [vmem:[%s187 + $0x10] sm:$0xf]
                  %194 = vst [vmem:[%s188 + $0x8] sm:$0xf] %v193
                  %v195 = vld [vmem:[%s187 + $0x18] sm:$0xf]
                  %196 = vst [vmem:[%s188 + $0xc] sm:$0xf] %v195
                  %v197 = vld [vmem:[%s187 + $0x20] sm:$0xf]
                  %198 = vst [vmem:[%s188 + $0x10] sm:$0xf] %v197
                  %v199 = vld [vmem:[%s187 + $0x28] sm:$0xf]
                  %200 = vst [vmem:[%s188 + $0x14] sm:$0xf] %v199
                  %v201 = vld [vmem:[%s187 + $0x30] sm:$0xf]
                  %202 = vst [vmem:[%s188 + $0x18] sm:$0xf] %v201
                  %v203 = vld [vmem:[%s187 + $0x38] sm:$0xf]
                  %204 = vst [vmem:[%s188 + $0x1c] sm:$0xf] %v203
                  %v205 = vld [vmem:[%s187 + $0x40] sm:$0xf]
                  %206 = vst [vmem:[%s188 + $0x20] sm:$0xf] %v205
                $region63: #{model_forward.31} parent=50 // loop_footer
                  %s186 = sadd.s32 1, %s182
                $region64: #{model_forward.31} parent=50 // loop_footer_branch
                  %181 = sbr.rel target = $region60
                $region65: #{model_forward.31} parent=50 // loop_exit
                  _
              $region51: #{model_forward.31} parent=35 // pred_fallthru
                _
            $region36: #{model_forward.31} parent=31 // pred_fallthru
              _
            // Predicated region
            $region37: #{model_forward.31} parent=31 // pred_check
              _
            $region38: #{model_forward.31} parent=31 // pred_check_branch
              %142 = sbr.rel (0) target = $region40
            $region39: #{model_forward.31} parent=31 // pred_region
              loop: start=0, step=1, limit=1
              $region41: #{model_forward.31} parent=39 // loop_pre_header
                _
              $region42: #{model_forward.31} parent=39 // loop_header
                %s145 = sphi 0, %s149
                %p146 = scmp.ge.s32.totalorder %s145, 1
                %s150 = sphi %s136, %s136
                %s151 = sphi %s134, %s134
              $region43: #{model_forward.31} parent=39 // loop_header_branch
                %148 = sbr.rel (%p146) target = $region47
              $region44: #{model_forward.31} parent=39 // loop_body
                %v152 = vld [vmem:[%s150] sm:$0xf]
                %153 = vst [vmem:[%s151] sm:$0xf] %v152
                %v154 = vld [vmem:[%s150 + $0x8] sm:$0xf]
                %155 = vst [vmem:[%s151 + $0x4] sm:$0xf] %v154
                %v156 = vld [vmem:[%s150 + $0x10] sm:$0xf]
                %157 = vst [vmem:[%s151 + $0x8] sm:$0xf] %v156
                %v158 = vld [vmem:[%s150 + $0x18] sm:$0xf]
                %159 = vst [vmem:[%s151 + $0xc] sm:$0xf] %v158
                %v160 = vld [vmem:[%s150 + $0x20] sm:$0xf]
                %161 = vst [vmem:[%s151 + $0x10] sm:$0xf] %v160
                %v162 = vld [vmem:[%s150 + $0x28] sm:$0xf]
                %163 = vst [vmem:[%s151 + $0x14] sm:$0xf] %v162
                %v164 = vld [vmem:[%s150 + $0x30] sm:$0xf]
                %165 = vst [vmem:[%s151 + $0x18] sm:$0xf] %v164
                %v166 = vld [vmem:[%s150 + $0x38] sm:$0xf]
                %167 = vst [vmem:[%s151 + $0x1c] sm:$0xf] %v166
                %v168 = vld [vmem:[%s150 + $0x40] sm:$0xf]
                %169 = vst [vmem:[%s151 + $0x20] sm:$0xf] %v168
              $region45: #{model_forward.31} parent=39 // loop_footer
                %s149 = sadd.s32 1, %s145
              $region46: #{model_forward.31} parent=39 // loop_footer_branch
                %144 = sbr.rel target = $region42
              $region47: #{model_forward.31} parent=39 // loop_exit
                _
            $region40: #{model_forward.31} parent=31 // pred_fallthru
              _
          $region32: #{model_forward.31} parent=27 // pred_fallthru
            _
          %207 = vnop
        $region28: #{model_forward.31} parent=23 // pred_fallthru
          _
      $region24: #{model_forward.31} parent=5 // pred_fallthru
        _
      %p208 = scmp.le.s32.totalorder 1, %s9
      %p209 = scmp.lt.s32.totalorder %s9, 3
      %p210 = pnand %p208, %p209
      %p211 = pneg %p210
      // Predicated region
      $region66: #{model_forward.31} parent=5 // pred_check
        _
      $region67: #{model_forward.31} parent=5 // pred_check_branch
        %213 = sbr.rel (%p210) target = $region69
      $region68: #{model_forward.31} parent=5 // pred_region
        %s214 = ssub.s32 %s9, 1
        %s215 = sand.u32 %s43, 1
        %s216 = sand.u32 %s43, 1
        %s217 = smul.addr %s216, 36
        %s218 = scalar_lea.vmem [#allocation2], %s217
        // Predicated region
        $region70: #{model_forward.31} parent=68 // pred_check
          %p219 = pneg %p56
        $region71: #{model_forward.31} parent=68 // pred_check_branch
          %221 = sbr.rel (%p219) target = $region73
        $region72: #{model_forward.31} parent=68 // pred_region
          _
        $region73: #{model_forward.31} parent=68 // pred_fallthru
          _
        %p222 = pneg %p30
        %p223 = pneg %p27
        %s224 = sand.u32 %s43, 1
        %s225 = sand.u32 %s43, 1
        %s226 = smul.addr %s225, 36
        %s227 = scalar_lea.vmem [#allocation2], %s226
        %p228 = pneg %p56
        %p229 = pneg %p53
        %p230 = pneg %p77
        %p231 = pneg %p74
        %p232 = pneg %p103
        %p233 = pneg %p100
        %p234 = scmp.lt.s32.totalorder %s14, 1
        %s235 = scalar_select %p234, %s14, 1
        %s236 = smul.addr %s235, 4
        %s237 = scalar_lea.vmem %s3, %s236
        %p238 = scmp.lt.s32.totalorder %s14, 1
        %s239 = scalar_select %p238, %s14, 1
        %s240 = smul.addr %s239, 4
        %s241 = scalar_lea.vmem %s3, %s240
        %v243 = vld [vmem:[%s218] sm:$0xf]
        %v244 = vld [vmem:[%s218 + $0x4] sm:$0xf]
        %v245 = vld [vmem:[%s218 + $0x8] sm:$0xf]
        %v246 = vld [vmem:[%s218 + $0xc] sm:$0xf]
        %v247 = vld [vmem:[%s218 + $0x10] sm:$0xf]
        %v248 = vld [vmem:[%s218 + $0x14] sm:$0xf]
        %v249 = vld [vmem:[%s218 + $0x18] sm:$0xf]
        %v250 = vld [vmem:[%s218 + $0x1c] sm:$0xf]
        %v251 = vld [vmem:[%s218 + $0x20] sm:$0xf]
        %v252 = vld [vmem:[%s0] sm:$0xf]
        %v253 = vld [vmem:[%s2] sm:$0xff]
        %255 = vset.pattern.permute.xlu0 0
        %256 = vperm.xlu0 %255, %v253
        %v257 = vpop.permute.xlu0 %256
        %v268 = vunpack.c.l.b16 %v243
        %v269 = vunpack.c.l.b16 %v244
        %v270 = vunpack.c.l.b16 %v245
        %v271 = vunpack.c.l.b16 %v246
        %v272 = vunpack.c.l.b16 %v247
        %v273 = vunpack.c.l.b16 %v248
        %v274 = vunpack.c.l.b16 %v249
        %v275 = vunpack.c.l.b16 %v250
        %v276 = vunpack.c.l.b16 %v251
        %v277 = vpack.c.b16 %v269, %v268
        %v278 = vpack.c.b16 %v271, %v270
        %v279 = vpack.c.b16 %v273, %v272
        %v280 = vpack.c.b16 %v275, %v274
        %v281 = vpack.c.b16 %v276, %v276
        %vm286 = vcmask 588800
        %v288 = vsel %vm286, %v252, 0
        %vm290 = vcmask 1043456
        %v292 = vsel %vm290, %v281, 0
        %294 = vmatprep.subr.bf16.mxu0 0
        %295 = vmatpush1.bf16.msra.mxu0 %v277
        %296 = vmatprep.subr.bf16.mxu0 0
        %297 = vmatpush1.bf16.msra.mxu0 %v278
        %298 = vmatprep.subr.bf16.mxu0 0
        %299 = vmatpush1.bf16.msra.mxu0 %v279
        %300 = vmatprep.subr.bf16.mxu0 0
        %301 = vmatpush1.bf16.msra.mxu0 %v280
        %302 = vmatprep.subr.bf16.mxu0 0
        %303 = vmatpush1.bf16.msra.mxu0 %v292
        %304 = vmatprep.subr.bf16.mxu0 0
        %305 = vmatpush1.bf16.msra.mxu0 0
        %306 = vmatprep.subr.bf16.mxu0 0
        %307 = vmatpush1.bf16.msra.mxu0 0
        %308 = vmatprep.subr.bf16.mxu0 0
        %309 = vmatpush1.bf16.msra.mxu0 0
        %310 = vmatprep.subr.bf16.mxu0 0
        %311 = vmatpush1.bf16.msra.mxu0 0
        %312 = vmatprep.subr.bf16.mxu0 0
        %313 = vmatpush1.bf16.msra.mxu0 0
        %314 = vmatprep.subr.bf16.mxu0 0
        %315 = vmatpush1.bf16.msra.mxu0 0
        %316 = vmatprep.subr.bf16.mxu0 0
        %317 = vmatpush1.bf16.msra.mxu0 0
        %318 = vmatprep.subr.bf16.mxu0 0
        %319 = vmatpush1.bf16.msra.mxu0 0
        %320 = vmatprep.subr.bf16.mxu0 0
        %321 = vmatpush1.bf16.msra.mxu0 0
        %322 = vmatprep.subr.bf16.mxu0 0
        %323 = vmatpush1.bf16.msra.mxu0 0
        %324 = vmatprep.subr.bf16.mxu0 0
        %325 = vmatpush1.bf16.msra.mxu0 0
        %326 = vmatprep.mubr.bf16.mxu0 0
        %327 = vmatmul.mubr.bf16.gmra.mrb[0].mxu0 %v288
        %v328 = vpop.f32.mrb[0].mxu0
        %v329 = vadd.f32 %v257, %v328
        %v330 = vpop.f32.mrb[0].mxu0
        %v331 = vpop.f32.mrb[0].mxu0
        %v332 = vpop.f32.mrb[0].mxu0
        %333 = vdwg.mxu0
        %v334 = vmax.f32 %v329, 0.0
        %v335 = vpack.c.bf16 %v334, %v334
        %336 = vst [vmem:[%s241] sm:$0xf] %v335
        %p337 = scmp.lt.s32.totalorder %s14, 1
        %s338 = scalar_select %p337, %s14, 1
        %s339 = smul.addr %s338, 4
        %s340 = scalar_lea.vmem %s3, %s339
        // Predicated region
        $region74: #{model_forward.31} parent=68 // pred_check
          %p341 = pneg %p100
        $region75: #{model_forward.31} parent=68 // pred_check_branch
          %343 = sbr.rel (%p341) target = $region77
        $region76: #{model_forward.31} parent=68 // pred_region
          _
        $region77: #{model_forward.31} parent=68 // pred_fallthru
          _
      $region69: #{model_forward.31} parent=5 // pred_fallthru
        _
      %p344 = scmp.le.s32.totalorder 2, %s9
      // Predicated region
      $region78: #{model_forward.31} parent=5 // pred_check
        %p345 = pneg %p344
      $region79: #{model_forward.31} parent=5 // pred_check_branch
        %347 = sbr.rel (%p345) target = $region81
      $region80: #{model_forward.31} parent=5 // pred_region
        %s348 = ssub.s32 %s9, 2
        // Predicated region
        $region82: #{model_forward.31} parent=80 // pred_check
          %p349 = pneg %p106
        $region83: #{model_forward.31} parent=80 // pred_check_branch
          %351 = sbr.rel (%p349) target = $region85
        $region84: #{model_forward.31} parent=80 // pred_region
          %p352 = scmp.lt.s32.totalorder %s15, 1
          %s353 = scalar_select %p352, %s15, 1
          %s354 = smul.addr %s353, 4
          %s355 = scalar_lea.vmem %s3, %s354
        $region85: #{model_forward.31} parent=80 // pred_fallthru
          _
      $region81: #{model_forward.31} parent=5 // pred_fallthru
        _
    $region6: #{model_forward.31} parent=1 // loop_footer
      %s13 = sadd.s32 1, %s9
    $region7: #{model_forward.31} parent=1 // loop_footer_branch
      %8 = sbr.rel target = $region3
    $region8: #{model_forward.31} parent=1 // loop_exit
      _

// kernel: model_forward.33
$region0: #{model_forward.33}
  #allocation0 [shape = 'u32[]', space=smem, size = 0x4, offset = 0x4, fixed_abs, tag = 'smem constant byte address 0x4 - core index']
  #allocation1 [shape = 'u32[144,128]{1,0:T(1,128)}', space=vmem, size = 0x12000, scoped, tag = 'internal scratch']
  %s0 = inlined_call_operand.vmem [shape: bf16[8,72], index: 0, kind: input, shape index: {}]
  %s1 = inlined_call_operand.vmem [shape: bf16[72,256], index: 1, kind: input, shape index: {}]
  %s2 = inlined_call_operand.vmem [shape: f32[8,1], index: 2, kind: input, shape index: {}]
  %s3 = inlined_call_operand.vmem [shape: bf16[8,256], index: 3, kind: input, shape index: {}]
  %s4 = inlined_call_operand.vmem [shape: bf16[8,256], index: 4, kind: output, shape index: {}]
  %s5 = sld [smem:[#allocation0]]
  $region90: #{model_forward.33} parent=0
    _
  %s7 = ssub.s32 1, %s5
  %s8 = scalar_select 0, %s7, %s5
  $region1: #{model_forward.33} parent=0
    #allocation2 [shape = 'u8[36864]{0}', space=vmem, size = 0x9000, scoped, tag = 'input window, operand 1']
    loop: start=0, step=1, limit=4
    $region2: #{model_forward.33} parent=1 // loop_pre_header
      _
    $region3: #{model_forward.33} parent=1 // loop_header
      %s10 = sphi 0, %s14
      %p11 = scmp.ge.s32.totalorder %s10, 4
      %s18 = sphi 0, %s18
      %s20 = sphi 0, %s18
      %s21 = sphi 0, %s20
      %s35 = sphi 0, %s21
      %s41 = sphi 0, %s43
      %s44 = sphi 0, %s41
      %s45 = sphi 0, %s44
      %s61 = sphi 0, %s45
      %s65 = sphi 0, %s65
      %s67 = sphi 0, %s65
      %s68 = sphi 0, %s67
      %s82 = sphi 0, %s68
      %s88 = sphi 0, %s90
      %s91 = sphi 0, %s88
      %s92 = sphi 0, %s91
      %s108 = sphi 0, %s92
      %s114 = sphi 0, %s116
      %s117 = sphi 0, %s114
      %s118 = sphi 0, %s117
      %s134 = sphi 0, %s118
    $region4: #{model_forward.33} parent=1 // loop_header_branch
      %13 = sbr.rel (%p11) target = $region8
    $region5: #{model_forward.33} parent=1 // loop_body
      %s15 = ssub.s32 %s10, 1
      %s16 = ssub.s32 %s10, 2
      %s17 = sadd.s32 %s10, 1
      %s19 = sadd.s32 %s18, 1
      %p22 = scmp.eq.s32.totalorder %s10, 1
      %p23 = scmp.ne.s32.totalorder %s18, %s20
      %p24 = scmp.eq.s32.totalorder %s10, 0
      %p25 = por %p23, %p24
      %p26 = scmp.ne.s32.totalorder %s18, %s20
      %p27 = scmp.eq.s32.totalorder %s15, 1
      %p28 = por %p26, %p27
      %p29 = scmp.ne.s32.totalorder %s20, %s21
      %p30 = scmp.eq.s32.totalorder %s15, 0
      %p31 = por %p29, %p30
      %p32 = scmp.ne.s32.totalorder %s20, %s21
      %p33 = scmp.eq.s32.totalorder %s16, 1
      %p34 = por %p32, %p33
      %p36 = scmp.ne.s32.totalorder %s21, %s35
      %p37 = scmp.eq.s32.totalorder %s16, 0
      %p38 = por %p36, %p37
      %s39 = ssub.s32 %s10, %s17
      %p40 = scmp.eq.s32.totalorder %s39, 0
      %s42 = sadd.s32 %s41, 1
      %s43 = scalar_select %p40, %s41, %s42
      %p46 = pneg %p40
      %p47 = scmp.eq.s32.totalorder %s10, 1
      %p48 = por %p46, %p47
      %p49 = scmp.ne.s32.totalorder %s41, %s44
      %p50 = scmp.eq.s32.totalorder %s10, 0
      %p51 = por %p49, %p50
      %p52 = scmp.ne.s32.totalorder %s41, %s44
      %p53 = scmp.eq.s32.totalorder %s15, 1
      %p54 = por %p52, %p53
      %p55 = scmp.ne.s32.totalorder %s44, %s45
      %p56 = scmp.eq.s32.totalorder %s15, 0
      %p57 = por %p55, %p56
      %p58 = scmp.ne.s32.totalorder %s44, %s45
      %p59 = scmp.eq.s32.totalorder %s16, 1
      %p60 = por %p58, %p59
      %p62 = scmp.ne.s32.totalorder %s45, %s61
      %p63 = scmp.eq.s32.totalorder %s16, 0
      %p64 = por %p62, %p63
      %s66 = sadd.s32 %s65, 1
      %p69 = scmp.eq.s32.totalorder %s10, 1
      %p70 = scmp.ne.s32.totalorder %s65, %s67
      %p71 = scmp.eq.s32.totalorder %s10, 0
      %p72 = por %p70, %p71
      %p73 = scmp.ne.s32.totalorder %s65, %s67
      %p74 = scmp.eq.s32.totalorder %s15, 1
      %p75 = por %p73, %p74
      %p76 = scmp.ne.s32.totalorder %s67, %s68
      %p77 = scmp.eq.s32.totalorder %s15, 0
      %p78 = por %p76, %p77
      %p79 = scmp.ne.s32.totalorder %s67, %s68
      %p80 = scmp.eq.s32.totalorder %s16, 1
      %p81 = por %p79, %p80
      %p83 = scmp.ne.s32.totalorder %s68, %s82
      %p84 = scmp.eq.s32.totalorder %s16, 0
      %p85 = por %p83, %p84
      %s86 = ssub.s32 %s10, %s17
      %p87 = scmp.eq.s32.totalorder %s86, 0
      %s89 = sadd.s32 %s88, 1
      %s90 = scalar_select %p87, %s88, %s89
      %p93 = pneg %p87
      %p94 = scmp.eq.s32.totalorder %s10, 1
      %p95 = por %p93, %p94
      %p96 = scmp.ne.s32.totalorder %s88, %s91
      %p97 = scmp.eq.s32.totalorder %s10, 0
      %p98 = por %p96, %p97
      %p99 = scmp.ne.s32.totalorder %s88, %s91
      %p100 = scmp.eq.s32.totalorder %s15, 1
      %p101 = por %p99, %p100
      %p102 = scmp.ne.s32.totalorder %s91, %s92
      %p103 = scmp.eq.s32.totalorder %s15, 0
      %p104 = por %p102, %p103
      %p105 = scmp.ne.s32.totalorder %s91, %s92
      %p106 = scmp.eq.s32.totalorder %s16, 1
      %p107 = por %p105, %p106
      %p109 = scmp.ne.s32.totalorder %s92, %s108
      %p110 = scmp.eq.s32.totalorder %s16, 0
      %p111 = por %p109, %p110
      %s112 = ssub.s32 %s10, %s17
      %p113 = scmp.eq.s32.totalorder %s112, 0
      %s115 = sadd.s32 %s114, 1
      %s116 = scalar_select %p113, %s114, %s115
      %p119 = pneg %p113
      %p120 = scmp.eq.s32.totalorder %s10, 1
      %p121 = por %p119, %p120
      %p122 = scmp.ne.s32.totalorder %s114, %s117
      %p123 = scmp.eq.s32.totalorder %s10, 0
      %p124 = por %p122, %p123
      %p125 = scmp.ne.s32.totalorder %s114, %s117
      %p126 = scmp.eq.s32.totalorder %s15, 1
      %p127 = por %p125, %p126
      %p128 = scmp.ne.s32.totalorder %s117, %s118
      %p129 = scmp.eq.s32.totalorder %s15, 0
      %p130 = por %p128, %p129
      %p131 = scmp.ne.s32.totalorder %s117, %s118
      %p132 = scmp.eq.s32.totalorder %s16, 1
      %p133 = por %p131, %p132
      %p135 = scmp.ne.s32.totalorder %s118, %s134
      %p136 = scmp.eq.s32.totalorder %s16, 0
      %p137 = por %p135, %p136
      %p138 = scmp.le.s32.totalorder 1, %s10
      %p139 = scmp.lt.s32.totalorder %s10, 3
      %p140 = pnand %p138, %p139
      %p141 = pneg %p140
      // Predicated region
      $region9: #{model_forward.33} parent=5 // pred_check
        _
      $region10: #{model_forward.33} parent=5 // pred_check_branch
        %143 = sbr.rel (%p140) target = $region12
      $region11: #{model_forward.33} parent=5 // pred_region
        %s144 = ssub.s32 %s10, 1
        // Predicated region
        $region13: #{model_forward.33} parent=11 // pred_check
          %p145 = pneg %p31
        $region14: #{model_forward.33} parent=11 // pred_check_branch
          %147 = sbr.rel (%p145) target = $region16
        $region15: #{model_forward.33} parent=11 // pred_region
          _
        $region16: #{model_forward.33} parent=11 // pred_fallthru
          _
        // Predicated region
        $region17: #{model_forward.33} parent=11 // pred_check
          %p148 = pneg %p78
        $region18: #{model_forward.33} parent=11 // pred_check_branch
          %150 = sbr.rel (%p148) target = $region20
        $region19: #{model_forward.33} parent=11 // pred_region
          _
        $region20: #{model_forward.33} parent=11 // pred_fallthru
          _
      $region12: #{model_forward.33} parent=5 // pred_fallthru
        _
      %p151 = scmp.lt.s32.totalorder %s10, 2
      // Predicated region
      $region21: #{model_forward.33} parent=5 // pred_check
        %p152 = pneg %p151
      $region22: #{model_forward.33} parent=5 // pred_check_branch
        %154 = sbr.rel (%p152) target = $region24
      $region23: #{model_forward.33} parent=5 // pred_region
        // Predicated region
        $region25: #{model_forward.33} parent=23 // pred_check
          %p155 = pneg %p51
        $region26: #{model_forward.33} parent=23 // pred_check_branch
          %157 = sbr.rel (%p155) target = $region28
        $region27: #{model_forward.33} parent=23 // pred_region
          %s158 = sand.u32 %s41, 1
          %s159 = sand.u32 %s41, 1
          %s160 = smul.addr %s159, 36
          %s161 = scalar_lea.vmem [#allocation2], %s160
          %s162 = smul.addr %s10, 4
          %s163 = scalar_lea.vmem %s1, %s162
          // Predicated region
          $region29: #{model_forward.33} parent=27 // pred_check
            _
          $region30: #{model_forward.33} parent=27 // pred_check_branch
            %165 = sbr.rel (0) target = $region32
          $region31: #{model_forward.33} parent=27 // pred_region
            // Predicated region
            $region33: #{model_forward.33} parent=31 // pred_check
              _
            $region34: #{model_forward.33} parent=31 // pred_check_branch
              %167 = sbr.rel target = $region36
            $region35: #{model_forward.33} parent=31 // pred_region
              // Predicated region
              $region48: #{model_forward.33} parent=35 // pred_check
                _
              $region49: #{model_forward.33} parent=35 // pred_check_branch
                %198 = sbr.rel (0) target = $region51
              $region50: #{model_forward.33} parent=35 // pred_region
                loop: start=0, step=1, limit=1
                $region52: #{model_forward.33} parent=50 // loop_pre_header
                  _
                $region53: #{model_forward.33} parent=50 // loop_header
                  %s200 = sphi 0, %s204
                  %p201 = scmp.ge.s32.totalorder %s200, 1
                  %s205 = sphi %s163, %s163
                  %s206 = sphi %s161, %s161
                $region54: #{model_forward.33} parent=50 // loop_header_branch
                  %203 = sbr.rel (%p201) target = $region58
                $region55: #{model_forward.33} parent=50 // loop_body
                  _
                $region56: #{model_forward.33} parent=50 // loop_footer
                  %s204 = sadd.s32 1, %s200
                $region57: #{model_forward.33} parent=50 // loop_footer_branch
                  %199 = sbr.rel target = $region53
                $region58: #{model_forward.33} parent=50 // loop_exit
                  _
                loop: start=0, step=1, limit=1
                $region59: #{model_forward.33} parent=50 // loop_pre_header
                  _
                $region60: #{model_forward.33} parent=50 // loop_header
                  %s209 = sphi 0, %s213
                  %p210 = scmp.ge.s32.totalorder %s209, 1
                  %s214 = sphi %s163, %s163
                  %s215 = sphi %s161, %s161
                $region61: #{model_forward.33} parent=50 // loop_header_branch
                  %212 = sbr.rel (%p210) target = $region65
                $region62: #{model_forward.33} parent=50 // loop_body
                  %v216 = vld [vmem:[%s214] sm:$0xf]
                  %217 = vst [vmem:[%s215] sm:$0xf] %v216
                  %v218 = vld [vmem:[%s214 + $0x8] sm:$0xf]
                  %219 = vst [vmem:[%s215 + $0x4] sm:$0xf] %v218
                  %v220 = vld [vmem:[%s214 + $0x10] sm:$0xf]
                  %221 = vst [vmem:[%s215 + $0x8] sm:$0xf] %v220
                  %v222 = vld [vmem:[%s214 + $0x18] sm:$0xf]
                  %223 = vst [vmem:[%s215 + $0xc] sm:$0xf] %v222
                  %v224 = vld [vmem:[%s214 + $0x20] sm:$0xf]
                  %225 = vst [vmem:[%s215 + $0x10] sm:$0xf] %v224
                  %v226 = vld [vmem:[%s214 + $0x28] sm:$0xf]
                  %227 = vst [vmem:[%s215 + $0x14] sm:$0xf] %v226
                  %v228 = vld [vmem:[%s214 + $0x30] sm:$0xf]
                  %229 = vst [vmem:[%s215 + $0x18] sm:$0xf] %v228
                  %v230 = vld [vmem:[%s214 + $0x38] sm:$0xf]
                  %231 = vst [vmem:[%s215 + $0x1c] sm:$0xf] %v230
                  %v232 = vld [vmem:[%s214 + $0x40] sm:$0xf]
                  %233 = vst [vmem:[%s215 + $0x20] sm:$0xf] %v232
                $region63: #{model_forward.33} parent=50 // loop_footer
                  %s213 = sadd.s32 1, %s209
                $region64: #{model_forward.33} parent=50 // loop_footer_branch
                  %208 = sbr.rel target = $region60
                $region65: #{model_forward.33} parent=50 // loop_exit
                  _
              $region51: #{model_forward.33} parent=35 // pred_fallthru
                _
            $region36: #{model_forward.33} parent=31 // pred_fallthru
              _
            // Predicated region
            $region37: #{model_forward.33} parent=31 // pred_check
              _
            $region38: #{model_forward.33} parent=31 // pred_check_branch
              %169 = sbr.rel (0) target = $region40
            $region39: #{model_forward.33} parent=31 // pred_region
              loop: start=0, step=1, limit=1
              $region41: #{model_forward.33} parent=39 // loop_pre_header
                _
              $region42: #{model_forward.33} parent=39 // loop_header
                %s172 = sphi 0, %s176
                %p173 = scmp.ge.s32.totalorder %s172, 1
                %s177 = sphi %s163, %s163
                %s178 = sphi %s161, %s161
              $region43: #{model_forward.33} parent=39 // loop_header_branch
                %175 = sbr.rel (%p173) target = $region47
              $region44: #{model_forward.33} parent=39 // loop_body
                %v179 = vld [vmem:[%s177] sm:$0xf]
                %180 = vst [vmem:[%s178] sm:$0xf] %v179
                %v181 = vld [vmem:[%s177 + $0x8] sm:$0xf]
                %182 = vst [vmem:[%s178 + $0x4] sm:$0xf] %v181
                %v183 = vld [vmem:[%s177 + $0x10] sm:$0xf]
                %184 = vst [vmem:[%s178 + $0x8] sm:$0xf] %v183
                %v185 = vld [vmem:[%s177 + $0x18] sm:$0xf]
                %186 = vst [vmem:[%s178 + $0xc] sm:$0xf] %v185
                %v187 = vld [vmem:[%s177 + $0x20] sm:$0xf]
                %188 = vst [vmem:[%s178 + $0x10] sm:$0xf] %v187
                %v189 = vld [vmem:[%s177 + $0x28] sm:$0xf]
                %190 = vst [vmem:[%s178 + $0x14] sm:$0xf] %v189
                %v191 = vld [vmem:[%s177 + $0x30] sm:$0xf]
                %192 = vst [vmem:[%s178 + $0x18] sm:$0xf] %v191
                %v193 = vld [vmem:[%s177 + $0x38] sm:$0xf]
                %194 = vst [vmem:[%s178 + $0x1c] sm:$0xf] %v193
                %v195 = vld [vmem:[%s177 + $0x40] sm:$0xf]
                %196 = vst [vmem:[%s178 + $0x20] sm:$0xf] %v195
              $region45: #{model_forward.33} parent=39 // loop_footer
                %s176 = sadd.s32 1, %s172
              $region46: #{model_forward.33} parent=39 // loop_footer_branch
                %171 = sbr.rel target = $region42
              $region47: #{model_forward.33} parent=39 // loop_exit
                _
            $region40: #{model_forward.33} parent=31 // pred_fallthru
              _
          $region32: #{model_forward.33} parent=27 // pred_fallthru
            _
          %234 = vnop
        $region28: #{model_forward.33} parent=23 // pred_fallthru
          _
        // Predicated region
        $region66: #{model_forward.33} parent=23 // pred_check
          %p235 = pneg %p98
        $region67: #{model_forward.33} parent=23 // pred_check_branch
          %237 = sbr.rel (%p235) target = $region69
        $region68: #{model_forward.33} parent=23 // pred_region
          %p238 = scmp.lt.s32.totalorder %s10, 1
          %s239 = scalar_select %p238, %s10, 1
          %s240 = smul.addr %s239, 4
          %s241 = scalar_lea.vmem %s3, %s240
        $region69: #{model_forward.33} parent=23 // pred_fallthru
          _
      $region24: #{model_forward.33} parent=5 // pred_fallthru
        _
      %p242 = scmp.le.s32.totalorder 1, %s10
      %p243 = scmp.lt.s32.totalorder %s10, 3
      %p244 = pnand %p242, %p243
      %p245 = pneg %p244
      // Predicated region
      $region70: #{model_forward.33} parent=5 // pred_check
        _
      $region71: #{model_forward.33} parent=5 // pred_check_branch
        %247 = sbr.rel (%p244) target = $region73
      $region72: #{model_forward.33} parent=5 // pred_region
        %s248 = ssub.s32 %s10, 1
        %s249 = sand.u32 %s44, 1
        %s250 = sand.u32 %s44, 1
        %s251 = smul.addr %s250, 36
        %s252 = scalar_lea.vmem [#allocation2], %s251
        // Predicated region
        $region74: #{model_forward.33} parent=72 // pred_check
          %p253 = pneg %p57
        $region75: #{model_forward.33} parent=72 // pred_check_branch
          %255 = sbr.rel (%p253) target = $region77
        $region76: #{model_forward.33} parent=72 // pred_region
          _
        $region77: #{model_forward.33} parent=72 // pred_fallthru
          _
        %p256 = pneg %p31
        %p257 = pneg %p28
        %s258 = sand.u32 %s44, 1
        %s259 = sand.u32 %s44, 1
        %s260 = smul.addr %s259, 36
        %s261 = scalar_lea.vmem [#allocation2], %s260
        %p262 = pneg %p57
        %p263 = pneg %p54
        %p264 = pneg %p78
        %p265 = pneg %p75
        %p266 = scmp.lt.s32.totalorder %s15, 1
        %s267 = scalar_select %p266, %s15, 1
        %s268 = smul.addr %s267, 4
        %s269 = scalar_lea.vmem %s3, %s268
        %p270 = pneg %p104
        %p271 = pneg %p101
        %p272 = pneg %p130
        %p273 = pneg %p127
        %p274 = scmp.lt.s32.totalorder %s15, 1
        %s275 = scalar_select %p274, %s15, 1
        %s276 = smul.addr %s275, 4
        %s277 = scalar_lea.vmem %s4, %s276
        %p278 = scmp.lt.s32.totalorder %s15, 1
        %s279 = scalar_select %p278, %s15, 1
        %s280 = smul.addr %s279, 4
        %s281 = scalar_lea.vmem %s3, %s280
        %p282 = scmp.lt.s32.totalorder %s15, 1
        %s283 = scalar_select %p282, %s15, 1
        %s284 = smul.addr %s283, 4
        %s285 = scalar_lea.vmem %s4, %s284
        %v287 = vld [vmem:[%s252] sm:$0xf]
        %v288 = vld [vmem:[%s252 + $0x4] sm:$0xf]
        %v289 = vld [vmem:[%s252 + $0x8] sm:$0xf]
        %v290 = vld [vmem:[%s252 + $0xc] sm:$0xf]
        %v291 = vld [vmem:[%s252 + $0x10] sm:$0xf]
        %v292 = vld [vmem:[%s252 + $0x14] sm:$0xf]
        %v293 = vld [vmem:[%s252 + $0x18] sm:$0xf]
        %v294 = vld [vmem:[%s252 + $0x1c] sm:$0xf]
        %v295 = vld [vmem:[%s252 + $0x20] sm:$0xf]
        %v296 = vld [vmem:[%s0] sm:$0xf]
        %v297 = vld [vmem:[%s2] sm:$0xff]
        %299 = vset.pattern.permute.xlu0 0
        %300 = vperm.xlu0 %299, %v297
        %v301 = vpop.permute.xlu0 %300
        %v312 = vunpack.c.l.b16 %v287
        %v313 = vunpack.c.l.b16 %v288
        %v314 = vunpack.c.l.b16 %v289
        %v315 = vunpack.c.l.b16 %v290
        %v316 = vunpack.c.l.b16 %v291
        %v317 = vunpack.c.l.b16 %v292
        %v318 = vunpack.c.l.b16 %v293
        %v319 = vunpack.c.l.b16 %v294
        %v320 = vunpack.c.l.b16 %v295
        %v321 = vpack.c.b16 %v313, %v312
        %v322 = vpack.c.b16 %v315, %v314
        %v323 = vpack.c.b16 %v317, %v316
        %v324 = vpack.c.b16 %v319, %v318
        %v325 = vpack.c.b16 %v320, %v320
        %vm330 = vcmask 588800
        %v332 = vsel %vm330, %v296, 0
        %vm334 = vcmask 1043456
        %v336 = vsel %vm334, %v325, 0
        %338 = vmatprep.subr.bf16.mxu0 0
        %339 = vmatpush1.bf16.msra.mxu0 %v321
        %340 = vmatprep.subr.bf16.mxu0 0
        %341 = vmatpush1.bf16.msra.mxu0 %v322
        %342 = vmatprep.subr.bf16.mxu0 0
        %343 = vmatpush1.bf16.msra.mxu0 %v323
        %344 = vmatprep.subr.bf16.mxu0 0
        %345 = vmatpush1.bf16.msra.mxu0 %v324
        %346 = vmatprep.subr.bf16.mxu0 0
        %347 = vmatpush1.bf16.msra.mxu0 %v336
        %348 = vmatprep.subr.bf16.mxu0 0
        %349 = vmatpush1.bf16.msra.mxu0 0
        %350 = vmatprep.subr.bf16.mxu0 0
        %351 = vmatpush1.bf16.msra.mxu0 0
        %352 = vmatprep.subr.bf16.mxu0 0
        %353 = vmatpush1.bf16.msra.mxu0 0
        %354 = vmatprep.subr.bf16.mxu0 0
        %355 = vmatpush1.bf16.msra.mxu0 0
        %356 = vmatprep.subr.bf16.mxu0 0
        %357 = vmatpush1.bf16.msra.mxu0 0
        %358 = vmatprep.subr.bf16.mxu0 0
        %359 = vmatpush1.bf16.msra.mxu0 0
        %360 = vmatprep.subr.bf16.mxu0 0
        %361 = vmatpush1.bf16.msra.mxu0 0
        %362 = vmatprep.subr.bf16.mxu0 0
        %363 = vmatpush1.bf16.msra.mxu0 0
        %364 = vmatprep.subr.bf16.mxu0 0
        %365 = vmatpush1.bf16.msra.mxu0 0
        %366 = vmatprep.subr.bf16.mxu0 0
        %367 = vmatpush1.bf16.msra.mxu0 0
        %368 = vmatprep.subr.bf16.mxu0 0
        %369 = vmatpush1.bf16.msra.mxu0 0
        %370 = vmatprep.mubr.bf16.mxu0 0
        %371 = vmatmul.mubr.bf16.gmra.mrb[0].mxu0 %v332
        %v372 = vpop.f32.mrb[0].mxu0
        %v373 = vadd.f32 %v301, %v372
        %v374 = vpop.f32.mrb[0].mxu0
        %v375 = vpop.f32.mrb[0].mxu0
        %v376 = vpop.f32.mrb[0].mxu0
        %377 = vdwg.mxu0
        %v378 = vld [vmem:[%s281] sm:$0xf]
        %v379 = vunpack.c.l.bf16 %v378
        %v380 = vadd.f32 %v373, %v379
        %v381 = vmax.f32 %v380, 0.0
        %v382 = vpack.c.bf16 %v381, %v381
        %383 = vst [vmem:[%s285] sm:$0xf] %v382
        %p384 = scmp.lt.s32.totalorder %s15, 1
        %s385 = scalar_select %p384, %s15, 1
        %s386 = smul.addr %s385, 4
        %s387 = scalar_lea.vmem %s4, %s386
        // Predicated region
        $region78: #{model_forward.33} parent=72 // pred_check
          %p388 = pneg %p127
        $region79: #{model_forward.33} parent=72 // pred_check_branch
          %390 = sbr.rel (%p388) target = $region81
        $region80: #{model_forward.33} parent=72 // pred_region
          _
        $region81: #{model_forward.33} parent=72 // pred_fallthru
          _
      $region73: #{model_forward.33} parent=5 // pred_fallthru
        _
      %p391 = scmp.le.s32.totalorder 2, %s10
      // Predicated region
      $region82: #{model_forward.33} parent=5 // pred_check
        %p392 = pneg %p391
      $region83: #{model_forward.33} parent=5 // pred_check_branch
        %394 = sbr.rel (%p392) target = $region85
      $region84: #{model_forward.33} parent=5 // pred_region
        %s395 = ssub.s32 %s10, 2
        // Predicated region
        $region86: #{model_forward.33} parent=84 // pred_check
          %p396 = pneg %p133
        $region87: #{model_forward.33} parent=84 // pred_check_branch
          %398 = sbr.rel (%p396) target = $region89
        $region88: #{model_forward.33} parent=84 // pred_region
          %p399 = scmp.lt.s32.totalorder %s16, 1
          %s400 = scalar_select %p399, %s16, 1
          %s401 = smul.addr %s400, 4
          %s402 = scalar_lea.vmem %s4, %s401
        $region89: #{model_forward.33} parent=84 // pred_fallthru
          _
      $region85: #{model_forward.33} parent=5 // pred_fallthru
        _
    $region6: #{model_forward.33} parent=1 // loop_footer
      %s14 = sadd.s32 1, %s10
    $region7: #{model_forward.33} parent=1 // loop_footer_branch
      %9 = sbr.rel target = $region3
    $region8: #{model_forward.33} parent=1 // loop_exit
      _

// kernel: model_forward.32
$region0: #{model_forward.32}
  #allocation0 [shape = 'u32[]', space=smem, size = 0x4, offset = 0x4, fixed_abs, tag = 'smem constant byte address 0x4 - core index']
  #allocation1 [shape = 'u32[144,128]{1,0:T(1,128)}', space=vmem, size = 0x12000, scoped, tag = 'internal scratch']
  %s0 = inlined_call_operand.vmem [shape: bf16[8,8], index: 0, kind: input, shape index: {}]
  %s1 = inlined_call_operand.vmem [shape: bf16[8,256], index: 1, kind: input, shape index: {}]
  %s2 = inlined_call_operand.vmem [shape: f32[8,1], index: 2, kind: input, shape index: {}]
  %s3 = inlined_call_operand.vmem [shape: bf16[8,256], index: 3, kind: output, shape index: {}]
  %s4 = sld [smem:[#allocation0]]
  $region45: #{model_forward.32} parent=0
    _
  %s6 = ssub.s32 1, %s4
  %s7 = scalar_select 0, %s6, %s4
  loop: start=0, step=1, limit=4
  $region2: #{model_forward.32} parent=0 // loop_pre_header
    _
  $region3: #{model_forward.32} parent=0 // loop_header
    %s9 = sphi 0, %s13
    %p10 = scmp.ge.s32.totalorder %s9, 4
    %s17 = sphi 0, %s17
    %s19 = sphi 0, %s17
    %s20 = sphi 0, %s19
    %s34 = sphi 0, %s20
    %s40 = sphi 0, %s42
    %s43 = sphi 0, %s40
    %s44 = sphi 0, %s43
    %s60 = sphi 0, %s44
    %s64 = sphi 0, %s64
    %s66 = sphi 0, %s64
    %s67 = sphi 0, %s66
    %s81 = sphi 0, %s67
    %s87 = sphi 0, %s89
    %s90 = sphi 0, %s87
    %s91 = sphi 0, %s90
    %s107 = sphi 0, %s91
  $region4: #{model_forward.32} parent=0 // loop_header_branch
    %12 = sbr.rel (%p10) target = $region8
  $region5: #{model_forward.32} parent=0 // loop_body
    %s14 = ssub.s32 %s9, 1
    %s15 = ssub.s32 %s9, 2
    %s16 = sadd.s32 %s9, 1
    %s18 = sadd.s32 %s17, 1
    %p21 = scmp.eq.s32.totalorder %s9, 1
    %p22 = scmp.ne.s32.totalorder %s17, %s19
    %p23 = scmp.eq.s32.totalorder %s9, 0
    %p24 = por %p22, %p23
    %p25 = scmp.ne.s32.totalorder %s17, %s19
    %p26 = scmp.eq.s32.totalorder %s14, 1
    %p27 = por %p25, %p26
    %p28 = scmp.ne.s32.totalorder %s19, %s20
    %p29 = scmp.eq.s32.totalorder %s14, 0
    %p30 = por %p28, %p29
    %p31 = scmp.ne.s32.totalorder %s19, %s20
    %p32 = scmp.eq.s32.totalorder %s15, 1
    %p33 = por %p31, %p32
    %p35 = scmp.ne.s32.totalorder %s20, %s34
    %p36 = scmp.eq.s32.totalorder %s15, 0
    %p37 = por %p35, %p36
    %s38 = ssub.s32 %s9, %s16
    %p39 = scmp.eq.s32.totalorder %s38, 0
    %s41 = sadd.s32 %s40, 1
    %s42 = scalar_select %p39, %s40, %s41
    %p45 = pneg %p39
    %p46 = scmp.eq.s32.totalorder %s9, 1
    %p47 = por %p45, %p46
    %p48 = scmp.ne.s32.totalorder %s40, %s43
    %p49 = scmp.eq.s32.totalorder %s9, 0
    %p50 = por %p48, %p49
    %p51 = scmp.ne.s32.totalorder %s40, %s43
    %p52 = scmp.eq.s32.totalorder %s14, 1
    %p53 = por %p51, %p52
    %p54 = scmp.ne.s32.totalorder %s43, %s44
    %p55 = scmp.eq.s32.totalorder %s14, 0
    %p56 = por %p54, %p55
    %p57 = scmp.ne.s32.totalorder %s43, %s44
    %p58 = scmp.eq.s32.totalorder %s15, 1
    %p59 = por %p57, %p58
    %p61 = scmp.ne.s32.totalorder %s44, %s60
    %p62 = scmp.eq.s32.totalorder %s15, 0
    %p63 = por %p61, %p62
    %s65 = sadd.s32 %s64, 1
    %p68 = scmp.eq.s32.totalorder %s9, 1
    %p69 = scmp.ne.s32.totalorder %s64, %s66
    %p70 = scmp.eq.s32.totalorder %s9, 0
    %p71 = por %p69, %p70
    %p72 = scmp.ne.s32.totalorder %s64, %s66
    %p73 = scmp.eq.s32.totalorder %s14, 1
    %p74 = por %p72, %p73
    %p75 = scmp.ne.s32.totalorder %s66, %s67
    %p76 = scmp.eq.s32.totalorder %s14, 0
    %p77 = por %p75, %p76
    %p78 = scmp.ne.s32.totalorder %s66, %s67
    %p79 = scmp.eq.s32.totalorder %s15, 1
    %p80 = por %p78, %p79
    %p82 = scmp.ne.s32.totalorder %s67, %s81
    %p83 = scmp.eq.s32.totalorder %s15, 0
    %p84 = por %p82, %p83
    %s85 = ssub.s32 %s9, %s16
    %p86 = scmp.eq.s32.totalorder %s85, 0
    %s88 = sadd.s32 %s87, 1
    %s89 = scalar_select %p86, %s87, %s88
    %p92 = pneg %p86
    %p93 = scmp.eq.s32.totalorder %s9, 1
    %p94 = por %p92, %p93
    %p95 = scmp.ne.s32.totalorder %s87, %s90
    %p96 = scmp.eq.s32.totalorder %s9, 0
    %p97 = por %p95, %p96
    %p98 = scmp.ne.s32.totalorder %s87, %s90
    %p99 = scmp.eq.s32.totalorder %s14, 1
    %p100 = por %p98, %p99
    %p101 = scmp.ne.s32.totalorder %s90, %s91
    %p102 = scmp.eq.s32.totalorder %s14, 0
    %p103 = por %p101, %p102
    %p104 = scmp.ne.s32.totalorder %s90, %s91
    %p105 = scmp.eq.s32.totalorder %s15, 1
    %p106 = por %p104, %p105
    %p108 = scmp.ne.s32.totalorder %s91, %s107
    %p109 = scmp.eq.s32.totalorder %s15, 0
    %p110 = por %p108, %p109
    %p111 = scmp.le.s32.totalorder 1, %s9
    %p112 = scmp.lt.s32.totalorder %s9, 3
    %p113 = pnand %p111, %p112
    %p114 = pneg %p113
    // Predicated region
    $region9: #{model_forward.32} parent=5 // pred_check
      _
    $region10: #{model_forward.32} parent=5 // pred_check_branch
      %116 = sbr.rel (%p113) target = $region12
    $region11: #{model_forward.32} parent=5 // pred_region
      %s117 = ssub.s32 %s9, 1
      // Predicated region
      $region13: #{model_forward.32} parent=11 // pred_check
        %p118 = pneg %p30
      $region14: #{model_forward.32} parent=11 // pred_check_branch
        %120 = sbr.rel (%p118) target = $region16
      $region15: #{model_forward.32} parent=11 // pred_region
        _
      $region16: #{model_forward.32} parent=11 // pred_fallthru
        _
      // Predicated region
      $region17: #{model_forward.32} parent=11 // pred_check
        %p121 = pneg %p77
      $region18: #{model_forward.32} parent=11 // pred_check_branch
        %123 = sbr.rel (%p121) target = $region20
      $region19: #{model_forward.32} parent=11 // pred_region
        _
      $region20: #{model_forward.32} parent=11 // pred_fallthru
        _
    $region12: #{model_forward.32} parent=5 // pred_fallthru
      _
    %p124 = scmp.lt.s32.totalorder %s9, 2
    // Predicated region
    $region21: #{model_forward.32} parent=5 // pred_check
      %p125 = pneg %p124
    $region22: #{model_forward.32} parent=5 // pred_check_branch
      %127 = sbr.rel (%p125) target = $region24
    $region23: #{model_forward.32} parent=5 // pred_region
      // Predicated region
      $region25: #{model_forward.32} parent=23 // pred_check
        %p128 = pneg %p50
      $region26: #{model_forward.32} parent=23 // pred_check_branch
        %130 = sbr.rel (%p128) target = $region28
      $region27: #{model_forward.32} parent=23 // pred_region
        %p131 = scmp.lt.s32.totalorder %s9, 1
        %s132 = scalar_select %p131, %s9, 1
        %s133 = smul.addr %s132, 4
        %s134 = scalar_lea.vmem %s1, %s133
      $region28: #{model_forward.32} parent=23 // pred_fallthru
        _
    $region24: #{model_forward.32} parent=5 // pred_fallthru
      _
    %p135 = scmp.le.s32.totalorder 1, %s9
    %p136 = scmp.lt.s32.totalorder %s9, 3
    %p137 = pnand %p135, %p136
    %p138 = pneg %p137
    // Predicated region
    $region29: #{model_forward.32} parent=5 // pred_check
      _
    $region30: #{model_forward.32} parent=5 // pred_check_branch
      %140 = sbr.rel (%p137) target = $region32
    $region31: #{model_forward.32} parent=5 // pred_region
      %s141 = ssub.s32 %s9, 1
      %p142 = pneg %p30
      %p143 = pneg %p27
      %p144 = scmp.lt.s32.totalorder %s14, 1
      %s145 = scalar_select %p144, %s14, 1
      %s146 = smul.addr %s145, 4
      %s147 = scalar_lea.vmem %s1, %s146
      %p148 = pneg %p56
      %p149 = pneg %p53
      %p150 = pneg %p77
      %p151 = pneg %p74
      %p152 = pneg %p103
      %p153 = pneg %p100
      %p154 = scmp.lt.s32.totalorder %s14, 1
      %s155 = scalar_select %p154, %s14, 1
      %s156 = smul.addr %s155, 4
      %s157 = scalar_lea.vmem %s3, %s156
      %p158 = scmp.lt.s32.totalorder %s14, 1
      %s159 = scalar_select %p158, %s14, 1
      %s160 = smul.addr %s159, 4
      %s161 = scalar_lea.vmem %s1, %s160
      %p162 = scmp.lt.s32.totalorder %s14, 1
      %s163 = scalar_select %p162, %s14, 1
      %s164 = smul.addr %s163, 4
      %s165 = scalar_lea.vmem %s3, %s164
      %v167 = vld [vmem:[%s161] sm:$0xf]
      %v168 = vld [vmem:[%s0] sm:$0xf]
      %v169 = vld [vmem:[%s2] sm:$0xff]
      %171 = vset.pattern.permute.xlu0 0
      %172 = vperm.xlu0 %171, %v169
      %v173 = vpop.permute.xlu0 %172
      %vm175 = vcmask 64512
      %v177 = vsel %vm175, %v168, 0
      %vm179 = vcmask 1043456
      %v181 = vsel %vm179, %v167, 0
      %183 = vmatprep.subr.bf16.mxu0 0
      %184 = vmatpush1.bf16.msra.mxu0 %v181
      %185 = vmatprep.subr.bf16.mxu0 0
      %186 = vmatpush1.bf16.msra.mxu0 0
      %187 = vmatprep.subr.bf16.mxu0 0
      %188 = vmatpush1.bf16.msra.mxu0 0
      %189 = vmatprep.subr.bf16.mxu0 0
      %190 = vmatpush1.bf16.msra.mxu0 0
      %191 = vmatprep.subr.bf16.mxu0 0
      %192 = vmatpush1.bf16.msra.mxu0 0
      %193 = vmatprep.subr.bf16.mxu0 0
      %194 = vmatpush1.bf16.msra.mxu0 0
      %195 = vmatprep.subr.bf16.mxu0 0
      %196 = vmatpush1.bf16.msra.mxu0 0
      %197 = vmatprep.subr.bf16.mxu0 0
      %198 = vmatpush1.bf16.msra.mxu0 0
      %199 = vmatprep.subr.bf16.mxu0 0
      %200 = vmatpush1.bf16.msra.mxu0 0
      %201 = vmatprep.subr.bf16.mxu0 0
      %202 = vmatpush1.bf16.msra.mxu0 0
      %203 = vmatprep.subr.bf16.mxu0 0
      %204 = vmatpush1.bf16.msra.mxu0 0
      %205 = vmatprep.subr.bf16.mxu0 0
      %206 = vmatpush1.bf16.msra.mxu0 0
      %207 = vmatprep.subr.bf16.mxu0 0
      %208 = vmatpush1.bf16.msra.mxu0 0
      %209 = vmatprep.subr.bf16.mxu0 0
      %210 = vmatpush1.bf16.msra.mxu0 0
      %211 = vmatprep.subr.bf16.mxu0 0
      %212 = vmatpush1.bf16.msra.mxu0 0
      %213 = vmatprep.subr.bf16.mxu0 0
      %214 = vmatpush1.bf16.msra.mxu0 0
      %215 = vmatprep.mubr.bf16.mxu0 0
      %216 = vmatmul.mubr.bf16.gmra.mrb[0].mxu0 %v177
      %v217 = vpop.f32.mrb[0].mxu0
      %v218 = vadd.f32 %v173, %v217
      %v219 = vpop.f32.mrb[0].mxu0
      %v220 = vpop.f32.mrb[0].mxu0
      %v221 = vpop.f32.mrb[0].mxu0
      %222 = vdwg.mxu0
      %v223 = vpack.c.bf16 %v218, %v218
      %224 = vst [vmem:[%s165] sm:$0xf] %v223
      %p225 = scmp.lt.s32.totalorder %s14, 1
      %s226 = scalar_select %p225, %s14, 1
      %s227 = smul.addr %s226, 4
      %s228 = scalar_lea.vmem %s3, %s227
      // Predicated region
      $region33: #{model_forward.32} parent=31 // pred_check
        %p229 = pneg %p100
      $region34: #{model_forward.32} parent=31 // pred_check_branch
        %231 = sbr.rel (%p229) target = $region36
      $region35: #{model_forward.32} parent=31 // pred_region
        _
      $region36: #{model_forward.32} parent=31 // pred_fallthru
        _
    $region32: #{model_forward.32} parent=5 // pred_fallthru
      _
    %p232 = scmp.le.s32.totalorder 2, %s9
    // Predicated region
    $region37: #{model_forward.32} parent=5 // pred_check
      %p233 = pneg %p232
    $region38: #{model_forward.32} parent=5 // pred_check_branch
      %235 = sbr.rel (%p233) target = $region40
    $region39: #{model_forward.32} parent=5 // pred_region
      %s236 = ssub.s32 %s9, 2
      // Predicated region
      $region41: #{model_forward.32} parent=39 // pred_check
        %p237 = pneg %p106
      $region42: #{model_forward.32} parent=39 // pred_check_branch
        %239 = sbr.rel (%p237) target = $region44
      $region43: #{model_forward.32} parent=39 // pred_region
        %p240 = scmp.lt.s32.totalorder %s15, 1
        %s241 = scalar_select %p240, %s15, 1
        %s242 = smul.addr %s241, 4
        %s243 = scalar_lea.vmem %s3, %s242
      $region44: #{model_forward.32} parent=39 // pred_fallthru
        _
    $region40: #{model_forward.32} parent=5 // pred_fallthru
      _
  $region6: #{model_forward.32} parent=0 // loop_footer
    %s13 = sadd.s32 1, %s9
  $region7: #{model_forward.32} parent=0 // loop_footer_branch
    %8 = sbr.rel target = $region3
  $region8: #{model_forward.32} parent=0 // loop_exit
    _

// kernel: model_forward.36
$region0: #{model_forward.36}
  #allocation0 [shape = 'u32[]', space=smem, size = 0x4, offset = 0x4, fixed_abs, tag = 'smem constant byte address 0x4 - core index']
  #allocation1 [shape = 'u32[144,128]{1,0:T(1,128)}', space=vmem, size = 0x12000, scoped, tag = 'internal scratch']
  %s0 = inlined_call_operand.vmem [shape: bf16[8,72], index: 0, kind: input, shape index: {}]
  %s1 = inlined_call_operand.vmem [shape: bf16[72,128], index: 1, kind: input, shape index: {}]
  %s2 = inlined_call_operand.vmem [shape: f32[8,1], index: 2, kind: input, shape index: {}]
  %s3 = inlined_call_operand.vmem [shape: bf16[8,128], index: 3, kind: output, shape index: {}]
  %s4 = sld [smem:[#allocation0]]
  $region22: #{model_forward.36} parent=0
    _
  %s6 = ssub.s32 1, %s4
  %s7 = scalar_select 0, %s6, %s4
  // Predicated region
  $region2: #{model_forward.36} parent=0 // pred_check
    _
  $region3: #{model_forward.36} parent=0 // pred_check_branch
    %9 = sbr.rel (0) target = $region5
  $region4: #{model_forward.36} parent=0 // pred_region
    _
  $region5: #{model_forward.36} parent=0 // pred_fallthru
    _
  // Predicated region
  $region6: #{model_forward.36} parent=0 // pred_check
    _
  $region7: #{model_forward.36} parent=0 // pred_check_branch
    %11 = sbr.rel (0) target = $region9
  $region8: #{model_forward.36} parent=0 // pred_region
    _
  $region9: #{model_forward.36} parent=0 // pred_fallthru
    _
  // Predicated region
  $region10: #{model_forward.36} parent=0 // pred_check
    _
  $region11: #{model_forward.36} parent=0 // pred_check_branch
    %13 = sbr.rel (0) target = $region13
  $region12: #{model_forward.36} parent=0 // pred_region
    _
  $region13: #{model_forward.36} parent=0 // pred_fallthru
    _
  %v15 = vld [vmem:[%s1] sm:$0xf]
  %v16 = vld [vmem:[%s1 + $0x4] sm:$0xf]
  %v17 = vld [vmem:[%s1 + $0x8] sm:$0xf]
  %v18 = vld [vmem:[%s1 + $0xc] sm:$0xf]
  %v19 = vld [vmem:[%s1 + $0x10] sm:$0xf]
  %v20 = vld [vmem:[%s1 + $0x14] sm:$0xf]
  %v21 = vld [vmem:[%s1 + $0x18] sm:$0xf]
  %v22 = vld [vmem:[%s1 + $0x1c] sm:$0xf]
  %v23 = vld [vmem:[%s1 + $0x20] sm:$0xf]
  %v24 = vld [vmem:[%s0] sm:$0xf]
  %v25 = vld [vmem:[%s2] sm:$0xff]
  %27 = vset.pattern.permute.xlu0 0
  %28 = vperm.xlu0 %27, %v25
  %v29 = vpop.permute.xlu0 %28
  %v40 = vunpack.c.l.b16 %v15
  %v41 = vunpack.c.l.b16 %v16
  %v42 = vunpack.c.l.b16 %v17
  %v43 = vunpack.c.l.b16 %v18
  %v44 = vunpack.c.l.b16 %v19
  %v45 = vunpack.c.l.b16 %v20
  %v46 = vunpack.c.l.b16 %v21
  %v47 = vunpack.c.l.b16 %v22
  %v48 = vunpack.c.l.b16 %v23
  %v49 = vpack.c.b16 %v41, %v40
  %v50 = vpack.c.b16 %v43, %v42
  %v51 = vpack.c.b16 %v45, %v44
  %v52 = vpack.c.b16 %v47, %v46
  %v53 = vpack.c.b16 %v48, %v48
  %vm58 = vcmask 588800
  %v60 = vsel %vm58, %v24, 0
  %vm62 = vcmask 1043456
  %v64 = vsel %vm62, %v53, 0
  %66 = vmatprep.subr.bf16.mxu0 0
  %67 = vmatpush1.bf16.msra.mxu0 %v49
  %68 = vmatprep.subr.bf16.mxu0 0
  %69 = vmatpush1.bf16.msra.mxu0 %v50
  %70 = vmatprep.subr.bf16.mxu0 0
  %71 = vmatpush1.bf16.msra.mxu0 %v51
  %72 = vmatprep.subr.bf16.mxu0 0
  %73 = vmatpush1.bf16.msra.mxu0 %v52
  %74 = vmatprep.subr.bf16.mxu0 0
  %75 = vmatpush1.bf16.msra.mxu0 %v64
  %76 = vmatprep.subr.bf16.mxu0 0
  %77 = vmatpush1.bf16.msra.mxu0 0
  %78 = vmatprep.subr.bf16.mxu0 0
  %79 = vmatpush1.bf16.msra.mxu0 0
  %80 = vmatprep.subr.bf16.mxu0 0
  %81 = vmatpush1.bf16.msra.mxu0 0
  %82 = vmatprep.subr.bf16.mxu0 0
  %83 = vmatpush1.bf16.msra.mxu0 0
  %84 = vmatprep.subr.bf16.mxu0 0
  %85 = vmatpush1.bf16.msra.mxu0 0
  %86 = vmatprep.subr.bf16.mxu0 0
  %87 = vmatpush1.bf16.msra.mxu0 0
  %88 = vmatprep.subr.bf16.mxu0 0
  %89 = vmatpush1.bf16.msra.mxu0 0
  %90 = vmatprep.subr.bf16.mxu0 0
  %91 = vmatpush1.bf16.msra.mxu0 0
  %92 = vmatprep.subr.bf16.mxu0 0
  %93 = vmatpush1.bf16.msra.mxu0 0
  %94 = vmatprep.subr.bf16.mxu0 0
  %95 = vmatpush1.bf16.msra.mxu0 0
  %96 = vmatprep.subr.bf16.mxu0 0
  %97 = vmatpush1.bf16.msra.mxu0 0
  %98 = vmatprep.mubr.bf16.mxu0 0
  %99 = vmatmul.mubr.bf16.gmra.mrb[0].mxu0 %v60
  %v100 = vpop.f32.mrb[0].mxu0
  %v101 = vadd.f32 %v29, %v100
  %v102 = vpop.f32.mrb[0].mxu0
  %v103 = vpop.f32.mrb[0].mxu0
  %v104 = vpop.f32.mrb[0].mxu0
  %105 = vdwg.mxu0
  %v106 = vmax.f32 %v101, 0.0
  %v107 = vpack.c.bf16 %v106, %v106
  %108 = vst [vmem:[%s3] sm:$0xf] %v107
  // Predicated region
  $region14: #{model_forward.36} parent=0 // pred_check
    _
  $region15: #{model_forward.36} parent=0 // pred_check_branch
    %110 = sbr.rel (0) target = $region17
  $region16: #{model_forward.36} parent=0 // pred_region
    _
  $region17: #{model_forward.36} parent=0 // pred_fallthru
    _
  // Predicated region
  $region18: #{model_forward.36} parent=0 // pred_check
    _
  $region19: #{model_forward.36} parent=0 // pred_check_branch
    %112 = sbr.rel (0) target = $region21
  $region20: #{model_forward.36} parent=0 // pred_region
    _
  $region21: #{model_forward.36} parent=0 // pred_fallthru
    _

// kernel: model_forward.38
$region0: #{model_forward.38}
  #allocation0 [shape = 'u32[]', space=smem, size = 0x4, offset = 0x4, fixed_abs, tag = 'smem constant byte address 0x4 - core index']
  #allocation1 [shape = 'u32[144,128]{1,0:T(1,128)}', space=vmem, size = 0x12000, scoped, tag = 'internal scratch']
  %s0 = inlined_call_operand.vmem [shape: bf16[8,72], index: 0, kind: input, shape index: {}]
  %s1 = inlined_call_operand.vmem [shape: bf16[72,128], index: 1, kind: input, shape index: {}]
  %s2 = inlined_call_operand.vmem [shape: f32[8,1], index: 2, kind: input, shape index: {}]
  %s3 = inlined_call_operand.vmem [shape: bf16[8,128], index: 3, kind: input, shape index: {}]
  %s4 = inlined_call_operand.vmem [shape: bf16[8,128], index: 4, kind: output, shape index: {}]
  %s5 = sld [smem:[#allocation0]]
  $region26: #{model_forward.38} parent=0
    _
  %s7 = ssub.s32 1, %s5
  %s8 = scalar_select 0, %s7, %s5
  // Predicated region
  $region2: #{model_forward.38} parent=0 // pred_check
    _
  $region3: #{model_forward.38} parent=0 // pred_check_branch
    %10 = sbr.rel (0) target = $region5
  $region4: #{model_forward.38} parent=0 // pred_region
    _
  $region5: #{model_forward.38} parent=0 // pred_fallthru
    _
  // Predicated region
  $region6: #{model_forward.38} parent=0 // pred_check
    _
  $region7: #{model_forward.38} parent=0 // pred_check_branch
    %12 = sbr.rel (0) target = $region9
  $region8: #{model_forward.38} parent=0 // pred_region
    _
  $region9: #{model_forward.38} parent=0 // pred_fallthru
    _
  // Predicated region
  $region10: #{model_forward.38} parent=0 // pred_check
    _
  $region11: #{model_forward.38} parent=0 // pred_check_branch
    %14 = sbr.rel (0) target = $region13
  $region12: #{model_forward.38} parent=0 // pred_region
    _
  $region13: #{model_forward.38} parent=0 // pred_fallthru
    _
  // Predicated region
  $region14: #{model_forward.38} parent=0 // pred_check
    _
  $region15: #{model_forward.38} parent=0 // pred_check_branch
    %16 = sbr.rel (0) target = $region17
  $region16: #{model_forward.38} parent=0 // pred_region
    _
  $region17: #{model_forward.38} parent=0 // pred_fallthru
    _
  %v18 = vld [vmem:[%s1] sm:$0xf]
  %v19 = vld [vmem:[%s1 + $0x4] sm:$0xf]
  %v20 = vld [vmem:[%s1 + $0x8] sm:$0xf]
  %v21 = vld [vmem:[%s1 + $0xc] sm:$0xf]
  %v22 = vld [vmem:[%s1 + $0x10] sm:$0xf]
  %v23 = vld [vmem:[%s1 + $0x14] sm:$0xf]
  %v24 = vld [vmem:[%s1 + $0x18] sm:$0xf]
  %v25 = vld [vmem:[%s1 + $0x1c] sm:$0xf]
  %v26 = vld [vmem:[%s1 + $0x20] sm:$0xf]
  %v27 = vld [vmem:[%s0] sm:$0xf]
  %v28 = vld [vmem:[%s2] sm:$0xff]
  %30 = vset.pattern.permute.xlu0 0
  %31 = vperm.xlu0 %30, %v28
  %v32 = vpop.permute.xlu0 %31
  %v43 = vunpack.c.l.b16 %v18
  %v44 = vunpack.c.l.b16 %v19
  %v45 = vunpack.c.l.b16 %v20
  %v46 = vunpack.c.l.b16 %v21
  %v47 = vunpack.c.l.b16 %v22
  %v48 = vunpack.c.l.b16 %v23
  %v49 = vunpack.c.l.b16 %v24
  %v50 = vunpack.c.l.b16 %v25
  %v51 = vunpack.c.l.b16 %v26
  %v52 = vpack.c.b16 %v44, %v43
  %v53 = vpack.c.b16 %v46, %v45
  %v54 = vpack.c.b16 %v48, %v47
  %v55 = vpack.c.b16 %v50, %v49
  %v56 = vpack.c.b16 %v51, %v51
  %vm61 = vcmask 588800
  %v63 = vsel %vm61, %v27, 0
  %vm65 = vcmask 1043456
  %v67 = vsel %vm65, %v56, 0
  %69 = vmatprep.subr.bf16.mxu0 0
  %70 = vmatpush1.bf16.msra.mxu0 %v52
  %71 = vmatprep.subr.bf16.mxu0 0
  %72 = vmatpush1.bf16.msra.mxu0 %v53
  %73 = vmatprep.subr.bf16.mxu0 0
  %74 = vmatpush1.bf16.msra.mxu0 %v54
  %75 = vmatprep.subr.bf16.mxu0 0
  %76 = vmatpush1.bf16.msra.mxu0 %v55
  %77 = vmatprep.subr.bf16.mxu0 0
  %78 = vmatpush1.bf16.msra.mxu0 %v67
  %79 = vmatprep.subr.bf16.mxu0 0
  %80 = vmatpush1.bf16.msra.mxu0 0
  %81 = vmatprep.subr.bf16.mxu0 0
  %82 = vmatpush1.bf16.msra.mxu0 0
  %83 = vmatprep.subr.bf16.mxu0 0
  %84 = vmatpush1.bf16.msra.mxu0 0
  %85 = vmatprep.subr.bf16.mxu0 0
  %86 = vmatpush1.bf16.msra.mxu0 0
  %87 = vmatprep.subr.bf16.mxu0 0
  %88 = vmatpush1.bf16.msra.mxu0 0
  %89 = vmatprep.subr.bf16.mxu0 0
  %90 = vmatpush1.bf16.msra.mxu0 0
  %91 = vmatprep.subr.bf16.mxu0 0
  %92 = vmatpush1.bf16.msra.mxu0 0
  %93 = vmatprep.subr.bf16.mxu0 0
  %94 = vmatpush1.bf16.msra.mxu0 0
  %95 = vmatprep.subr.bf16.mxu0 0
  %96 = vmatpush1.bf16.msra.mxu0 0
  %97 = vmatprep.subr.bf16.mxu0 0
  %98 = vmatpush1.bf16.msra.mxu0 0
  %99 = vmatprep.subr.bf16.mxu0 0
  %100 = vmatpush1.bf16.msra.mxu0 0
  %101 = vmatprep.mubr.bf16.mxu0 0
  %102 = vmatmul.mubr.bf16.gmra.mrb[0].mxu0 %v63
  %v103 = vpop.f32.mrb[0].mxu0
  %v104 = vadd.f32 %v32, %v103
  %v105 = vpop.f32.mrb[0].mxu0
  %v106 = vpop.f32.mrb[0].mxu0
  %v107 = vpop.f32.mrb[0].mxu0
  %108 = vdwg.mxu0
  %v109 = vld [vmem:[%s3] sm:$0xf]
  %v110 = vunpack.c.l.bf16 %v109
  %v111 = vadd.f32 %v104, %v110
  %v112 = vmax.f32 %v111, 0.0
  %v113 = vpack.c.bf16 %v112, %v112
  %114 = vst [vmem:[%s4] sm:$0xf] %v113
  // Predicated region
  $region18: #{model_forward.38} parent=0 // pred_check
    _
  $region19: #{model_forward.38} parent=0 // pred_check_branch
    %116 = sbr.rel (0) target = $region21
  $region20: #{model_forward.38} parent=0 // pred_region
    _
  $region21: #{model_forward.38} parent=0 // pred_fallthru
    _
  // Predicated region
  $region22: #{model_forward.38} parent=0 // pred_check
    _
  $region23: #{model_forward.38} parent=0 // pred_check_branch
    %118 = sbr.rel (0) target = $region25
  $region24: #{model_forward.38} parent=0 // pred_region
    _
  $region25: #{model_forward.38} parent=0 // pred_fallthru
    _

// kernel: model_forward.37
$region0: #{model_forward.37}
  #allocation0 [shape = 'u32[]', space=smem, size = 0x4, offset = 0x4, fixed_abs, tag = 'smem constant byte address 0x4 - core index']
  #allocation1 [shape = 'u32[144,128]{1,0:T(1,128)}', space=vmem, size = 0x12000, scoped, tag = 'internal scratch']
  %s0 = inlined_call_operand.vmem [shape: bf16[8,8], index: 0, kind: input, shape index: {}]
  %s1 = inlined_call_operand.vmem [shape: bf16[8,128], index: 1, kind: input, shape index: {}]
  %s2 = inlined_call_operand.vmem [shape: f32[8,1], index: 2, kind: input, shape index: {}]
  %s3 = inlined_call_operand.vmem [shape: bf16[8,128], index: 3, kind: output, shape index: {}]
  %s4 = sld [smem:[#allocation0]]
  $region22: #{model_forward.37} parent=0
    _
  %s6 = ssub.s32 1, %s4
  %s7 = scalar_select 0, %s6, %s4
  // Predicated region
  $region2: #{model_forward.37} parent=0 // pred_check
    _
  $region3: #{model_forward.37} parent=0 // pred_check_branch
    %9 = sbr.rel (0) target = $region5
  $region4: #{model_forward.37} parent=0 // pred_region
    _
  $region5: #{model_forward.37} parent=0 // pred_fallthru
    _
  // Predicated region
  $region6: #{model_forward.37} parent=0 // pred_check
    _
  $region7: #{model_forward.37} parent=0 // pred_check_branch
    %11 = sbr.rel (0) target = $region9
  $region8: #{model_forward.37} parent=0 // pred_region
    _
  $region9: #{model_forward.37} parent=0 // pred_fallthru
    _
  // Predicated region
  $region10: #{model_forward.37} parent=0 // pred_check
    _
  $region11: #{model_forward.37} parent=0 // pred_check_branch
    %13 = sbr.rel (0) target = $region13
  $region12: #{model_forward.37} parent=0 // pred_region
    _
  $region13: #{model_forward.37} parent=0 // pred_fallthru
    _
  %v15 = vld [vmem:[%s1] sm:$0xf]
  %v16 = vld [vmem:[%s0] sm:$0xf]
  %v17 = vld [vmem:[%s2] sm:$0xff]
  %19 = vset.pattern.permute.xlu0 0
  %20 = vperm.xlu0 %19, %v17
  %v21 = vpop.permute.xlu0 %20
  %vm23 = vcmask 64512
  %v25 = vsel %vm23, %v16, 0
  %vm27 = vcmask 1043456
  %v29 = vsel %vm27, %v15, 0
  %31 = vmatprep.subr.bf16.mxu0 0
  %32 = vmatpush1.bf16.msra.mxu0 %v29
  %33 = vmatprep.subr.bf16.mxu0 0
  %34 = vmatpush1.bf16.msra.mxu0 0
  %35 = vmatprep.subr.bf16.mxu0 0
  %36 = vmatpush1.bf16.msra.mxu0 0
  %37 = vmatprep.subr.bf16.mxu0 0
  %38 = vmatpush1.bf16.msra.mxu0 0
  %39 = vmatprep.subr.bf16.mxu0 0
  %40 = vmatpush1.bf16.msra.mxu0 0
  %41 = vmatprep.subr.bf16.mxu0 0
  %42 = vmatpush1.bf16.msra.mxu0 0
  %43 = vmatprep.subr.bf16.mxu0 0
  %44 = vmatpush1.bf16.msra.mxu0 0
  %45 = vmatprep.subr.bf16.mxu0 0
  %46 = vmatpush1.bf16.msra.mxu0 0
  %47 = vmatprep.subr.bf16.mxu0 0
  %48 = vmatpush1.bf16.msra.mxu0 0
  %49 = vmatprep.subr.bf16.mxu0 0
  %50 = vmatpush1.bf16.msra.mxu0 0
  %51 = vmatprep.subr.bf16.mxu0 0
  %52 = vmatpush1.bf16.msra.mxu0 0
  %53 = vmatprep.subr.bf16.mxu0 0
  %54 = vmatpush1.bf16.msra.mxu0 0
  %55 = vmatprep.subr.bf16.mxu0 0
  %56 = vmatpush1.bf16.msra.mxu0 0
  %57 = vmatprep.subr.bf16.mxu0 0
  %58 = vmatpush1.bf16.msra.mxu0 0
  %59 = vmatprep.subr.bf16.mxu0 0
  %60 = vmatpush1.bf16.msra.mxu0 0
  %61 = vmatprep.subr.bf16.mxu0 0
  %62 = vmatpush1.bf16.msra.mxu0 0
  %63 = vmatprep.mubr.bf16.mxu0 0
  %64 = vmatmul.mubr.bf16.gmra.mrb[0].mxu0 %v25
  %v65 = vpop.f32.mrb[0].mxu0
  %v66 = vadd.f32 %v21, %v65
  %v67 = vpop.f32.mrb[0].mxu0
  %v68 = vpop.f32.mrb[0].mxu0
  %v69 = vpop.f32.mrb[0].mxu0
  %70 = vdwg.mxu0
  %v71 = vpack.c.bf16 %v66, %v66
  %72 = vst [vmem:[%s3] sm:$0xf] %v71
  // Predicated region
  $region14: #{model_forward.37} parent=0 // pred_check
    _
  $region15: #{model_forward.37} parent=0 // pred_check_branch
    %74 = sbr.rel (0) target = $region17
  $region16: #{model_forward.37} parent=0 // pred_region
    _
  $region17: #{model_forward.37} parent=0 // pred_fallthru
    _
  // Predicated region
  $region18: #{model_forward.37} parent=0 // pred_check
    _
  $region19: #{model_forward.37} parent=0 // pred_check_branch
    %76 = sbr.rel (0) target = $region21
  $region20: #{model_forward.37} parent=0 // pred_region
    _
  $region21: #{model_forward.37} parent=0 // pred_fallthru
    _

// kernel: model_forward.43
$region0: #{model_forward.43}
  #allocation0 [shape = 'u32[]', space=smem, size = 0x4, offset = 0x4, fixed_abs, tag = 'smem constant byte address 0x4 - core index']
  #allocation1 [shape = 'u32[144,128]{1,0:T(1,128)}', space=vmem, size = 0x12000, scoped, tag = 'internal scratch']
  %s0 = inlined_call_operand.vmem [shape: bf16[16,32], index: 0, kind: input, shape index: {}]
  %s1 = inlined_call_operand.vmem [shape: bf16[32,128], index: 1, kind: input, shape index: {}]
  %s2 = inlined_call_operand.vmem [shape: f32[32,2], index: 2, kind: input, shape index: {}]
  %s3 = inlined_call_operand.vmem [shape: f32[16,1], index: 3, kind: input, shape index: {}]
  %s4 = inlined_call_operand.vmem [shape: bf16[16,128], index: 4, kind: output, shape index: {}]
  %s5 = sld [smem:[#allocation0]]
  $region26: #{model_forward.43} parent=0
    _
  %s7 = ssub.s32 1, %s5
  %s8 = scalar_select 0, %s7, %s5
  // Predicated region
  $region2: #{model_forward.43} parent=0 // pred_check
    _
  $region3: #{model_forward.43} parent=0 // pred_check_branch
    %10 = sbr.rel (0) target = $region5
  $region4: #{model_forward.43} parent=0 // pred_region
    _
  $region5: #{model_forward.43} parent=0 // pred_fallthru
    _
  // Predicated region
  $region6: #{model_forward.43} parent=0 // pred_check
    _
  $region7: #{model_forward.43} parent=0 // pred_check_branch
    %12 = sbr.rel (0) target = $region9
  $region8: #{model_forward.43} parent=0 // pred_region
    _
  $region9: #{model_forward.43} parent=0 // pred_fallthru
    _
  // Predicated region
  $region10: #{model_forward.43} parent=0 // pred_check
    _
  $region11: #{model_forward.43} parent=0 // pred_check_branch
    %14 = sbr.rel (0) target = $region13
  $region12: #{model_forward.43} parent=0 // pred_region
    _
  $region13: #{model_forward.43} parent=0 // pred_fallthru
    _
  // Predicated region
  $region14: #{model_forward.43} parent=0 // pred_check
    _
  $region15: #{model_forward.43} parent=0 // pred_check_branch
    %16 = sbr.rel (0) target = $region17
  $region16: #{model_forward.43} parent=0 // pred_region
    _
  $region17: #{model_forward.43} parent=0 // pred_fallthru
    _
  %v18 = vld [vmem:[%s1] sm:$0xf]
  %v19 = vld [vmem:[%s1 + $0x4] sm:$0xf]
  %v20 = vld [vmem:[%s1 + $0x8] sm:$0xf]
  %v21 = vld [vmem:[%s1 + $0xc] sm:$0xf]
  %v22 = vunpack.c.l.bf16 %v18
  %v23 = vunpack.c.l.bf16 %v19
  %v24 = vunpack.c.l.bf16 %v20
  %v25 = vunpack.c.l.bf16 %v21
  %v26 = vld [vmem:[%s2] sm:$0xff]
  %v27 = vld [vmem:[%s2 + $0x8] sm:$0xff]
  %v28 = vld [vmem:[%s2 + $0x10] sm:$0xff]
  %v29 = vld [vmem:[%s2 + $0x18] sm:$0xff]
  %31 = vset.pattern.permute.xlu0 0
  %32 = vperm.xlu0 %31, %v26
  %v33 = vpop.permute.xlu0 %32
  %36 = vset.pattern.permute.xlu0 0
  %37 = vperm.xlu0 %36, %v27
  %v38 = vpop.permute.xlu0 %37
  %41 = vset.pattern.permute.xlu0 0
  %42 = vperm.xlu0 %41, %v28
  %v43 = vpop.permute.xlu0 %42
  %46 = vset.pattern.permute.xlu0 0
  %47 = vperm.xlu0 %46, %v29
  %v48 = vpop.permute.xlu0 %47
  %v50 = vmul.f32 %v22, %v33
  %v51 = vmul.f32 %v23, %v38
  %v52 = vmul.f32 %v24, %v43
  %v53 = vmul.f32 %v25, %v48
  %54 = vset.pattern.permute.xlu0 1
  %55 = vperm.xlu0 %54, %v26
  %v56 = vpop.permute.xlu0 %55
  %58 = vset.pattern.permute.xlu0 1
  %59 = vperm.xlu0 %58, %v27
  %v60 = vpop.permute.xlu0 %59
  %62 = vset.pattern.permute.xlu0 1
  %63 = vperm.xlu0 %62, %v28
  %v64 = vpop.permute.xlu0 %63
  %66 = vset.pattern.permute.xlu0 1
  %67 = vperm.xlu0 %66, %v29
  %v68 = vpop.permute.xlu0 %67
  %v70 = vadd.f32 %v50, %v56
  %v71 = vadd.f32 %v51, %v60
  %v72 = vadd.f32 %v52, %v64
  %v73 = vadd.f32 %v53, %v68
  %v74 = vmax.f32 %v70, 0.0
  %v75 = vmax.f32 %v71, 0.0
  %v76 = vmax.f32 %v72, 0.0
  %v77 = vmax.f32 %v73, 0.0
  %v78 = vpack.c.bf16 %v75, %v74
  %v79 = vpack.c.bf16 %v77, %v76
  %v80 = vld [vmem:[%s0] sm:$0xf]
  %v81 = vld [vmem:[%s0 + $0x4] sm:$0xf]
  %v82 = vld [vmem:[%s3] sm:$0xff]
  %v83 = vld [vmem:[%s3 + $0x8] sm:$0xff]
  %85 = vset.pattern.permute.xlu0 0
  %86 = vperm.xlu0 %85, %v82
  %v87 = vpop.permute.xlu0 %86
  %90 = vset.pattern.permute.xlu0 0
  %91 = vperm.xlu0 %90, %v83
  %v92 = vpop.permute.xlu0 %91
  %v96 = vunpack.c.l.b16 %v80
  %v97 = vunpack.c.l.b16 %v81
  %v98 = vpack.c.b16 %v97, %v96
  %vm99 = vcmask 261120
  %v101 = vsel %vm99, %v98, 0
  %103 = vmatprep.subr.bf16.mxu0 0
  %104 = vmatpush1.bf16.msra.mxu0 %v78
  %105 = vmatprep.subr.bf16.mxu0 0
  %106 = vmatpush1.bf16.msra.mxu0 %v79
  %107 = vmatprep.subr.bf16.mxu0 0
  %108 = vmatpush1.bf16.msra.mxu0 0
  %109 = vmatprep.subr.bf16.mxu0 0
  %110 = vmatpush1.bf16.msra.mxu0 0
  %111 = vmatprep.subr.bf16.mxu0 0
  %112 = vmatpush1.bf16.msra.mxu0 0
  %113 = vmatprep.subr.bf16.mxu0 0
  %114 = vmatpush1.bf16.msra.mxu0 0
  %115 = vmatprep.subr.bf16.mxu0 0
  %116 = vmatpush1.bf16.msra.mxu0 0
  %117 = vmatprep.subr.bf16.mxu0 0
  %118 = vmatpush1.bf16.msra.mxu0 0
  %119 = vmatprep.subr.bf16.mxu0 0
  %120 = vmatpush1.bf16.msra.mxu0 0
  %121 = vmatprep.subr.bf16.mxu0 0
  %122 = vmatpush1.bf16.msra.mxu0 0
  %123 = vmatprep.subr.bf16.mxu0 0
  %124 = vmatpush1.bf16.msra.mxu0 0
  %125 = vmatprep.subr.bf16.mxu0 0
  %126 = vmatpush1.bf16.msra.mxu0 0
  %127 = vmatprep.subr.bf16.mxu0 0
  %128 = vmatpush1.bf16.msra.mxu0 0
  %129 = vmatprep.subr.bf16.mxu0 0
  %130 = vmatpush1.bf16.msra.mxu0 0
  %131 = vmatprep.subr.bf16.mxu0 0
  %132 = vmatpush1.bf16.msra.mxu0 0
  %133 = vmatprep.subr.bf16.mxu0 0
  %134 = vmatpush1.bf16.msra.mxu0 0
  %135 = vmatprep.mubr.bf16.mxu0 0
  %136 = vmatmul.mubr.bf16.gmra.mrb[0].mxu0 %v101
  %v137 = vpop.f32.mrb[0].mxu0
  %v138 = vadd.f32 %v87, %v137
  %v139 = vpop.f32.mrb[0].mxu0
  %v140 = vpop.f32.mrb[0].mxu0
  %v141 = vadd.f32 %v92, %v140
  %v142 = vpop.f32.mrb[0].mxu0
  %143 = vdwg.mxu0
  %v144 = vmax.f32 %v138, 0.0
  %v145 = vmax.f32 %v141, 0.0
  %v146 = vpack.c.bf16 %v145, %v144
  %v148 = vunpack.c.l.b16 %v146
  %v149 = vunpack.c.h.b16 %v146
  %v150 = vpack.c.b16 %v148, %v148
  %v151 = vpack.c.b16 %v149, %v149
  %154 = vst [vmem:[%s4] sm:$0xf] %v150
  %155 = vst [vmem:[%s4 + $0x4] sm:$0xf] %v151
  // Predicated region
  $region18: #{model_forward.43} parent=0 // pred_check
    _
  $region19: #{model_forward.43} parent=0 // pred_check_branch
    %157 = sbr.rel (0) target = $region21
  $region20: #{model_forward.43} parent=0 // pred_region
    _
  $region21: #{model_forward.43} parent=0 // pred_fallthru
    _
  // Predicated region
  $region22: #{model_forward.43} parent=0 // pred_check
    _
  $region23: #{model_forward.43} parent=0 // pred_check_branch
    %159 = sbr.rel (0) target = $region25
  $region24: #{model_forward.43} parent=0 // pred_region
    _
  $region25: #{model_forward.43} parent=0 // pred_fallthru
    _

// kernel: model_forward.42
$region0: #{model_forward.42}
  #allocation0 [shape = 'u32[]', space=smem, size = 0x4, offset = 0x4, fixed_abs, tag = 'smem constant byte address 0x4 - core index']
  #allocation1 [shape = 'u32[144,128]{1,0:T(1,128)}', space=vmem, size = 0x12000, scoped, tag = 'internal scratch']
  %s0 = inlined_call_operand.vmem [shape: bf16[5,32,16], index: 0, kind: input, shape index: {}]
  %s1 = inlined_call_operand.vmem [shape: bf16[16,40], index: 1, kind: input, shape index: {}]
  %s2 = inlined_call_operand.vmem [shape: f32[32,1], index: 2, kind: input, shape index: {}]
  %s3 = inlined_call_operand.vmem [shape: bf16[32,32], index: 3, kind: output, shape index: {}]
  %s4 = sld [smem:[#allocation0]]
  $region22: #{model_forward.42} parent=0
    _
  %s6 = ssub.s32 1, %s4
  %s7 = scalar_select 0, %s6, %s4
  // Predicated region
  $region2: #{model_forward.42} parent=0 // pred_check
    _
  $region3: #{model_forward.42} parent=0 // pred_check_branch
    %9 = sbr.rel (0) target = $region5
  $region4: #{model_forward.42} parent=0 // pred_region
    _
  $region5: #{model_forward.42} parent=0 // pred_fallthru
    _
  // Predicated region
  $region6: #{model_forward.42} parent=0 // pred_check
    _
  $region7: #{model_forward.42} parent=0 // pred_check_branch
    %11 = sbr.rel (0) target = $region9
  $region8: #{model_forward.42} parent=0 // pred_region
    _
  $region9: #{model_forward.42} parent=0 // pred_fallthru
    _
  // Predicated region
  $region10: #{model_forward.42} parent=0 // pred_check
    _
  $region11: #{model_forward.42} parent=0 // pred_check_branch
    %13 = sbr.rel (0) target = $region13
  $region12: #{model_forward.42} parent=0 // pred_region
    _
  $region13: #{model_forward.42} parent=0 // pred_fallthru
    _
  %v15 = vld [vmem:[%s1] sm:$0xf]
  %v16 = vld [vmem:[%s1 + $0x4] sm:$0xf]
  %v17 = vld [vmem:[%s0] sm:$0xf]
  %v18 = vld [vmem:[%s0 + $0x4] sm:$0xf]
  %v19 = vld [vmem:[%s0 + $0x8] sm:$0xf]
  %v20 = vld [vmem:[%s0 + $0xc] sm:$0xf]
  %s21 = scalar_lea.vmem %s0, 16
  %v22 = vld [vmem:[%s21] sm:$0xf]
  %v23 = vld [vmem:[%s21 + $0x4] sm:$0xf]
  %v24 = vld [vmem:[%s21 + $0x8] sm:$0xf]
  %v25 = vld [vmem:[%s21 + $0xc] sm:$0xf]
  %v30 = vunpack.c.l.b16 %v22
  %v31 = vunpack.c.l.b16 %v23
  %v32 = vunpack.c.l.b16 %v24
  %v33 = vunpack.c.l.b16 %v25
  %v34 = vpack.c.b16 %v31, %v30
  %v35 = vpack.c.b16 %v33, %v32
  %v38 = vunpack.c.l.b16 %v15
  %v39 = vunpack.c.l.b16 %v16
  %v40 = vpack.c.b16 %v39, %v38
  %41 = vrot.lane.b32.xlu0 %v40, 127
  %v42 = vpop.permute.xlu0 %41
  %vm44 = vcmask 130048
  %v46 = vsel %vm44, %v34, 0
  %v49 = vsel %vm44, %v35, 0
  %51 = vmatprep.subr.bf16.mxu0 0
  %52 = vmatpush1.bf16.msra.mxu0 %v42
  %53 = vmatprep.subr.bf16.mxu0 0
  %54 = vmatpush1.bf16.msra.mxu0 0
  %55 = vmatprep.subr.bf16.mxu0 0
  %56 = vmatpush1.bf16.msra.mxu0 0
  %57 = vmatprep.subr.bf16.mxu0 0
  %58 = vmatpush1.bf16.msra.mxu0 0
  %59 = vmatprep.subr.bf16.mxu0 0
  %60 = vmatpush1.bf16.msra.mxu0 0
  %61 = vmatprep.subr.bf16.mxu0 0
  %62 = vmatpush1.bf16.msra.mxu0 0
  %63 = vmatprep.subr.bf16.mxu0 0
  %64 = vmatpush1.bf16.msra.mxu0 0
  %65 = vmatprep.subr.bf16.mxu0 0
  %66 = vmatpush1.bf16.msra.mxu0 0
  %67 = vmatprep.subr.bf16.mxu0 0
  %68 = vmatpush1.bf16.msra.mxu0 0
  %69 = vmatprep.subr.bf16.mxu0 0
  %70 = vmatpush1.bf16.msra.mxu0 0
  %71 = vmatprep.subr.bf16.mxu0 0
  %72 = vmatpush1.bf16.msra.mxu0 0
  %73 = vmatprep.subr.bf16.mxu0 0
  %74 = vmatpush1.bf16.msra.mxu0 0
  %75 = vmatprep.subr.bf16.mxu0 0
  %76 = vmatpush1.bf16.msra.mxu0 0
  %77 = vmatprep.subr.bf16.mxu0 0
  %78 = vmatpush1.bf16.msra.mxu0 0
  %79 = vmatprep.subr.bf16.mxu0 0
  %80 = vmatpush1.bf16.msra.mxu0 0
  %81 = vmatprep.subr.bf16.mxu0 0
  %82 = vmatpush1.bf16.msra.mxu0 0
  %83 = vmatprep.mubr.bf16.mxu0 0
  %84 = vmatmul.mubr.bf16.gmra.mrb[0].mxu0 %v46
  %v85 = vpop.f32.mrb[0].mxu0
  %v86 = vadd.f32 0.0, %v85
  %v87 = vpop.f32.mrb[0].mxu0
  %v88 = vpop.f32.mrb[0].mxu0
  %v89 = vadd.f32 0.0, %v88
  %v90 = vpop.f32.mrb[0].mxu0
  %91 = vmatprep.mubr.bf16.mxu0 0
  %92 = vmatmul.mubr.bf16.gmra.mrb[0].mxu0 %v49
  %v93 = vpop.f32.mrb[0].mxu0
  %v94 = vadd.f32 0.0, %v93
  %v95 = vpop.f32.mrb[0].mxu0
  %v96 = vpop.f32.mrb[0].mxu0
  %v97 = vadd.f32 0.0, %v96
  %v98 = vpop.f32.mrb[0].mxu0
  %99 = vdwg.mxu0
  %v104 = vunpack.c.l.b16 %v17
  %v105 = vunpack.c.l.b16 %v18
  %v106 = vunpack.c.l.b16 %v19
  %v107 = vunpack.c.l.b16 %v20
  %v108 = vpack.c.b16 %v105, %v104
  %v109 = vpack.c.b16 %v107, %v106
  %v112 = vsel %vm44, %v108, 0
  %v115 = vsel %vm44, %v109, 0
  %117 = vmatprep.subr.bf16.mxu0 0
  %118 = vmatpush1.bf16.msra.mxu0 %v40
  %119 = vmatprep.subr.bf16.mxu0 0
  %120 = vmatpush1.bf16.msra.mxu0 0
  %121 = vmatprep.subr.bf16.mxu0 0
  %122 = vmatpush1.bf16.msra.mxu0 0
  %123 = vmatprep.subr.bf16.mxu0 0
  %124 = vmatpush1.bf16.msra.mxu0 0
  %125 = vmatprep.subr.bf16.mxu0 0
  %126 = vmatpush1.bf16.msra.mxu0 0
  %127 = vmatprep.subr.bf16.mxu0 0
  %128 = vmatpush1.bf16.msra.mxu0 0
  %129 = vmatprep.subr.bf16.mxu0 0
  %130 = vmatpush1.bf16.msra.mxu0 0
  %131 = vmatprep.subr.bf16.mxu0 0
  %132 = vmatpush1.bf16.msra.mxu0 0
  %133 = vmatprep.subr.bf16.mxu0 0
  %134 = vmatpush1.bf16.msra.mxu0 0
  %135 = vmatprep.subr.bf16.mxu0 0
  %136 = vmatpush1.bf16.msra.mxu0 0
  %137 = vmatprep.subr.bf16.mxu0 0
  %138 = vmatpush1.bf16.msra.mxu0 0
  %139 = vmatprep.subr.bf16.mxu0 0
  %140 = vmatpush1.bf16.msra.mxu0 0
  %141 = vmatprep.subr.bf16.mxu0 0
  %142 = vmatpush1.bf16.msra.mxu0 0
  %143 = vmatprep.subr.bf16.mxu0 0
  %144 = vmatpush1.bf16.msra.mxu0 0
  %145 = vmatprep.subr.bf16.mxu0 0
  %146 = vmatpush1.bf16.msra.mxu0 0
  %147 = vmatprep.subr.bf16.mxu0 0
  %148 = vmatpush1.bf16.msra.mxu0 0
  %149 = vmatprep.mubr.bf16.mxu0 0
  %150 = vmatmul.mubr.bf16.gmra.mrb[0].mxu0 %v112
  %v151 = vpop.f32.mrb[0].mxu0
  %v152 = vadd.f32 %v86, %v151
  %v153 = vpop.f32.mrb[0].mxu0
  %v154 = vpop.f32.mrb[0].mxu0
  %v155 = vadd.f32 %v89, %v154
  %v156 = vpop.f32.mrb[0].mxu0
  %157 = vmatprep.mubr.bf16.mxu0 0
  %158 = vmatmul.mubr.bf16.gmra.mrb[0].mxu0 %v115
  %v159 = vpop.f32.mrb[0].mxu0
  %v160 = vadd.f32 %v94, %v159
  %v161 = vpop.f32.mrb[0].mxu0
  %v162 = vpop.f32.mrb[0].mxu0
  %v163 = vadd.f32 %v97, %v162
  %v164 = vpop.f32.mrb[0].mxu0
  %165 = vdwg.mxu0
  %s166 = scalar_lea.vmem %s0, 32
  %v167 = vld [vmem:[%s166] sm:$0xf]
  %v168 = vld [vmem:[%s166 + $0x4] sm:$0xf]
  %v169 = vld [vmem:[%s166 + $0x8] sm:$0xf]
  %v170 = vld [vmem:[%s166 + $0xc] sm:$0xf]
  %v175 = vunpack.c.l.b16 %v167
  %v176 = vunpack.c.l.b16 %v168
  %v177 = vunpack.c.l.b16 %v169
  %v178 = vunpack.c.l.b16 %v170
  %v179 = vpack.c.b16 %v176, %v175
  %v180 = vpack.c.b16 %v178, %v177
  %181 = vrot.lane.b32.xlu0 %v40, 126
  %v182 = vpop.permute.xlu0 %181
  %v185 = vsel %vm44, %v179, 0
  %v188 = vsel %vm44, %v180, 0
  %190 = vmatprep.subr.bf16.mxu0 0
  %191 = vmatpush1.bf16.msra.mxu0 %v182
  %192 = vmatprep.subr.bf16.mxu0 0
  %193 = vmatpush1.bf16.msra.mxu0 0
  %194 = vmatprep.subr.bf16.mxu0 0
  %195 = vmatpush1.bf16.msra.mxu0 0
  %196 = vmatprep.subr.bf16.mxu0 0
  %197 = vmatpush1.bf16.msra.mxu0 0
  %198 = vmatprep.subr.bf16.mxu0 0
  %199 = vmatpush1.bf16.msra.mxu0 0
  %200 = vmatprep.subr.bf16.mxu0 0
  %201 = vmatpush1.bf16.msra.mxu0 0
  %202 = vmatprep.subr.bf16.mxu0 0
  %203 = vmatpush1.bf16.msra.mxu0 0
  %204 = vmatprep.subr.bf16.mxu0 0
  %205 = vmatpush1.bf16.msra.mxu0 0
  %206 = vmatprep.subr.bf16.mxu0 0
  %207 = vmatpush1.bf16.msra.mxu0 0
  %208 = vmatprep.subr.bf16.mxu0 0
  %209 = vmatpush1.bf16.msra.mxu0 0
  %210 = vmatprep.subr.bf16.mxu0 0
  %211 = vmatpush1.bf16.msra.mxu0 0
  %212 = vmatprep.subr.bf16.mxu0 0
  %213 = vmatpush1.bf16.msra.mxu0 0
  %214 = vmatprep.subr.bf16.mxu0 0
  %215 = vmatpush1.bf16.msra.mxu0 0
  %216 = vmatprep.subr.bf16.mxu0 0
  %217 = vmatpush1.bf16.msra.mxu0 0
  %218 = vmatprep.subr.bf16.mxu0 0
  %219 = vmatpush1.bf16.msra.mxu0 0
  %220 = vmatprep.subr.bf16.mxu0 0
  %221 = vmatpush1.bf16.msra.mxu0 0
  %222 = vmatprep.mubr.bf16.mxu0 0
  %223 = vmatmul.mubr.bf16.gmra.mrb[0].mxu0 %v185
  %v224 = vpop.f32.mrb[0].mxu0
  %v225 = vadd.f32 0.0, %v224
  %v226 = vpop.f32.mrb[0].mxu0
  %v227 = vpop.f32.mrb[0].mxu0
  %v228 = vadd.f32 0.0, %v227
  %v229 = vpop.f32.mrb[0].mxu0
  %230 = vmatprep.mubr.bf16.mxu0 0
  %231 = vmatmul.mubr.bf16.gmra.mrb[0].mxu0 %v188
  %v232 = vpop.f32.mrb[0].mxu0
  %v233 = vadd.f32 0.0, %v232
  %v234 = vpop.f32.mrb[0].mxu0
  %v235 = vpop.f32.mrb[0].mxu0
  %v236 = vadd.f32 0.0, %v235
  %v237 = vpop.f32.mrb[0].mxu0
  %238 = vdwg.mxu0
  %v239 = vadd.f32 %v152, %v225
  %v240 = vadd.f32 %v155, %v228
  %v241 = vadd.f32 %v160, %v233
  %v242 = vadd.f32 %v163, %v236
  %s243 = scalar_lea.vmem %s0, 48
  %v244 = vld [vmem:[%s243] sm:$0xf]
  %v245 = vld [vmem:[%s243 + $0x4] sm:$0xf]
  %v246 = vld [vmem:[%s243 + $0x8] sm:$0xf]
  %v247 = vld [vmem:[%s243 + $0xc] sm:$0xf]
  %v252 = vunpack.c.l.b16 %v244
  %v253 = vunpack.c.l.b16 %v245
  %v254 = vunpack.c.l.b16 %v246
  %v255 = vunpack.c.l.b16 %v247
  %v256 = vpack.c.b16 %v253, %v252
  %v257 = vpack.c.b16 %v255, %v254
  %258 = vrot.lane.b32.xlu0 %v40, 125
  %v259 = vpop.permute.xlu0 %258
  %v262 = vsel %vm44, %v256, 0
  %v265 = vsel %vm44, %v257, 0
  %267 = vmatprep.subr.bf16.mxu0 0
  %268 = vmatpush1.bf16.msra.mxu0 %v259
  %269 = vmatprep.subr.bf16.mxu0 0
  %270 = vmatpush1.bf16.msra.mxu0 0
  %271 = vmatprep.subr.bf16.mxu0 0
  %272 = vmatpush1.bf16.msra.mxu0 0
  %273 = vmatprep.subr.bf16.mxu0 0
  %274 = vmatpush1.bf16.msra.mxu0 0
  %275 = vmatprep.subr.bf16.mxu0 0
  %276 = vmatpush1.bf16.msra.mxu0 0
  %277 = vmatprep.subr.bf16.mxu0 0
  %278 = vmatpush1.bf16.msra.mxu0 0
  %279 = vmatprep.subr.bf16.mxu0 0
  %280 = vmatpush1.bf16.msra.mxu0 0
  %281 = vmatprep.subr.bf16.mxu0 0
  %282 = vmatpush1.bf16.msra.mxu0 0
  %283 = vmatprep.subr.bf16.mxu0 0
  %284 = vmatpush1.bf16.msra.mxu0 0
  %285 = vmatprep.subr.bf16.mxu0 0
  %286 = vmatpush1.bf16.msra.mxu0 0
  %287 = vmatprep.subr.bf16.mxu0 0
  %288 = vmatpush1.bf16.msra.mxu0 0
  %289 = vmatprep.subr.bf16.mxu0 0
  %290 = vmatpush1.bf16.msra.mxu0 0
  %291 = vmatprep.subr.bf16.mxu0 0
  %292 = vmatpush1.bf16.msra.mxu0 0
  %293 = vmatprep.subr.bf16.mxu0 0
  %294 = vmatpush1.bf16.msra.mxu0 0
  %295 = vmatprep.subr.bf16.mxu0 0
  %296 = vmatpush1.bf16.msra.mxu0 0
  %297 = vmatprep.subr.bf16.mxu0 0
  %298 = vmatpush1.bf16.msra.mxu0 0
  %299 = vmatprep.mubr.bf16.mxu0 0
  %300 = vmatmul.mubr.bf16.gmra.mrb[0].mxu0 %v262
  %v301 = vpop.f32.mrb[0].mxu0
  %v302 = vadd.f32 0.0, %v301
  %v303 = vpop.f32.mrb[0].mxu0
  %v304 = vpop.f32.mrb[0].mxu0
  %v305 = vadd.f32 0.0, %v304
  %v306 = vpop.f32.mrb[0].mxu0
  %307 = vmatprep.mubr.bf16.mxu0 0
  %308 = vmatmul.mubr.bf16.gmra.mrb[0].mxu0 %v265
  %v309 = vpop.f32.mrb[0].mxu0
  %v310 = vadd.f32 0.0, %v309
  %v311 = vpop.f32.mrb[0].mxu0
  %v312 = vpop.f32.mrb[0].mxu0
  %v313 = vadd.f32 0.0, %v312
  %v314 = vpop.f32.mrb[0].mxu0
  %315 = vdwg.mxu0
  %v316 = vadd.f32 %v239, %v302
  %v317 = vadd.f32 %v240, %v305
  %v318 = vadd.f32 %v241, %v310
  %v319 = vadd.f32 %v242, %v313
  %s320 = scalar_lea.vmem %s0, 64
  %v321 = vld [vmem:[%s320] sm:$0xf]
  %v322 = vld [vmem:[%s320 + $0x4] sm:$0xf]
  %v323 = vld [vmem:[%s320 + $0x8] sm:$0xf]
  %v324 = vld [vmem:[%s320 + $0xc] sm:$0xf]
  %v329 = vunpack.c.l.b16 %v321
  %v330 = vunpack.c.l.b16 %v322
  %v331 = vunpack.c.l.b16 %v323
  %v332 = vunpack.c.l.b16 %v324
  %v333 = vpack.c.b16 %v330, %v329
  %v334 = vpack.c.b16 %v332, %v331
  %335 = vrot.lane.b32.xlu0 %v40, 124
  %v336 = vpop.permute.xlu0 %335
  %v339 = vsel %vm44, %v333, 0
  %v342 = vsel %vm44, %v334, 0
  %344 = vmatprep.subr.bf16.mxu0 0
  %345 = vmatpush1.bf16.msra.mxu0 %v336
  %346 = vmatprep.subr.bf16.mxu0 0
  %347 = vmatpush1.bf16.msra.mxu0 0
  %348 = vmatprep.subr.bf16.mxu0 0
  %349 = vmatpush1.bf16.msra.mxu0 0
  %350 = vmatprep.subr.bf16.mxu0 0
  %351 = vmatpush1.bf16.msra.mxu0 0
  %352 = vmatprep.subr.bf16.mxu0 0
  %353 = vmatpush1.bf16.msra.mxu0 0
  %354 = vmatprep.subr.bf16.mxu0 0
  %355 = vmatpush1.bf16.msra.mxu0 0
  %356 = vmatprep.subr.bf16.mxu0 0
  %357 = vmatpush1.bf16.msra.mxu0 0
  %358 = vmatprep.subr.bf16.mxu0 0
  %359 = vmatpush1.bf16.msra.mxu0 0
  %360 = vmatprep.subr.bf16.mxu0 0
  %361 = vmatpush1.bf16.msra.mxu0 0
  %362 = vmatprep.subr.bf16.mxu0 0
  %363 = vmatpush1.bf16.msra.mxu0 0
  %364 = vmatprep.subr.bf16.mxu0 0
  %365 = vmatpush1.bf16.msra.mxu0 0
  %366 = vmatprep.subr.bf16.mxu0 0
  %367 = vmatpush1.bf16.msra.mxu0 0
  %368 = vmatprep.subr.bf16.mxu0 0
  %369 = vmatpush1.bf16.msra.mxu0 0
  %370 = vmatprep.subr.bf16.mxu0 0
  %371 = vmatpush1.bf16.msra.mxu0 0
  %372 = vmatprep.subr.bf16.mxu0 0
  %373 = vmatpush1.bf16.msra.mxu0 0
  %374 = vmatprep.subr.bf16.mxu0 0
  %375 = vmatpush1.bf16.msra.mxu0 0
  %376 = vmatprep.mubr.bf16.mxu0 0
  %377 = vmatmul.mubr.bf16.gmra.mrb[0].mxu0 %v339
  %v378 = vpop.f32.mrb[0].mxu0
  %v379 = vadd.f32 0.0, %v378
  %v380 = vpop.f32.mrb[0].mxu0
  %v381 = vpop.f32.mrb[0].mxu0
  %v382 = vadd.f32 0.0, %v381
  %v383 = vpop.f32.mrb[0].mxu0
  %384 = vmatprep.mubr.bf16.mxu0 0
  %385 = vmatmul.mubr.bf16.gmra.mrb[0].mxu0 %v342
  %v386 = vpop.f32.mrb[0].mxu0
  %v387 = vadd.f32 0.0, %v386
  %v388 = vpop.f32.mrb[0].mxu0
  %v389 = vpop.f32.mrb[0].mxu0
  %v390 = vadd.f32 0.0, %v389
  %v391 = vpop.f32.mrb[0].mxu0
  %392 = vdwg.mxu0
  %v393 = vadd.f32 %v316, %v379
  %v394 = vadd.f32 %v317, %v382
  %v395 = vadd.f32 %v318, %v387
  %v396 = vadd.f32 %v319, %v390
  %v397 = vld [vmem:[%s2] sm:$0xff]
  %v398 = vld [vmem:[%s2 + $0x8] sm:$0xff]
  %v399 = vld [vmem:[%s2 + $0x10] sm:$0xff]
  %v400 = vld [vmem:[%s2 + $0x18] sm:$0xff]
  %402 = vset.pattern.permute.xlu0 0
  %403 = vperm.xlu0 %402, %v397
  %v404 = vpop.permute.xlu0 %403
  %407 = vset.pattern.permute.xlu0 0
  %408 = vperm.xlu0 %407, %v398
  %v409 = vpop.permute.xlu0 %408
  %412 = vset.pattern.permute.xlu0 0
  %413 = vperm.xlu0 %412, %v399
  %v414 = vpop.permute.xlu0 %413
  %417 = vset.pattern.permute.xlu0 0
  %418 = vperm.xlu0 %417, %v400
  %v419 = vpop.permute.xlu0 %418
  %v421 = vadd.f32 %v393, %v404
  %v422 = vadd.f32 %v394, %v409
  %v423 = vadd.f32 %v395, %v414
  %v424 = vadd.f32 %v396, %v419
  %v425 = vmax.f32 %v421, 0.0
  %v426 = vmax.f32 %v422, 0.0
  %v427 = vmax.f32 %v423, 0.0
  %v428 = vmax.f32 %v424, 0.0
  %v429 = vpack.c.bf16 %v426, %v425
  %v430 = vpack.c.bf16 %v428, %v427
  %v433 = vunpack.c.l.b16 %v429
  %v434 = vunpack.c.h.b16 %v429
  %v435 = vunpack.c.l.b16 %v430
  %v436 = vunpack.c.h.b16 %v430
  %v437 = vpack.c.b16 %v433, %v433
  %v438 = vpack.c.b16 %v434, %v434
  %v439 = vpack.c.b16 %v435, %v435
  %v440 = vpack.c.b16 %v436, %v436
  %vm445 = vcmask 125952
  %446 = vst.msk [vmem:[%s3] sm:$0xf] %vm445, %v437
  %447 = vst.msk [vmem:[%s3 + $0x4] sm:$0xf] %vm445, %v438
  %448 = vst.msk [vmem:[%s3 + $0x8] sm:$0xf] %vm445, %v439
  %449 = vst.msk [vmem:[%s3 + $0xc] sm:$0xf] %vm445, %v440
  %v450 = vld [vmem:[%s0] sm:$0xf]
  %v451 = vld [vmem:[%s0 + $0x4] sm:$0xf]
  %v452 = vld [vmem:[%s0 + $0x8] sm:$0xf]
  %v453 = vld [vmem:[%s0 + $0xc] sm:$0xf]
  %v454 = vld [vmem:[%s21] sm:$0xf]
  %v455 = vld [vmem:[%s21 + $0x4] sm:$0xf]
  %v456 = vld [vmem:[%s21 + $0x8] sm:$0xf]
  %v457 = vld [vmem:[%s21 + $0xc] sm:$0xf]
  %v462 = vunpack.c.l.b16 %v454
  %v463 = vunpack.c.l.b16 %v455
  %v464 = vunpack.c.l.b16 %v456
  %v465 = vunpack.c.l.b16 %v457
  %v466 = vpack.c.b16 %v463, %v462
  %v467 = vpack.c.b16 %v465, %v464
  %468 = vrot.lane.b32.xlu0 %v40, 107
  %v469 = vpop.permute.xlu0 %468
  %v472 = vsel %vm44, %v466, 0
  %v475 = vsel %vm44, %v467, 0
  %477 = vmatprep.subr.bf16.mxu0 0
  %478 = vmatpush1.bf16.msra.mxu0 %v469
  %479 = vmatprep.subr.bf16.mxu0 0
  %480 = vmatpush1.bf16.msra.mxu0 0
  %481 = vmatprep.subr.bf16.mxu0 0
  %482 = vmatpush1.bf16.msra.mxu0 0
  %483 = vmatprep.subr.bf16.mxu0 0
  %484 = vmatpush1.bf16.msra.mxu0 0
  %485 = vmatprep.subr.bf16.mxu0 0
  %486 = vmatpush1.bf16.msra.mxu0 0
  %487 = vmatprep.subr.bf16.mxu0 0
  %488 = vmatpush1.bf16.msra.mxu0 0
  %489 = vmatprep.subr.bf16.mxu0 0
  %490 = vmatpush1.bf16.msra.mxu0 0
  %491 = vmatprep.subr.bf16.mxu0 0
  %492 = vmatpush1.bf16.msra.mxu0 0
  %493 = vmatprep.subr.bf16.mxu0 0
  %494 = vmatpush1.bf16.msra.mxu0 0
  %495 = vmatprep.subr.bf16.mxu0 0
  %496 = vmatpush1.bf16.msra.mxu0 0
  %497 = vmatprep.subr.bf16.mxu0 0
  %498 = vmatpush1.bf16.msra.mxu0 0
  %499 = vmatprep.subr.bf16.mxu0 0
  %500 = vmatpush1.bf16.msra.mxu0 0
  %501 = vmatprep.subr.bf16.mxu0 0
  %502 = vmatpush1.bf16.msra.mxu0 0
  %503 = vmatprep.subr.bf16.mxu0 0
  %504 = vmatpush1.bf16.msra.mxu0 0
  %505 = vmatprep.subr.bf16.mxu0 0
  %506 = vmatpush1.bf16.msra.mxu0 0
  %507 = vmatprep.subr.bf16.mxu0 0
  %508 = vmatpush1.bf16.msra.mxu0 0
  %509 = vmatprep.mubr.bf16.mxu0 0
  %510 = vmatmul.mubr.bf16.gmra.mrb[0].mxu0 %v472
  %v511 = vpop.f32.mrb[0].mxu0
  %v512 = vadd.f32 0.0, %v511
  %v513 = vpop.f32.mrb[0].mxu0
  %v514 = vpop.f32.mrb[0].mxu0
  %v515 = vadd.f32 0.0, %v514
  %v516 = vpop.f32.mrb[0].mxu0
  %517 = vmatprep.mubr.bf16.mxu0 0
  %518 = vmatmul.mubr.bf16.gmra.mrb[0].mxu0 %v475
  %v519 = vpop.f32.mrb[0].mxu0
  %v520 = vadd.f32 0.0, %v519
  %v521 = vpop.f32.mrb[0].mxu0
  %v522 = vpop.f32.mrb[0].mxu0
  %v523 = vadd.f32 0.0, %v522
  %v524 = vpop.f32.mrb[0].mxu0
  %525 = vdwg.mxu0
  %v530 = vunpack.c.l.b16 %v450
  %v531 = vunpack.c.l.b16 %v451
  %v532 = vunpack.c.l.b16 %v452
  %v533 = vunpack.c.l.b16 %v453
  %v534 = vpack.c.b16 %v531, %v530
  %v535 = vpack.c.b16 %v533, %v532
  %536 = vrot.lane.b32.xlu0 %v40, 108
  %v537 = vpop.permute.xlu0 %536
  %v540 = vsel %vm44, %v534, 0
  %v543 = vsel %vm44, %v535, 0
  %545 = vmatprep.subr.bf16.mxu0 0
  %546 = vmatpush1.bf16.msra.mxu0 %v537
  %547 = vmatprep.subr.bf16.mxu0 0
  %548 = vmatpush1.bf16.msra.mxu0 0
  %549 = vmatprep.subr.bf16.mxu0 0
  %550 = vmatpush1.bf16.msra.mxu0 0
  %551 = vmatprep.subr.bf16.mxu0 0
  %552 = vmatpush1.bf16.msra.mxu0 0
  %553 = vmatprep.subr.bf16.mxu0 0
  %554 = vmatpush1.bf16.msra.mxu0 0
  %555 = vmatprep.subr.bf16.mxu0 0
  %556 = vmatpush1.bf16.msra.mxu0 0
  %557 = vmatprep.subr.bf16.mxu0 0
  %558 = vmatpush1.bf16.msra.mxu0 0
  %559 = vmatprep.subr.bf16.mxu0 0
  %560 = vmatpush1.bf16.msra.mxu0 0
  %561 = vmatprep.subr.bf16.mxu0 0
  %562 = vmatpush1.bf16.msra.mxu0 0
  %563 = vmatprep.subr.bf16.mxu0 0
  %564 = vmatpush1.bf16.msra.mxu0 0
  %565 = vmatprep.subr.bf16.mxu0 0
  %566 = vmatpush1.bf16.msra.mxu0 0
  %567 = vmatprep.subr.bf16.mxu0 0
  %568 = vmatpush1.bf16.msra.mxu0 0
  %569 = vmatprep.subr.bf16.mxu0 0
  %570 = vmatpush1.bf16.msra.mxu0 0
  %571 = vmatprep.subr.bf16.mxu0 0
  %572 = vmatpush1.bf16.msra.mxu0 0
  %573 = vmatprep.subr.bf16.mxu0 0
  %574 = vmatpush1.bf16.msra.mxu0 0
  %575 = vmatprep.subr.bf16.mxu0 0
  %576 = vmatpush1.bf16.msra.mxu0 0
  %577 = vmatprep.mubr.bf16.mxu0 0
  %578 = vmatmul.mubr.bf16.gmra.mrb[0].mxu0 %v540
  %v579 = vpop.f32.mrb[0].mxu0
  %v580 = vadd.f32 %v512, %v579
  %v581 = vpop.f32.mrb[0].mxu0
  %v582 = vpop.f32.mrb[0].mxu0
  %v583 = vadd.f32 %v515, %v582
  %v584 = vpop.f32.mrb[0].mxu0
  %585 = vmatprep.mubr.bf16.mxu0 0
  %586 = vmatmul.mubr.bf16.gmra.mrb[0].mxu0 %v543
  %v587 = vpop.f32.mrb[0].mxu0
  %v588 = vadd.f32 %v520, %v587
  %v589 = vpop.f32.mrb[0].mxu0
  %v590 = vpop.f32.mrb[0].mxu0
  %v591 = vadd.f32 %v523, %v590
  %v592 = vpop.f32.mrb[0].mxu0
  %593 = vdwg.mxu0
  %v594 = vld [vmem:[%s166] sm:$0xf]
  %v595 = vld [vmem:[%s166 + $0x4] sm:$0xf]
  %v596 = vld [vmem:[%s166 + $0x8] sm:$0xf]
  %v597 = vld [vmem:[%s166 + $0xc] sm:$0xf]
  %v602 = vunpack.c.l.b16 %v594
  %v603 = vunpack.c.l.b16 %v595
  %v604 = vunpack.c.l.b16 %v596
  %v605 = vunpack.c.l.b16 %v597
  %v606 = vpack.c.b16 %v603, %v602
  %v607 = vpack.c.b16 %v605, %v604
  %608 = vrot.lane.b32.xlu0 %v40, 106
  %v609 = vpop.permute.xlu0 %608
  %v612 = vsel %vm44, %v606, 0
  %v615 = vsel %vm44, %v607, 0
  %617 = vmatprep.subr.bf16.mxu0 0
  %618 = vmatpush1.bf16.msra.mxu0 %v609
  %619 = vmatprep.subr.bf16.mxu0 0
  %620 = vmatpush1.bf16.msra.mxu0 0
  %621 = vmatprep.subr.bf16.mxu0 0
  %622 = vmatpush1.bf16.msra.mxu0 0
  %623 = vmatprep.subr.bf16.mxu0 0
  %624 = vmatpush1.bf16.msra.mxu0 0
  %625 = vmatprep.subr.bf16.mxu0 0
  %626 = vmatpush1.bf16.msra.mxu0 0
  %627 = vmatprep.subr.bf16.mxu0 0
  %628 = vmatpush1.bf16.msra.mxu0 0
  %629 = vmatprep.subr.bf16.mxu0 0
  %630 = vmatpush1.bf16.msra.mxu0 0
  %631 = vmatprep.subr.bf16.mxu0 0
  %632 = vmatpush1.bf16.msra.mxu0 0
  %633 = vmatprep.subr.bf16.mxu0 0
  %634 = vmatpush1.bf16.msra.mxu0 0
  %635 = vmatprep.subr.bf16.mxu0 0
  %636 = vmatpush1.bf16.msra.mxu0 0
  %637 = vmatprep.subr.bf16.mxu0 0
  %638 = vmatpush1.bf16.msra.mxu0 0
  %639 = vmatprep.subr.bf16.mxu0 0
  %640 = vmatpush1.bf16.msra.mxu0 0
  %641 = vmatprep.subr.bf16.mxu0 0
  %642 = vmatpush1.bf16.msra.mxu0 0
  %643 = vmatprep.subr.bf16.mxu0 0
  %644 = vmatpush1.bf16.msra.mxu0 0
  %645 = vmatprep.subr.bf16.mxu0 0
  %646 = vmatpush1.bf16.msra.mxu0 0
  %647 = vmatprep.subr.bf16.mxu0 0
  %648 = vmatpush1.bf16.msra.mxu0 0
  %649 = vmatprep.mubr.bf16.mxu0 0
  %650 = vmatmul.mubr.bf16.gmra.mrb[0].mxu0 %v612
  %v651 = vpop.f32.mrb[0].mxu0
  %v652 = vadd.f32 0.0, %v651
  %v653 = vpop.f32.mrb[0].mxu0
  %v654 = vpop.f32.mrb[0].mxu0
  %v655 = vadd.f32 0.0, %v654
  %v656 = vpop.f32.mrb[0].mxu0
  %657 = vmatprep.mubr.bf16.mxu0 0
  %658 = vmatmul.mubr.bf16.gmra.mrb[0].mxu0 %v615
  %v659 = vpop.f32.mrb[0].mxu0
  %v660 = vadd.f32 0.0, %v659
  %v661 = vpop.f32.mrb[0].mxu0
  %v662 = vpop.f32.mrb[0].mxu0
  %v663 = vadd.f32 0.0, %v662
  %v664 = vpop.f32.mrb[0].mxu0
  %665 = vdwg.mxu0
  %v666 = vadd.f32 %v580, %v652
  %v667 = vadd.f32 %v583, %v655
  %v668 = vadd.f32 %v588, %v660
  %v669 = vadd.f32 %v591, %v663
  %v670 = vld [vmem:[%s243] sm:$0xf]
  %v671 = vld [vmem:[%s243 + $0x4] sm:$0xf]
  %v672 = vld [vmem:[%s243 + $0x8] sm:$0xf]
  %v673 = vld [vmem:[%s243 + $0xc] sm:$0xf]
  %v678 = vunpack.c.l.b16 %v670
  %v679 = vunpack.c.l.b16 %v671
  %v680 = vunpack.c.l.b16 %v672
  %v681 = vunpack.c.l.b16 %v673
  %v682 = vpack.c.b16 %v679, %v678
  %v683 = vpack.c.b16 %v681, %v680
  %684 = vrot.lane.b32.xlu0 %v40, 105
  %v685 = vpop.permute.xlu0 %684
  %v688 = vsel %vm44, %v682, 0
  %v691 = vsel %vm44, %v683, 0
  %693 = vmatprep.subr.bf16.mxu0 0
  %694 = vmatpush1.bf16.msra.mxu0 %v685
  %695 = vmatprep.subr.bf16.mxu0 0
  %696 = vmatpush1.bf16.msra.mxu0 0
  %697 = vmatprep.subr.bf16.mxu0 0
  %698 = vmatpush1.bf16.msra.mxu0 0
  %699 = vmatprep.subr.bf16.mxu0 0
  %700 = vmatpush1.bf16.msra.mxu0 0
  %701 = vmatprep.subr.bf16.mxu0 0
  %702 = vmatpush1.bf16.msra.mxu0 0
  %703 = vmatprep.subr.bf16.mxu0 0
  %704 = vmatpush1.bf16.msra.mxu0 0
  %705 = vmatprep.subr.bf16.mxu0 0
  %706 = vmatpush1.bf16.msra.mxu0 0
  %707 = vmatprep.subr.bf16.mxu0 0
  %708 = vmatpush1.bf16.msra.mxu0 0
  %709 = vmatprep.subr.bf16.mxu0 0
  %710 = vmatpush1.bf16.msra.mxu0 0
  %711 = vmatprep.subr.bf16.mxu0 0
  %712 = vmatpush1.bf16.msra.mxu0 0
  %713 = vmatprep.subr.bf16.mxu0 0
  %714 = vmatpush1.bf16.msra.mxu0 0
  %715 = vmatprep.subr.bf16.mxu0 0
  %716 = vmatpush1.bf16.msra.mxu0 0
  %717 = vmatprep.subr.bf16.mxu0 0
  %718 = vmatpush1.bf16.msra.mxu0 0
  %719 = vmatprep.subr.bf16.mxu0 0
  %720 = vmatpush1.bf16.msra.mxu0 0
  %721 = vmatprep.subr.bf16.mxu0 0
  %722 = vmatpush1.bf16.msra.mxu0 0
  %723 = vmatprep.subr.bf16.mxu0 0
  %724 = vmatpush1.bf16.msra.mxu0 0
  %725 = vmatprep.mubr.bf16.mxu0 0
  %726 = vmatmul.mubr.bf16.gmra.mrb[0].mxu0 %v688
  %v727 = vpop.f32.mrb[0].mxu0
  %v728 = vadd.f32 0.0, %v727
  %v729 = vpop.f32.mrb[0].mxu0
  %v730 = vpop.f32.mrb[0].mxu0
  %v731 = vadd.f32 0.0, %v730
  %v732 = vpop.f32.mrb[0].mxu0
  %733 = vmatprep.mubr.bf16.mxu0 0
  %734 = vmatmul.mubr.bf16.gmra.mrb[0].mxu0 %v691
  %v735 = vpop.f32.mrb[0].mxu0
  %v736 = vadd.f32 0.0, %v735
  %v737 = vpop.f32.mrb[0].mxu0
  %v738 = vpop.f32.mrb[0].mxu0
  %v739 = vadd.f32 0.0, %v738
  %v740 = vpop.f32.mrb[0].mxu0
  %741 = vdwg.mxu0
  %v742 = vadd.f32 %v666, %v728
  %v743 = vadd.f32 %v667, %v731
  %v744 = vadd.f32 %v668, %v736
  %v745 = vadd.f32 %v669, %v739
  %v746 = vld [vmem:[%s320] sm:$0xf]
  %v747 = vld [vmem:[%s320 + $0x4] sm:$0xf]
  %v748 = vld [vmem:[%s320 + $0x8] sm:$0xf]
  %v749 = vld [vmem:[%s320 + $0xc] sm:$0xf]
  %v754 = vunpack.c.l.b16 %v746
  %v755 = vunpack.c.l.b16 %v747
  %v756 = vunpack.c.l.b16 %v748
  %v757 = vunpack.c.l.b16 %v749
  %v758 = vpack.c.b16 %v755, %v754
  %v759 = vpack.c.b16 %v757, %v756
  %760 = vrot.lane.b32.xlu0 %v40, 104
  %v761 = vpop.permute.xlu0 %760
  %v764 = vsel %vm44, %v758, 0
  %v767 = vsel %vm44, %v759, 0
  %769 = vmatprep.subr.bf16.mxu0 0
  %770 = vmatpush1.bf16.msra.mxu0 %v761
  %771 = vmatprep.subr.bf16.mxu0 0
  %772 = vmatpush1.bf16.msra.mxu0 0
  %773 = vmatprep.subr.bf16.mxu0 0
  %774 = vmatpush1.bf16.msra.mxu0 0
  %775 = vmatprep.subr.bf16.mxu0 0
  %776 = vmatpush1.bf16.msra.mxu0 0
  %777 = vmatprep.subr.bf16.mxu0 0
  %778 = vmatpush1.bf16.msra.mxu0 0
  %779 = vmatprep.subr.bf16.mxu0 0
  %780 = vmatpush1.bf16.msra.mxu0 0
  %781 = vmatprep.subr.bf16.mxu0 0
  %782 = vmatpush1.bf16.msra.mxu0 0
  %783 = vmatprep.subr.bf16.mxu0 0
  %784 = vmatpush1.bf16.msra.mxu0 0
  %785 = vmatprep.subr.bf16.mxu0 0
  %786 = vmatpush1.bf16.msra.mxu0 0
  %787 = vmatprep.subr.bf16.mxu0 0
  %788 = vmatpush1.bf16.msra.mxu0 0
  %789 = vmatprep.subr.bf16.mxu0 0
  %790 = vmatpush1.bf16.msra.mxu0 0
  %791 = vmatprep.subr.bf16.mxu0 0
  %792 = vmatpush1.bf16.msra.mxu0 0
  %793 = vmatprep.subr.bf16.mxu0 0
  %794 = vmatpush1.bf16.msra.mxu0 0
  %795 = vmatprep.subr.bf16.mxu0 0
  %796 = vmatpush1.bf16.msra.mxu0 0
  %797 = vmatprep.subr.bf16.mxu0 0
  %798 = vmatpush1.bf16.msra.mxu0 0
  %799 = vmatprep.subr.bf16.mxu0 0
  %800 = vmatpush1.bf16.msra.mxu0 0
  %801 = vmatprep.mubr.bf16.mxu0 0
  %802 = vmatmul.mubr.bf16.gmra.mrb[0].mxu0 %v764
  %v803 = vpop.f32.mrb[0].mxu0
  %v804 = vadd.f32 0.0, %v803
  %v805 = vpop.f32.mrb[0].mxu0
  %v806 = vpop.f32.mrb[0].mxu0
  %v807 = vadd.f32 0.0, %v806
  %v808 = vpop.f32.mrb[0].mxu0
  %809 = vmatprep.mubr.bf16.mxu0 0
  %810 = vmatmul.mubr.bf16.gmra.mrb[0].mxu0 %v767
  %v811 = vpop.f32.mrb[0].mxu0
  %v812 = vadd.f32 0.0, %v811
  %v813 = vpop.f32.mrb[0].mxu0
  %v814 = vpop.f32.mrb[0].mxu0
  %v815 = vadd.f32 0.0, %v814
  %v816 = vpop.f32.mrb[0].mxu0
  %817 = vdwg.mxu0
  %v818 = vadd.f32 %v742, %v804
  %v819 = vadd.f32 %v743, %v807
  %v820 = vadd.f32 %v744, %v812
  %v821 = vadd.f32 %v745, %v815
  %v822 = vld [vmem:[%s2] sm:$0xff]
  %v823 = vld [vmem:[%s2 + $0x8] sm:$0xff]
  %v824 = vld [vmem:[%s2 + $0x10] sm:$0xff]
  %v825 = vld [vmem:[%s2 + $0x18] sm:$0xff]
  %827 = vset.pattern.permute.xlu0 0
  %828 = vperm.xlu0 %827, %v822
  %v829 = vpop.permute.xlu0 %828
  %832 = vset.pattern.permute.xlu0 0
  %833 = vperm.xlu0 %832, %v823
  %v834 = vpop.permute.xlu0 %833
  %837 = vset.pattern.permute.xlu0 0
  %838 = vperm.xlu0 %837, %v824
  %v839 = vpop.permute.xlu0 %838
  %842 = vset.pattern.permute.xlu0 0
  %843 = vperm.xlu0 %842, %v825
  %v844 = vpop.permute.xlu0 %843
  %v846 = vadd.f32 %v818, %v829
  %v847 = vadd.f32 %v819, %v834
  %v848 = vadd.f32 %v820, %v839
  %v849 = vadd.f32 %v821, %v844
  %v850 = vmax.f32 %v846, 0.0
  %v851 = vmax.f32 %v847, 0.0
  %v852 = vmax.f32 %v848, 0.0
  %v853 = vmax.f32 %v849, 0.0
  %v854 = vpack.c.bf16 %v851, %v850
  %v855 = vpack.c.bf16 %v853, %v852
  %v858 = vunpack.c.l.b16 %v854
  %v859 = vunpack.c.h.b16 %v854
  %v860 = vunpack.c.l.b16 %v855
  %v861 = vunpack.c.h.b16 %v855
  %v862 = vpack.c.b16 %v858, %v858
  %v863 = vpack.c.b16 %v859, %v859
  %v864 = vpack.c.b16 %v860, %v860
  %v865 = vpack.c.b16 %v861, %v861
  %866 = vrot.lane.b32.xlu0 %v862, 16
  %v867 = vpop.permute.xlu0 %866
  %868 = vrot.lane.b32.xlu0 %v863, 16
  %v869 = vpop.permute.xlu0 %868
  %870 = vrot.lane.b32.xlu0 %v864, 16
  %v871 = vpop.permute.xlu0 %870
  %872 = vrot.lane.b32.xlu0 %v865, 16
  %v873 = vpop.permute.xlu0 %872
  %vm878 = vcmask 257152
  %879 = vst.msk [vmem:[%s3] sm:$0xf] %vm878, %v867
  %880 = vst.msk [vmem:[%s3 + $0x4] sm:$0xf] %vm878, %v869
  %881 = vst.msk [vmem:[%s3 + $0x8] sm:$0xf] %vm878, %v871
  %882 = vst.msk [vmem:[%s3 + $0xc] sm:$0xf] %vm878, %v873
  // Predicated region
  $region14: #{model_forward.42} parent=0 // pred_check
    _
  $region15: #{model_forward.42} parent=0 // pred_check_branch
    %884 = sbr.rel (0) target = $region17
  $region16: #{model_forward.42} parent=0 // pred_region
    _
  $region17: #{model_forward.42} parent=0 // pred_fallthru
    _
  // Predicated region
  $region18: #{model_forward.42} parent=0 // pred_check
    _
  $region19: #{model_forward.42} parent=0 // pred_check_branch
    %886 = sbr.rel (0) target = $region21
  $region20: #{model_forward.42} parent=0 // pred_region
    _
  $region21: #{model_forward.42} parent=0 // pred_fallthru
    _

// kernel: model_forward.44
$region0: #{model_forward.44}
  #allocation0 [shape = 'u32[]', space=smem, size = 0x4, offset = 0x4, fixed_abs, tag = 'smem constant byte address 0x4 - core index']
  #allocation1 [shape = 'u32[144,128]{1,0:T(1,128)}', space=vmem, size = 0x12000, scoped, tag = 'internal scratch']
  %s0 = inlined_call_operand.vmem [shape: bf16[3,8,16], index: 0, kind: input, shape index: {}]
  %s1 = inlined_call_operand.vmem [shape: bf16[16,36], index: 1, kind: input, shape index: {}]
  %s2 = inlined_call_operand.vmem [shape: f32[16,2], index: 2, kind: input, shape index: {}]
  %s3 = inlined_call_operand.vmem [shape: f32[8,16], index: 3, kind: input, shape index: {}]
  %s4 = inlined_call_operand.vmem [shape: f32[8,1], index: 4, kind: input, shape index: {}]
  %s5 = inlined_call_operand.vmem [shape: f32[8,8], index: 5, kind: input, shape index: {}]
  %s6 = inlined_call_operand.vmem [shape: f32[8,1], index: 6, kind: input, shape index: {}]
  %s7 = inlined_call_operand.vmem [shape: bf16[8,32], index: 7, kind: output, shape index: {}]
  %s8 = sld [smem:[#allocation0]]
  $region38: #{model_forward.44} parent=0
    _
  %s10 = ssub.s32 1, %s8
  %s11 = scalar_select 0, %s10, %s8
  // Predicated region
  $region2: #{model_forward.44} parent=0 // pred_check
    _
  $region3: #{model_forward.44} parent=0 // pred_check_branch
    %13 = sbr.rel (0) target = $region5
  $region4: #{model_forward.44} parent=0 // pred_region
    _
  $region5: #{model_forward.44} parent=0 // pred_fallthru
    _
  // Predicated region
  $region6: #{model_forward.44} parent=0 // pred_check
    _
  $region7: #{model_forward.44} parent=0 // pred_check_branch
    %15 = sbr.rel (0) target = $region9
  $region8: #{model_forward.44} parent=0 // pred_region
    _
  $region9: #{model_forward.44} parent=0 // pred_fallthru
    _
  // Predicated region
  $region10: #{model_forward.44} parent=0 // pred_check
    _
  $region11: #{model_forward.44} parent=0 // pred_check_branch
    %17 = sbr.rel (0) target = $region13
  $region12: #{model_forward.44} parent=0 // pred_region
    _
  $region13: #{model_forward.44} parent=0 // pred_fallthru
    _
  // Predicated region
  $region14: #{model_forward.44} parent=0 // pred_check
    _
  $region15: #{model_forward.44} parent=0 // pred_check_branch
    %19 = sbr.rel (0) target = $region17
  $region16: #{model_forward.44} parent=0 // pred_region
    _
  $region17: #{model_forward.44} parent=0 // pred_fallthru
    _
  // Predicated region
  $region18: #{model_forward.44} parent=0 // pred_check
    _
  $region19: #{model_forward.44} parent=0 // pred_check_branch
    %21 = sbr.rel (0) target = $region21
  $region20: #{model_forward.44} parent=0 // pred_region
    _
  $region21: #{model_forward.44} parent=0 // pred_fallthru
    _
  // Predicated region
  $region22: #{model_forward.44} parent=0 // pred_check
    _
  $region23: #{model_forward.44} parent=0 // pred_check_branch
    %23 = sbr.rel (0) target = $region25
  $region24: #{model_forward.44} parent=0 // pred_region
    _
  $region25: #{model_forward.44} parent=0 // pred_fallthru
    _
  // Predicated region
  $region26: #{model_forward.44} parent=0 // pred_check
    _
  $region27: #{model_forward.44} parent=0 // pred_check_branch
    %25 = sbr.rel (0) target = $region29
  $region28: #{model_forward.44} parent=0 // pred_region
    _
  $region29: #{model_forward.44} parent=0 // pred_fallthru
    _
  %v27 = vld [vmem:[%s3] sm:$0xff]
  %v28 = vld [vmem:[%s2] sm:$0xff]
  %v29 = vld [vmem:[%s2 + $0x8] sm:$0xff]
  %v30 = vld [vmem:[%s4] sm:$0xff]
  %32 = vset.pattern.permute.xlu0 0
  %33 = vperm.xlu0 %32, %v30
  %v34 = vpop.permute.xlu0 %33
  %vm36 = vcmask 130048
  %v38 = vsel %vm36, %v27, 0
  %40 = vmatprep.subr.mxu0 0.0
  %41 = vmatpush1.msra.mxu0 %v28
  %42 = vmatprep.subr.mxu0 0.0
  %43 = vmatpush1.msra.mxu0 %v29
  %44 = vmatprep.subr.mxu0 0.0
  %45 = vmatpush1.msra.mxu0 0.0
  %46 = vmatprep.subr.mxu0 0.0
  %47 = vmatpush1.msra.mxu0 0.0
  %48 = vmatprep.subr.mxu0 0.0
  %49 = vmatpush1.msra.mxu0 0.0
  %50 = vmatprep.subr.mxu0 0.0
  %51 = vmatpush1.msra.mxu0 0.0
  %52 = vmatprep.subr.mxu0 0.0
  %53 = vmatpush1.msra.mxu0 0.0
  %54 = vmatprep.subr.mxu0 0.0
  %55 = vmatpush1.msra.mxu0 0.0
  %56 = vmatprep.subr.mxu0 0.0
  %57 = vmatpush1.msra.mxu0 0.0
  %58 = vmatprep.subr.mxu0 0.0
  %59 = vmatpush1.msra.mxu0 0.0
  %60 = vmatprep.subr.mxu0 0.0
  %61 = vmatpush1.msra.mxu0 0.0
  %62 = vmatprep.subr.mxu0 0.0
  %63 = vmatpush1.msra.mxu0 0.0
  %64 = vmatprep.subr.mxu0 0.0
  %65 = vmatpush1.msra.mxu0 0.0
  %66 = vmatprep.subr.mxu0 0.0
  %67 = vmatpush1.msra.mxu0 0.0
  %68 = vmatprep.subr.mxu0 0.0
  %69 = vmatpush1.msra.mxu0 0.0
  %70 = vmatprep.subr.mxu0 0.0
  %71 = vmatpush1.msra.mxu0 0.0
  %72 = vmatprep.subr.mxu0 0.0
  %73 = vmatpush1.msra.mxu0 0.0
  %74 = vmatprep.subr.mxu0 0.0
  %75 = vmatpush1.msra.mxu0 0.0
  %76 = vmatprep.subr.mxu0 0.0
  %77 = vmatpush1.msra.mxu0 0.0
  %78 = vmatprep.subr.mxu0 0.0
  %79 = vmatpush1.msra.mxu0 0.0
  %80 = vmatprep.subr.mxu0 0.0
  %81 = vmatpush1.msra.mxu0 0.0
  %82 = vmatprep.subr.mxu0 0.0
  %83 = vmatpush1.msra.mxu0 0.0
  %84 = vmatprep.subr.mxu0 0.0
  %85 = vmatpush1.msra.mxu0 0.0
  %86 = vmatprep.subr.mxu0 0.0
  %87 = vmatpush1.msra.mxu0 0.0
  %88 = vmatprep.subr.mxu0 0.0
  %89 = vmatpush1.msra.mxu0 0.0
  %90 = vmatprep.subr.mxu0 0.0
  %91 = vmatpush1.msra.mxu0 0.0
  %92 = vmatprep.subr.mxu0 0.0
  %93 = vmatpush1.msra.mxu0 0.0
  %94 = vmatprep.subr.mxu0 0.0
  %95 = vmatpush1.msra.mxu0 0.0
  %96 = vmatprep.subr.mxu0 0.0
  %97 = vmatpush1.msra.mxu0 0.0
  %98 = vmatprep.subr.mxu0 0.0
  %99 = vmatpush1.msra.mxu0 0.0
  %100 = vmatprep.subr.mxu0 0.0
  %101 = vmatpush1.msra.mxu0 0.0
  %102 = vmatprep.subr.mxu0 0.0
  %103 = vmatpush1.msra.mxu0 0.0
  %104 = vmatprep.mubr.f32.mxu0 0.0
  %105 = vmatmul.mubr.f32.gmra.mrb[0].mxu0 %v38
  %v106 = vpop.f32.mrb[0].mxu0
  %v107 = vadd.f32 %v34, %v106
  %v108 = vpop.f32.mrb[0].mxu0
  %109 = vdwg.mxu0
  %v110 = vmax.f32 %v107, 0.0
  %v111 = vld [vmem:[%s5] sm:$0xff]
  %v112 = vld [vmem:[%s6] sm:$0xff]
  %114 = vset.pattern.permute.xlu0 0
  %115 = vperm.xlu0 %114, %v112
  %v116 = vpop.permute.xlu0 %115
  %vm118 = vcmask 64512
  %v120 = vsel %vm118, %v111, 0
  %122 = vmatprep.subr.mxu0 0.0
  %123 = vmatpush1.msra.mxu0 %v110
  %124 = vmatprep.subr.mxu0 0.0
  %125 = vmatpush1.msra.mxu0 0.0
  %126 = vmatprep.subr.mxu0 0.0
  %127 = vmatpush1.msra.mxu0 0.0
  %128 = vmatprep.subr.mxu0 0.0
  %129 = vmatpush1.msra.mxu0 0.0
  %130 = vmatprep.subr.mxu0 0.0
  %131 = vmatpush1.msra.mxu0 0.0
  %132 = vmatprep.subr.mxu0 0.0
  %133 = vmatpush1.msra.mxu0 0.0
  %134 = vmatprep.subr.mxu0 0.0
  %135 = vmatpush1.msra.mxu0 0.0
  %136 = vmatprep.subr.mxu0 0.0
  %137 = vmatpush1.msra.mxu0 0.0
  %138 = vmatprep.subr.mxu0 0.0
  %139 = vmatpush1.msra.mxu0 0.0
  %140 = vmatprep.subr.mxu0 0.0
  %141 = vmatpush1.msra.mxu0 0.0
  %142 = vmatprep.subr.mxu0 0.0
  %143 = vmatpush1.msra.mxu0 0.0
  %144 = vmatprep.subr.mxu0 0.0
  %145 = vmatpush1.msra.mxu0 0.0
  %146 = vmatprep.subr.mxu0 0.0
  %147 = vmatpush1.msra.mxu0 0.0
  %148 = vmatprep.subr.mxu0 0.0
  %149 = vmatpush1.msra.mxu0 0.0
  %150 = vmatprep.subr.mxu0 0.0
  %151 = vmatpush1.msra.mxu0 0.0
  %152 = vmatprep.subr.mxu0 0.0
  %153 = vmatpush1.msra.mxu0 0.0
  %154 = vmatprep.subr.mxu0 0.0
  %155 = vmatpush1.msra.mxu0 0.0
  %156 = vmatprep.subr.mxu0 0.0
  %157 = vmatpush1.msra.mxu0 0.0
  %158 = vmatprep.subr.mxu0 0.0
  %159 = vmatpush1.msra.mxu0 0.0
  %160 = vmatprep.subr.mxu0 0.0
  %161 = vmatpush1.msra.mxu0 0.0
  %162 = vmatprep.subr.mxu0 0.0
  %163 = vmatpush1.msra.mxu0 0.0
  %164 = vmatprep.subr.mxu0 0.0
  %165 = vmatpush1.msra.mxu0 0.0
  %166 = vmatprep.subr.mxu0 0.0
  %167 = vmatpush1.msra.mxu0 0.0
  %168 = vmatprep.subr.mxu0 0.0
  %169 = vmatpush1.msra.mxu0 0.0
  %170 = vmatprep.subr.mxu0 0.0
  %171 = vmatpush1.msra.mxu0 0.0
  %172 = vmatprep.subr.mxu0 0.0
  %173 = vmatpush1.msra.mxu0 0.0
  %174 = vmatprep.subr.mxu0 0.0
  %175 = vmatpush1.msra.mxu0 0.0
  %176 = vmatprep.subr.mxu0 0.0
  %177 = vmatpush1.msra.mxu0 0.0
  %178 = vmatprep.subr.mxu0 0.0
  %179 = vmatpush1.msra.mxu0 0.0
  %180 = vmatprep.subr.mxu0 0.0
  %181 = vmatpush1.msra.mxu0 0.0
  %182 = vmatprep.subr.mxu0 0.0
  %183 = vmatpush1.msra.mxu0 0.0
  %184 = vmatprep.subr.mxu0 0.0
  %185 = vmatpush1.msra.mxu0 0.0
  %186 = vmatprep.mubr.f32.mxu0 0.0
  %187 = vmatmul.mubr.f32.gmra.mrb[0].mxu0 %v120
  %v188 = vpop.f32.mrb[0].mxu0
  %v189 = vadd.f32 %v116, %v188
  %v190 = vpop.f32.mrb[0].mxu0
  %191 = vdwg.mxu0
  %v192 = vxor.u32 %v189, 2147483648
  %v193 = vmul.f32 %v192, 1.442695
  %v194 = vpow.pop %v193
  %v195 = vadd.f32 %v194, 1.0
  %v196 = vrcp.pop %v195
  %v197 = vmul.f32 1.0, %v196
  %v198 = vld [vmem:[%s1] sm:$0xf]
  %v199 = vld [vmem:[%s1 + $0x4] sm:$0xf]
  %v200 = vld [vmem:[%s0] sm:$0xf]
  %s201 = scalar_lea.vmem %s0, 4
  %v202 = vld [vmem:[%s201] sm:$0xf]
  %v205 = vunpack.c.l.b16 %v198
  %v206 = vunpack.c.l.b16 %v199
  %v207 = vpack.c.b16 %v206, %v205
  %208 = vrot.lane.b32.xlu0 %v207, 127
  %v209 = vpop.permute.xlu0 %208
  %v212 = vsel %vm36, %v202, 0
  %214 = vmatprep.subr.bf16.mxu0 0
  %215 = vmatpush1.bf16.msra.mxu0 %v209
  %216 = vmatprep.subr.bf16.mxu0 0
  %217 = vmatpush1.bf16.msra.mxu0 0
  %218 = vmatprep.subr.bf16.mxu0 0
  %219 = vmatpush1.bf16.msra.mxu0 0
  %220 = vmatprep.subr.bf16.mxu0 0
  %221 = vmatpush1.bf16.msra.mxu0 0
  %222 = vmatprep.subr.bf16.mxu0 0
  %223 = vmatpush1.bf16.msra.mxu0 0
  %224 = vmatprep.subr.bf16.mxu0 0
  %225 = vmatpush1.bf16.msra.mxu0 0
  %226 = vmatprep.subr.bf16.mxu0 0
  %227 = vmatpush1.bf16.msra.mxu0 0
  %228 = vmatprep.subr.bf16.mxu0 0
  %229 = vmatpush1.bf16.msra.mxu0 0
  %230 = vmatprep.subr.bf16.mxu0 0
  %231 = vmatpush1.bf16.msra.mxu0 0
  %232 = vmatprep.subr.bf16.mxu0 0
  %233 = vmatpush1.bf16.msra.mxu0 0
  %234 = vmatprep.subr.bf16.mxu0 0
  %235 = vmatpush1.bf16.msra.mxu0 0
  %236 = vmatprep.subr.bf16.mxu0 0
  %237 = vmatpush1.bf16.msra.mxu0 0
  %238 = vmatprep.subr.bf16.mxu0 0
  %239 = vmatpush1.bf16.msra.mxu0 0
  %240 = vmatprep.subr.bf16.mxu0 0
  %241 = vmatpush1.bf16.msra.mxu0 0
  %242 = vmatprep.subr.bf16.mxu0 0
  %243 = vmatpush1.bf16.msra.mxu0 0
  %244 = vmatprep.subr.bf16.mxu0 0
  %245 = vmatpush1.bf16.msra.mxu0 0
  %246 = vmatprep.mubr.bf16.mxu0 0
  %247 = vmatmul.mubr.bf16.gmra.mrb[0].mxu0 %v212
  %v248 = vpop.f32.mrb[0].mxu0
  %v249 = vadd.f32 0.0, %v248
  %v250 = vpop.f32.mrb[0].mxu0
  %v251 = vpop.f32.mrb[0].mxu0
  %v252 = vpop.f32.mrb[0].mxu0
  %253 = vdwg.mxu0
  %v256 = vsel %vm36, %v200, 0
  %258 = vmatprep.subr.bf16.mxu0 0
  %259 = vmatpush1.bf16.msra.mxu0 %v207
  %260 = vmatprep.subr.bf16.mxu0 0
  %261 = vmatpush1.bf16.msra.mxu0 0
  %262 = vmatprep.subr.bf16.mxu0 0
  %263 = vmatpush1.bf16.msra.mxu0 0
  %264 = vmatprep.subr.bf16.mxu0 0
  %265 = vmatpush1.bf16.msra.mxu0 0
  %266 = vmatprep.subr.bf16.mxu0 0
  %267 = vmatpush1.bf16.msra.mxu0 0
  %268 = vmatprep.subr.bf16.mxu0 0
  %269 = vmatpush1.bf16.msra.mxu0 0
  %270 = vmatprep.subr.bf16.mxu0 0
  %271 = vmatpush1.bf16.msra.mxu0 0
  %272 = vmatprep.subr.bf16.mxu0 0
  %273 = vmatpush1.bf16.msra.mxu0 0
  %274 = vmatprep.subr.bf16.mxu0 0
  %275 = vmatpush1.bf16.msra.mxu0 0
  %276 = vmatprep.subr.bf16.mxu0 0
  %277 = vmatpush1.bf16.msra.mxu0 0
  %278 = vmatprep.subr.bf16.mxu0 0
  %279 = vmatpush1.bf16.msra.mxu0 0
  %280 = vmatprep.subr.bf16.mxu0 0
  %281 = vmatpush1.bf16.msra.mxu0 0
  %282 = vmatprep.subr.bf16.mxu0 0
  %283 = vmatpush1.bf16.msra.mxu0 0
  %284 = vmatprep.subr.bf16.mxu0 0
  %285 = vmatpush1.bf16.msra.mxu0 0
  %286 = vmatprep.subr.bf16.mxu0 0
  %287 = vmatpush1.bf16.msra.mxu0 0
  %288 = vmatprep.subr.bf16.mxu0 0
  %289 = vmatpush1.bf16.msra.mxu0 0
  %290 = vmatprep.mubr.bf16.mxu0 0
  %291 = vmatmul.mubr.bf16.gmra.mrb[0].mxu0 %v256
  %v292 = vpop.f32.mrb[0].mxu0
  %v293 = vadd.f32 %v249, %v292
  %v294 = vpop.f32.mrb[0].mxu0
  %v295 = vpop.f32.mrb[0].mxu0
  %v296 = vpop.f32.mrb[0].mxu0
  %297 = vdwg.mxu0
  %s298 = scalar_lea.vmem %s0, 8
  %v299 = vld [vmem:[%s298] sm:$0xf]
  %300 = vrot.lane.b32.xlu0 %v207, 126
  %v301 = vpop.permute.xlu0 %300
  %v304 = vsel %vm36, %v299, 0
  %306 = vmatprep.subr.bf16.mxu0 0
  %307 = vmatpush1.bf16.msra.mxu0 %v301
  %308 = vmatprep.subr.bf16.mxu0 0
  %309 = vmatpush1.bf16.msra.mxu0 0
  %310 = vmatprep.subr.bf16.mxu0 0
  %311 = vmatpush1.bf16.msra.mxu0 0
  %312 = vmatprep.subr.bf16.mxu0 0
  %313 = vmatpush1.bf16.msra.mxu0 0
  %314 = vmatprep.subr.bf16.mxu0 0
  %315 = vmatpush1.bf16.msra.mxu0 0
  %316 = vmatprep.subr.bf16.mxu0 0
  %317 = vmatpush1.bf16.msra.mxu0 0
  %318 = vmatprep.subr.bf16.mxu0 0
  %319 = vmatpush1.bf16.msra.mxu0 0
  %320 = vmatprep.subr.bf16.mxu0 0
  %321 = vmatpush1.bf16.msra.mxu0 0
  %322 = vmatprep.subr.bf16.mxu0 0
  %323 = vmatpush1.bf16.msra.mxu0 0
  %324 = vmatprep.subr.bf16.mxu0 0
  %325 = vmatpush1.bf16.msra.mxu0 0
  %326 = vmatprep.subr.bf16.mxu0 0
  %327 = vmatpush1.bf16.msra.mxu0 0
  %328 = vmatprep.subr.bf16.mxu0 0
  %329 = vmatpush1.bf16.msra.mxu0 0
  %330 = vmatprep.subr.bf16.mxu0 0
  %331 = vmatpush1.bf16.msra.mxu0 0
  %332 = vmatprep.subr.bf16.mxu0 0
  %333 = vmatpush1.bf16.msra.mxu0 0
  %334 = vmatprep.subr.bf16.mxu0 0
  %335 = vmatpush1.bf16.msra.mxu0 0
  %336 = vmatprep.subr.bf16.mxu0 0
  %337 = vmatpush1.bf16.msra.mxu0 0
  %338 = vmatprep.mubr.bf16.mxu0 0
  %339 = vmatmul.mubr.bf16.gmra.mrb[0].mxu0 %v304
  %v340 = vpop.f32.mrb[0].mxu0
  %v341 = vadd.f32 0.0, %v340
  %v342 = vpop.f32.mrb[0].mxu0
  %v343 = vpop.f32.mrb[0].mxu0
  %v344 = vpop.f32.mrb[0].mxu0
  %345 = vdwg.mxu0
  %v346 = vadd.f32 %v293, %v341
  %348 = vset.pattern.permute.xlu0 0
  %349 = vperm.xlu0 %348, %v197
  %v350 = vpop.permute.xlu0 %349
  %v352 = vmul.f32 %v346, %v350
  %v353 = vpack.c.bf16 %v352, %v352
  %vm354 = vcmask 125952
  %355 = vst.msk [vmem:[%s7] sm:$0xf] %vm354, %v353
  %v356 = vld [vmem:[%s0] sm:$0xf]
  %v357 = vld [vmem:[%s201] sm:$0xf]
  %358 = vrot.lane.b32.xlu0 %v207, 109
  %v359 = vpop.permute.xlu0 %358
  %v362 = vsel %vm36, %v357, 0
  %364 = vmatprep.subr.bf16.mxu0 0
  %365 = vmatpush1.bf16.msra.mxu0 %v359
  %366 = vmatprep.subr.bf16.mxu0 0
  %367 = vmatpush1.bf16.msra.mxu0 0
  %368 = vmatprep.subr.bf16.mxu0 0
  %369 = vmatpush1.bf16.msra.mxu0 0
  %370 = vmatprep.subr.bf16.mxu0 0
  %371 = vmatpush1.bf16.msra.mxu0 0
  %372 = vmatprep.subr.bf16.mxu0 0
  %373 = vmatpush1.bf16.msra.mxu0 0
  %374 = vmatprep.subr.bf16.mxu0 0
  %375 = vmatpush1.bf16.msra.mxu0 0
  %376 = vmatprep.subr.bf16.mxu0 0
  %377 = vmatpush1.bf16.msra.mxu0 0
  %378 = vmatprep.subr.bf16.mxu0 0
  %379 = vmatpush1.bf16.msra.mxu0 0
  %380 = vmatprep.subr.bf16.mxu0 0
  %381 = vmatpush1.bf16.msra.mxu0 0
  %382 = vmatprep.subr.bf16.mxu0 0
  %383 = vmatpush1.bf16.msra.mxu0 0
  %384 = vmatprep.subr.bf16.mxu0 0
  %385 = vmatpush1.bf16.msra.mxu0 0
  %386 = vmatprep.subr.bf16.mxu0 0
  %387 = vmatpush1.bf16.msra.mxu0 0
  %388 = vmatprep.subr.bf16.mxu0 0
  %389 = vmatpush1.bf16.msra.mxu0 0
  %390 = vmatprep.subr.bf16.mxu0 0
  %391 = vmatpush1.bf16.msra.mxu0 0
  %392 = vmatprep.subr.bf16.mxu0 0
  %393 = vmatpush1.bf16.msra.mxu0 0
  %394 = vmatprep.subr.bf16.mxu0 0
  %395 = vmatpush1.bf16.msra.mxu0 0
  %396 = vmatprep.mubr.bf16.mxu0 0
  %397 = vmatmul.mubr.bf16.gmra.mrb[0].mxu0 %v362
  %v398 = vpop.f32.mrb[0].mxu0
  %v399 = vadd.f32 0.0, %v398
  %v400 = vpop.f32.mrb[0].mxu0
  %v401 = vpop.f32.mrb[0].mxu0
  %v402 = vpop.f32.mrb[0].mxu0
  %403 = vdwg.mxu0
  %404 = vrot.lane.b32.xlu0 %v207, 110
  %v405 = vpop.permute.xlu0 %404
  %v408 = vsel %vm36, %v356, 0
  %410 = vmatprep.subr.bf16.mxu0 0
  %411 = vmatpush1.bf16.msra.mxu0 %v405
  %412 = vmatprep.subr.bf16.mxu0 0
  %413 = vmatpush1.bf16.msra.mxu0 0
  %414 = vmatprep.subr.bf16.mxu0 0
  %415 = vmatpush1.bf16.msra.mxu0 0
  %416 = vmatprep.subr.bf16.mxu0 0
  %417 = vmatpush1.bf16.msra.mxu0 0
  %418 = vmatprep.subr.bf16.mxu0 0
  %419 = vmatpush1.bf16.msra.mxu0 0
  %420 = vmatprep.subr.bf16.mxu0 0
  %421 = vmatpush1.bf16.msra.mxu0 0
  %422 = vmatprep.subr.bf16.mxu0 0
  %423 = vmatpush1.bf16.msra.mxu0 0
  %424 = vmatprep.subr.bf16.mxu0 0
  %425 = vmatpush1.bf16.msra.mxu0 0
  %426 = vmatprep.subr.bf16.mxu0 0
  %427 = vmatpush1.bf16.msra.mxu0 0
  %428 = vmatprep.subr.bf16.mxu0 0
  %429 = vmatpush1.bf16.msra.mxu0 0
  %430 = vmatprep.subr.bf16.mxu0 0
  %431 = vmatpush1.bf16.msra.mxu0 0
  %432 = vmatprep.subr.bf16.mxu0 0
  %433 = vmatpush1.bf16.msra.mxu0 0
  %434 = vmatprep.subr.bf16.mxu0 0
  %435 = vmatpush1.bf16.msra.mxu0 0
  %436 = vmatprep.subr.bf16.mxu0 0
  %437 = vmatpush1.bf16.msra.mxu0 0
  %438 = vmatprep.subr.bf16.mxu0 0
  %439 = vmatpush1.bf16.msra.mxu0 0
  %440 = vmatprep.subr.bf16.mxu0 0
  %441 = vmatpush1.bf16.msra.mxu0 0
  %442 = vmatprep.mubr.bf16.mxu0 0
  %443 = vmatmul.mubr.bf16.gmra.mrb[0].mxu0 %v408
  %v444 = vpop.f32.mrb[0].mxu0
  %v445 = vadd.f32 %v399, %v444
  %v446 = vpop.f32.mrb[0].mxu0
  %v447 = vpop.f32.mrb[0].mxu0
  %v448 = vpop.f32.mrb[0].mxu0
  %449 = vdwg.mxu0
  %v450 = vld [vmem:[%s298] sm:$0xf]
  %451 = vrot.lane.b32.xlu0 %v207, 108
  %v452 = vpop.permute.xlu0 %451
  %v455 = vsel %vm36, %v450, 0
  %457 = vmatprep.subr.bf16.mxu0 0
  %458 = vmatpush1.bf16.msra.mxu0 %v452
  %459 = vmatprep.subr.bf16.mxu0 0
  %460 = vmatpush1.bf16.msra.mxu0 0
  %461 = vmatprep.subr.bf16.mxu0 0
  %462 = vmatpush1.bf16.msra.mxu0 0
  %463 = vmatprep.subr.bf16.mxu0 0
  %464 = vmatpush1.bf16.msra.mxu0 0
  %465 = vmatprep.subr.bf16.mxu0 0
  %466 = vmatpush1.bf16.msra.mxu0 0
  %467 = vmatprep.subr.bf16.mxu0 0
  %468 = vmatpush1.bf16.msra.mxu0 0
  %469 = vmatprep.subr.bf16.mxu0 0
  %470 = vmatpush1.bf16.msra.mxu0 0
  %471 = vmatprep.subr.bf16.mxu0 0
  %472 = vmatpush1.bf16.msra.mxu0 0
  %473 = vmatprep.subr.bf16.mxu0 0
  %474 = vmatpush1.bf16.msra.mxu0 0
  %475 = vmatprep.subr.bf16.mxu0 0
  %476 = vmatpush1.bf16.msra.mxu0 0
  %477 = vmatprep.subr.bf16.mxu0 0
  %478 = vmatpush1.bf16.msra.mxu0 0
  %479 = vmatprep.subr.bf16.mxu0 0
  %480 = vmatpush1.bf16.msra.mxu0 0
  %481 = vmatprep.subr.bf16.mxu0 0
  %482 = vmatpush1.bf16.msra.mxu0 0
  %483 = vmatprep.subr.bf16.mxu0 0
  %484 = vmatpush1.bf16.msra.mxu0 0
  %485 = vmatprep.subr.bf16.mxu0 0
  %486 = vmatpush1.bf16.msra.mxu0 0
  %487 = vmatprep.subr.bf16.mxu0 0
  %488 = vmatpush1.bf16.msra.mxu0 0
  %489 = vmatprep.mubr.bf16.mxu0 0
  %490 = vmatmul.mubr.bf16.gmra.mrb[0].mxu0 %v455
  %v491 = vpop.f32.mrb[0].mxu0
  %v492 = vadd.f32 0.0, %v491
  %v493 = vpop.f32.mrb[0].mxu0
  %v494 = vpop.f32.mrb[0].mxu0
  %v495 = vpop.f32.mrb[0].mxu0
  %496 = vdwg.mxu0
  %v497 = vadd.f32 %v445, %v492
  %498 = vset.pattern.permute.xlu0 1
  %499 = vperm.xlu0 %498, %v197
  %v500 = vpop.permute.xlu0 %499
  %v502 = vmul.f32 %v497, %v500
  %v503 = vpack.c.bf16 %v502, %v502
  %v505 = vunpack.c.l.b16 %v503
  %v506 = vpack.c.b16 %v505, %v505
  %507 = vrot.lane.b32.xlu0 %v506, 16
  %v508 = vpop.permute.xlu0 %507
  %vm510 = vcmask 257152
  %511 = vst.msk [vmem:[%s7] sm:$0xf] %vm510, %v508
  // Predicated region
  $region30: #{model_forward.44} parent=0 // pred_check
    _
  $region31: #{model_forward.44} parent=0 // pred_check_branch
    %513 = sbr.rel (0) target = $region33
  $region32: #{model_forward.44} parent=0 // pred_region
    _
  $region33: #{model_forward.44} parent=0 // pred_fallthru
    _
  // Predicated region
  $region34: #{model_forward.44} parent=0 // pred_check
    _
  $region35: #{model_forward.44} parent=0 // pred_check_branch
    %515 = sbr.rel (0) target = $region37
  $region36: #{model_forward.44} parent=0 // pred_region
    _
  $region37: #{model_forward.44} parent=0 // pred_fallthru
    _

// kernel: model_forward.45
$region0: #{model_forward.45}
  #allocation0 [shape = 'u32[]', space=smem, size = 0x4, offset = 0x4, fixed_abs, tag = 'smem constant byte address 0x4 - core index']
  #allocation1 [shape = 'u32[144,128]{1,0:T(1,128)}', space=vmem, size = 0x12000, scoped, tag = 'internal scratch']
  %s0 = inlined_call_operand.vmem [shape: bf16[16,40], index: 0, kind: input, shape index: {}]
  %s1 = inlined_call_operand.vmem [shape: bf16[40,128], index: 1, kind: input, shape index: {}]
  %s2 = inlined_call_operand.vmem [shape: f32[40,2], index: 2, kind: input, shape index: {}]
  %s3 = inlined_call_operand.vmem [shape: f32[16,1], index: 3, kind: input, shape index: {}]
  %s4 = inlined_call_operand.vmem [shape: bf16[16,128], index: 4, kind: output, shape index: {}]
  %s5 = sld [smem:[#allocation0]]
  $region26: #{model_forward.45} parent=0
    _
  %s7 = ssub.s32 1, %s5
  %s8 = scalar_select 0, %s7, %s5
  // Predicated region
  $region2: #{model_forward.45} parent=0 // pred_check
    _
  $region3: #{model_forward.45} parent=0 // pred_check_branch
    %10 = sbr.rel (0) target = $region5
  $region4: #{model_forward.45} parent=0 // pred_region
    _
  $region5: #{model_forward.45} parent=0 // pred_fallthru
    _
  // Predicated region
  $region6: #{model_forward.45} parent=0 // pred_check
    _
  $region7: #{model_forward.45} parent=0 // pred_check_branch
    %12 = sbr.rel (0) target = $region9
  $region8: #{model_forward.45} parent=0 // pred_region
    _
  $region9: #{model_forward.45} parent=0 // pred_fallthru
    _
  // Predicated region
  $region10: #{model_forward.45} parent=0 // pred_check
    _
  $region11: #{model_forward.45} parent=0 // pred_check_branch
    %14 = sbr.rel (0) target = $region13
  $region12: #{model_forward.45} parent=0 // pred_region
    _
  $region13: #{model_forward.45} parent=0 // pred_fallthru
    _
  // Predicated region
  $region14: #{model_forward.45} parent=0 // pred_check
    _
  $region15: #{model_forward.45} parent=0 // pred_check_branch
    %16 = sbr.rel (0) target = $region17
  $region16: #{model_forward.45} parent=0 // pred_region
    _
  $region17: #{model_forward.45} parent=0 // pred_fallthru
    _
  %v18 = vld [vmem:[%s1] sm:$0xf]
  %v19 = vld [vmem:[%s1 + $0x4] sm:$0xf]
  %v20 = vld [vmem:[%s1 + $0x8] sm:$0xf]
  %v21 = vld [vmem:[%s1 + $0xc] sm:$0xf]
  %v22 = vld [vmem:[%s1 + $0x10] sm:$0xf]
  %v23 = vunpack.c.l.bf16 %v18
  %v24 = vunpack.c.l.bf16 %v19
  %v25 = vunpack.c.l.bf16 %v20
  %v26 = vunpack.c.l.bf16 %v21
  %v27 = vunpack.c.l.bf16 %v22
  %v28 = vld [vmem:[%s2] sm:$0xff]
  %v29 = vld [vmem:[%s2 + $0x8] sm:$0xff]
  %v30 = vld [vmem:[%s2 + $0x10] sm:$0xff]
  %v31 = vld [vmem:[%s2 + $0x18] sm:$0xff]
  %v32 = vld [vmem:[%s2 + $0x20] sm:$0xff]
  %34 = vset.pattern.permute.xlu0 0
  %35 = vperm.xlu0 %34, %v28
  %v36 = vpop.permute.xlu0 %35
  %39 = vset.pattern.permute.xlu0 0
  %40 = vperm.xlu0 %39, %v29
  %v41 = vpop.permute.xlu0 %40
  %44 = vset.pattern.permute.xlu0 0
  %45 = vperm.xlu0 %44, %v30
  %v46 = vpop.permute.xlu0 %45
  %49 = vset.pattern.permute.xlu0 0
  %50 = vperm.xlu0 %49, %v31
  %v51 = vpop.permute.xlu0 %50
  %54 = vset.pattern.permute.xlu0 0
  %55 = vperm.xlu0 %54, %v32
  %v56 = vpop.permute.xlu0 %55
  %v58 = vmul.f32 %v23, %v36
  %v59 = vmul.f32 %v24, %v41
  %v60 = vmul.f32 %v25, %v46
  %v61 = vmul.f32 %v26, %v51
  %v62 = vmul.f32 %v27, %v56
  %63 = vset.pattern.permute.xlu0 1
  %64 = vperm.xlu0 %63, %v28
  %v65 = vpop.permute.xlu0 %64
  %67 = vset.pattern.permute.xlu0 1
  %68 = vperm.xlu0 %67, %v29
  %v69 = vpop.permute.xlu0 %68
  %71 = vset.pattern.permute.xlu0 1
  %72 = vperm.xlu0 %71, %v30
  %v73 = vpop.permute.xlu0 %72
  %75 = vset.pattern.permute.xlu0 1
  %76 = vperm.xlu0 %75, %v31
  %v77 = vpop.permute.xlu0 %76
  %79 = vset.pattern.permute.xlu0 1
  %80 = vperm.xlu0 %79, %v32
  %v81 = vpop.permute.xlu0 %80
  %v83 = vadd.f32 %v58, %v65
  %v84 = vadd.f32 %v59, %v69
  %v85 = vadd.f32 %v60, %v73
  %v86 = vadd.f32 %v61, %v77
  %v87 = vadd.f32 %v62, %v81
  %v88 = vmax.f32 %v83, 0.0
  %v89 = vmax.f32 %v84, 0.0
  %v90 = vmax.f32 %v85, 0.0
  %v91 = vmax.f32 %v86, 0.0
  %v92 = vmax.f32 %v87, 0.0
  %v93 = vpack.c.bf16 %v89, %v88
  %v94 = vpack.c.bf16 %v91, %v90
  %v95 = vpack.c.bf16 %v92, %v92
  %v96 = vld [vmem:[%s0] sm:$0xf]
  %v97 = vld [vmem:[%s0 + $0x4] sm:$0xf]
  %v98 = vld [vmem:[%s3] sm:$0xff]
  %v99 = vld [vmem:[%s3 + $0x8] sm:$0xff]
  %101 = vset.pattern.permute.xlu0 0
  %102 = vperm.xlu0 %101, %v98
  %v103 = vpop.permute.xlu0 %102
  %106 = vset.pattern.permute.xlu0 0
  %107 = vperm.xlu0 %106, %v99
  %v108 = vpop.permute.xlu0 %107
  %v112 = vunpack.c.l.b16 %v96
  %v113 = vunpack.c.l.b16 %v97
  %v114 = vpack.c.b16 %v113, %v112
  %vm115 = vcmask 326656
  %v117 = vsel %vm115, %v114, 0
  %vm119 = vcmask 1043456
  %v121 = vsel %vm119, %v95, 0
  %123 = vmatprep.subr.bf16.mxu0 0
  %124 = vmatpush1.bf16.msra.mxu0 %v93
  %125 = vmatprep.subr.bf16.mxu0 0
  %126 = vmatpush1.bf16.msra.mxu0 %v94
  %127 = vmatprep.subr.bf16.mxu0 0
  %128 = vmatpush1.bf16.msra.mxu0 %v121
  %129 = vmatprep.subr.bf16.mxu0 0
  %130 = vmatpush1.bf16.msra.mxu0 0
  %131 = vmatprep.subr.bf16.mxu0 0
  %132 = vmatpush1.bf16.msra.mxu0 0
  %133 = vmatprep.subr.bf16.mxu0 0
  %134 = vmatpush1.bf16.msra.mxu0 0
  %135 = vmatprep.subr.bf16.mxu0 0
  %136 = vmatpush1.bf16.msra.mxu0 0
  %137 = vmatprep.subr.bf16.mxu0 0
  %138 = vmatpush1.bf16.msra.mxu0 0
  %139 = vmatprep.subr.bf16.mxu0 0
  %140 = vmatpush1.bf16.msra.mxu0 0
  %141 = vmatprep.subr.bf16.mxu0 0
  %142 = vmatpush1.bf16.msra.mxu0 0
  %143 = vmatprep.subr.bf16.mxu0 0
  %144 = vmatpush1.bf16.msra.mxu0 0
  %145 = vmatprep.subr.bf16.mxu0 0
  %146 = vmatpush1.bf16.msra.mxu0 0
  %147 = vmatprep.subr.bf16.mxu0 0
  %148 = vmatpush1.bf16.msra.mxu0 0
  %149 = vmatprep.subr.bf16.mxu0 0
  %150 = vmatpush1.bf16.msra.mxu0 0
  %151 = vmatprep.subr.bf16.mxu0 0
  %152 = vmatpush1.bf16.msra.mxu0 0
  %153 = vmatprep.subr.bf16.mxu0 0
  %154 = vmatpush1.bf16.msra.mxu0 0
  %155 = vmatprep.mubr.bf16.mxu0 0
  %156 = vmatmul.mubr.bf16.gmra.mrb[0].mxu0 %v117
  %v157 = vpop.f32.mrb[0].mxu0
  %v158 = vadd.f32 %v103, %v157
  %v159 = vpop.f32.mrb[0].mxu0
  %v160 = vpop.f32.mrb[0].mxu0
  %v161 = vadd.f32 %v108, %v160
  %v162 = vpop.f32.mrb[0].mxu0
  %163 = vdwg.mxu0
  %v164 = vmax.f32 %v158, 0.0
  %v165 = vmax.f32 %v161, 0.0
  %v166 = vpack.c.bf16 %v165, %v164
  %v168 = vunpack.c.l.b16 %v166
  %v169 = vunpack.c.h.b16 %v166
  %v170 = vpack.c.b16 %v168, %v168
  %v171 = vpack.c.b16 %v169, %v169
  %174 = vst [vmem:[%s4] sm:$0xf] %v170
  %175 = vst [vmem:[%s4 + $0x4] sm:$0xf] %v171
  // Predicated region
  $region18: #{model_forward.45} parent=0 // pred_check
    _
  $region19: #{model_forward.45} parent=0 // pred_check_branch
    %177 = sbr.rel (0) target = $region21
  $region20: #{model_forward.45} parent=0 // pred_region
    _
  $region21: #{model_forward.45} parent=0 // pred_fallthru
    _
  // Predicated region
  $region22: #{model_forward.45} parent=0 // pred_check
    _
  $region23: #{model_forward.45} parent=0 // pred_check_branch
    %179 = sbr.rel (0) target = $region25
  $region24: #{model_forward.45} parent=0 // pred_region
    _
  $region25: #{model_forward.45} parent=0 // pred_fallthru
    _

// kernel: model_forward.47
$region0: #{model_forward.47}
  #allocation0 [shape = 'u32[]', space=smem, size = 0x4, offset = 0x4, fixed_abs, tag = 'smem constant byte address 0x4 - core index']
  #allocation1 [shape = 'u32[144,128]{1,0:T(1,128)}', space=vmem, size = 0x12000, scoped, tag = 'internal scratch']
  %s0 = inlined_call_operand.vmem [shape: bf16[24,48], index: 0, kind: input, shape index: {}]
  %s1 = inlined_call_operand.vmem [shape: bf16[48,128], index: 1, kind: input, shape index: {}]
  %s2 = inlined_call_operand.vmem [shape: f32[48,2], index: 2, kind: input, shape index: {}]
  %s3 = inlined_call_operand.vmem [shape: bf16[24,128], index: 3, kind: output, shape index: {}]
  %s4 = sld [smem:[#allocation0]]
  $region22: #{model_forward.47} parent=0
    _
  %s6 = ssub.s32 1, %s4
  %s7 = scalar_select 0, %s6, %s4
  // Predicated region
  $region2: #{model_forward.47} parent=0 // pred_check
    _
  $region3: #{model_forward.47} parent=0 // pred_check_branch
    %9 = sbr.rel (0) target = $region5
  $region4: #{model_forward.47} parent=0 // pred_region
    _
  $region5: #{model_forward.47} parent=0 // pred_fallthru
    _
  // Predicated region
  $region6: #{model_forward.47} parent=0 // pred_check
    _
  $region7: #{model_forward.47} parent=0 // pred_check_branch
    %11 = sbr.rel (0) target = $region9
  $region8: #{model_forward.47} parent=0 // pred_region
    _
  $region9: #{model_forward.47} parent=0 // pred_fallthru
    _
  // Predicated region
  $region10: #{model_forward.47} parent=0 // pred_check
    _
  $region11: #{model_forward.47} parent=0 // pred_check_branch
    %13 = sbr.rel (0) target = $region13
  $region12: #{model_forward.47} parent=0 // pred_region
    _
  $region13: #{model_forward.47} parent=0 // pred_fallthru
    _
  %v15 = vld [vmem:[%s1] sm:$0xf]
  %v16 = vld [vmem:[%s1 + $0x4] sm:$0xf]
  %v17 = vld [vmem:[%s1 + $0x8] sm:$0xf]
  %v18 = vld [vmem:[%s1 + $0xc] sm:$0xf]
  %v19 = vld [vmem:[%s1 + $0x10] sm:$0xf]
  %v20 = vld [vmem:[%s1 + $0x14] sm:$0xf]
  %v21 = vunpack.c.l.bf16 %v15
  %v22 = vunpack.c.l.bf16 %v16
  %v23 = vunpack.c.l.bf16 %v17
  %v24 = vunpack.c.l.bf16 %v18
  %v25 = vunpack.c.l.bf16 %v19
  %v26 = vunpack.c.l.bf16 %v20
  %v27 = vld [vmem:[%s2] sm:$0xff]
  %v28 = vld [vmem:[%s2 + $0x8] sm:$0xff]
  %v29 = vld [vmem:[%s2 + $0x10] sm:$0xff]
  %v30 = vld [vmem:[%s2 + $0x18] sm:$0xff]
  %v31 = vld [vmem:[%s2 + $0x20] sm:$0xff]
  %v32 = vld [vmem:[%s2 + $0x28] sm:$0xff]
  %34 = vset.pattern.permute.xlu0 0
  %35 = vperm.xlu0 %34, %v27
  %v36 = vpop.permute.xlu0 %35
  %39 = vset.pattern.permute.xlu0 0
  %40 = vperm.xlu0 %39, %v28
  %v41 = vpop.permute.xlu0 %40
  %44 = vset.pattern.permute.xlu0 0
  %45 = vperm.xlu0 %44, %v29
  %v46 = vpop.permute.xlu0 %45
  %49 = vset.pattern.permute.xlu0 0
  %50 = vperm.xlu0 %49, %v30
  %v51 = vpop.permute.xlu0 %50
  %54 = vset.pattern.permute.xlu0 0
  %55 = vperm.xlu0 %54, %v31
  %v56 = vpop.permute.xlu0 %55
  %59 = vset.pattern.permute.xlu0 0
  %60 = vperm.xlu0 %59, %v32
  %v61 = vpop.permute.xlu0 %60
  %v63 = vmul.f32 %v21, %v36
  %v64 = vmul.f32 %v22, %v41
  %v65 = vmul.f32 %v23, %v46
  %v66 = vmul.f32 %v24, %v51
  %v67 = vmul.f32 %v25, %v56
  %v68 = vmul.f32 %v26, %v61
  %69 = vset.pattern.permute.xlu0 1
  %70 = vperm.xlu0 %69, %v27
  %v71 = vpop.permute.xlu0 %70
  %73 = vset.pattern.permute.xlu0 1
  %74 = vperm.xlu0 %73, %v28
  %v75 = vpop.permute.xlu0 %74
  %77 = vset.pattern.permute.xlu0 1
  %78 = vperm.xlu0 %77, %v29
  %v79 = vpop.permute.xlu0 %78
  %81 = vset.pattern.permute.xlu0 1
  %82 = vperm.xlu0 %81, %v30
  %v83 = vpop.permute.xlu0 %82
  %85 = vset.pattern.permute.xlu0 1
  %86 = vperm.xlu0 %85, %v31
  %v87 = vpop.permute.xlu0 %86
  %89 = vset.pattern.permute.xlu0 1
  %90 = vperm.xlu0 %89, %v32
  %v91 = vpop.permute.xlu0 %90
  %v93 = vadd.f32 %v63, %v71
  %v94 = vadd.f32 %v64, %v75
  %v95 = vadd.f32 %v65, %v79
  %v96 = vadd.f32 %v66, %v83
  %v97 = vadd.f32 %v67, %v87
  %v98 = vadd.f32 %v68, %v91
  %v99 = vmax.f32 %v93, 0.0
  %v100 = vmax.f32 %v94, 0.0
  %v101 = vmax.f32 %v95, 0.0
  %v102 = vmax.f32 %v96, 0.0
  %v103 = vmax.f32 %v97, 0.0
  %v104 = vmax.f32 %v98, 0.0
  %v105 = vpack.c.bf16 %v100, %v99
  %v106 = vpack.c.bf16 %v102, %v101
  %v107 = vpack.c.bf16 %v104, %v103
  %v108 = vld [vmem:[%s0] sm:$0xf]
  %v109 = vld [vmem:[%s0 + $0x4] sm:$0xf]
  %v110 = vld [vmem:[%s0 + $0x8] sm:$0xf]
  %v114 = vunpack.c.l.b16 %v108
  %v115 = vunpack.c.l.b16 %v109
  %v116 = vunpack.c.l.b16 %v110
  %v117 = vpack.c.b16 %v115, %v114
  %v118 = vpack.c.b16 %v116, %v116
  %vm119 = vcmask 392192
  %v121 = vsel %vm119, %v117, 0
  %v124 = vsel %vm119, %v118, 0
  %126 = vmatprep.subr.bf16.mxu0 0
  %127 = vmatpush1.bf16.msra.mxu0 %v105
  %128 = vmatprep.subr.bf16.mxu0 0
  %129 = vmatpush1.bf16.msra.mxu0 %v106
  %130 = vmatprep.subr.bf16.mxu0 0
  %131 = vmatpush1.bf16.msra.mxu0 %v107
  %132 = vmatprep.subr.bf16.mxu0 0
  %133 = vmatpush1.bf16.msra.mxu0 0
  %134 = vmatprep.subr.bf16.mxu0 0
  %135 = vmatpush1.bf16.msra.mxu0 0
  %136 = vmatprep.subr.bf16.mxu0 0
  %137 = vmatpush1.bf16.msra.mxu0 0
  %138 = vmatprep.subr.bf16.mxu0 0
  %139 = vmatpush1.bf16.msra.mxu0 0
  %140 = vmatprep.subr.bf16.mxu0 0
  %141 = vmatpush1.bf16.msra.mxu0 0
  %142 = vmatprep.subr.bf16.mxu0 0
  %143 = vmatpush1.bf16.msra.mxu0 0
  %144 = vmatprep.subr.bf16.mxu0 0
  %145 = vmatpush1.bf16.msra.mxu0 0
  %146 = vmatprep.subr.bf16.mxu0 0
  %147 = vmatpush1.bf16.msra.mxu0 0
  %148 = vmatprep.subr.bf16.mxu0 0
  %149 = vmatpush1.bf16.msra.mxu0 0
  %150 = vmatprep.subr.bf16.mxu0 0
  %151 = vmatpush1.bf16.msra.mxu0 0
  %152 = vmatprep.subr.bf16.mxu0 0
  %153 = vmatpush1.bf16.msra.mxu0 0
  %154 = vmatprep.subr.bf16.mxu0 0
  %155 = vmatpush1.bf16.msra.mxu0 0
  %156 = vmatprep.subr.bf16.mxu0 0
  %157 = vmatpush1.bf16.msra.mxu0 0
  %158 = vmatprep.mubr.bf16.mxu0 0
  %159 = vmatmul.mubr.bf16.gmra.mrb[0].mxu0 %v121
  %v160 = vpop.f32.mrb[0].mxu0
  %v161 = vadd.f32 0.0, %v160
  %v162 = vpop.f32.mrb[0].mxu0
  %v163 = vpop.f32.mrb[0].mxu0
  %v164 = vadd.f32 0.0, %v163
  %v165 = vpop.f32.mrb[0].mxu0
  %166 = vmatprep.mubr.bf16.mxu0 0
  %167 = vmatmul.mubr.bf16.gmra.mrb[0].mxu0 %v124
  %v168 = vpop.f32.mrb[0].mxu0
  %v169 = vadd.f32 0.0, %v168
  %v170 = vpop.f32.mrb[0].mxu0
  %v171 = vpop.f32.mrb[0].mxu0
  %v172 = vpop.f32.mrb[0].mxu0
  %173 = vdwg.mxu0
  %v174 = vpack.c.bf16 %v164, %v161
  %v175 = vpack.c.bf16 %v169, %v169
  %v178 = vunpack.c.l.b16 %v174
  %v179 = vunpack.c.h.b16 %v174
  %v180 = vunpack.c.l.b16 %v175
  %v181 = vpack.c.b16 %v178, %v178
  %v182 = vpack.c.b16 %v179, %v179
  %v183 = vpack.c.b16 %v180, %v180
  %187 = vst [vmem:[%s3] sm:$0xf] %v181
  %188 = vst [vmem:[%s3 + $0x4] sm:$0xf] %v182
  %189 = vst [vmem:[%s3 + $0x8] sm:$0xf] %v183
  // Predicated region
  $region14: #{model_forward.47} parent=0 // pred_check
    _
  $region15: #{model_forward.47} parent=0 // pred_check_branch
    %191 = sbr.rel (0) target = $region17
  $region16: #{model_forward.47} parent=0 // pred_region
    _
  $region17: #{model_forward.47} parent=0 // pred_fallthru
    _
  // Predicated region
  $region18: #{model_forward.47} parent=0 // pred_check
    _
  $region19: #{model_forward.47} parent=0 // pred_check_branch
    %193 = sbr.rel (0) target = $region21
  $region20: #{model_forward.47} parent=0 // pred_region
    _
  $region21: #{model_forward.47} parent=0 // pred_fallthru
    _

// kernel: model_forward.48
$region0: #{model_forward.48}
  #allocation0 [shape = 'u32[]', space=smem, size = 0x4, offset = 0x4, fixed_abs, tag = 'smem constant byte address 0x4 - core index']
  #allocation1 [shape = 'u32[144,128]{1,0:T(1,128)}', space=vmem, size = 0x12000, scoped, tag = 'internal scratch']
  %s0 = inlined_call_operand.vmem [shape: bf16[16,24], index: 0, kind: input, shape index: {}]
  %s1 = inlined_call_operand.vmem [shape: bf16[24,128], index: 1, kind: input, shape index: {}]
  %s2 = inlined_call_operand.vmem [shape: f32[24,2], index: 2, kind: input, shape index: {}]
  %s3 = inlined_call_operand.vmem [shape: f32[16,1], index: 3, kind: input, shape index: {}]
  %s4 = inlined_call_operand.vmem [shape: bf16[16,128], index: 4, kind: output, shape index: {}]
  %s5 = sld [smem:[#allocation0]]
  $region26: #{model_forward.48} parent=0
    _
  %s7 = ssub.s32 1, %s5
  %s8 = scalar_select 0, %s7, %s5
  // Predicated region
  $region2: #{model_forward.48} parent=0 // pred_check
    _
  $region3: #{model_forward.48} parent=0 // pred_check_branch
    %10 = sbr.rel (0) target = $region5
  $region4: #{model_forward.48} parent=0 // pred_region
    _
  $region5: #{model_forward.48} parent=0 // pred_fallthru
    _
  // Predicated region
  $region6: #{model_forward.48} parent=0 // pred_check
    _
  $region7: #{model_forward.48} parent=0 // pred_check_branch
    %12 = sbr.rel (0) target = $region9
  $region8: #{model_forward.48} parent=0 // pred_region
    _
  $region9: #{model_forward.48} parent=0 // pred_fallthru
    _
  // Predicated region
  $region10: #{model_forward.48} parent=0 // pred_check
    _
  $region11: #{model_forward.48} parent=0 // pred_check_branch
    %14 = sbr.rel (0) target = $region13
  $region12: #{model_forward.48} parent=0 // pred_region
    _
  $region13: #{model_forward.48} parent=0 // pred_fallthru
    _
  // Predicated region
  $region14: #{model_forward.48} parent=0 // pred_check
    _
  $region15: #{model_forward.48} parent=0 // pred_check_branch
    %16 = sbr.rel (0) target = $region17
  $region16: #{model_forward.48} parent=0 // pred_region
    _
  $region17: #{model_forward.48} parent=0 // pred_fallthru
    _
  %v18 = vld [vmem:[%s1] sm:$0xf]
  %v19 = vld [vmem:[%s1 + $0x4] sm:$0xf]
  %v20 = vld [vmem:[%s1 + $0x8] sm:$0xf]
  %v21 = vunpack.c.l.bf16 %v18
  %v22 = vunpack.c.l.bf16 %v19
  %v23 = vunpack.c.l.bf16 %v20
  %v24 = vld [vmem:[%s2] sm:$0xff]
  %v25 = vld [vmem:[%s2 + $0x8] sm:$0xff]
  %v26 = vld [vmem:[%s2 + $0x10] sm:$0xff]
  %28 = vset.pattern.permute.xlu0 0
  %29 = vperm.xlu0 %28, %v24
  %v30 = vpop.permute.xlu0 %29
  %33 = vset.pattern.permute.xlu0 0
  %34 = vperm.xlu0 %33, %v25
  %v35 = vpop.permute.xlu0 %34
  %38 = vset.pattern.permute.xlu0 0
  %39 = vperm.xlu0 %38, %v26
  %v40 = vpop.permute.xlu0 %39
  %v42 = vmul.f32 %v21, %v30
  %v43 = vmul.f32 %v22, %v35
  %v44 = vmul.f32 %v23, %v40
  %45 = vset.pattern.permute.xlu0 1
  %46 = vperm.xlu0 %45, %v24
  %v47 = vpop.permute.xlu0 %46
  %49 = vset.pattern.permute.xlu0 1
  %50 = vperm.xlu0 %49, %v25
  %v51 = vpop.permute.xlu0 %50
  %53 = vset.pattern.permute.xlu0 1
  %54 = vperm.xlu0 %53, %v26
  %v55 = vpop.permute.xlu0 %54
  %v57 = vadd.f32 %v42, %v47
  %v58 = vadd.f32 %v43, %v51
  %v59 = vadd.f32 %v44, %v55
  %v60 = vmax.f32 %v57, 0.0
  %v61 = vmax.f32 %v58, 0.0
  %v62 = vmax.f32 %v59, 0.0
  %v63 = vpack.c.bf16 %v61, %v60
  %v64 = vpack.c.bf16 %v62, %v62
  %v65 = vld [vmem:[%s0] sm:$0xf]
  %v66 = vld [vmem:[%s0 + $0x4] sm:$0xf]
  %v67 = vld [vmem:[%s3] sm:$0xff]
  %v68 = vld [vmem:[%s3 + $0x8] sm:$0xff]
  %70 = vset.pattern.permute.xlu0 0
  %71 = vperm.xlu0 %70, %v67
  %v72 = vpop.permute.xlu0 %71
  %75 = vset.pattern.permute.xlu0 0
  %76 = vperm.xlu0 %75, %v68
  %v77 = vpop.permute.xlu0 %76
  %v81 = vunpack.c.l.b16 %v65
  %v82 = vunpack.c.l.b16 %v66
  %v83 = vpack.c.b16 %v82, %v81
  %vm84 = vcmask 195584
  %v86 = vsel %vm84, %v83, 0
  %vm88 = vcmask 1043456
  %v90 = vsel %vm88, %v64, 0
  %92 = vmatprep.subr.bf16.mxu0 0
  %93 = vmatpush1.bf16.msra.mxu0 %v63
  %94 = vmatprep.subr.bf16.mxu0 0
  %95 = vmatpush1.bf16.msra.mxu0 %v90
  %96 = vmatprep.subr.bf16.mxu0 0
  %97 = vmatpush1.bf16.msra.mxu0 0
  %98 = vmatprep.subr.bf16.mxu0 0
  %99 = vmatpush1.bf16.msra.mxu0 0
  %100 = vmatprep.subr.bf16.mxu0 0
  %101 = vmatpush1.bf16.msra.mxu0 0
  %102 = vmatprep.subr.bf16.mxu0 0
  %103 = vmatpush1.bf16.msra.mxu0 0
  %104 = vmatprep.subr.bf16.mxu0 0
  %105 = vmatpush1.bf16.msra.mxu0 0
  %106 = vmatprep.subr.bf16.mxu0 0
  %107 = vmatpush1.bf16.msra.mxu0 0
  %108 = vmatprep.subr.bf16.mxu0 0
  %109 = vmatpush1.bf16.msra.mxu0 0
  %110 = vmatprep.subr.bf16.mxu0 0
  %111 = vmatpush1.bf16.msra.mxu0 0
  %112 = vmatprep.subr.bf16.mxu0 0
  %113 = vmatpush1.bf16.msra.mxu0 0
  %114 = vmatprep.subr.bf16.mxu0 0
  %115 = vmatpush1.bf16.msra.mxu0 0
  %116 = vmatprep.subr.bf16.mxu0 0
  %117 = vmatpush1.bf16.msra.mxu0 0
  %118 = vmatprep.subr.bf16.mxu0 0
  %119 = vmatpush1.bf16.msra.mxu0 0
  %120 = vmatprep.subr.bf16.mxu0 0
  %121 = vmatpush1.bf16.msra.mxu0 0
  %122 = vmatprep.subr.bf16.mxu0 0
  %123 = vmatpush1.bf16.msra.mxu0 0
  %124 = vmatprep.mubr.bf16.mxu0 0
  %125 = vmatmul.mubr.bf16.gmra.mrb[0].mxu0 %v86
  %v126 = vpop.f32.mrb[0].mxu0
  %v127 = vadd.f32 %v72, %v126
  %v128 = vpop.f32.mrb[0].mxu0
  %v129 = vpop.f32.mrb[0].mxu0
  %v130 = vadd.f32 %v77, %v129
  %v131 = vpop.f32.mrb[0].mxu0
  %132 = vdwg.mxu0
  %v133 = vmax.f32 %v127, 0.0
  %v134 = vmax.f32 %v130, 0.0
  %v135 = vpack.c.bf16 %v134, %v133
  %v137 = vunpack.c.l.b16 %v135
  %v138 = vunpack.c.h.b16 %v135
  %v139 = vpack.c.b16 %v137, %v137
  %v140 = vpack.c.b16 %v138, %v138
  %143 = vst [vmem:[%s4] sm:$0xf] %v139
  %144 = vst [vmem:[%s4 + $0x4] sm:$0xf] %v140
  // Predicated region
  $region18: #{model_forward.48} parent=0 // pred_check
    _
  $region19: #{model_forward.48} parent=0 // pred_check_branch
    %146 = sbr.rel (0) target = $region21
  $region20: #{model_forward.48} parent=0 // pred_region
    _
  $region21: #{model_forward.48} parent=0 // pred_fallthru
    _
  // Predicated region
  $region22: #{model_forward.48} parent=0 // pred_check
    _
  $region23: #{model_forward.48} parent=0 // pred_check_branch
    %148 = sbr.rel (0) target = $region25
  $region24: #{model_forward.48} parent=0 // pred_region
    _
  $region25: #{model_forward.48} parent=0 // pred_fallthru
    _

// kernel: model_forward.49
$region0: #{model_forward.49}
  #allocation0 [shape = 'u32[]', space=smem, size = 0x4, offset = 0x4, fixed_abs, tag = 'smem constant byte address 0x4 - core index']
  #allocation1 [shape = 'u32[144,128]{1,0:T(1,128)}', space=vmem, size = 0x12000, scoped, tag = 'internal scratch']
  %s0 = inlined_call_operand.vmem [shape: bf16[3,8,16], index: 0, kind: input, shape index: {}]
  %s1 = inlined_call_operand.vmem [shape: bf16[16,40], index: 1, kind: input, shape index: {}]
  %s2 = inlined_call_operand.vmem [shape: f32[16,2], index: 2, kind: input, shape index: {}]
  %s3 = inlined_call_operand.vmem [shape: f32[8,16], index: 3, kind: input, shape index: {}]
  %s4 = inlined_call_operand.vmem [shape: f32[8,1], index: 4, kind: input, shape index: {}]
  %s5 = inlined_call_operand.vmem [shape: f32[8,8], index: 5, kind: input, shape index: {}]
  %s6 = inlined_call_operand.vmem [shape: f32[8,1], index: 6, kind: input, shape index: {}]
  %s7 = inlined_call_operand.vmem [shape: bf16[8,32], index: 7, kind: output, shape index: {}]
  %s8 = sld [smem:[#allocation0]]
  $region38: #{model_forward.49} parent=0
    _
  %s10 = ssub.s32 1, %s8
  %s11 = scalar_select 0, %s10, %s8
  // Predicated region
  $region2: #{model_forward.49} parent=0 // pred_check
    _
  $region3: #{model_forward.49} parent=0 // pred_check_branch
    %13 = sbr.rel (0) target = $region5
  $region4: #{model_forward.49} parent=0 // pred_region
    _
  $region5: #{model_forward.49} parent=0 // pred_fallthru
    _
  // Predicated region
  $region6: #{model_forward.49} parent=0 // pred_check
    _
  $region7: #{model_forward.49} parent=0 // pred_check_branch
    %15 = sbr.rel (0) target = $region9
  $region8: #{model_forward.49} parent=0 // pred_region
    _
  $region9: #{model_forward.49} parent=0 // pred_fallthru
    _
  // Predicated region
  $region10: #{model_forward.49} parent=0 // pred_check
    _
  $region11: #{model_forward.49} parent=0 // pred_check_branch
    %17 = sbr.rel (0) target = $region13
  $region12: #{model_forward.49} parent=0 // pred_region
    _
  $region13: #{model_forward.49} parent=0 // pred_fallthru
    _
  // Predicated region
  $region14: #{model_forward.49} parent=0 // pred_check
    _
  $region15: #{model_forward.49} parent=0 // pred_check_branch
    %19 = sbr.rel (0) target = $region17
  $region16: #{model_forward.49} parent=0 // pred_region
    _
  $region17: #{model_forward.49} parent=0 // pred_fallthru
    _
  // Predicated region
  $region18: #{model_forward.49} parent=0 // pred_check
    _
  $region19: #{model_forward.49} parent=0 // pred_check_branch
    %21 = sbr.rel (0) target = $region21
  $region20: #{model_forward.49} parent=0 // pred_region
    _
  $region21: #{model_forward.49} parent=0 // pred_fallthru
    _
  // Predicated region
  $region22: #{model_forward.49} parent=0 // pred_check
    _
  $region23: #{model_forward.49} parent=0 // pred_check_branch
    %23 = sbr.rel (0) target = $region25
  $region24: #{model_forward.49} parent=0 // pred_region
    _
  $region25: #{model_forward.49} parent=0 // pred_fallthru
    _
  // Predicated region
  $region26: #{model_forward.49} parent=0 // pred_check
    _
  $region27: #{model_forward.49} parent=0 // pred_check_branch
    %25 = sbr.rel (0) target = $region29
  $region28: #{model_forward.49} parent=0 // pred_region
    _
  $region29: #{model_forward.49} parent=0 // pred_fallthru
    _
  %v27 = vld [vmem:[%s3] sm:$0xff]
  %v28 = vld [vmem:[%s2] sm:$0xff]
  %v29 = vld [vmem:[%s2 + $0x8] sm:$0xff]
  %v30 = vld [vmem:[%s4] sm:$0xff]
  %32 = vset.pattern.permute.xlu0 0
  %33 = vperm.xlu0 %32, %v30
  %v34 = vpop.permute.xlu0 %33
  %vm36 = vcmask 130048
  %v38 = vsel %vm36, %v27, 0
  %40 = vmatprep.subr.mxu0 0.0
  %41 = vmatpush1.msra.mxu0 %v28
  %42 = vmatprep.subr.mxu0 0.0
  %43 = vmatpush1.msra.mxu0 %v29
  %44 = vmatprep.subr.mxu0 0.0
  %45 = vmatpush1.msra.mxu0 0.0
  %46 = vmatprep.subr.mxu0 0.0
  %47 = vmatpush1.msra.mxu0 0.0
  %48 = vmatprep.subr.mxu0 0.0
  %49 = vmatpush1.msra.mxu0 0.0
  %50 = vmatprep.subr.mxu0 0.0
  %51 = vmatpush1.msra.mxu0 0.0
  %52 = vmatprep.subr.mxu0 0.0
  %53 = vmatpush1.msra.mxu0 0.0
  %54 = vmatprep.subr.mxu0 0.0
  %55 = vmatpush1.msra.mxu0 0.0
  %56 = vmatprep.subr.mxu0 0.0
  %57 = vmatpush1.msra.mxu0 0.0
  %58 = vmatprep.subr.mxu0 0.0
  %59 = vmatpush1.msra.mxu0 0.0
  %60 = vmatprep.subr.mxu0 0.0
  %61 = vmatpush1.msra.mxu0 0.0
  %62 = vmatprep.subr.mxu0 0.0
  %63 = vmatpush1.msra.mxu0 0.0
  %64 = vmatprep.subr.mxu0 0.0
  %65 = vmatpush1.msra.mxu0 0.0
  %66 = vmatprep.subr.mxu0 0.0
  %67 = vmatpush1.msra.mxu0 0.0
  %68 = vmatprep.subr.mxu0 0.0
  %69 = vmatpush1.msra.mxu0 0.0
  %70 = vmatprep.subr.mxu0 0.0
  %71 = vmatpush1.msra.mxu0 0.0
  %72 = vmatprep.subr.mxu0 0.0
  %73 = vmatpush1.msra.mxu0 0.0
  %74 = vmatprep.subr.mxu0 0.0
  %75 = vmatpush1.msra.mxu0 0.0
  %76 = vmatprep.subr.mxu0 0.0
  %77 = vmatpush1.msra.mxu0 0.0
  %78 = vmatprep.subr.mxu0 0.0
  %79 = vmatpush1.msra.mxu0 0.0
  %80 = vmatprep.subr.mxu0 0.0
  %81 = vmatpush1.msra.mxu0 0.0
  %82 = vmatprep.subr.mxu0 0.0
  %83 = vmatpush1.msra.mxu0 0.0
  %84 = vmatprep.subr.mxu0 0.0
  %85 = vmatpush1.msra.mxu0 0.0
  %86 = vmatprep.subr.mxu0 0.0
  %87 = vmatpush1.msra.mxu0 0.0
  %88 = vmatprep.subr.mxu0 0.0
  %89 = vmatpush1.msra.mxu0 0.0
  %90 = vmatprep.subr.mxu0 0.0
  %91 = vmatpush1.msra.mxu0 0.0
  %92 = vmatprep.subr.mxu0 0.0
  %93 = vmatpush1.msra.mxu0 0.0
  %94 = vmatprep.subr.mxu0 0.0
  %95 = vmatpush1.msra.mxu0 0.0
  %96 = vmatprep.subr.mxu0 0.0
  %97 = vmatpush1.msra.mxu0 0.0
  %98 = vmatprep.subr.mxu0 0.0
  %99 = vmatpush1.msra.mxu0 0.0
  %100 = vmatprep.subr.mxu0 0.0
  %101 = vmatpush1.msra.mxu0 0.0
  %102 = vmatprep.subr.mxu0 0.0
  %103 = vmatpush1.msra.mxu0 0.0
  %104 = vmatprep.mubr.f32.mxu0 0.0
  %105 = vmatmul.mubr.f32.gmra.mrb[0].mxu0 %v38
  %v106 = vpop.f32.mrb[0].mxu0
  %v107 = vadd.f32 %v34, %v106
  %v108 = vpop.f32.mrb[0].mxu0
  %109 = vdwg.mxu0
  %v110 = vmax.f32 %v107, 0.0
  %v111 = vld [vmem:[%s5] sm:$0xff]
  %v112 = vld [vmem:[%s6] sm:$0xff]
  %114 = vset.pattern.permute.xlu0 0
  %115 = vperm.xlu0 %114, %v112
  %v116 = vpop.permute.xlu0 %115
  %vm118 = vcmask 64512
  %v120 = vsel %vm118, %v111, 0
  %122 = vmatprep.subr.mxu0 0.0
  %123 = vmatpush1.msra.mxu0 %v110
  %124 = vmatprep.subr.mxu0 0.0
  %125 = vmatpush1.msra.mxu0 0.0
  %126 = vmatprep.subr.mxu0 0.0
  %127 = vmatpush1.msra.mxu0 0.0
  %128 = vmatprep.subr.mxu0 0.0
  %129 = vmatpush1.msra.mxu0 0.0
  %130 = vmatprep.subr.mxu0 0.0
  %131 = vmatpush1.msra.mxu0 0.0
  %132 = vmatprep.subr.mxu0 0.0
  %133 = vmatpush1.msra.mxu0 0.0
  %134 = vmatprep.subr.mxu0 0.0
  %135 = vmatpush1.msra.mxu0 0.0
  %136 = vmatprep.subr.mxu0 0.0
  %137 = vmatpush1.msra.mxu0 0.0
  %138 = vmatprep.subr.mxu0 0.0
  %139 = vmatpush1.msra.mxu0 0.0
  %140 = vmatprep.subr.mxu0 0.0
  %141 = vmatpush1.msra.mxu0 0.0
  %142 = vmatprep.subr.mxu0 0.0
  %143 = vmatpush1.msra.mxu0 0.0
  %144 = vmatprep.subr.mxu0 0.0
  %145 = vmatpush1.msra.mxu0 0.0
  %146 = vmatprep.subr.mxu0 0.0
  %147 = vmatpush1.msra.mxu0 0.0
  %148 = vmatprep.subr.mxu0 0.0
  %149 = vmatpush1.msra.mxu0 0.0
  %150 = vmatprep.subr.mxu0 0.0
  %151 = vmatpush1.msra.mxu0 0.0
  %152 = vmatprep.subr.mxu0 0.0
  %153 = vmatpush1.msra.mxu0 0.0
  %154 = vmatprep.subr.mxu0 0.0
  %155 = vmatpush1.msra.mxu0 0.0
  %156 = vmatprep.subr.mxu0 0.0
  %157 = vmatpush1.msra.mxu0 0.0
  %158 = vmatprep.subr.mxu0 0.0
  %159 = vmatpush1.msra.mxu0 0.0
  %160 = vmatprep.subr.mxu0 0.0
  %161 = vmatpush1.msra.mxu0 0.0
  %162 = vmatprep.subr.mxu0 0.0
  %163 = vmatpush1.msra.mxu0 0.0
  %164 = vmatprep.subr.mxu0 0.0
  %165 = vmatpush1.msra.mxu0 0.0
  %166 = vmatprep.subr.mxu0 0.0
  %167 = vmatpush1.msra.mxu0 0.0
  %168 = vmatprep.subr.mxu0 0.0
  %169 = vmatpush1.msra.mxu0 0.0
  %170 = vmatprep.subr.mxu0 0.0
  %171 = vmatpush1.msra.mxu0 0.0
  %172 = vmatprep.subr.mxu0 0.0
  %173 = vmatpush1.msra.mxu0 0.0
  %174 = vmatprep.subr.mxu0 0.0
  %175 = vmatpush1.msra.mxu0 0.0
  %176 = vmatprep.subr.mxu0 0.0
  %177 = vmatpush1.msra.mxu0 0.0
  %178 = vmatprep.subr.mxu0 0.0
  %179 = vmatpush1.msra.mxu0 0.0
  %180 = vmatprep.subr.mxu0 0.0
  %181 = vmatpush1.msra.mxu0 0.0
  %182 = vmatprep.subr.mxu0 0.0
  %183 = vmatpush1.msra.mxu0 0.0
  %184 = vmatprep.subr.mxu0 0.0
  %185 = vmatpush1.msra.mxu0 0.0
  %186 = vmatprep.mubr.f32.mxu0 0.0
  %187 = vmatmul.mubr.f32.gmra.mrb[0].mxu0 %v120
  %v188 = vpop.f32.mrb[0].mxu0
  %v189 = vadd.f32 %v116, %v188
  %v190 = vpop.f32.mrb[0].mxu0
  %191 = vdwg.mxu0
  %v192 = vxor.u32 %v189, 2147483648
  %v193 = vmul.f32 %v192, 1.442695
  %v194 = vpow.pop %v193
  %v195 = vadd.f32 %v194, 1.0
  %v196 = vrcp.pop %v195
  %v197 = vmul.f32 1.0, %v196
  %v198 = vld [vmem:[%s1] sm:$0xf]
  %v199 = vld [vmem:[%s1 + $0x4] sm:$0xf]
  %v200 = vld [vmem:[%s0] sm:$0xf]
  %s201 = scalar_lea.vmem %s0, 4
  %v202 = vld [vmem:[%s201] sm:$0xf]
  %v205 = vunpack.c.l.b16 %v198
  %v206 = vunpack.c.l.b16 %v199
  %v207 = vpack.c.b16 %v206, %v205
  %208 = vrot.lane.b32.xlu0 %v207, 126
  %v209 = vpop.permute.xlu0 %208
  %v212 = vsel %vm36, %v202, 0
  %214 = vmatprep.subr.bf16.mxu0 0
  %215 = vmatpush1.bf16.msra.mxu0 %v209
  %216 = vmatprep.subr.bf16.mxu0 0
  %217 = vmatpush1.bf16.msra.mxu0 0
  %218 = vmatprep.subr.bf16.mxu0 0
  %219 = vmatpush1.bf16.msra.mxu0 0
  %220 = vmatprep.subr.bf16.mxu0 0
  %221 = vmatpush1.bf16.msra.mxu0 0
  %222 = vmatprep.subr.bf16.mxu0 0
  %223 = vmatpush1.bf16.msra.mxu0 0
  %224 = vmatprep.subr.bf16.mxu0 0
  %225 = vmatpush1.bf16.msra.mxu0 0
  %226 = vmatprep.subr.bf16.mxu0 0
  %227 = vmatpush1.bf16.msra.mxu0 0
  %228 = vmatprep.subr.bf16.mxu0 0
  %229 = vmatpush1.bf16.msra.mxu0 0
  %230 = vmatprep.subr.bf16.mxu0 0
  %231 = vmatpush1.bf16.msra.mxu0 0
  %232 = vmatprep.subr.bf16.mxu0 0
  %233 = vmatpush1.bf16.msra.mxu0 0
  %234 = vmatprep.subr.bf16.mxu0 0
  %235 = vmatpush1.bf16.msra.mxu0 0
  %236 = vmatprep.subr.bf16.mxu0 0
  %237 = vmatpush1.bf16.msra.mxu0 0
  %238 = vmatprep.subr.bf16.mxu0 0
  %239 = vmatpush1.bf16.msra.mxu0 0
  %240 = vmatprep.subr.bf16.mxu0 0
  %241 = vmatpush1.bf16.msra.mxu0 0
  %242 = vmatprep.subr.bf16.mxu0 0
  %243 = vmatpush1.bf16.msra.mxu0 0
  %244 = vmatprep.subr.bf16.mxu0 0
  %245 = vmatpush1.bf16.msra.mxu0 0
  %246 = vmatprep.mubr.bf16.mxu0 0
  %247 = vmatmul.mubr.bf16.gmra.mrb[0].mxu0 %v212
  %v248 = vpop.f32.mrb[0].mxu0
  %v249 = vadd.f32 0.0, %v248
  %v250 = vpop.f32.mrb[0].mxu0
  %v251 = vpop.f32.mrb[0].mxu0
  %v252 = vpop.f32.mrb[0].mxu0
  %253 = vdwg.mxu0
  %v256 = vsel %vm36, %v200, 0
  %258 = vmatprep.subr.bf16.mxu0 0
  %259 = vmatpush1.bf16.msra.mxu0 %v207
  %260 = vmatprep.subr.bf16.mxu0 0
  %261 = vmatpush1.bf16.msra.mxu0 0
  %262 = vmatprep.subr.bf16.mxu0 0
  %263 = vmatpush1.bf16.msra.mxu0 0
  %264 = vmatprep.subr.bf16.mxu0 0
  %265 = vmatpush1.bf16.msra.mxu0 0
  %266 = vmatprep.subr.bf16.mxu0 0
  %267 = vmatpush1.bf16.msra.mxu0 0
  %268 = vmatprep.subr.bf16.mxu0 0
  %269 = vmatpush1.bf16.msra.mxu0 0
  %270 = vmatprep.subr.bf16.mxu0 0
  %271 = vmatpush1.bf16.msra.mxu0 0
  %272 = vmatprep.subr.bf16.mxu0 0
  %273 = vmatpush1.bf16.msra.mxu0 0
  %274 = vmatprep.subr.bf16.mxu0 0
  %275 = vmatpush1.bf16.msra.mxu0 0
  %276 = vmatprep.subr.bf16.mxu0 0
  %277 = vmatpush1.bf16.msra.mxu0 0
  %278 = vmatprep.subr.bf16.mxu0 0
  %279 = vmatpush1.bf16.msra.mxu0 0
  %280 = vmatprep.subr.bf16.mxu0 0
  %281 = vmatpush1.bf16.msra.mxu0 0
  %282 = vmatprep.subr.bf16.mxu0 0
  %283 = vmatpush1.bf16.msra.mxu0 0
  %284 = vmatprep.subr.bf16.mxu0 0
  %285 = vmatpush1.bf16.msra.mxu0 0
  %286 = vmatprep.subr.bf16.mxu0 0
  %287 = vmatpush1.bf16.msra.mxu0 0
  %288 = vmatprep.subr.bf16.mxu0 0
  %289 = vmatpush1.bf16.msra.mxu0 0
  %290 = vmatprep.mubr.bf16.mxu0 0
  %291 = vmatmul.mubr.bf16.gmra.mrb[0].mxu0 %v256
  %v292 = vpop.f32.mrb[0].mxu0
  %v293 = vadd.f32 %v249, %v292
  %v294 = vpop.f32.mrb[0].mxu0
  %v295 = vpop.f32.mrb[0].mxu0
  %v296 = vpop.f32.mrb[0].mxu0
  %297 = vdwg.mxu0
  %s298 = scalar_lea.vmem %s0, 8
  %v299 = vld [vmem:[%s298] sm:$0xf]
  %300 = vrot.lane.b32.xlu0 %v207, 124
  %v301 = vpop.permute.xlu0 %300
  %v304 = vsel %vm36, %v299, 0
  %306 = vmatprep.subr.bf16.mxu0 0
  %307 = vmatpush1.bf16.msra.mxu0 %v301
  %308 = vmatprep.subr.bf16.mxu0 0
  %309 = vmatpush1.bf16.msra.mxu0 0
  %310 = vmatprep.subr.bf16.mxu0 0
  %311 = vmatpush1.bf16.msra.mxu0 0
  %312 = vmatprep.subr.bf16.mxu0 0
  %313 = vmatpush1.bf16.msra.mxu0 0
  %314 = vmatprep.subr.bf16.mxu0 0
  %315 = vmatpush1.bf16.msra.mxu0 0
  %316 = vmatprep.subr.bf16.mxu0 0
  %317 = vmatpush1.bf16.msra.mxu0 0
  %318 = vmatprep.subr.bf16.mxu0 0
  %319 = vmatpush1.bf16.msra.mxu0 0
  %320 = vmatprep.subr.bf16.mxu0 0
  %321 = vmatpush1.bf16.msra.mxu0 0
  %322 = vmatprep.subr.bf16.mxu0 0
  %323 = vmatpush1.bf16.msra.mxu0 0
  %324 = vmatprep.subr.bf16.mxu0 0
  %325 = vmatpush1.bf16.msra.mxu0 0
  %326 = vmatprep.subr.bf16.mxu0 0
  %327 = vmatpush1.bf16.msra.mxu0 0
  %328 = vmatprep.subr.bf16.mxu0 0
  %329 = vmatpush1.bf16.msra.mxu0 0
  %330 = vmatprep.subr.bf16.mxu0 0
  %331 = vmatpush1.bf16.msra.mxu0 0
  %332 = vmatprep.subr.bf16.mxu0 0
  %333 = vmatpush1.bf16.msra.mxu0 0
  %334 = vmatprep.subr.bf16.mxu0 0
  %335 = vmatpush1.bf16.msra.mxu0 0
  %336 = vmatprep.subr.bf16.mxu0 0
  %337 = vmatpush1.bf16.msra.mxu0 0
  %338 = vmatprep.mubr.bf16.mxu0 0
  %339 = vmatmul.mubr.bf16.gmra.mrb[0].mxu0 %v304
  %v340 = vpop.f32.mrb[0].mxu0
  %v341 = vadd.f32 0.0, %v340
  %v342 = vpop.f32.mrb[0].mxu0
  %v343 = vpop.f32.mrb[0].mxu0
  %v344 = vpop.f32.mrb[0].mxu0
  %345 = vdwg.mxu0
  %v346 = vadd.f32 %v293, %v341
  %348 = vset.pattern.permute.xlu0 0
  %349 = vperm.xlu0 %348, %v197
  %v350 = vpop.permute.xlu0 %349
  %v352 = vmul.f32 %v346, %v350
  %v353 = vpack.c.bf16 %v352, %v352
  %vm354 = vcmask 125952
  %355 = vst.msk [vmem:[%s7] sm:$0xf] %vm354, %v353
  %v356 = vld [vmem:[%s0] sm:$0xf]
  %v357 = vld [vmem:[%s201] sm:$0xf]
  %358 = vrot.lane.b32.xlu0 %v207, 106
  %v359 = vpop.permute.xlu0 %358
  %v362 = vsel %vm36, %v357, 0
  %364 = vmatprep.subr.bf16.mxu0 0
  %365 = vmatpush1.bf16.msra.mxu0 %v359
  %366 = vmatprep.subr.bf16.mxu0 0
  %367 = vmatpush1.bf16.msra.mxu0 0
  %368 = vmatprep.subr.bf16.mxu0 0
  %369 = vmatpush1.bf16.msra.mxu0 0
  %370 = vmatprep.subr.bf16.mxu0 0
  %371 = vmatpush1.bf16.msra.mxu0 0
  %372 = vmatprep.subr.bf16.mxu0 0
  %373 = vmatpush1.bf16.msra.mxu0 0
  %374 = vmatprep.subr.bf16.mxu0 0
  %375 = vmatpush1.bf16.msra.mxu0 0
  %376 = vmatprep.subr.bf16.mxu0 0
  %377 = vmatpush1.bf16.msra.mxu0 0
  %378 = vmatprep.subr.bf16.mxu0 0
  %379 = vmatpush1.bf16.msra.mxu0 0
  %380 = vmatprep.subr.bf16.mxu0 0
  %381 = vmatpush1.bf16.msra.mxu0 0
  %382 = vmatprep.subr.bf16.mxu0 0
  %383 = vmatpush1.bf16.msra.mxu0 0
  %384 = vmatprep.subr.bf16.mxu0 0
  %385 = vmatpush1.bf16.msra.mxu0 0
  %386 = vmatprep.subr.bf16.mxu0 0
  %387 = vmatpush1.bf16.msra.mxu0 0
  %388 = vmatprep.subr.bf16.mxu0 0
  %389 = vmatpush1.bf16.msra.mxu0 0
  %390 = vmatprep.subr.bf16.mxu0 0
  %391 = vmatpush1.bf16.msra.mxu0 0
  %392 = vmatprep.subr.bf16.mxu0 0
  %393 = vmatpush1.bf16.msra.mxu0 0
  %394 = vmatprep.subr.bf16.mxu0 0
  %395 = vmatpush1.bf16.msra.mxu0 0
  %396 = vmatprep.mubr.bf16.mxu0 0
  %397 = vmatmul.mubr.bf16.gmra.mrb[0].mxu0 %v362
  %v398 = vpop.f32.mrb[0].mxu0
  %v399 = vadd.f32 0.0, %v398
  %v400 = vpop.f32.mrb[0].mxu0
  %v401 = vpop.f32.mrb[0].mxu0
  %v402 = vpop.f32.mrb[0].mxu0
  %403 = vdwg.mxu0
  %404 = vrot.lane.b32.xlu0 %v207, 108
  %v405 = vpop.permute.xlu0 %404
  %v408 = vsel %vm36, %v356, 0
  %410 = vmatprep.subr.bf16.mxu0 0
  %411 = vmatpush1.bf16.msra.mxu0 %v405
  %412 = vmatprep.subr.bf16.mxu0 0
  %413 = vmatpush1.bf16.msra.mxu0 0
  %414 = vmatprep.subr.bf16.mxu0 0
  %415 = vmatpush1.bf16.msra.mxu0 0
  %416 = vmatprep.subr.bf16.mxu0 0
  %417 = vmatpush1.bf16.msra.mxu0 0
  %418 = vmatprep.subr.bf16.mxu0 0
  %419 = vmatpush1.bf16.msra.mxu0 0
  %420 = vmatprep.subr.bf16.mxu0 0
  %421 = vmatpush1.bf16.msra.mxu0 0
  %422 = vmatprep.subr.bf16.mxu0 0
  %423 = vmatpush1.bf16.msra.mxu0 0
  %424 = vmatprep.subr.bf16.mxu0 0
  %425 = vmatpush1.bf16.msra.mxu0 0
  %426 = vmatprep.subr.bf16.mxu0 0
  %427 = vmatpush1.bf16.msra.mxu0 0
  %428 = vmatprep.subr.bf16.mxu0 0
  %429 = vmatpush1.bf16.msra.mxu0 0
  %430 = vmatprep.subr.bf16.mxu0 0
  %431 = vmatpush1.bf16.msra.mxu0 0
  %432 = vmatprep.subr.bf16.mxu0 0
  %433 = vmatpush1.bf16.msra.mxu0 0
  %434 = vmatprep.subr.bf16.mxu0 0
  %435 = vmatpush1.bf16.msra.mxu0 0
  %436 = vmatprep.subr.bf16.mxu0 0
  %437 = vmatpush1.bf16.msra.mxu0 0
  %438 = vmatprep.subr.bf16.mxu0 0
  %439 = vmatpush1.bf16.msra.mxu0 0
  %440 = vmatprep.subr.bf16.mxu0 0
  %441 = vmatpush1.bf16.msra.mxu0 0
  %442 = vmatprep.mubr.bf16.mxu0 0
  %443 = vmatmul.mubr.bf16.gmra.mrb[0].mxu0 %v408
  %v444 = vpop.f32.mrb[0].mxu0
  %v445 = vadd.f32 %v399, %v444
  %v446 = vpop.f32.mrb[0].mxu0
  %v447 = vpop.f32.mrb[0].mxu0
  %v448 = vpop.f32.mrb[0].mxu0
  %449 = vdwg.mxu0
  %v450 = vld [vmem:[%s298] sm:$0xf]
  %451 = vrot.lane.b32.xlu0 %v207, 104
  %v452 = vpop.permute.xlu0 %451
  %v455 = vsel %vm36, %v450, 0
  %457 = vmatprep.subr.bf16.mxu0 0
  %458 = vmatpush1.bf16.msra.mxu0 %v452
  %459 = vmatprep.subr.bf16.mxu0 0
  %460 = vmatpush1.bf16.msra.mxu0 0
  %461 = vmatprep.subr.bf16.mxu0 0
  %462 = vmatpush1.bf16.msra.mxu0 0
  %463 = vmatprep.subr.bf16.mxu0 0
  %464 = vmatpush1.bf16.msra.mxu0 0
  %465 = vmatprep.subr.bf16.mxu0 0
  %466 = vmatpush1.bf16.msra.mxu0 0
  %467 = vmatprep.subr.bf16.mxu0 0
  %468 = vmatpush1.bf16.msra.mxu0 0
  %469 = vmatprep.subr.bf16.mxu0 0
  %470 = vmatpush1.bf16.msra.mxu0 0
  %471 = vmatprep.subr.bf16.mxu0 0
  %472 = vmatpush1.bf16.msra.mxu0 0
  %473 = vmatprep.subr.bf16.mxu0 0
  %474 = vmatpush1.bf16.msra.mxu0 0
  %475 = vmatprep.subr.bf16.mxu0 0
  %476 = vmatpush1.bf16.msra.mxu0 0
  %477 = vmatprep.subr.bf16.mxu0 0
  %478 = vmatpush1.bf16.msra.mxu0 0
  %479 = vmatprep.subr.bf16.mxu0 0
  %480 = vmatpush1.bf16.msra.mxu0 0
  %481 = vmatprep.subr.bf16.mxu0 0
  %482 = vmatpush1.bf16.msra.mxu0 0
  %483 = vmatprep.subr.bf16.mxu0 0
  %484 = vmatpush1.bf16.msra.mxu0 0
  %485 = vmatprep.subr.bf16.mxu0 0
  %486 = vmatpush1.bf16.msra.mxu0 0
  %487 = vmatprep.subr.bf16.mxu0 0
  %488 = vmatpush1.bf16.msra.mxu0 0
  %489 = vmatprep.mubr.bf16.mxu0 0
  %490 = vmatmul.mubr.bf16.gmra.mrb[0].mxu0 %v455
  %v491 = vpop.f32.mrb[0].mxu0
  %v492 = vadd.f32 0.0, %v491
  %v493 = vpop.f32.mrb[0].mxu0
  %v494 = vpop.f32.mrb[0].mxu0
  %v495 = vpop.f32.mrb[0].mxu0
  %496 = vdwg.mxu0
  %v497 = vadd.f32 %v445, %v492
  %498 = vset.pattern.permute.xlu0 1
  %499 = vperm.xlu0 %498, %v197
  %v500 = vpop.permute.xlu0 %499
  %v502 = vmul.f32 %v497, %v500
  %v503 = vpack.c.bf16 %v502, %v502
  %v505 = vunpack.c.l.b16 %v503
  %v506 = vpack.c.b16 %v505, %v505
  %507 = vrot.lane.b32.xlu0 %v506, 16
  %v508 = vpop.permute.xlu0 %507
  %vm510 = vcmask 257152
  %511 = vst.msk [vmem:[%s7] sm:$0xf] %vm510, %v508
  // Predicated region
  $region30: #{model_forward.49} parent=0 // pred_check
    _
  $region31: #{model_forward.49} parent=0 // pred_check_branch
    %513 = sbr.rel (0) target = $region33
  $region32: #{model_forward.49} parent=0 // pred_region
    _
  $region33: #{model_forward.49} parent=0 // pred_fallthru
    _
  // Predicated region
  $region34: #{model_forward.49} parent=0 // pred_check
    _
  $region35: #{model_forward.49} parent=0 // pred_check_branch
    %515 = sbr.rel (0) target = $region37
  $region36: #{model_forward.49} parent=0 // pred_region
    _
  $region37: #{model_forward.49} parent=0 // pred_fallthru
    _

// kernel: model_forward.52
$region0: #{model_forward.52}
  #allocation0 [shape = 'u32[]', space=smem, size = 0x4, offset = 0x4, fixed_abs, tag = 'smem constant byte address 0x4 - core index']
  #allocation1 [shape = 'u32[144,128]{1,0:T(1,128)}', space=vmem, size = 0x12000, scoped, tag = 'internal scratch']
  %s0 = inlined_call_operand.vmem [shape: bf16[20,40], index: 0, kind: input, shape index: {}]
  %s1 = inlined_call_operand.vmem [shape: bf16[40,128], index: 1, kind: input, shape index: {}]
  %s2 = inlined_call_operand.vmem [shape: f32[40,2], index: 2, kind: input, shape index: {}]
  %s3 = inlined_call_operand.vmem [shape: bf16[20,128], index: 3, kind: output, shape index: {}]
  %s4 = sld [smem:[#allocation0]]
  $region22: #{model_forward.52} parent=0
    _
  %s6 = ssub.s32 1, %s4
  %s7 = scalar_select 0, %s6, %s4
  // Predicated region
  $region2: #{model_forward.52} parent=0 // pred_check
    _
  $region3: #{model_forward.52} parent=0 // pred_check_branch
    %9 = sbr.rel (0) target = $region5
  $region4: #{model_forward.52} parent=0 // pred_region
    _
  $region5: #{model_forward.52} parent=0 // pred_fallthru
    _
  // Predicated region
  $region6: #{model_forward.52} parent=0 // pred_check
    _
  $region7: #{model_forward.52} parent=0 // pred_check_branch
    %11 = sbr.rel (0) target = $region9
  $region8: #{model_forward.52} parent=0 // pred_region
    _
  $region9: #{model_forward.52} parent=0 // pred_fallthru
    _
  // Predicated region
  $region10: #{model_forward.52} parent=0 // pred_check
    _
  $region11: #{model_forward.52} parent=0 // pred_check_branch
    %13 = sbr.rel (0) target = $region13
  $region12: #{model_forward.52} parent=0 // pred_region
    _
  $region13: #{model_forward.52} parent=0 // pred_fallthru
    _
  %v15 = vld [vmem:[%s1] sm:$0xf]
  %v16 = vld [vmem:[%s1 + $0x4] sm:$0xf]
  %v17 = vld [vmem:[%s1 + $0x8] sm:$0xf]
  %v18 = vld [vmem:[%s1 + $0xc] sm:$0xf]
  %v19 = vld [vmem:[%s1 + $0x10] sm:$0xf]
  %v20 = vunpack.c.l.bf16 %v15
  %v21 = vunpack.c.l.bf16 %v16
  %v22 = vunpack.c.l.bf16 %v17
  %v23 = vunpack.c.l.bf16 %v18
  %v24 = vunpack.c.l.bf16 %v19
  %v25 = vld [vmem:[%s2] sm:$0xff]
  %v26 = vld [vmem:[%s2 + $0x8] sm:$0xff]
  %v27 = vld [vmem:[%s2 + $0x10] sm:$0xff]
  %v28 = vld [vmem:[%s2 + $0x18] sm:$0xff]
  %v29 = vld [vmem:[%s2 + $0x20] sm:$0xff]
  %31 = vset.pattern.permute.xlu0 0
  %32 = vperm.xlu0 %31, %v25
  %v33 = vpop.permute.xlu0 %32
  %36 = vset.pattern.permute.xlu0 0
  %37 = vperm.xlu0 %36, %v26
  %v38 = vpop.permute.xlu0 %37
  %41 = vset.pattern.permute.xlu0 0
  %42 = vperm.xlu0 %41, %v27
  %v43 = vpop.permute.xlu0 %42
  %46 = vset.pattern.permute.xlu0 0
  %47 = vperm.xlu0 %46, %v28
  %v48 = vpop.permute.xlu0 %47
  %51 = vset.pattern.permute.xlu0 0
  %52 = vperm.xlu0 %51, %v29
  %v53 = vpop.permute.xlu0 %52
  %v55 = vmul.f32 %v20, %v33
  %v56 = vmul.f32 %v21, %v38
  %v57 = vmul.f32 %v22, %v43
  %v58 = vmul.f32 %v23, %v48
  %v59 = vmul.f32 %v24, %v53
  %60 = vset.pattern.permute.xlu0 1
  %61 = vperm.xlu0 %60, %v25
  %v62 = vpop.permute.xlu0 %61
  %64 = vset.pattern.permute.xlu0 1
  %65 = vperm.xlu0 %64, %v26
  %v66 = vpop.permute.xlu0 %65
  %68 = vset.pattern.permute.xlu0 1
  %69 = vperm.xlu0 %68, %v27
  %v70 = vpop.permute.xlu0 %69
  %72 = vset.pattern.permute.xlu0 1
  %73 = vperm.xlu0 %72, %v28
  %v74 = vpop.permute.xlu0 %73
  %76 = vset.pattern.permute.xlu0 1
  %77 = vperm.xlu0 %76, %v29
  %v78 = vpop.permute.xlu0 %77
  %v80 = vadd.f32 %v55, %v62
  %v81 = vadd.f32 %v56, %v66
  %v82 = vadd.f32 %v57, %v70
  %v83 = vadd.f32 %v58, %v74
  %v84 = vadd.f32 %v59, %v78
  %v85 = vmax.f32 %v80, 0.0
  %v86 = vmax.f32 %v81, 0.0
  %v87 = vmax.f32 %v82, 0.0
  %v88 = vmax.f32 %v83, 0.0
  %v89 = vmax.f32 %v84, 0.0
  %v90 = vpack.c.bf16 %v86, %v85
  %v91 = vpack.c.bf16 %v88, %v87
  %v92 = vpack.c.bf16 %v89, %v89
  %v93 = vld [vmem:[%s0] sm:$0xf]
  %v94 = vld [vmem:[%s0 + $0x4] sm:$0xf]
  %v95 = vld [vmem:[%s0 + $0x8] sm:$0x3]
  %v99 = vunpack.c.l.b16 %v93
  %v100 = vunpack.c.l.b16 %v94
  %v101 = vunpack.c.l.b16 %v95
  %v102 = vpack.c.b16 %v100, %v99
  %v103 = vpack.c.b16 %v101, %v101
  %vm104 = vcmask 326656
  %v106 = vsel %vm104, %v102, 0
  %v109 = vsel %vm104, %v103, 0
  %vm111 = vcmask 1043456
  %v113 = vsel %vm111, %v92, 0
  %115 = vmatprep.subr.bf16.mxu0 0
  %116 = vmatpush1.bf16.msra.mxu0 %v90
  %117 = vmatprep.subr.bf16.mxu0 0
  %118 = vmatpush1.bf16.msra.mxu0 %v91
  %119 = vmatprep.subr.bf16.mxu0 0
  %120 = vmatpush1.bf16.msra.mxu0 %v113
  %121 = vmatprep.subr.bf16.mxu0 0
  %122 = vmatpush1.bf16.msra.mxu0 0
  %123 = vmatprep.subr.bf16.mxu0 0
  %124 = vmatpush1.bf16.msra.mxu0 0
  %125 = vmatprep.subr.bf16.mxu0 0
  %126 = vmatpush1.bf16.msra.mxu0 0
  %127 = vmatprep.subr.bf16.mxu0 0
  %128 = vmatpush1.bf16.msra.mxu0 0
  %129 = vmatprep.subr.bf16.mxu0 0
  %130 = vmatpush1.bf16.msra.mxu0 0
  %131 = vmatprep.subr.bf16.mxu0 0
  %132 = vmatpush1.bf16.msra.mxu0 0
  %133 = vmatprep.subr.bf16.mxu0 0
  %134 = vmatpush1.bf16.msra.mxu0 0
  %135 = vmatprep.subr.bf16.mxu0 0
  %136 = vmatpush1.bf16.msra.mxu0 0
  %137 = vmatprep.subr.bf16.mxu0 0
  %138 = vmatpush1.bf16.msra.mxu0 0
  %139 = vmatprep.subr.bf16.mxu0 0
  %140 = vmatpush1.bf16.msra.mxu0 0
  %141 = vmatprep.subr.bf16.mxu0 0
  %142 = vmatpush1.bf16.msra.mxu0 0
  %143 = vmatprep.subr.bf16.mxu0 0
  %144 = vmatpush1.bf16.msra.mxu0 0
  %145 = vmatprep.subr.bf16.mxu0 0
  %146 = vmatpush1.bf16.msra.mxu0 0
  %147 = vmatprep.mubr.bf16.mxu0 0
  %148 = vmatmul.mubr.bf16.gmra.mrb[0].mxu0 %v106
  %v149 = vpop.f32.mrb[0].mxu0
  %v150 = vadd.f32 0.0, %v149
  %v151 = vpop.f32.mrb[0].mxu0
  %v152 = vpop.f32.mrb[0].mxu0
  %v153 = vadd.f32 0.0, %v152
  %v154 = vpop.f32.mrb[0].mxu0
  %155 = vmatprep.mubr.bf16.mxu0 0
  %156 = vmatmul.mubr.bf16.gmra.mrb[0].mxu0 %v109
  %v157 = vpop.f32.mrb[0].mxu0
  %v158 = vadd.f32 0.0, %v157
  %v159 = vpop.f32.mrb[0].mxu0
  %v160 = vpop.f32.mrb[0].mxu0
  %v161 = vpop.f32.mrb[0].mxu0
  %162 = vdwg.mxu0
  %v163 = vpack.c.bf16 %v153, %v150
  %v164 = vpack.c.bf16 %v158, %v158
  %v167 = vunpack.c.l.b16 %v163
  %v168 = vunpack.c.h.b16 %v163
  %v169 = vunpack.c.l.b16 %v164
  %v170 = vpack.c.b16 %v167, %v167
  %v171 = vpack.c.b16 %v168, %v168
  %v172 = vpack.c.b16 %v169, %v169
  %176 = vst [vmem:[%s3] sm:$0xf] %v170
  %177 = vst [vmem:[%s3 + $0x4] sm:$0xf] %v171
  %178 = vst [vmem:[%s3 + $0x8] sm:$0x3] %v172
  // Predicated region
  $region14: #{model_forward.52} parent=0 // pred_check
    _
  $region15: #{model_forward.52} parent=0 // pred_check_branch
    %180 = sbr.rel (0) target = $region17
  $region16: #{model_forward.52} parent=0 // pred_region
    _
  $region17: #{model_forward.52} parent=0 // pred_fallthru
    _
  // Predicated region
  $region18: #{model_forward.52} parent=0 // pred_check
    _
  $region19: #{model_forward.52} parent=0 // pred_check_branch
    %182 = sbr.rel (0) target = $region21
  $region20: #{model_forward.52} parent=0 // pred_region
    _
  $region21: #{model_forward.52} parent=0 // pred_fallthru
    _

// kernel: model_forward.53
$region0: #{model_forward.53}
  #allocation0 [shape = 'u32[]', space=smem, size = 0x4, offset = 0x4, fixed_abs, tag = 'smem constant byte address 0x4 - core index']
  #allocation1 [shape = 'u32[144,128]{1,0:T(1,128)}', space=vmem, size = 0x12000, scoped, tag = 'internal scratch']
  %s0 = inlined_call_operand.vmem [shape: bf16[16,20], index: 0, kind: input, shape index: {}]
  %s1 = inlined_call_operand.vmem [shape: bf16[20,128], index: 1, kind: input, shape index: {}]
  %s2 = inlined_call_operand.vmem [shape: f32[20,2], index: 2, kind: input, shape index: {}]
  %s3 = inlined_call_operand.vmem [shape: f32[16,1], index: 3, kind: input, shape index: {}]
  %s4 = inlined_call_operand.vmem [shape: bf16[16,128], index: 4, kind: output, shape index: {}]
  %s5 = sld [smem:[#allocation0]]
  $region26: #{model_forward.53} parent=0
    _
  %s7 = ssub.s32 1, %s5
  %s8 = scalar_select 0, %s7, %s5
  // Predicated region
  $region2: #{model_forward.53} parent=0 // pred_check
    _
  $region3: #{model_forward.53} parent=0 // pred_check_branch
    %10 = sbr.rel (0) target = $region5
  $region4: #{model_forward.53} parent=0 // pred_region
    _
  $region5: #{model_forward.53} parent=0 // pred_fallthru
    _
  // Predicated region
  $region6: #{model_forward.53} parent=0 // pred_check
    _
  $region7: #{model_forward.53} parent=0 // pred_check_branch
    %12 = sbr.rel (0) target = $region9
  $region8: #{model_forward.53} parent=0 // pred_region
    _
  $region9: #{model_forward.53} parent=0 // pred_fallthru
    _
  // Predicated region
  $region10: #{model_forward.53} parent=0 // pred_check
    _
  $region11: #{model_forward.53} parent=0 // pred_check_branch
    %14 = sbr.rel (0) target = $region13
  $region12: #{model_forward.53} parent=0 // pred_region
    _
  $region13: #{model_forward.53} parent=0 // pred_fallthru
    _
  // Predicated region
  $region14: #{model_forward.53} parent=0 // pred_check
    _
  $region15: #{model_forward.53} parent=0 // pred_check_branch
    %16 = sbr.rel (0) target = $region17
  $region16: #{model_forward.53} parent=0 // pred_region
    _
  $region17: #{model_forward.53} parent=0 // pred_fallthru
    _
  %v18 = vld [vmem:[%s1] sm:$0xf]
  %v19 = vld [vmem:[%s1 + $0x4] sm:$0xf]
  %v20 = vld [vmem:[%s1 + $0x8] sm:$0x3]
  %v21 = vunpack.c.l.bf16 %v18
  %v22 = vunpack.c.l.bf16 %v19
  %v23 = vunpack.c.l.bf16 %v20
  %v24 = vld [vmem:[%s2] sm:$0xff]
  %v25 = vld [vmem:[%s2 + $0x8] sm:$0xff]
  %v26 = vld [vmem:[%s2 + $0x10] sm:$0xf]
  %28 = vset.pattern.permute.xlu0 0
  %29 = vperm.xlu0 %28, %v24
  %v30 = vpop.permute.xlu0 %29
  %33 = vset.pattern.permute.xlu0 0
  %34 = vperm.xlu0 %33, %v25
  %v35 = vpop.permute.xlu0 %34
  %38 = vset.pattern.permute.xlu0 0
  %39 = vperm.xlu0 %38, %v26
  %v40 = vpop.permute.xlu0 %39
  %v42 = vmul.f32 %v21, %v30
  %v43 = vmul.f32 %v22, %v35
  %v44 = vmul.f32 %v23, %v40
  %45 = vset.pattern.permute.xlu0 1
  %46 = vperm.xlu0 %45, %v24
  %v47 = vpop.permute.xlu0 %46
  %49 = vset.pattern.permute.xlu0 1
  %50 = vperm.xlu0 %49, %v25
  %v51 = vpop.permute.xlu0 %50
  %53 = vset.pattern.permute.xlu0 1
  %54 = vperm.xlu0 %53, %v26
  %v55 = vpop.permute.xlu0 %54
  %v57 = vadd.f32 %v42, %v47
  %v58 = vadd.f32 %v43, %v51
  %v59 = vadd.f32 %v44, %v55
  %v60 = vmax.f32 %v57, 0.0
  %v61 = vmax.f32 %v58, 0.0
  %v62 = vmax.f32 %v59, 0.0
  %v63 = vpack.c.bf16 %v61, %v60
  %v64 = vpack.c.bf16 %v62, %v62
  %v65 = vld [vmem:[%s0] sm:$0xf]
  %v66 = vld [vmem:[%s0 + $0x4] sm:$0xf]
  %v67 = vld [vmem:[%s3] sm:$0xff]
  %v68 = vld [vmem:[%s3 + $0x8] sm:$0xff]
  %70 = vset.pattern.permute.xlu0 0
  %71 = vperm.xlu0 %70, %v67
  %v72 = vpop.permute.xlu0 %71
  %75 = vset.pattern.permute.xlu0 0
  %76 = vperm.xlu0 %75, %v68
  %v77 = vpop.permute.xlu0 %76
  %v81 = vunpack.c.l.b16 %v65
  %v82 = vunpack.c.l.b16 %v66
  %v83 = vpack.c.b16 %v82, %v81
  %vm84 = vcmask 162816
  %v86 = vsel %vm84, %v83, 0
  %vm88 = vcmask 1041408
  %v90 = vsel %vm88, %v64, 0
  %92 = vmatprep.subr.bf16.mxu0 0
  %93 = vmatpush1.bf16.msra.mxu0 %v63
  %94 = vmatprep.subr.bf16.mxu0 0
  %95 = vmatpush1.bf16.msra.mxu0 %v90
  %96 = vmatprep.subr.bf16.mxu0 0
  %97 = vmatpush1.bf16.msra.mxu0 0
  %98 = vmatprep.subr.bf16.mxu0 0
  %99 = vmatpush1.bf16.msra.mxu0 0
  %100 = vmatprep.subr.bf16.mxu0 0
  %101 = vmatpush1.bf16.msra.mxu0 0
  %102 = vmatprep.subr.bf16.mxu0 0
  %103 = vmatpush1.bf16.msra.mxu0 0
  %104 = vmatprep.subr.bf16.mxu0 0
  %105 = vmatpush1.bf16.msra.mxu0 0
  %106 = vmatprep.subr.bf16.mxu0 0
  %107 = vmatpush1.bf16.msra.mxu0 0
  %108 = vmatprep.subr.bf16.mxu0 0
  %109 = vmatpush1.bf16.msra.mxu0 0
  %110 = vmatprep.subr.bf16.mxu0 0
  %111 = vmatpush1.bf16.msra.mxu0 0
  %112 = vmatprep.subr.bf16.mxu0 0
  %113 = vmatpush1.bf16.msra.mxu0 0
  %114 = vmatprep.subr.bf16.mxu0 0
  %115 = vmatpush1.bf16.msra.mxu0 0
  %116 = vmatprep.subr.bf16.mxu0 0
  %117 = vmatpush1.bf16.msra.mxu0 0
  %118 = vmatprep.subr.bf16.mxu0 0
  %119 = vmatpush1.bf16.msra.mxu0 0
  %120 = vmatprep.subr.bf16.mxu0 0
  %121 = vmatpush1.bf16.msra.mxu0 0
  %122 = vmatprep.subr.bf16.mxu0 0
  %123 = vmatpush1.bf16.msra.mxu0 0
  %124 = vmatprep.mubr.bf16.mxu0 0
  %125 = vmatmul.mubr.bf16.gmra.mrb[0].mxu0 %v86
  %v126 = vpop.f32.mrb[0].mxu0
  %v127 = vadd.f32 %v72, %v126
  %v128 = vpop.f32.mrb[0].mxu0
  %v129 = vpop.f32.mrb[0].mxu0
  %v130 = vadd.f32 %v77, %v129
  %v131 = vpop.f32.mrb[0].mxu0
  %132 = vdwg.mxu0
  %v133 = vmax.f32 %v127, 0.0
  %v134 = vmax.f32 %v130, 0.0
  %v135 = vpack.c.bf16 %v134, %v133
  %v137 = vunpack.c.l.b16 %v135
  %v138 = vunpack.c.h.b16 %v135
  %v139 = vpack.c.b16 %v137, %v137
  %v140 = vpack.c.b16 %v138, %v138
  %143 = vst [vmem:[%s4] sm:$0xf] %v139
  %144 = vst [vmem:[%s4 + $0x4] sm:$0xf] %v140
  // Predicated region
  $region18: #{model_forward.53} parent=0 // pred_check
    _
  $region19: #{model_forward.53} parent=0 // pred_check_branch
    %146 = sbr.rel (0) target = $region21
  $region20: #{model_forward.53} parent=0 // pred_region
    _
  $region21: #{model_forward.53} parent=0 // pred_fallthru
    _
  // Predicated region
  $region22: #{model_forward.53} parent=0 // pred_check
    _
  $region23: #{model_forward.53} parent=0 // pred_check_branch
    %148 = sbr.rel (0) target = $region25
  $region24: #{model_forward.53} parent=0 // pred_region
    _
  $region25: #{model_forward.53} parent=0 // pred_fallthru
    _

// kernel: model_forward.55
$region0: #{model_forward.55}
  #allocation0 [shape = 'u32[]', space=smem, size = 0x4, offset = 0x4, fixed_abs, tag = 'smem constant byte address 0x4 - core index']
  #allocation1 [shape = 'u32[144,128]{1,0:T(1,128)}', space=vmem, size = 0x12000, scoped, tag = 'internal scratch']
  %s0 = inlined_call_operand.vmem [shape: bf16[16,28], index: 0, kind: input, shape index: {}]
  %s1 = inlined_call_operand.vmem [shape: bf16[28,128], index: 1, kind: input, shape index: {}]
  %s2 = inlined_call_operand.vmem [shape: f32[28,2], index: 2, kind: input, shape index: {}]
  %s3 = inlined_call_operand.vmem [shape: f32[16,1], index: 3, kind: input, shape index: {}]
  %s4 = inlined_call_operand.vmem [shape: bf16[16,128], index: 4, kind: output, shape index: {}]
  %s5 = sld [smem:[#allocation0]]
  $region26: #{model_forward.55} parent=0
    _
  %s7 = ssub.s32 1, %s5
  %s8 = scalar_select 0, %s7, %s5
  // Predicated region
  $region2: #{model_forward.55} parent=0 // pred_check
    _
  $region3: #{model_forward.55} parent=0 // pred_check_branch
    %10 = sbr.rel (0) target = $region5
  $region4: #{model_forward.55} parent=0 // pred_region
    _
  $region5: #{model_forward.55} parent=0 // pred_fallthru
    _
  // Predicated region
  $region6: #{model_forward.55} parent=0 // pred_check
    _
  $region7: #{model_forward.55} parent=0 // pred_check_branch
    %12 = sbr.rel (0) target = $region9
  $region8: #{model_forward.55} parent=0 // pred_region
    _
  $region9: #{model_forward.55} parent=0 // pred_fallthru
    _
  // Predicated region
  $region10: #{model_forward.55} parent=0 // pred_check
    _
  $region11: #{model_forward.55} parent=0 // pred_check_branch
    %14 = sbr.rel (0) target = $region13
  $region12: #{model_forward.55} parent=0 // pred_region
    _
  $region13: #{model_forward.55} parent=0 // pred_fallthru
    _
  // Predicated region
  $region14: #{model_forward.55} parent=0 // pred_check
    _
  $region15: #{model_forward.55} parent=0 // pred_check_branch
    %16 = sbr.rel (0) target = $region17
  $region16: #{model_forward.55} parent=0 // pred_region
    _
  $region17: #{model_forward.55} parent=0 // pred_fallthru
    _
  %v18 = vld [vmem:[%s1] sm:$0xf]
  %v19 = vld [vmem:[%s1 + $0x4] sm:$0xf]
  %v20 = vld [vmem:[%s1 + $0x8] sm:$0xf]
  %v21 = vld [vmem:[%s1 + $0xc] sm:$0x3]
  %v22 = vunpack.c.l.bf16 %v18
  %v23 = vunpack.c.l.bf16 %v19
  %v24 = vunpack.c.l.bf16 %v20
  %v25 = vunpack.c.l.bf16 %v21
  %v26 = vld [vmem:[%s2] sm:$0xff]
  %v27 = vld [vmem:[%s2 + $0x8] sm:$0xff]
  %v28 = vld [vmem:[%s2 + $0x10] sm:$0xff]
  %v29 = vld [vmem:[%s2 + $0x18] sm:$0xf]
  %31 = vset.pattern.permute.xlu0 0
  %32 = vperm.xlu0 %31, %v26
  %v33 = vpop.permute.xlu0 %32
  %36 = vset.pattern.permute.xlu0 0
  %37 = vperm.xlu0 %36, %v27
  %v38 = vpop.permute.xlu0 %37
  %41 = vset.pattern.permute.xlu0 0
  %42 = vperm.xlu0 %41, %v28
  %v43 = vpop.permute.xlu0 %42
  %46 = vset.pattern.permute.xlu0 0
  %47 = vperm.xlu0 %46, %v29
  %v48 = vpop.permute.xlu0 %47
  %v50 = vmul.f32 %v22, %v33
  %v51 = vmul.f32 %v23, %v38
  %v52 = vmul.f32 %v24, %v43
  %v53 = vmul.f32 %v25, %v48
  %54 = vset.pattern.permute.xlu0 1
  %55 = vperm.xlu0 %54, %v26
  %v56 = vpop.permute.xlu0 %55
  %58 = vset.pattern.permute.xlu0 1
  %59 = vperm.xlu0 %58, %v27
  %v60 = vpop.permute.xlu0 %59
  %62 = vset.pattern.permute.xlu0 1
  %63 = vperm.xlu0 %62, %v28
  %v64 = vpop.permute.xlu0 %63
  %66 = vset.pattern.permute.xlu0 1
  %67 = vperm.xlu0 %66, %v29
  %v68 = vpop.permute.xlu0 %67
  %v70 = vadd.f32 %v50, %v56
  %v71 = vadd.f32 %v51, %v60
  %v72 = vadd.f32 %v52, %v64
  %v73 = vadd.f32 %v53, %v68
  %v74 = vmax.f32 %v70, 0.0
  %v75 = vmax.f32 %v71, 0.0
  %v76 = vmax.f32 %v72, 0.0
  %v77 = vmax.f32 %v73, 0.0
  %v78 = vpack.c.bf16 %v75, %v74
  %v79 = vpack.c.bf16 %v77, %v76
  %v80 = vld [vmem:[%s0] sm:$0xf]
  %v81 = vld [vmem:[%s0 + $0x4] sm:$0xf]
  %v82 = vld [vmem:[%s3] sm:$0xff]
  %v83 = vld [vmem:[%s3 + $0x8] sm:$0xff]
  %85 = vset.pattern.permute.xlu0 0
  %86 = vperm.xlu0 %85, %v82
  %v87 = vpop.permute.xlu0 %86
  %90 = vset.pattern.permute.xlu0 0
  %91 = vperm.xlu0 %90, %v83
  %v92 = vpop.permute.xlu0 %91
  %v96 = vunpack.c.l.b16 %v80
  %v97 = vunpack.c.l.b16 %v81
  %v98 = vpack.c.b16 %v97, %v96
  %vm99 = vcmask 228352
  %v101 = vsel %vm99, %v98, 0
  %vm103 = vcmask 1045504
  %v105 = vsel %vm103, %v79, 0
  %107 = vmatprep.subr.bf16.mxu0 0
  %108 = vmatpush1.bf16.msra.mxu0 %v78
  %109 = vmatprep.subr.bf16.mxu0 0
  %110 = vmatpush1.bf16.msra.mxu0 %v105
  %111 = vmatprep.subr.bf16.mxu0 0
  %112 = vmatpush1.bf16.msra.mxu0 0
  %113 = vmatprep.subr.bf16.mxu0 0
  %114 = vmatpush1.bf16.msra.mxu0 0
  %115 = vmatprep.subr.bf16.mxu0 0
  %116 = vmatpush1.bf16.msra.mxu0 0
  %117 = vmatprep.subr.bf16.mxu0 0
  %118 = vmatpush1.bf16.msra.mxu0 0
  %119 = vmatprep.subr.bf16.mxu0 0
  %120 = vmatpush1.bf16.msra.mxu0 0
  %121 = vmatprep.subr.bf16.mxu0 0
  %122 = vmatpush1.bf16.msra.mxu0 0
  %123 = vmatprep.subr.bf16.mxu0 0
  %124 = vmatpush1.bf16.msra.mxu0 0
  %125 = vmatprep.subr.bf16.mxu0 0
  %126 = vmatpush1.bf16.msra.mxu0 0
  %127 = vmatprep.subr.bf16.mxu0 0
  %128 = vmatpush1.bf16.msra.mxu0 0
  %129 = vmatprep.subr.bf16.mxu0 0
  %130 = vmatpush1.bf16.msra.mxu0 0
  %131 = vmatprep.subr.bf16.mxu0 0
  %132 = vmatpush1.bf16.msra.mxu0 0
  %133 = vmatprep.subr.bf16.mxu0 0
  %134 = vmatpush1.bf16.msra.mxu0 0
  %135 = vmatprep.subr.bf16.mxu0 0
  %136 = vmatpush1.bf16.msra.mxu0 0
  %137 = vmatprep.subr.bf16.mxu0 0
  %138 = vmatpush1.bf16.msra.mxu0 0
  %139 = vmatprep.mubr.bf16.mxu0 0
  %140 = vmatmul.mubr.bf16.gmra.mrb[0].mxu0 %v101
  %v141 = vpop.f32.mrb[0].mxu0
  %v142 = vadd.f32 %v87, %v141
  %v143 = vpop.f32.mrb[0].mxu0
  %v144 = vpop.f32.mrb[0].mxu0
  %v145 = vadd.f32 %v92, %v144
  %v146 = vpop.f32.mrb[0].mxu0
  %147 = vdwg.mxu0
  %v148 = vmax.f32 %v142, 0.0
  %v149 = vmax.f32 %v145, 0.0
  %v150 = vpack.c.bf16 %v149, %v148
  %v152 = vunpack.c.l.b16 %v150
  %v153 = vunpack.c.h.b16 %v150
  %v154 = vpack.c.b16 %v152, %v152
  %v155 = vpack.c.b16 %v153, %v153
  %158 = vst [vmem:[%s4] sm:$0xf] %v154
  %159 = vst [vmem:[%s4 + $0x4] sm:$0xf] %v155
  // Predicated region
  $region18: #{model_forward.55} parent=0 // pred_check
    _
  $region19: #{model_forward.55} parent=0 // pred_check_branch
    %161 = sbr.rel (0) target = $region21
  $region20: #{model_forward.55} parent=0 // pred_region
    _
  $region21: #{model_forward.55} parent=0 // pred_fallthru
    _
  // Predicated region
  $region22: #{model_forward.55} parent=0 // pred_check
    _
  $region23: #{model_forward.55} parent=0 // pred_check_branch
    %163 = sbr.rel (0) target = $region25
  $region24: #{model_forward.55} parent=0 // pred_region
    _
  $region25: #{model_forward.55} parent=0 // pred_fallthru
    _

// kernel: model_forward.57
$region0: #{model_forward.57}
  #allocation0 [shape = 'u32[]', space=smem, size = 0x4, offset = 0x4, fixed_abs, tag = 'smem constant byte address 0x4 - core index']
  #allocation1 [shape = 'u32[144,128]{1,0:T(1,128)}', space=vmem, size = 0x12000, scoped, tag = 'internal scratch']
  %s0 = inlined_call_operand.vmem [shape: bf16[18,36], index: 0, kind: input, shape index: {}]
  %s1 = inlined_call_operand.vmem [shape: bf16[36,128], index: 1, kind: input, shape index: {}]
  %s2 = inlined_call_operand.vmem [shape: f32[36,2], index: 2, kind: input, shape index: {}]
  %s3 = inlined_call_operand.vmem [shape: bf16[18,128], index: 3, kind: output, shape index: {}]
  %s4 = sld [smem:[#allocation0]]
  $region22: #{model_forward.57} parent=0
    _
  %s6 = ssub.s32 1, %s4
  %s7 = scalar_select 0, %s6, %s4
  // Predicated region
  $region2: #{model_forward.57} parent=0 // pred_check
    _
  $region3: #{model_forward.57} parent=0 // pred_check_branch
    %9 = sbr.rel (0) target = $region5
  $region4: #{model_forward.57} parent=0 // pred_region
    _
  $region5: #{model_forward.57} parent=0 // pred_fallthru
    _
  // Predicated region
  $region6: #{model_forward.57} parent=0 // pred_check
    _
  $region7: #{model_forward.57} parent=0 // pred_check_branch
    %11 = sbr.rel (0) target = $region9
  $region8: #{model_forward.57} parent=0 // pred_region
    _
  $region9: #{model_forward.57} parent=0 // pred_fallthru
    _
  // Predicated region
  $region10: #{model_forward.57} parent=0 // pred_check
    _
  $region11: #{model_forward.57} parent=0 // pred_check_branch
    %13 = sbr.rel (0) target = $region13
  $region12: #{model_forward.57} parent=0 // pred_region
    _
  $region13: #{model_forward.57} parent=0 // pred_fallthru
    _
  %v15 = vld [vmem:[%s1] sm:$0xf]
  %v16 = vld [vmem:[%s1 + $0x4] sm:$0xf]
  %v17 = vld [vmem:[%s1 + $0x8] sm:$0xf]
  %v18 = vld [vmem:[%s1 + $0xc] sm:$0xf]
  %v19 = vld [vmem:[%s1 + $0x10] sm:$0x3]
  %v20 = vunpack.c.l.bf16 %v15
  %v21 = vunpack.c.l.bf16 %v16
  %v22 = vunpack.c.l.bf16 %v17
  %v23 = vunpack.c.l.bf16 %v18
  %v24 = vunpack.c.l.bf16 %v19
  %v25 = vld [vmem:[%s2] sm:$0xff]
  %v26 = vld [vmem:[%s2 + $0x8] sm:$0xff]
  %v27 = vld [vmem:[%s2 + $0x10] sm:$0xff]
  %v28 = vld [vmem:[%s2 + $0x18] sm:$0xff]
  %v29 = vld [vmem:[%s2 + $0x20] sm:$0xf]
  %31 = vset.pattern.permute.xlu0 0
  %32 = vperm.xlu0 %31, %v25
  %v33 = vpop.permute.xlu0 %32
  %36 = vset.pattern.permute.xlu0 0
  %37 = vperm.xlu0 %36, %v26
  %v38 = vpop.permute.xlu0 %37
  %41 = vset.pattern.permute.xlu0 0
  %42 = vperm.xlu0 %41, %v27
  %v43 = vpop.permute.xlu0 %42
  %46 = vset.pattern.permute.xlu0 0
  %47 = vperm.xlu0 %46, %v28
  %v48 = vpop.permute.xlu0 %47
  %51 = vset.pattern.permute.xlu0 0
  %52 = vperm.xlu0 %51, %v29
  %v53 = vpop.permute.xlu0 %52
  %v55 = vmul.f32 %v20, %v33
  %v56 = vmul.f32 %v21, %v38
  %v57 = vmul.f32 %v22, %v43
  %v58 = vmul.f32 %v23, %v48
  %v59 = vmul.f32 %v24, %v53
  %60 = vset.pattern.permute.xlu0 1
  %61 = vperm.xlu0 %60, %v25
  %v62 = vpop.permute.xlu0 %61
  %64 = vset.pattern.permute.xlu0 1
  %65 = vperm.xlu0 %64, %v26
  %v66 = vpop.permute.xlu0 %65
  %68 = vset.pattern.permute.xlu0 1
  %69 = vperm.xlu0 %68, %v27
  %v70 = vpop.permute.xlu0 %69
  %72 = vset.pattern.permute.xlu0 1
  %73 = vperm.xlu0 %72, %v28
  %v74 = vpop.permute.xlu0 %73
  %76 = vset.pattern.permute.xlu0 1
  %77 = vperm.xlu0 %76, %v29
  %v78 = vpop.permute.xlu0 %77
  %v80 = vadd.f32 %v55, %v62
  %v81 = vadd.f32 %v56, %v66
  %v82 = vadd.f32 %v57, %v70
  %v83 = vadd.f32 %v58, %v74
  %v84 = vadd.f32 %v59, %v78
  %v85 = vmax.f32 %v80, 0.0
  %v86 = vmax.f32 %v81, 0.0
  %v87 = vmax.f32 %v82, 0.0
  %v88 = vmax.f32 %v83, 0.0
  %v89 = vmax.f32 %v84, 0.0
  %v90 = vpack.c.bf16 %v86, %v85
  %v91 = vpack.c.bf16 %v88, %v87
  %v92 = vpack.c.bf16 %v89, %v89
  %v93 = vld [vmem:[%s0] sm:$0xf]
  %v94 = vld [vmem:[%s0 + $0x4] sm:$0xf]
  %v95 = vld [vmem:[%s0 + $0x8] sm:$0x1]
  %v99 = vunpack.c.l.b16 %v93
  %v100 = vunpack.c.l.b16 %v94
  %v101 = vunpack.c.l.b16 %v95
  %v102 = vpack.c.b16 %v100, %v99
  %v103 = vpack.c.b16 %v101, %v101
  %vm104 = vcmask 293888
  %v106 = vsel %vm104, %v102, 0
  %v109 = vsel %vm104, %v103, 0
  %vm111 = vcmask 1041408
  %v113 = vsel %vm111, %v92, 0
  %115 = vmatprep.subr.bf16.mxu0 0
  %116 = vmatpush1.bf16.msra.mxu0 %v90
  %117 = vmatprep.subr.bf16.mxu0 0
  %118 = vmatpush1.bf16.msra.mxu0 %v91
  %119 = vmatprep.subr.bf16.mxu0 0
  %120 = vmatpush1.bf16.msra.mxu0 %v113
  %121 = vmatprep.subr.bf16.mxu0 0
  %122 = vmatpush1.bf16.msra.mxu0 0
  %123 = vmatprep.subr.bf16.mxu0 0
  %124 = vmatpush1.bf16.msra.mxu0 0
  %125 = vmatprep.subr.bf16.mxu0 0
  %126 = vmatpush1.bf16.msra.mxu0 0
  %127 = vmatprep.subr.bf16.mxu0 0
  %128 = vmatpush1.bf16.msra.mxu0 0
  %129 = vmatprep.subr.bf16.mxu0 0
  %130 = vmatpush1.bf16.msra.mxu0 0
  %131 = vmatprep.subr.bf16.mxu0 0
  %132 = vmatpush1.bf16.msra.mxu0 0
  %133 = vmatprep.subr.bf16.mxu0 0
  %134 = vmatpush1.bf16.msra.mxu0 0
  %135 = vmatprep.subr.bf16.mxu0 0
  %136 = vmatpush1.bf16.msra.mxu0 0
  %137 = vmatprep.subr.bf16.mxu0 0
  %138 = vmatpush1.bf16.msra.mxu0 0
  %139 = vmatprep.subr.bf16.mxu0 0
  %140 = vmatpush1.bf16.msra.mxu0 0
  %141 = vmatprep.subr.bf16.mxu0 0
  %142 = vmatpush1.bf16.msra.mxu0 0
  %143 = vmatprep.subr.bf16.mxu0 0
  %144 = vmatpush1.bf16.msra.mxu0 0
  %145 = vmatprep.subr.bf16.mxu0 0
  %146 = vmatpush1.bf16.msra.mxu0 0
  %147 = vmatprep.mubr.bf16.mxu0 0
  %148 = vmatmul.mubr.bf16.gmra.mrb[0].mxu0 %v106
  %v149 = vpop.f32.mrb[0].mxu0
  %v150 = vadd.f32 0.0, %v149
  %v151 = vpop.f32.mrb[0].mxu0
  %v152 = vpop.f32.mrb[0].mxu0
  %v153 = vadd.f32 0.0, %v152
  %v154 = vpop.f32.mrb[0].mxu0
  %155 = vmatprep.mubr.bf16.mxu0 0
  %156 = vmatmul.mubr.bf16.gmra.mrb[0].mxu0 %v109
  %v157 = vpop.f32.mrb[0].mxu0
  %v158 = vadd.f32 0.0, %v157
  %v159 = vpop.f32.mrb[0].mxu0
  %v160 = vpop.f32.mrb[0].mxu0
  %v161 = vpop.f32.mrb[0].mxu0
  %162 = vdwg.mxu0
  %v163 = vpack.c.bf16 %v153, %v150
  %v164 = vpack.c.bf16 %v158, %v158
  %v167 = vunpack.c.l.b16 %v163
  %v168 = vunpack.c.h.b16 %v163
  %v169 = vunpack.c.l.b16 %v164
  %v170 = vpack.c.b16 %v167, %v167
  %v171 = vpack.c.b16 %v168, %v168
  %v172 = vpack.c.b16 %v169, %v169
  %176 = vst [vmem:[%s3] sm:$0xf] %v170
  %177 = vst [vmem:[%s3 + $0x4] sm:$0xf] %v171
  %178 = vst [vmem:[%s3 + $0x8] sm:$0x1] %v172
  // Predicated region
  $region14: #{model_forward.57} parent=0 // pred_check
    _
  $region15: #{model_forward.57} parent=0 // pred_check_branch
    %180 = sbr.rel (0) target = $region17
  $region16: #{model_forward.57} parent=0 // pred_region
    _
  $region17: #{model_forward.57} parent=0 // pred_fallthru
    _
  // Predicated region
  $region18: #{model_forward.57} parent=0 // pred_check
    _
  $region19: #{model_forward.57} parent=0 // pred_check_branch
    %182 = sbr.rel (0) target = $region21
  $region20: #{model_forward.57} parent=0 // pred_region
    _
  $region21: #{model_forward.57} parent=0 // pred_fallthru
    _

// kernel: model_forward.58
$region0: #{model_forward.58}
  #allocation0 [shape = 'u32[]', space=smem, size = 0x4, offset = 0x4, fixed_abs, tag = 'smem constant byte address 0x4 - core index']
  #allocation1 [shape = 'u32[144,128]{1,0:T(1,128)}', space=vmem, size = 0x12000, scoped, tag = 'internal scratch']
  #allocation2 [shape = 'f32[36,1]{1,0:T(8,128)}', space=vmem, size = 0x5000, scoped, tag = 'scratch operand']
  #allocation3 [shape = 'f32[36,1]{1,0:T(8,128)}', space=vmem, size = 0x5000, scoped, tag = 'scratch operand']
  %s0 = inlined_call_operand.vmem [shape: bf16[36,128], index: 0, kind: input, shape index: {}]
  %s1 = inlined_call_operand.vmem [shape: f32[36,1], index: 1, kind: input, shape index: {}]
  %s2 = inlined_call_operand.vmem [shape: f32[36,1], index: 2, kind: input, shape index: {}]
  %s3 = inlined_call_operand.vmem [shape: f32[36,1], index: 3, kind: output, shape index: {0}]
  %s4 = inlined_call_operand.vmem [shape: f32[36,1], index: 4, kind: output, shape index: {1}]
  %5 = xla_tuple %s3, %s4
  %s6 = sld [smem:[#allocation0]]
  $region38: #{model_forward.58} parent=0
    _
  %s8 = ssub.s32 1, %s6
  %s9 = scalar_select 0, %s8, %s6
  // Predicated region
  $region2: #{model_forward.58} parent=0 // pred_check
    _
  $region3: #{model_forward.58} parent=0 // pred_check_branch
    %11 = sbr.rel (0) target = $region5
  $region4: #{model_forward.58} parent=0 // pred_region
    _
  $region5: #{model_forward.58} parent=0 // pred_fallthru
    _
  // Predicated region
  $region6: #{model_forward.58} parent=0 // pred_check
    _
  $region7: #{model_forward.58} parent=0 // pred_check_branch
    %13 = sbr.rel (0) target = $region9
  $region8: #{model_forward.58} parent=0 // pred_region
    _
  $region9: #{model_forward.58} parent=0 // pred_fallthru
    _
  // Predicated region
  $region10: #{model_forward.58} parent=0 // pred_check
    _
  $region11: #{model_forward.58} parent=0 // pred_check_branch
    %15 = sbr.rel (0) target = $region13
  $region12: #{model_forward.58} parent=0 // pred_region
    _
  $region13: #{model_forward.58} parent=0 // pred_fallthru
    _
  %p16 = scmp.eq.s32.totalorder 0, 0
  // Predicated region
  $region14: #{model_forward.58} parent=0 // pred_check
    %p17 = pneg %p16
  $region15: #{model_forward.58} parent=0 // pred_check_branch
    %19 = sbr.rel (%p17) target = $region17
  $region16: #{model_forward.58} parent=0 // pred_region
    %vm20 = vcmask 7168
    %21 = vst.msk [vmem:[#allocation2] sm:$0xff] %vm20, 0.0
    %22 = vst.msk [vmem:[#allocation2 + $0x8] sm:$0xff] %vm20, 0.0
    %23 = vst.msk [vmem:[#allocation2 + $0x10] sm:$0xff] %vm20, 0.0
    %24 = vst.msk [vmem:[#allocation2 + $0x18] sm:$0xff] %vm20, 0.0
    %vm25 = vcmask 3072
    %26 = vst.msk [vmem:[#allocation2 + $0x20] sm:$0xf] %vm25, 0.0
    %27 = vst.msk [vmem:[#allocation3] sm:$0xff] %vm20, 0.0
    %28 = vst.msk [vmem:[#allocation3 + $0x8] sm:$0xff] %vm20, 0.0
    %29 = vst.msk [vmem:[#allocation3 + $0x10] sm:$0xff] %vm20, 0.0
    %30 = vst.msk [vmem:[#allocation3 + $0x18] sm:$0xff] %vm20, 0.0
    %31 = vst.msk [vmem:[#allocation3 + $0x20] sm:$0xf] %vm25, 0.0
  $region17: #{model_forward.58} parent=0 // pred_fallthru
    _
  %v32 = vld [vmem:[%s0] sm:$0xf]
  %v33 = vld [vmem:[%s0 + $0x4] sm:$0xf]
  %v34 = vld [vmem:[%s0 + $0x8] sm:$0xf]
  %v35 = vld [vmem:[%s0 + $0xc] sm:$0xf]
  %v36 = vld [vmem:[%s0 + $0x10] sm:$0x3]
  %v37 = vunpack.c.l.bf16 %v32
  %v38 = vunpack.c.l.bf16 %v33
  %v39 = vunpack.c.l.bf16 %v34
  %v40 = vunpack.c.l.bf16 %v35
  %v41 = vunpack.c.l.bf16 %v36
  %v42 = vld [vmem:[%s1] sm:$0xff]
  %v43 = vld [vmem:[%s1 + $0x8] sm:$0xff]
  %v44 = vld [vmem:[%s1 + $0x10] sm:$0xff]
  %v45 = vld [vmem:[%s1 + $0x18] sm:$0xff]
  %v46 = vld [vmem:[%s1 + $0x20] sm:$0xf]
  %48 = vset.pattern.permute.xlu0 0
  %49 = vperm.xlu0 %48, %v42
  %v50 = vpop.permute.xlu0 %49
  %53 = vset.pattern.permute.xlu0 0
  %54 = vperm.xlu0 %53, %v43
  %v55 = vpop.permute.xlu0 %54
  %58 = vset.pattern.permute.xlu0 0
  %59 = vperm.xlu0 %58, %v44
  %v60 = vpop.permute.xlu0 %59
  %63 = vset.pattern.permute.xlu0 0
  %64 = vperm.xlu0 %63, %v45
  %v65 = vpop.permute.xlu0 %64
  %68 = vset.pattern.permute.xlu0 0
  %69 = vperm.xlu0 %68, %v46
  %v70 = vpop.permute.xlu0 %69
  %v72 = vmul.f32 %v37, %v50
  %v73 = vmul.f32 %v38, %v55
  %v74 = vmul.f32 %v39, %v60
  %v75 = vmul.f32 %v40, %v65
  %v76 = vmul.f32 %v41, %v70
  %v77 = vld [vmem:[%s2] sm:$0xff]
  %v78 = vld [vmem:[%s2 + $0x8] sm:$0xff]
  %v79 = vld [vmem:[%s2 + $0x10] sm:$0xff]
  %v80 = vld [vmem:[%s2 + $0x18] sm:$0xff]
  %v81 = vld [vmem:[%s2 + $0x20] sm:$0xf]
  %83 = vset.pattern.permute.xlu0 0
  %84 = vperm.xlu0 %83, %v77
  %v85 = vpop.permute.xlu0 %84
  %88 = vset.pattern.permute.xlu0 0
  %89 = vperm.xlu0 %88, %v78
  %v90 = vpop.permute.xlu0 %89
  %93 = vset.pattern.permute.xlu0 0
  %94 = vperm.xlu0 %93, %v79
  %v95 = vpop.permute.xlu0 %94
  %98 = vset.pattern.permute.xlu0 0
  %99 = vperm.xlu0 %98, %v80
  %v100 = vpop.permute.xlu0 %99
  %103 = vset.pattern.permute.xlu0 0
  %104 = vperm.xlu0 %103, %v81
  %v105 = vpop.permute.xlu0 %104
  %v107 = vadd.f32 %v72, %v85
  %v108 = vadd.f32 %v73, %v90
  %v109 = vadd.f32 %v74, %v95
  %v110 = vadd.f32 %v75, %v100
  %v111 = vadd.f32 %v76, %v105
  %v112 = vmax.f32 %v107, 0.0
  %v113 = vmax.f32 %v108, 0.0
  %v114 = vmax.f32 %v109, 0.0
  %v115 = vmax.f32 %v110, 0.0
  %v116 = vmax.f32 %v111, 0.0
  %s117 = smul.u32 0, 128
  %v118 = vlaneseq
  %v119 = vand.u32 %v118, 127
  %v120 = vstv %s117
  %v121 = vadd.s32 %v120, %v119
  %vm122 = vcmp.lt.s32.totalorder %v121, 16
  %v123 = vsel %vm122, %v112, 0.0
  %v124 = vsel %vm122, %v113, 0.0
  %v125 = vsel %vm122, %v114, 0.0
  %v126 = vsel %vm122, %v115, 0.0
  %v127 = vsel %vm122, %v116, 0.0
  %v128 = vld [vmem:[#allocation2] sm:$0xff]
  %v129 = vld [vmem:[#allocation2 + $0x8] sm:$0xff]
  %v130 = vld [vmem:[#allocation2 + $0x10] sm:$0xff]
  %v131 = vld [vmem:[#allocation2 + $0x18] sm:$0xff]
  %v132 = vld [vmem:[#allocation2 + $0x20] sm:$0xf]
  %133 = vadd.xlane.f32.xlu0 %v123
  %v134 = vpop.xlane.xlu0 %133
  %135 = vadd.xlane.f32.xlu0 %v124
  %v136 = vpop.xlane.xlu0 %135
  %137 = vadd.xlane.f32.xlu0 %v125
  %v138 = vpop.xlane.xlu0 %137
  %139 = vadd.xlane.f32.xlu0 %v126
  %v140 = vpop.xlane.xlu0 %139
  %vm141 = vcmask 1043456
  %v142 = vsel %vm141, %v127, 0.0
  %143 = vadd.xlane.f32.xlu0 %v142
  %v144 = vpop.xlane.xlu0 %143
  %v145 = vadd.f32 %v128, %v134
  %v146 = vadd.f32 %v129, %v136
  %v147 = vadd.f32 %v130, %v138
  %v148 = vadd.f32 %v131, %v140
  %v149 = vadd.f32 %v132, %v144
  %vm150 = vcmask 7168
  %151 = vst.msk [vmem:[#allocation2] sm:$0xff] %vm150, %v145
  %152 = vst.msk [vmem:[#allocation2 + $0x8] sm:$0xff] %vm150, %v146
  %153 = vst.msk [vmem:[#allocation2 + $0x10] sm:$0xff] %vm150, %v147
  %154 = vst.msk [vmem:[#allocation2 + $0x18] sm:$0xff] %vm150, %v148
  %vm155 = vcmask 3072
  %156 = vst.msk [vmem:[#allocation2 + $0x20] sm:$0xf] %vm155, %v149
  %v157 = vld [vmem:[#allocation3] sm:$0xff]
  %v158 = vld [vmem:[#allocation3 + $0x8] sm:$0xff]
  %v159 = vld [vmem:[#allocation3 + $0x10] sm:$0xff]
  %v160 = vld [vmem:[#allocation3 + $0x18] sm:$0xff]
  %v161 = vld [vmem:[#allocation3 + $0x20] sm:$0xf]
  %v162 = vmul.f32 %v123, %v123
  %v163 = vmul.f32 %v124, %v124
  %v164 = vmul.f32 %v125, %v125
  %v165 = vmul.f32 %v126, %v126
  %v166 = vmul.f32 %v127, %v127
  %167 = vadd.xlane.f32.xlu0 %v162
  %v168 = vpop.xlane.xlu0 %167
  %169 = vadd.xlane.f32.xlu0 %v163
  %v170 = vpop.xlane.xlu0 %169
  %171 = vadd.xlane.f32.xlu0 %v164
  %v172 = vpop.xlane.xlu0 %171
  %173 = vadd.xlane.f32.xlu0 %v165
  %v174 = vpop.xlane.xlu0 %173
  %v175 = vsel %vm141, %v166, 0.0
  %176 = vadd.xlane.f32.xlu0 %v175
  %v177 = vpop.xlane.xlu0 %176
  %v178 = vadd.f32 %v157, %v168
  %v179 = vadd.f32 %v158, %v170
  %v180 = vadd.f32 %v159, %v172
  %v181 = vadd.f32 %v160, %v174
  %v182 = vadd.f32 %v161, %v177
  %183 = vst.msk [vmem:[#allocation3] sm:$0xff] %vm150, %v178
  %184 = vst.msk [vmem:[#allocation3 + $0x8] sm:$0xff] %vm150, %v179
  %185 = vst.msk [vmem:[#allocation3 + $0x10] sm:$0xff] %vm150, %v180
  %186 = vst.msk [vmem:[#allocation3 + $0x18] sm:$0xff] %vm150, %v181
  %187 = vst.msk [vmem:[#allocation3 + $0x20] sm:$0xf] %vm155, %v182
  // Predicated region
  $region18: #{model_forward.58} parent=0 // pred_check
    %p188 = pneg %p16
  $region19: #{model_forward.58} parent=0 // pred_check_branch
    %190 = sbr.rel (%p188) target = $region21
  $region20: #{model_forward.58} parent=0 // pred_region
    %v191 = vld [vmem:[#allocation2] sm:$0xff]
    %v192 = vld [vmem:[#allocation2 + $0x8] sm:$0xff]
    %v193 = vld [vmem:[#allocation2 + $0x10] sm:$0xff]
    %v194 = vld [vmem:[#allocation2 + $0x18] sm:$0xff]
    %v195 = vld [vmem:[#allocation2 + $0x20] sm:$0xf]
    %v196 = vmul.f32 %v191, 0.0625
    %v197 = vmul.f32 %v192, 0.0625
    %v198 = vmul.f32 %v193, 0.0625
    %v199 = vmul.f32 %v194, 0.0625
    %v200 = vmul.f32 %v195, 0.0625
    %v201 = vld [vmem:[#allocation3] sm:$0xff]
    %v202 = vld [vmem:[#allocation3 + $0x8] sm:$0xff]
    %v203 = vld [vmem:[#allocation3 + $0x10] sm:$0xff]
    %v204 = vld [vmem:[#allocation3 + $0x18] sm:$0xff]
    %v205 = vld [vmem:[#allocation3 + $0x20] sm:$0xf]
    %v206 = vmul.f32 %v196, %v191
    %v207 = vmul.f32 %v197, %v192
    %v208 = vmul.f32 %v198, %v193
    %v209 = vmul.f32 %v199, %v194
    %v210 = vmul.f32 %v200, %v195
    %v211 = vsub.f32 %v201, %v206
    %v212 = vsub.f32 %v202, %v207
    %v213 = vsub.f32 %v203, %v208
    %v214 = vsub.f32 %v204, %v209
    %v215 = vsub.f32 %v205, %v210
    %v216 = vmax.f32 %v211, 0.0
    %v217 = vmax.f32 %v212, 0.0
    %v218 = vmax.f32 %v213, 0.0
    %v219 = vmax.f32 %v214, 0.0
    %v220 = vmax.f32 %v215, 0.0
    %v221 = vmul.f32 %v216, 0.06666667
    %v222 = vmul.f32 %v217, 0.06666667
    %v223 = vmul.f32 %v218, 0.06666667
    %v224 = vmul.f32 %v219, 0.06666667
    %v225 = vmul.f32 %v220, 0.06666667
    %226 = vst.msk [vmem:[%s3] sm:$0xff] %vm150, %v196
    %227 = vst.msk [vmem:[%s3 + $0x8] sm:$0xff] %vm150, %v197
    %228 = vst.msk [vmem:[%s3 + $0x10] sm:$0xff] %vm150, %v198
    %229 = vst.msk [vmem:[%s3 + $0x18] sm:$0xff] %vm150, %v199
    %230 = vst.msk [vmem:[%s3 + $0x20] sm:$0xf] %vm155, %v200
    %v231 = vrsqrt.pop %v221
    %v232 = vmul.f32 %v221, %v231
    %vm233 = vcmp.eq.f32.partialorder %v221, inf
    %v234 = vsel %vm233, %v221, %v232
    %vm235 = vcmp.eq.f32.partialorder %v221, 0.0
    %v236 = vand.u32 %v221, 2147483648
    %v237 = vsel %vm235, %v236, %v234
    %v238 = vrsqrt.pop %v222
    %v239 = vmul.f32 %v222, %v238
    %vm240 = vcmp.eq.f32.partialorder %v222, inf
    %v241 = vsel %vm240, %v222, %v239
    %vm242 = vcmp.eq.f32.partialorder %v222, 0.0
    %v243 = vand.u32 %v222, 2147483648
    %v244 = vsel %vm242, %v243, %v241
    %v245 = vrsqrt.pop %v223
    %v246 = vmul.f32 %v223, %v245
    %vm247 = vcmp.eq.f32.partialorder %v223, inf
    %v248 = vsel %vm247, %v223, %v246
    %vm249 = vcmp.eq.f32.partialorder %v223, 0.0
    %v250 = vand.u32 %v223, 2147483648
    %v251 = vsel %vm249, %v250, %v248
    %v252 = vrsqrt.pop %v224
    %v253 = vmul.f32 %v224, %v252
    %vm254 = vcmp.eq.f32.partialorder %v224, inf
    %v255 = vsel %vm254, %v224, %v253
    %vm256 = vcmp.eq.f32.partialorder %v224, 0.0
    %v257 = vand.u32 %v224, 2147483648
    %v258 = vsel %vm256, %v257, %v255
    %v259 = vrsqrt.pop %v225
    %v260 = vmul.f32 %v225, %v259
    %vm261 = vcmp.eq.f32.partialorder %v225, inf
    %v262 = vsel %vm261, %v225, %v260
    %vm263 = vcmp.eq.f32.partialorder %v225, 0.0
    %v264 = vand.u32 %v225, 2147483648
    %v265 = vsel %vm263, %v264, %v262
    %266 = vst.msk [vmem:[%s4] sm:$0xff] %vm150, %v237
    %267 = vst.msk [vmem:[%s4 + $0x8] sm:$0xff] %vm150, %v244
    %268 = vst.msk [vmem:[%s4 + $0x10] sm:$0xff] %vm150, %v251
    %269 = vst.msk [vmem:[%s4 + $0x18] sm:$0xff] %vm150, %v258
    %270 = vst.msk [vmem:[%s4 + $0x20] sm:$0xf] %vm155, %v265
  $region21: #{model_forward.58} parent=0 // pred_fallthru
    _
  // Predicated region
  $region22: #{model_forward.58} parent=0 // pred_check
    _
  $region23: #{model_forward.58} parent=0 // pred_check_branch
    %272 = sbr.rel (0) target = $region25
  $region24: #{model_forward.58} parent=0 // pred_region
    _
  $region25: #{model_forward.58} parent=0 // pred_fallthru
    _
  // Predicated region
  $region26: #{model_forward.58} parent=0 // pred_check
    _
  $region27: #{model_forward.58} parent=0 // pred_check_branch
    %274 = sbr.rel (0) target = $region29
  $region28: #{model_forward.58} parent=0 // pred_region
    _
  $region29: #{model_forward.58} parent=0 // pred_fallthru
    _
  // Predicated region
  $region30: #{model_forward.58} parent=0 // pred_check
    _
  $region31: #{model_forward.58} parent=0 // pred_check_branch
    %276 = sbr.rel (0) target = $region33
  $region32: #{model_forward.58} parent=0 // pred_region
    _
  $region33: #{model_forward.58} parent=0 // pred_fallthru
    _
  // Predicated region
  $region34: #{model_forward.58} parent=0 // pred_check
    _
  $region35: #{model_forward.58} parent=0 // pred_check_branch
    %278 = sbr.rel (0) target = $region37
  $region36: #{model_forward.58} parent=0 // pred_region
    _
  $region37: #{model_forward.58} parent=0 // pred_fallthru
    _

// kernel: model_forward.59
$region0: #{model_forward.59}
  #allocation0 [shape = 'u32[]', space=smem, size = 0x4, offset = 0x4, fixed_abs, tag = 'smem constant byte address 0x4 - core index']
  #allocation1 [shape = 'u32[144,128]{1,0:T(1,128)}', space=vmem, size = 0x12000, scoped, tag = 'internal scratch']
  %s0 = inlined_call_operand.vmem [shape: bf16[16,36], index: 0, kind: input, shape index: {}]
  %s1 = inlined_call_operand.vmem [shape: bf16[36,128], index: 1, kind: input, shape index: {}]
  %s2 = inlined_call_operand.vmem [shape: f32[16,1], index: 2, kind: input, shape index: {}]
  %s3 = inlined_call_operand.vmem [shape: f32[16,128], index: 3, kind: output, shape index: {}]
  %s4 = sld [smem:[#allocation0]]
  $region22: #{model_forward.59} parent=0
    _
  %s6 = ssub.s32 1, %s4
  %s7 = scalar_select 0, %s6, %s4
  // Predicated region
  $region2: #{model_forward.59} parent=0 // pred_check
    _
  $region3: #{model_forward.59} parent=0 // pred_check_branch
    %9 = sbr.rel (0) target = $region5
  $region4: #{model_forward.59} parent=0 // pred_region
    _
  $region5: #{model_forward.59} parent=0 // pred_fallthru
    _
  // Predicated region
  $region6: #{model_forward.59} parent=0 // pred_check
    _
  $region7: #{model_forward.59} parent=0 // pred_check_branch
    %11 = sbr.rel (0) target = $region9
  $region8: #{model_forward.59} parent=0 // pred_region
    _
  $region9: #{model_forward.59} parent=0 // pred_fallthru
    _
  // Predicated region
  $region10: #{model_forward.59} parent=0 // pred_check
    _
  $region11: #{model_forward.59} parent=0 // pred_check_branch
    %13 = sbr.rel (0) target = $region13
  $region12: #{model_forward.59} parent=0 // pred_region
    _
  $region13: #{model_forward.59} parent=0 // pred_fallthru
    _
  %v15 = vld [vmem:[%s1] sm:$0xf]
  %v16 = vld [vmem:[%s1 + $0x4] sm:$0xf]
  %v17 = vld [vmem:[%s1 + $0x8] sm:$0xf]
  %v18 = vld [vmem:[%s1 + $0xc] sm:$0xf]
  %v19 = vld [vmem:[%s1 + $0x10] sm:$0x3]
  %v20 = vld [vmem:[%s0] sm:$0xf]
  %v21 = vld [vmem:[%s0 + $0x4] sm:$0xf]
  %v22 = vld [vmem:[%s2] sm:$0xff]
  %v23 = vld [vmem:[%s2 + $0x8] sm:$0xff]
  %25 = vset.pattern.permute.xlu0 0
  %26 = vperm.xlu0 %25, %v22
  %v27 = vpop.permute.xlu0 %26
  %30 = vset.pattern.permute.xlu0 0
  %31 = vperm.xlu0 %30, %v23
  %v32 = vpop.permute.xlu0 %31
  %v36 = vunpack.c.l.b16 %v20
  %v37 = vunpack.c.l.b16 %v21
  %v38 = vpack.c.b16 %v37, %v36
  %v44 = vunpack.c.l.b16 %v15
  %v45 = vunpack.c.l.b16 %v16
  %v46 = vunpack.c.l.b16 %v17
  %v47 = vunpack.c.l.b16 %v18
  %v48 = vunpack.c.l.b16 %v19
  %v49 = vpack.c.b16 %v45, %v44
  %v50 = vpack.c.b16 %v47, %v46
  %v51 = vpack.c.b16 %v48, %v48
  %vm54 = vcmask 293888
  %v56 = vsel %vm54, %v38, 0
  %vm58 = vcmask 1041408
  %v60 = vsel %vm58, %v51, 0
  %62 = vmatprep.subr.bf16.mxu0 0
  %63 = vmatpush1.bf16.msra.mxu0 %v49
  %64 = vmatprep.subr.bf16.mxu0 0
  %65 = vmatpush1.bf16.msra.mxu0 %v50
  %66 = vmatprep.subr.bf16.mxu0 0
  %67 = vmatpush1.bf16.msra.mxu0 %v60
  %68 = vmatprep.subr.bf16.mxu0 0
  %69 = vmatpush1.bf16.msra.mxu0 0
  %70 = vmatprep.subr.bf16.mxu0 0
  %71 = vmatpush1.bf16.msra.mxu0 0
  %72 = vmatprep.subr.bf16.mxu0 0
  %73 = vmatpush1.bf16.msra.mxu0 0
  %74 = vmatprep.subr.bf16.mxu0 0
  %75 = vmatpush1.bf16.msra.mxu0 0
  %76 = vmatprep.subr.bf16.mxu0 0
  %77 = vmatpush1.bf16.msra.mxu0 0
  %78 = vmatprep.subr.bf16.mxu0 0
  %79 = vmatpush1.bf16.msra.mxu0 0
  %80 = vmatprep.subr.bf16.mxu0 0
  %81 = vmatpush1.bf16.msra.mxu0 0
  %82 = vmatprep.subr.bf16.mxu0 0
  %83 = vmatpush1.bf16.msra.mxu0 0
  %84 = vmatprep.subr.bf16.mxu0 0
  %85 = vmatpush1.bf16.msra.mxu0 0
  %86 = vmatprep.subr.bf16.mxu0 0
  %87 = vmatpush1.bf16.msra.mxu0 0
  %88 = vmatprep.subr.bf16.mxu0 0
  %89 = vmatpush1.bf16.msra.mxu0 0
  %90 = vmatprep.subr.bf16.mxu0 0
  %91 = vmatpush1.bf16.msra.mxu0 0
  %92 = vmatprep.subr.bf16.mxu0 0
  %93 = vmatpush1.bf16.msra.mxu0 0
  %94 = vmatprep.mubr.bf16.mxu0 0
  %95 = vmatmul.mubr.bf16.gmra.mrb[0].mxu0 %v56
  %v96 = vpop.f32.mrb[0].mxu0
  %v97 = vadd.f32 %v27, %v96
  %v98 = vpop.f32.mrb[0].mxu0
  %v99 = vpop.f32.mrb[0].mxu0
  %v100 = vadd.f32 %v32, %v99
  %v101 = vpop.f32.mrb[0].mxu0
  %102 = vdwg.mxu0
  %103 = vst [vmem:[%s3] sm:$0xff] %v97
  %104 = vst [vmem:[%s3 + $0x8] sm:$0xff] %v100
  // Predicated region
  $region14: #{model_forward.59} parent=0 // pred_check
    _
  $region15: #{model_forward.59} parent=0 // pred_check_branch
    %106 = sbr.rel (0) target = $region17
  $region16: #{model_forward.59} parent=0 // pred_region
    _
  $region17: #{model_forward.59} parent=0 // pred_fallthru
    _
  // Predicated region
  $region18: #{model_forward.59} parent=0 // pred_check
    _
  $region19: #{model_forward.59} parent=0 // pred_check_branch
    %108 = sbr.rel (0) target = $region21
  $region20: #{model_forward.59} parent=0 // pred_region
    _
  $region21: #{model_forward.59} parent=0 // pred_fallthru
    _

</llo_original>
